<compile_context>
chip_gen: v7x
topology: tpu7x:2x2x1
jax: 0.10.0
libtpu: 0.0.40
codegen_flags: <defaults>
</compile_context>

<pallas_src>
import numpy as np
import jax
import jax.numpy as jnp
from jax import lax
from jax.experimental import pallas as pl
from jax.experimental.pallas import tpu as pltpu

EPS = 1e-5
LANES = 128


# ------------------------------ helpers ------------------------------------ #

def _round_up(n, m):
    return ((n + m - 1) // m) * m


def _pad_to(a, target_shape):
    pads = [(0, t - s) for s, t in zip(a.shape, target_shape)]
    if all(p == (0, 0) for p in pads):
        return a
    return jnp.pad(a, pads)


# ------------------------------ fused kernel ------------------------------- #

def _make_preact_kernel(H, W, Cinp, Coutp, use_projection):
    HW = H * W
    taps = [(dy, dx) for dy in range(3) for dx in range(3)]

    def kernel(*refs):
        if use_projection:
            (x_ref, s0_ref, b0_ref, pw_ref, w1_ref, b1_ref, w2_ref, o_ref,
             hpad_ref, h1pad_ref, cols1_ref, cols2_ref, res_ref) = refs
        else:
            (x_ref, s0_ref, b0_ref, w1_ref, b1_ref, w2_ref, o_ref,
             hpad_ref, h1pad_ref, cols1_ref, cols2_ref, res_ref) = refs

        # ---- pre-activation BN + ReLU (folded scale/bias) ------------------ #
        x2 = x_ref[0].reshape(HW, Cinp).astype(jnp.float32)          # (HW, Cinp)
        h2 = jnp.maximum(x2 * s0_ref[...] + b0_ref[...], 0.0)

        # ---- residual branch (kept in VMEM) -------------------------------- #
        if use_projection:
            res_ref[...] = jnp.dot(h2, pw_ref[...],
                                   preferred_element_type=jnp.float32)
        else:
            res_ref[...] = x2                                        # Cinp == Coutp

        # ---- conv1: 3x3, zero halo built in VMEM (no HBM pad) -------------- #
        hpad_ref[...] = jnp.zeros_like(hpad_ref)
        hpad_ref[1:H + 1, 1:W + 1, :] = h2.reshape(H, W, Cinp)
        for t, (dy, dx) in enumerate(taps):                          # im2col slab
            cols1_ref[:, t * Cinp:(t + 1) * Cinp] = (
                hpad_ref[dy:dy + H, dx:dx + W, :].reshape(HW, Cinp))
        h1 = jnp.dot(cols1_ref[...], w1_ref[...],                    # one long-K matmul
                     preferred_element_type=jnp.float32)             # (HW, Coutp)
        h1 = jnp.maximum(h1 + b1_ref[...], 0.0)                      # bias1 + ReLU (f32)

        # ---- conv2: 3x3 + residual add -------------------------------------- #
        h1pad_ref[...] = jnp.zeros_like(h1pad_ref)
        h1pad_ref[1:H + 1, 1:W + 1, :] = h1.reshape(H, W, Coutp)
        for t, (dy, dx) in enumerate(taps):
            cols2_ref[:, t * Coutp:(t + 1) * Coutp] = (
                h1pad_ref[dy:dy + H, dx:dx + W, :].reshape(HW, Coutp))
        out = jnp.dot(cols2_ref[...], w2_ref[...],
                      preferred_element_type=jnp.float32) + res_ref[...]
        o_ref[0] = out.reshape(H, W, Coutp).astype(o_ref.dtype)

    return kernel


# ------------------------------ wrapper ------------------------------------- #

def preact_unit_forward(x_nchw, p, stride=1):
    # TODO(synk): only the stride=1 unit (1x1 projection path) is implemented.
    assert stride == 1
    x = jnp.transpose(x_nchw, (0, 2, 3, 1)).astype(jnp.float32)     # NCHW -> NHWC
    N, H, W, Cin = x.shape
    Cout = p["conv1_w"].shape[-1]
    use_projection = (Cin != Cout) or (stride != 1)

    # lane-dense channel padding (no-op for real resnet channel counts >= 128)
    Cinp = _round_up(Cin, LANES)
    Coutp = _round_up(Cout, LANES)
    HW = H * W

    # fold BN0 into scale/bias
    scale0 = p["bn_gamma"] / jnp.sqrt(p["bn_var"] + EPS)
    bias0 = p["bn_beta"] - p["bn_mean"] * scale0
    s0 = _pad_to(scale0.astype(jnp.float32), (Cinp,)).reshape(1, Cinp)
    b0 = _pad_to(bias0.astype(jnp.float32), (Cinp,)).reshape(1, Cinp)

    # fold BN1 scale into conv1 weights; only the bias stays in the epilogue
    scale1 = p["bn1_gamma"] / jnp.sqrt(p["bn1_var"] + EPS)
    bias1 = p["bn1_beta"] - p["bn1_mean"] * scale1
    w1 = (p["conv1_w"] * scale1[None, None, None, :]).astype(jnp.float32)
    w1p = _pad_to(w1, (3, 3, Cinp, Coutp)).reshape(9 * Cinp, Coutp)   # im2col form
    b1 = _pad_to(bias1.astype(jnp.float32), (Coutp,)).reshape(1, Coutp)

    w2p = _pad_to(p["conv2_w"].astype(jnp.float32),
                  (3, 3, Coutp, Coutp)).reshape(9 * Coutp, Coutp)

    xp = _pad_to(x, (N, H, W, Cinp))

    inputs = [xp, s0, b0]
    in_specs = [
        pl.BlockSpec((1, H, W, Cinp), lambda n: (n, 0, 0, 0)),
        pl.BlockSpec((1, Cinp), lambda n: (0, 0)),
        pl.BlockSpec((1, Cinp), lambda n: (0, 0)),
    ]
    flops_per_img = 2 * HW * 9 * Cinp * Coutp + 2 * HW * 9 * Coutp * Coutp
    if use_projection:
        pwp = _pad_to(p["proj_w"].astype(jnp.float32), (Cinp, Coutp))
        inputs.append(pwp)
        in_specs.append(pl.BlockSpec((Cinp, Coutp), lambda n: (0, 0)))
        flops_per_img += 2 * HW * Cinp * Coutp
    inputs += [w1p, b1, w2p]
    in_specs += [
        pl.BlockSpec((9 * Cinp, Coutp), lambda n: (0, 0)),
        pl.BlockSpec((1, Coutp), lambda n: (0, 0)),
        pl.BlockSpec((9 * Coutp, Coutp), lambda n: (0, 0)),
    ]

    bytes_accessed = 4 * (N * HW * (Cinp + Coutp)
                          + 9 * Cinp * Coutp + 9 * Coutp * Coutp
                          + (Cinp * Coutp if use_projection else 0))

    kernel = _make_preact_kernel(H, W, Cinp, Coutp, use_projection)

    out = pl.pallas_call(
        kernel,
        out_shape=jax.ShapeDtypeStruct((N, H, W, Coutp), jnp.float32),
        grid_spec=pltpu.PrefetchScalarGridSpec(
            num_scalar_prefetch=0,
            grid=(N,),
            in_specs=in_specs,
            out_specs=pl.BlockSpec((1, H, W, Coutp), lambda n: (n, 0, 0, 0)),
            scratch_shapes=[
                pltpu.VMEM((H + 2, W + 2, Cinp), jnp.float32),    # zero-halo h
                pltpu.VMEM((H + 2, W + 2, Coutp), jnp.float32),   # zero-halo h1
                pltpu.VMEM((HW, 9 * Cinp), jnp.float32),          # im2col (conv1)
                pltpu.VMEM((HW, 9 * Coutp), jnp.float32),         # im2col (conv2)
                pltpu.VMEM((HW, Coutp), jnp.float32),             # residual
            ]),
        compiler_params=pltpu.CompilerParams(
            dimension_semantics=("parallel",)),
        cost_estimate=pl.CostEstimate(flops=int(N * flops_per_img),
                                      transcendentals=0,
                                      bytes_accessed=int(bytes_accessed)),
    )(*inputs)

    out = out[..., :Cout]                                           # drop lane padding
    return jnp.transpose(out, (0, 3, 1, 2))                         # NHWC -> NCHW


# ------------------------------ reference (pure JAX) ------------------------ #

def ref_forward(x_nchw, p):
    dn = ("NHWC", "HWIO", "NHWC")
    x = jnp.transpose(x_nchw, (0, 2, 3, 1))
    Cin = x.shape[-1]
    Cout = p["conv1_w"].shape[-1]
    use_projection = Cin != Cout
    s0 = p["bn_gamma"] / jnp.sqrt(p["bn_var"] + EPS)
    b0 = p["bn_beta"] - p["bn_mean"] * s0
    h = jnp.maximum(x * s0 + b0, 0.0)
    if use_projection:
        proj_w = p["proj_w"].reshape(1, 1, Cin, Cout)
        residual = lax.conv_general_dilated(h, proj_w, (1, 1), "SAME",
                                            dimension_numbers=dn)
    else:
        residual = x
    s1 = p["bn1_gamma"] / jnp.sqrt(p["bn1_var"] + EPS)
    b1 = p["bn1_beta"] - p["bn1_mean"] * s1
    h = lax.conv_general_dilated(h, p["conv1_w"], (1, 1), "SAME",
                                 dimension_numbers=dn)
    h = jnp.maximum(h * s1 + b1, 0.0)
    h = lax.conv_general_dilated(h, p["conv2_w"], (1, 1), "SAME",
                                 dimension_numbers=dn)
    return jnp.transpose(h + residual, (0, 3, 1, 2))


# ------------------------------ params -------------------------------------- #

def init_params(key, in_channels, out_channels):
    ks = jax.random.split(key, 11)
    f32 = jnp.float32
    return {
        # pre-activation BatchNorm (inference-mode affine + running stats)
        "bn_gamma": jax.random.uniform(ks[0], (in_channels,), f32, 0.5, 1.5),
        "bn_beta": 0.1 * jax.random.normal(ks[1], (in_channels,), f32),
        "bn_mean": 0.1 * jax.random.normal(ks[2], (in_channels,), f32),
        "bn_var": jax.random.uniform(ks[3], (in_channels,), f32, 0.5, 1.5),
        # projection 1x1 conv (no bn, no activation), weight as (Cin, Cout)
        "proj_w": 0.1 * jax.random.normal(ks[4], (in_channels, out_channels), f32),
        # conv1 block: 3x3 conv (HWIO) + BN + ReLU
        "conv1_w": 0.1 * jax.random.normal(ks[5], (3, 3, in_channels, out_channels), f32),
        "bn1_gamma": jax.random.uniform(ks[6], (out_channels,), f32, 0.5, 1.5),
        "bn1_beta": 0.1 * jax.random.normal(ks[7], (out_channels,), f32),
        "bn1_mean": 0.1 * jax.random.normal(ks[8], (out_channels,), f32),
        "bn1_var": jax.random.uniform(ks[9], (out_channels,), f32, 0.5, 1.5),
        # conv2 block: 3x3 conv, no bn, no activation
        "conv2_w": 0.1 * jax.random.normal(ks[10], (3, 3, out_channels, out_channels), f32),
    }


if __name__ == "__main__":
    key = jax.random.PRNGKey(0)
    kx, kp, kx2, kp2 = jax.random.split(key, 4)

    # projection path (in_channels != out_channels)
    x = jax.random.normal(kx, (2, 4, 16, 16), jnp.float32)          # NCHW
    params = init_params(kp, 4, 8)
    out = jax.block_until_ready(preact_unit_forward(x, params, stride=1))
    assert out.shape == (2, 8, 16, 16)
    ref = ref_forward(x, params)
    np.testing.assert_allclose(np.asarray(out), np.asarray(ref),
                               atol=1e-4, rtol=1e-4)

    # identity-residual path (in_channels == out_channels)
    x2 = jax.random.normal(kx2, (2, 8, 16, 16), jnp.float32)
    params2 = init_params(kp2, 8, 8)
    out2 = jax.block_until_ready(preact_unit_forward(x2, params2, stride=1))
    ref2 = ref_forward(x2, params2)
    np.testing.assert_allclose(np.asarray(out2), np.asarray(ref2),
                               atol=1e-4, rtol=1e-4)

    print("KERNEL_OK")
</pallas_src>

<mosaic_0001>
module attributes {stable_mosaic.version = 11 : i64} {
  func.func @kernel(%arg0: i32, %arg1: memref<1x16x16x128xf32, #tpu.memory_space<vmem>>, %arg2: memref<1x128xf32, #tpu.memory_space<vmem>>, %arg3: memref<1x128xf32, #tpu.memory_space<vmem>>, %arg4: memref<128x128xf32, #tpu.memory_space<vmem>>, %arg5: memref<1152x128xf32, #tpu.memory_space<vmem>>, %arg6: memref<1x128xf32, #tpu.memory_space<vmem>>, %arg7: memref<1152x128xf32, #tpu.memory_space<vmem>>, %arg8: memref<1x16x16x128xf32, #tpu.memory_space<vmem>>, %arg9: memref<18x18x128xf32, #tpu.memory_space<vmem>>, %arg10: memref<18x18x128xf32, #tpu.memory_space<vmem>>, %arg11: memref<256x1152xf32, #tpu.memory_space<vmem>>, %arg12: memref<256x1152xf32, #tpu.memory_space<vmem>>, %arg13: memref<256x128xf32, #tpu.memory_space<vmem>>) attributes {dimension_semantics = [#tpu.dimension_semantics<parallel>], iteration_bounds = array<i64: 2>, scalar_prefetch = 0 : i64, scratch_operands = 5 : i64, tpu.core_type = #tpu.core_type<tc>, window_params = [{transform_indices = @transform_0, window_bounds = array<i64: 1, 16, 16, 128>}, {pipeline_mode = #tpu.pipeline_mode<synchronous>, transform_indices = @transform_1, window_bounds = array<i64: 1, 128>}, {pipeline_mode = #tpu.pipeline_mode<synchronous>, transform_indices = @transform_2, window_bounds = array<i64: 1, 128>}, {pipeline_mode = #tpu.pipeline_mode<synchronous>, transform_indices = @transform_3, window_bounds = array<i64: 128, 128>}, {pipeline_mode = #tpu.pipeline_mode<synchronous>, transform_indices = @transform_4, window_bounds = array<i64: 1152, 128>}, {pipeline_mode = #tpu.pipeline_mode<synchronous>, transform_indices = @transform_5, window_bounds = array<i64: 1, 128>}, {pipeline_mode = #tpu.pipeline_mode<synchronous>, transform_indices = @transform_6, window_bounds = array<i64: 1152, 128>}, {transform_indices = @transform_7, window_bounds = array<i64: 1, 16, 16, 128>}]} {
    %c0 = arith.constant 0 : index
    %c0_0 = arith.constant 0 : index
    %c0_1 = arith.constant 0 : index
    %c0_2 = arith.constant 0 : index
    %0 = vector.load %arg1[%c0, %c0_0, %c0_1, %c0_2] : memref<1x16x16x128xf32, #tpu.memory_space<vmem>>, vector<1x16x16x128xf32>
    %1 = vector.shape_cast %0 : vector<1x16x16x128xf32> to vector<16x16x128xf32>
    %2 = vector.shape_cast %1 : vector<16x16x128xf32> to vector<256x128xf32>
    %c0_3 = arith.constant 0 : index
    %c0_4 = arith.constant 0 : index
    %3 = vector.load %arg2[%c0_3, %c0_4] : memref<1x128xf32, #tpu.memory_space<vmem>>, vector<1x128xf32>
    %4 = vector.broadcast %3 : vector<1x128xf32> to vector<256x128xf32>
    %5 = arith.mulf %2, %4 : vector<256x128xf32>
    %c0_5 = arith.constant 0 : index
    %c0_6 = arith.constant 0 : index
    %6 = vector.load %arg3[%c0_5, %c0_6] : memref<1x128xf32, #tpu.memory_space<vmem>>, vector<1x128xf32>
    %7 = vector.broadcast %6 : vector<1x128xf32> to vector<256x128xf32>
    %8 = arith.addf %5, %7 : vector<256x128xf32>
    %cst = arith.constant 0.000000e+00 : f32
    %9 = vector.broadcast %cst : f32 to vector<256x128xf32>
    %10 = arith.maximumf %8, %9 : vector<256x128xf32>
    %c0_7 = arith.constant 0 : index
    %c0_8 = arith.constant 0 : index
    %11 = vector.load %arg4[%c0_7, %c0_8] : memref<128x128xf32, #tpu.memory_space<vmem>>, vector<128x128xf32>
    %cst_9 = arith.constant dense<0.000000e+00> : vector<256x128xf32>
    %12 = tpu.matmul %10, %11, %cst_9 {dimension_numbers = #tpu.dot_dimension_numbers<[1], [0], [0], [1], [0, 0, 1, 1], [], []>} : vector<256x128xf32>, vector<128x128xf32>, vector<256x128xf32> -> vector<256x128xf32>
    %c0_10 = arith.constant 0 : index
    %c0_11 = arith.constant 0 : index
    %13 = vector.load %arg13[%c0_10, %c0_11] : memref<256x128xf32, #tpu.memory_space<vmem>>, vector<256x128xf32>
    tpu.vector_store %arg13[%c0_10, %c0_11], %12 {strides = array<i32>} : memref<256x128xf32, #tpu.memory_space<vmem>>, vector<256x128xf32>,
    %cst_12 = arith.constant 0.000000e+00 : f32
    %14 = vector.broadcast %cst_12 : f32 to vector<18x18x128xf32>
    %c0_13 = arith.constant 0 : index
    %c0_14 = arith.constant 0 : index
    %c0_15 = arith.constant 0 : index
    %15 = vector.load %arg9[%c0_13, %c0_14, %c0_15] : memref<18x18x128xf32, #tpu.memory_space<vmem>>, vector<18x18x128xf32>
    tpu.vector_store %arg9[%c0_13, %c0_14, %c0_15], %14 {strides = array<i32>} : memref<18x18x128xf32, #tpu.memory_space<vmem>>, vector<18x18x128xf32>,
    %16 = vector.shape_cast %10 : vector<256x128xf32> to vector<16x16x128xf32>
    %c1 = arith.constant 1 : index
    %c1_16 = arith.constant 1 : index
    %c0_17 = arith.constant 0 : index
    %17 = vector.load %arg9[%c1, %c1_16, %c0_17] : memref<18x18x128xf32, #tpu.memory_space<vmem>>, vector<16x16x128xf32>
    tpu.vector_store %arg9[%c1, %c1_16, %c0_17], %16 {strides = array<i32>} : memref<18x18x128xf32, #tpu.memory_space<vmem>>, vector<16x16x128xf32>,
    %c0_18 = arith.constant 0 : index
    %c0_19 = arith.constant 0 : index
    %c0_20 = arith.constant 0 : index
    %18 = vector.load %arg9[%c0_18, %c0_19, %c0_20] : memref<18x18x128xf32, #tpu.memory_space<vmem>>, vector<16x16x128xf32>
    %19 = vector.shape_cast %18 : vector<16x16x128xf32> to vector<256x128xf32>
    %c0_21 = arith.constant 0 : index
    %c0_22 = arith.constant 0 : index
    %20 = vector.load %arg11[%c0_21, %c0_22] : memref<256x1152xf32, #tpu.memory_space<vmem>>, vector<256x128xf32>
    tpu.vector_store %arg11[%c0_21, %c0_22], %19 {strides = array<i32>} : memref<256x1152xf32, #tpu.memory_space<vmem>>, vector<256x128xf32>,
    %c0_23 = arith.constant 0 : index
    %c1_24 = arith.constant 1 : index
    %c0_25 = arith.constant 0 : index
    %21 = vector.load %arg9[%c0_23, %c1_24, %c0_25] : memref<18x18x128xf32, #tpu.memory_space<vmem>>, vector<16x16x128xf32>
    %22 = vector.shape_cast %21 : vector<16x16x128xf32> to vector<256x128xf32>
    %c0_26 = arith.constant 0 : index
    %c128 = arith.constant 128 : index
    %23 = vector.load %arg11[%c0_26, %c128] : memref<256x1152xf32, #tpu.memory_space<vmem>>, vector<256x128xf32>
    tpu.vector_store %arg11[%c0_26, %c128], %22 {strides = array<i32>} : memref<256x1152xf32, #tpu.memory_space<vmem>>, vector<256x128xf32>,
    %c0_27 = arith.constant 0 : index
    %c2 = arith.constant 2 : index
    %c0_28 = arith.constant 0 : index
    %24 = vector.load %arg9[%c0_27, %c2, %c0_28] : memref<18x18x128xf32, #tpu.memory_space<vmem>>, vector<16x16x128xf32>
    %25 = vector.shape_cast %24 : vector<16x16x128xf32> to vector<256x128xf32>
    %c0_29 = arith.constant 0 : index
    %c256 = arith.constant 256 : index
    %26 = vector.load %arg11[%c0_29, %c256] : memref<256x1152xf32, #tpu.memory_space<vmem>>, vector<256x128xf32>
    tpu.vector_store %arg11[%c0_29, %c256], %25 {strides = array<i32>} : memref<256x1152xf32, #tpu.memory_space<vmem>>, vector<256x128xf32>,
    %c1_30 = arith.constant 1 : index
    %c0_31 = arith.constant 0 : index
    %c0_32 = arith.constant 0 : index
    %27 = vector.load %arg9[%c1_30, %c0_31, %c0_32] : memref<18x18x128xf32, #tpu.memory_space<vmem>>, vector<16x16x128xf32>
    %28 = vector.shape_cast %27 : vector<16x16x128xf32> to vector<256x128xf32>
    %c0_33 = arith.constant 0 : index
    %c384 = arith.constant 384 : index
    %29 = vector.load %arg11[%c0_33, %c384] : memref<256x1152xf32, #tpu.memory_space<vmem>>, vector<256x128xf32>
    tpu.vector_store %arg11[%c0_33, %c384], %28 {strides = array<i32>} : memref<256x1152xf32, #tpu.memory_space<vmem>>, vector<256x128xf32>,
    %c1_34 = arith.constant 1 : index
    %c1_35 = arith.constant 1 : index
    %c0_36 = arith.constant 0 : index
    %30 = vector.load %arg9[%c1_34, %c1_35, %c0_36] : memref<18x18x128xf32, #tpu.memory_space<vmem>>, vector<16x16x128xf32>
    %31 = vector.shape_cast %30 : vector<16x16x128xf32> to vector<256x128xf32>
    %c0_37 = arith.constant 0 : index
    %c512 = arith.constant 512 : index
    %32 = vector.load %arg11[%c0_37, %c512] : memref<256x1152xf32, #tpu.memory_space<vmem>>, vector<256x128xf32>
    tpu.vector_store %arg11[%c0_37, %c512], %31 {strides = array<i32>} : memref<256x1152xf32, #tpu.memory_space<vmem>>, vector<256x128xf32>,
    %c1_38 = arith.constant 1 : index
    %c2_39 = arith.constant 2 : index
    %c0_40 = arith.constant 0 : index
    %33 = vector.load %arg9[%c1_38, %c2_39, %c0_40] : memref<18x18x128xf32, #tpu.memory_space<vmem>>, vector<16x16x128xf32>
    %34 = vector.shape_cast %33 : vector<16x16x128xf32> to vector<256x128xf32>
    %c0_41 = arith.constant 0 : index
    %c640 = arith.constant 640 : index
    %35 = vector.load %arg11[%c0_41, %c640] : memref<256x1152xf32, #tpu.memory_space<vmem>>, vector<256x128xf32>
    tpu.vector_store %arg11[%c0_41, %c640], %34 {strides = array<i32>} : memref<256x1152xf32, #tpu.memory_space<vmem>>, vector<256x128xf32>,
    %c2_42 = arith.constant 2 : index
    %c0_43 = arith.constant 0 : index
    %c0_44 = arith.constant 0 : index
    %36 = vector.load %arg9[%c2_42, %c0_43, %c0_44] : memref<18x18x128xf32, #tpu.memory_space<vmem>>, vector<16x16x128xf32>
    %37 = vector.shape_cast %36 : vector<16x16x128xf32> to vector<256x128xf32>
    %c0_45 = arith.constant 0 : index
    %c768 = arith.constant 768 : index
    %38 = vector.load %arg11[%c0_45, %c768] : memref<256x1152xf32, #tpu.memory_space<vmem>>, vector<256x128xf32>
    tpu.vector_store %arg11[%c0_45, %c768], %37 {strides = array<i32>} : memref<256x1152xf32, #tpu.memory_space<vmem>>, vector<256x128xf32>,
    %c2_46 = arith.constant 2 : index
    %c1_47 = arith.constant 1 : index
    %c0_48 = arith.constant 0 : index
    %39 = vector.load %arg9[%c2_46, %c1_47, %c0_48] : memref<18x18x128xf32, #tpu.memory_space<vmem>>, vector<16x16x128xf32>
    %40 = vector.shape_cast %39 : vector<16x16x128xf32> to vector<256x128xf32>
    %c0_49 = arith.constant 0 : index
    %c896 = arith.constant 896 : index
    %41 = vector.load %arg11[%c0_49, %c896] : memref<256x1152xf32, #tpu.memory_space<vmem>>, vector<256x128xf32>
    tpu.vector_store %arg11[%c0_49, %c896], %40 {strides = array<i32>} : memref<256x1152xf32, #tpu.memory_space<vmem>>, vector<256x128xf32>,
    %c2_50 = arith.constant 2 : index
    %c2_51 = arith.constant 2 : index
    %c0_52 = arith.constant 0 : index
    %42 = vector.load %arg9[%c2_50, %c2_51, %c0_52] : memref<18x18x128xf32, #tpu.memory_space<vmem>>, vector<16x16x128xf32>
    %43 = vector.shape_cast %42 : vector<16x16x128xf32> to vector<256x128xf32>
    %c0_53 = arith.constant 0 : index
    %c1024 = arith.constant 1024 : index
    %44 = vector.load %arg11[%c0_53, %c1024] : memref<256x1152xf32, #tpu.memory_space<vmem>>, vector<256x128xf32>
    tpu.vector_store %arg11[%c0_53, %c1024], %43 {strides = array<i32>} : memref<256x1152xf32, #tpu.memory_space<vmem>>, vector<256x128xf32>,
    %c0_54 = arith.constant 0 : index
    %c0_55 = arith.constant 0 : index
    %45 = vector.load %arg11[%c0_54, %c0_55] : memref<256x1152xf32, #tpu.memory_space<vmem>>, vector<256x1152xf32>
    %c0_56 = arith.constant 0 : index
    %c0_57 = arith.constant 0 : index
    %46 = vector.load %arg5[%c0_56, %c0_57] : memref<1152x128xf32, #tpu.memory_space<vmem>>, vector<1152x128xf32>
    %cst_58 = arith.constant dense<0.000000e+00> : vector<256x128xf32>
    %47 = tpu.matmul %45, %46, %cst_58 {dimension_numbers = #tpu.dot_dimension_numbers<[1], [0], [0], [1], [0, 0, 1, 1], [], []>} : vector<256x1152xf32>, vector<1152x128xf32>, vector<256x128xf32> -> vector<256x128xf32>
    %c0_59 = arith.constant 0 : index
    %c0_60 = arith.constant 0 : index
    %48 = vector.load %arg6[%c0_59, %c0_60] : memref<1x128xf32, #tpu.memory_space<vmem>>, vector<1x128xf32>
    %49 = vector.broadcast %48 : vector<1x128xf32> to vector<256x128xf32>
    %50 = arith.addf %47, %49 : vector<256x128xf32>
    %cst_61 = arith.constant 0.000000e+00 : f32
    %51 = vector.broadcast %cst_61 : f32 to vector<256x128xf32>
    %52 = arith.maximumf %50, %51 : vector<256x128xf32>
    %cst_62 = arith.constant 0.000000e+00 : f32
    %53 = vector.broadcast %cst_62 : f32 to vector<18x18x128xf32>
    %c0_63 = arith.constant 0 : index
    %c0_64 = arith.constant 0 : index
    %c0_65 = arith.constant 0 : index
    %54 = vector.load %arg10[%c0_63, %c0_64, %c0_65] : memref<18x18x128xf32, #tpu.memory_space<vmem>>, vector<18x18x128xf32>
    tpu.vector_store %arg10[%c0_63, %c0_64, %c0_65], %53 {strides = array<i32>} : memref<18x18x128xf32, #tpu.memory_space<vmem>>, vector<18x18x128xf32>,
    %55 = vector.shape_cast %52 : vector<256x128xf32> to vector<16x16x128xf32>
    %c1_66 = arith.constant 1 : index
    %c1_67 = arith.constant 1 : index
    %c0_68 = arith.constant 0 : index
    %56 = vector.load %arg10[%c1_66, %c1_67, %c0_68] : memref<18x18x128xf32, #tpu.memory_space<vmem>>, vector<16x16x128xf32>
    tpu.vector_store %arg10[%c1_66, %c1_67, %c0_68], %55 {strides = array<i32>} : memref<18x18x128xf32, #tpu.memory_space<vmem>>, vector<16x16x128xf32>,
    %c0_69 = arith.constant 0 : index
    %c0_70 = arith.constant 0 : index
    %c0_71 = arith.constant 0 : index
    %57 = vector.load %arg10[%c0_69, %c0_70, %c0_71] : memref<18x18x128xf32, #tpu.memory_space<vmem>>, vector<16x16x128xf32>
    %58 = vector.shape_cast %57 : vector<16x16x128xf32> to vector<256x128xf32>
    %c0_72 = arith.constant 0 : index
    %c0_73 = arith.constant 0 : index
    %59 = vector.load %arg12[%c0_72, %c0_73] : memref<256x1152xf32, #tpu.memory_space<vmem>>, vector<256x128xf32>
    tpu.vector_store %arg12[%c0_72, %c0_73], %58 {strides = array<i32>} : memref<256x1152xf32, #tpu.memory_space<vmem>>, vector<256x128xf32>,
    %c0_74 = arith.constant 0 : index
    %c1_75 = arith.constant 1 : index
    %c0_76 = arith.constant 0 : index
    %60 = vector.load %arg10[%c0_74, %c1_75, %c0_76] : memref<18x18x128xf32, #tpu.memory_space<vmem>>, vector<16x16x128xf32>
    %61 = vector.shape_cast %60 : vector<16x16x128xf32> to vector<256x128xf32>
    %c0_77 = arith.constant 0 : index
    %c128_78 = arith.constant 128 : index
    %62 = vector.load %arg12[%c0_77, %c128_78] : memref<256x1152xf32, #tpu.memory_space<vmem>>, vector<256x128xf32>
    tpu.vector_store %arg12[%c0_77, %c128_78], %61 {strides = array<i32>} : memref<256x1152xf32, #tpu.memory_space<vmem>>, vector<256x128xf32>,
    %c0_79 = arith.constant 0 : index
    %c2_80 = arith.constant 2 : index
    %c0_81 = arith.constant 0 : index
    %63 = vector.load %arg10[%c0_79, %c2_80, %c0_81] : memref<18x18x128xf32, #tpu.memory_space<vmem>>, vector<16x16x128xf32>
    %64 = vector.shape_cast %63 : vector<16x16x128xf32> to vector<256x128xf32>
    %c0_82 = arith.constant 0 : index
    %c256_83 = arith.constant 256 : index
    %65 = vector.load %arg12[%c0_82, %c256_83] : memref<256x1152xf32, #tpu.memory_space<vmem>>, vector<256x128xf32>
    tpu.vector_store %arg12[%c0_82, %c256_83], %64 {strides = array<i32>} : memref<256x1152xf32, #tpu.memory_space<vmem>>, vector<256x128xf32>,
    %c1_84 = arith.constant 1 : index
    %c0_85 = arith.constant 0 : index
    %c0_86 = arith.constant 0 : index
    %66 = vector.load %arg10[%c1_84, %c0_85, %c0_86] : memref<18x18x128xf32, #tpu.memory_space<vmem>>, vector<16x16x128xf32>
    %67 = vector.shape_cast %66 : vector<16x16x128xf32> to vector<256x128xf32>
    %c0_87 = arith.constant 0 : index
    %c384_88 = arith.constant 384 : index
    %68 = vector.load %arg12[%c0_87, %c384_88] : memref<256x1152xf32, #tpu.memory_space<vmem>>, vector<256x128xf32>
    tpu.vector_store %arg12[%c0_87, %c384_88], %67 {strides = array<i32>} : memref<256x1152xf32, #tpu.memory_space<vmem>>, vector<256x128xf32>,
    %c1_89 = arith.constant 1 : index
    %c1_90 = arith.constant 1 : index
    %c0_91 = arith.constant 0 : index
    %69 = vector.load %arg10[%c1_89, %c1_90, %c0_91] : memref<18x18x128xf32, #tpu.memory_space<vmem>>, vector<16x16x128xf32>
    %70 = vector.shape_cast %69 : vector<16x16x128xf32> to vector<256x128xf32>
    %c0_92 = arith.constant 0 : index
    %c512_93 = arith.constant 512 : index
    %71 = vector.load %arg12[%c0_92, %c512_93] : memref<256x1152xf32, #tpu.memory_space<vmem>>, vector<256x128xf32>
    tpu.vector_store %arg12[%c0_92, %c512_93], %70 {strides = array<i32>} : memref<256x1152xf32, #tpu.memory_space<vmem>>, vector<256x128xf32>,
    %c1_94 = arith.constant 1 : index
    %c2_95 = arith.constant 2 : index
    %c0_96 = arith.constant 0 : index
    %72 = vector.load %arg10[%c1_94, %c2_95, %c0_96] : memref<18x18x128xf32, #tpu.memory_space<vmem>>, vector<16x16x128xf32>
    %73 = vector.shape_cast %72 : vector<16x16x128xf32> to vector<256x128xf32>
    %c0_97 = arith.constant 0 : index
    %c640_98 = arith.constant 640 : index
    %74 = vector.load %arg12[%c0_97, %c640_98] : memref<256x1152xf32, #tpu.memory_space<vmem>>, vector<256x128xf32>
    tpu.vector_store %arg12[%c0_97, %c640_98], %73 {strides = array<i32>} : memref<256x1152xf32, #tpu.memory_space<vmem>>, vector<256x128xf32>,
    %c2_99 = arith.constant 2 : index
    %c0_100 = arith.constant 0 : index
    %c0_101 = arith.constant 0 : index
    %75 = vector.load %arg10[%c2_99, %c0_100, %c0_101] : memref<18x18x128xf32, #tpu.memory_space<vmem>>, vector<16x16x128xf32>
    %76 = vector.shape_cast %75 : vector<16x16x128xf32> to vector<256x128xf32>
    %c0_102 = arith.constant 0 : index
    %c768_103 = arith.constant 768 : index
    %77 = vector.load %arg12[%c0_102, %c768_103] : memref<256x1152xf32, #tpu.memory_space<vmem>>, vector<256x128xf32>
    tpu.vector_store %arg12[%c0_102, %c768_103], %76 {strides = array<i32>} : memref<256x1152xf32, #tpu.memory_space<vmem>>, vector<256x128xf32>,
    %c2_104 = arith.constant 2 : index
    %c1_105 = arith.constant 1 : index
    %c0_106 = arith.constant 0 : index
    %78 = vector.load %arg10[%c2_104, %c1_105, %c0_106] : memref<18x18x128xf32, #tpu.memory_space<vmem>>, vector<16x16x128xf32>
    %79 = vector.shape_cast %78 : vector<16x16x128xf32> to vector<256x128xf32>
    %c0_107 = arith.constant 0 : index
    %c896_108 = arith.constant 896 : index
    %80 = vector.load %arg12[%c0_107, %c896_108] : memref<256x1152xf32, #tpu.memory_space<vmem>>, vector<256x128xf32>
    tpu.vector_store %arg12[%c0_107, %c896_108], %79 {strides = array<i32>} : memref<256x1152xf32, #tpu.memory_space<vmem>>, vector<256x128xf32>,
    %c2_109 = arith.constant 2 : index
    %c2_110 = arith.constant 2 : index
    %c0_111 = arith.constant 0 : index
    %81 = vector.load %arg10[%c2_109, %c2_110, %c0_111] : memref<18x18x128xf32, #tpu.memory_space<vmem>>, vector<16x16x128xf32>
    %82 = vector.shape_cast %81 : vector<16x16x128xf32> to vector<256x128xf32>
    %c0_112 = arith.constant 0 : index
    %c1024_113 = arith.constant 1024 : index
    %83 = vector.load %arg12[%c0_112, %c1024_113] : memref<256x1152xf32, #tpu.memory_space<vmem>>, vector<256x128xf32>
    tpu.vector_store %arg12[%c0_112, %c1024_113], %82 {strides = array<i32>} : memref<256x1152xf32, #tpu.memory_space<vmem>>, vector<256x128xf32>,
    %c0_114 = arith.constant 0 : index
    %c0_115 = arith.constant 0 : index
    %84 = vector.load %arg12[%c0_114, %c0_115] : memref<256x1152xf32, #tpu.memory_space<vmem>>, vector<256x1152xf32>
    %c0_116 = arith.constant 0 : index
    %c0_117 = arith.constant 0 : index
    %85 = vector.load %arg7[%c0_116, %c0_117] : memref<1152x128xf32, #tpu.memory_space<vmem>>, vector<1152x128xf32>
    %cst_118 = arith.constant dense<0.000000e+00> : vector<256x128xf32>
    %86 = tpu.matmul %84, %85, %cst_118 {dimension_numbers = #tpu.dot_dimension_numbers<[1], [0], [0], [1], [0, 0, 1, 1], [], []>} : vector<256x1152xf32>, vector<1152x128xf32>, vector<256x128xf32> -> vector<256x128xf32>
    %c0_119 = arith.constant 0 : index
    %c0_120 = arith.constant 0 : index
    %87 = vector.load %arg13[%c0_119, %c0_120] : memref<256x128xf32, #tpu.memory_space<vmem>>, vector<256x128xf32>
    %88 = arith.addf %86, %87 : vector<256x128xf32>
    %89 = vector.shape_cast %88 : vector<256x128xf32> to vector<16x16x128xf32>
    %c0_121 = arith.constant 0 : index
    %c0_122 = arith.constant 0 : index
    %c0_123 = arith.constant 0 : index
    %c0_124 = arith.constant 0 : index
    %90 = vector.load %arg8[%c0_121, %c0_122, %c0_123, %c0_124] : memref<1x16x16x128xf32, #tpu.memory_space<vmem>>, vector<1x16x16x128xf32>
    %91 = vector.shape_cast %90 : vector<1x16x16x128xf32> to vector<16x16x128xf32>
    %92 = vector.shape_cast %89 : vector<16x16x128xf32> to vector<1x16x16x128xf32>
    tpu.vector_store %arg8[%c0_121, %c0_122, %c0_123, %c0_124], %92 {strides = array<i32>} : memref<1x16x16x128xf32, #tpu.memory_space<vmem>>, vector<1x16x16x128xf32>,
    return
  }
  func.func @transform_0(%arg0: i32) -> (i32, i32, i32, i32) {
    %c0_i32 = arith.constant 0 : i32
    %c0_i32_0 = arith.constant 0 : i32
    %c0_i32_1 = arith.constant 0 : i32
    %c0_i32_2 = arith.constant 0 : i32
    return %arg0, %c0_i32, %c0_i32_0, %c0_i32_1 : i32, i32, i32, i32
  }
  func.func @transform_1(%arg0: i32) -> (i32, i32) {
    %c0_i32 = arith.constant 0 : i32
    %c0_i32_0 = arith.constant 0 : i32
    %c0_i32_1 = arith.constant 0 : i32
    return %c0_i32, %c0_i32_0 : i32, i32
  }
  func.func @transform_2(%arg0: i32) -> (i32, i32) {
    %c0_i32 = arith.constant 0 : i32
    %c0_i32_0 = arith.constant 0 : i32
    %c0_i32_1 = arith.constant 0 : i32
    return %c0_i32, %c0_i32_0 : i32, i32
  }
  func.func @transform_3(%arg0: i32) -> (i32, i32) {
    %c0_i32 = arith.constant 0 : i32
    %c0_i32_0 = arith.constant 0 : i32
    %c0_i32_1 = arith.constant 0 : i32
    return %c0_i32, %c0_i32_0 : i32, i32
  }
  func.func @transform_4(%arg0: i32) -> (i32, i32) {
    %c0_i32 = arith.constant 0 : i32
    %c0_i32_0 = arith.constant 0 : i32
    %c0_i32_1 = arith.constant 0 : i32
    return %c0_i32, %c0_i32_0 : i32, i32
  }
  func.func @transform_5(%arg0: i32) -> (i32, i32) {
    %c0_i32 = arith.constant 0 : i32
    %c0_i32_0 = arith.constant 0 : i32
    %c0_i32_1 = arith.constant 0 : i32
    return %c0_i32, %c0_i32_0 : i32, i32
  }
  func.func @transform_6(%arg0: i32) -> (i32, i32) {
    %c0_i32 = arith.constant 0 : i32
    %c0_i32_0 = arith.constant 0 : i32
    %c0_i32_1 = arith.constant 0 : i32
    return %c0_i32, %c0_i32_0 : i32, i32
  }
  func.func @transform_7(%arg0: i32) -> (i32, i32, i32, i32) {
    %c0_i32 = arith.constant 0 : i32
    %c0_i32_0 = arith.constant 0 : i32
    %c0_i32_1 = arith.constant 0 : i32
    %c0_i32_2 = arith.constant 0 : i32
    return %arg0, %c0_i32, %c0_i32_0, %c0_i32_1 : i32, i32, i32, i32
  }
}

</mosaic_0001>

<llo_original>
// kernel: tpu_custom_call.1
$region0: #{tpu_custom_call.1}
  #allocation0 [shape = 'u32[]', space=smem, size = 0x4, offset = 0x4, fixed_abs, tag = 'smem constant byte address 0x4 - core index']
  #allocation1 [shape = 'u32[144,128]{1,0:T(1,128)}', space=vmem, size = 0x12000, scoped, tag = 'internal scratch']
  #allocation2 [shape = 'f32[18,18,128]{2,1,0:T(8,128)}', space=vmem, size = 0x36000, scoped, tag = 'scratch operand']
  #allocation3 [shape = 'f32[18,18,128]{2,1,0:T(8,128)}', space=vmem, size = 0x36000, scoped, tag = 'scratch operand']
  #allocation4 [shape = 'f32[256,1152]{1,0:T(8,128)}', space=vmem, size = 0x120000, scoped, tag = 'scratch operand']
  #allocation5 [shape = 'f32[256,1152]{1,0:T(8,128)}', space=vmem, size = 0x120000, scoped, tag = 'scratch operand']
  #allocation6 [shape = 'f32[256,128]{1,0:T(8,128)}', space=vmem, size = 0x20000, scoped, tag = 'scratch operand']
  %s0 = inlined_call_operand.hbm [shape: f32[2,16,16,128], index: 0, kind: input, shape index: {}]
  %s1 = inlined_call_operand.vmem [shape: f32[1,128], index: 1, kind: input, shape index: {}]
  %s2 = inlined_call_operand.vmem [shape: f32[1,128], index: 2, kind: input, shape index: {}]
  %s3 = inlined_call_operand.hbm [shape: f32[128,128], index: 3, kind: input, shape index: {}]
  %s4 = inlined_call_operand.hbm [shape: f32[1152,128], index: 4, kind: input, shape index: {}]
  %s5 = inlined_call_operand.vmem [shape: f32[1,128], index: 5, kind: input, shape index: {}]
  %s6 = inlined_call_operand.hbm [shape: f32[1152,128], index: 6, kind: input, shape index: {}]
  %s7 = inlined_call_operand.hbm [shape: f32[2,16,16,128], index: 7, kind: output, shape index: {}]
  %s8 = sld [smem:[#allocation0]]
  $region77: #{tpu_custom_call.1} parent=0
    _
  %s10 = ssub.s32 1, %s8
  %s11 = scalar_select 0, %s10, %s8
  $region1: #{tpu_custom_call.1} parent=0
    #allocation7 [shape = 'u8[262144]{0}', space=vmem, size = 0x40000, scoped, tag = 'input window, operand 0']
    #allocation8 [shape = 's32[2]{0}', space=sflag, size = 0x8, scoped, tag = 'scoped memory for tpu_custom_call.1']
    #allocation9 [shape = 's32[2]{0}', space=sflag, size = 0x8, scoped, tag = 'scoped memory for tpu_custom_call.1']
    #allocation10 [shape = 'u8[65536]{0}', space=vmem, size = 0x10000, scoped, tag = 'input window, operand 3, single buffered']
    #allocation11 [shape = 's32[1]{0}', space=sflag, size = 0x4, scoped, tag = 'scoped memory for tpu_custom_call.1']
    #allocation12 [shape = 'u8[589824]{0}', space=vmem, size = 0x90000, scoped, tag = 'input window, operand 4, single buffered']
    #allocation13 [shape = 'u8[589824]{0}', space=vmem, size = 0x90000, scoped, tag = 'input window, operand 6, single buffered']
    #allocation14 [shape = 's32[1]{0}', space=sflag, size = 0x4, scoped, tag = 'scoped memory for tpu_custom_call.1']
    #allocation15 [shape = 'u8[262144]{0}', space=vmem, size = 0x40000, scoped, tag = 'output window, operand 0']
    %12 = vsyncpa [#allocation8], 0
    %s13 = scalar_lea.sflag [#allocation8], 1
    %14 = vsyncpa %s13, 0
    %15 = vsyncpa [#allocation11], 0
    %16 = vsyncpa [#allocation14], 0
    %17 = vsyncpa [#allocation9], 0
    %s18 = scalar_lea.sflag [#allocation9], 1
    %19 = vsyncpa %s18, 0
    loop: start=0, step=1, limit=4
    $region2: #{tpu_custom_call.1} parent=1 // loop_pre_header
      _
    $region3: #{tpu_custom_call.1} parent=1 // loop_header
      %s21 = sphi 0, %s25
      %p22 = scmp.ge.s32.totalorder %s21, 4
      %s31 = sphi 0, %s33
      %s34 = sphi 0, %s31
      %s35 = sphi 0, %s34
      %s51 = sphi 0, %s35
      %s55 = sphi 0, %s55
      %s57 = sphi 0, %s55
      %s58 = sphi 0, %s57
      %s72 = sphi 0, %s58
      %s76 = sphi 0, %s76
      %s78 = sphi 0, %s76
      %s79 = sphi 0, %s78
      %s93 = sphi 0, %s79
      %s97 = sphi 0, %s97
      %s99 = sphi 0, %s97
      %s100 = sphi 0, %s99
      %s114 = sphi 0, %s100
      %s118 = sphi 0, %s118
      %s120 = sphi 0, %s118
      %s121 = sphi 0, %s120
      %s135 = sphi 0, %s121
      %s139 = sphi 0, %s139
      %s141 = sphi 0, %s139
      %s142 = sphi 0, %s141
      %s156 = sphi 0, %s142
      %s160 = sphi 0, %s160
      %s162 = sphi 0, %s160
      %s163 = sphi 0, %s162
      %s177 = sphi 0, %s163
      %s183 = sphi 0, %s185
      %s186 = sphi 0, %s183
      %s187 = sphi 0, %s186
      %s203 = sphi 0, %s187
    $region4: #{tpu_custom_call.1} parent=1 // loop_header_branch
      %24 = sbr.rel (%p22) target = $region8
    $region5: #{tpu_custom_call.1} parent=1 // loop_body
      %s26 = ssub.s32 %s21, 1
      %s27 = ssub.s32 %s21, 2
      %s28 = sadd.s32 %s21, 1
      %s29 = ssub.s32 %s21, %s28
      %p30 = scmp.eq.s32.totalorder %s29, 0
      %s32 = sadd.s32 %s31, 1
      %s33 = scalar_select %p30, %s31, %s32
      %p36 = pneg %p30
      %p37 = scmp.eq.s32.totalorder %s21, 1
      %p38 = por %p36, %p37
      %p39 = scmp.ne.s32.totalorder %s31, %s34
      %p40 = scmp.eq.s32.totalorder %s21, 0
      %p41 = por %p39, %p40
      %p42 = scmp.ne.s32.totalorder %s31, %s34
      %p43 = scmp.eq.s32.totalorder %s26, 1
      %p44 = por %p42, %p43
      %p45 = scmp.ne.s32.totalorder %s34, %s35
      %p46 = scmp.eq.s32.totalorder %s26, 0
      %p47 = por %p45, %p46
      %p48 = scmp.ne.s32.totalorder %s34, %s35
      %p49 = scmp.eq.s32.totalorder %s27, 1
      %p50 = por %p48, %p49
      %p52 = scmp.ne.s32.totalorder %s35, %s51
      %p53 = scmp.eq.s32.totalorder %s27, 0
      %p54 = por %p52, %p53
      %s56 = sadd.s32 %s55, 1
      %p59 = scmp.eq.s32.totalorder %s21, 1
      %p60 = scmp.ne.s32.totalorder %s55, %s57
      %p61 = scmp.eq.s32.totalorder %s21, 0
      %p62 = por %p60, %p61
      %p63 = scmp.ne.s32.totalorder %s55, %s57
      %p64 = scmp.eq.s32.totalorder %s26, 1
      %p65 = por %p63, %p64
      %p66 = scmp.ne.s32.totalorder %s57, %s58
      %p67 = scmp.eq.s32.totalorder %s26, 0
      %p68 = por %p66, %p67
      %p69 = scmp.ne.s32.totalorder %s57, %s58
      %p70 = scmp.eq.s32.totalorder %s27, 1
      %p71 = por %p69, %p70
      %p73 = scmp.ne.s32.totalorder %s58, %s72
      %p74 = scmp.eq.s32.totalorder %s27, 0
      %p75 = por %p73, %p74
      %s77 = sadd.s32 %s76, 1
      %p80 = scmp.eq.s32.totalorder %s21, 1
      %p81 = scmp.ne.s32.totalorder %s76, %s78
      %p82 = scmp.eq.s32.totalorder %s21, 0
      %p83 = por %p81, %p82
      %p84 = scmp.ne.s32.totalorder %s76, %s78
      %p85 = scmp.eq.s32.totalorder %s26, 1
      %p86 = por %p84, %p85
      %p87 = scmp.ne.s32.totalorder %s78, %s79
      %p88 = scmp.eq.s32.totalorder %s26, 0
      %p89 = por %p87, %p88
      %p90 = scmp.ne.s32.totalorder %s78, %s79
      %p91 = scmp.eq.s32.totalorder %s27, 1
      %p92 = por %p90, %p91
      %p94 = scmp.ne.s32.totalorder %s79, %s93
      %p95 = scmp.eq.s32.totalorder %s27, 0
      %p96 = por %p94, %p95
      %s98 = sadd.s32 %s97, 1
      %p101 = scmp.eq.s32.totalorder %s21, 1
      %p102 = scmp.ne.s32.totalorder %s97, %s99
      %p103 = scmp.eq.s32.totalorder %s21, 0
      %p104 = por %p102, %p103
      %p105 = scmp.ne.s32.totalorder %s97, %s99
      %p106 = scmp.eq.s32.totalorder %s26, 1
      %p107 = por %p105, %p106
      %p108 = scmp.ne.s32.totalorder %s99, %s100
      %p109 = scmp.eq.s32.totalorder %s26, 0
      %p110 = por %p108, %p109
      %p111 = scmp.ne.s32.totalorder %s99, %s100
      %p112 = scmp.eq.s32.totalorder %s27, 1
      %p113 = por %p111, %p112
      %p115 = scmp.ne.s32.totalorder %s100, %s114
      %p116 = scmp.eq.s32.totalorder %s27, 0
      %p117 = por %p115, %p116
      %s119 = sadd.s32 %s118, 1
      %p122 = scmp.eq.s32.totalorder %s21, 1
      %p123 = scmp.ne.s32.totalorder %s118, %s120
      %p124 = scmp.eq.s32.totalorder %s21, 0
      %p125 = por %p123, %p124
      %p126 = scmp.ne.s32.totalorder %s118, %s120
      %p127 = scmp.eq.s32.totalorder %s26, 1
      %p128 = por %p126, %p127
      %p129 = scmp.ne.s32.totalorder %s120, %s121
      %p130 = scmp.eq.s32.totalorder %s26, 0
      %p131 = por %p129, %p130
      %p132 = scmp.ne.s32.totalorder %s120, %s121
      %p133 = scmp.eq.s32.totalorder %s27, 1
      %p134 = por %p132, %p133
      %p136 = scmp.ne.s32.totalorder %s121, %s135
      %p137 = scmp.eq.s32.totalorder %s27, 0
      %p138 = por %p136, %p137
      %s140 = sadd.s32 %s139, 1
      %p143 = scmp.eq.s32.totalorder %s21, 1
      %p144 = scmp.ne.s32.totalorder %s139, %s141
      %p145 = scmp.eq.s32.totalorder %s21, 0
      %p146 = por %p144, %p145
      %p147 = scmp.ne.s32.totalorder %s139, %s141
      %p148 = scmp.eq.s32.totalorder %s26, 1
      %p149 = por %p147, %p148
      %p150 = scmp.ne.s32.totalorder %s141, %s142
      %p151 = scmp.eq.s32.totalorder %s26, 0
      %p152 = por %p150, %p151
      %p153 = scmp.ne.s32.totalorder %s141, %s142
      %p154 = scmp.eq.s32.totalorder %s27, 1
      %p155 = por %p153, %p154
      %p157 = scmp.ne.s32.totalorder %s142, %s156
      %p158 = scmp.eq.s32.totalorder %s27, 0
      %p159 = por %p157, %p158
      %s161 = sadd.s32 %s160, 1
      %p164 = scmp.eq.s32.totalorder %s21, 1
      %p165 = scmp.ne.s32.totalorder %s160, %s162
      %p166 = scmp.eq.s32.totalorder %s21, 0
      %p167 = por %p165, %p166
      %p168 = scmp.ne.s32.totalorder %s160, %s162
      %p169 = scmp.eq.s32.totalorder %s26, 1
      %p170 = por %p168, %p169
      %p171 = scmp.ne.s32.totalorder %s162, %s163
      %p172 = scmp.eq.s32.totalorder %s26, 0
      %p173 = por %p171, %p172
      %p174 = scmp.ne.s32.totalorder %s162, %s163
      %p175 = scmp.eq.s32.totalorder %s27, 1
      %p176 = por %p174, %p175
      %p178 = scmp.ne.s32.totalorder %s163, %s177
      %p179 = scmp.eq.s32.totalorder %s27, 0
      %p180 = por %p178, %p179
      %s181 = ssub.s32 %s21, %s28
      %p182 = scmp.eq.s32.totalorder %s181, 0
      %s184 = sadd.s32 %s183, 1
      %s185 = scalar_select %p182, %s183, %s184
      %p188 = pneg %p182
      %p189 = scmp.eq.s32.totalorder %s21, 1
      %p190 = por %p188, %p189
      %p191 = scmp.ne.s32.totalorder %s183, %s186
      %p192 = scmp.eq.s32.totalorder %s21, 0
      %p193 = por %p191, %p192
      %p194 = scmp.ne.s32.totalorder %s183, %s186
      %p195 = scmp.eq.s32.totalorder %s26, 1
      %p196 = por %p194, %p195
      %p197 = scmp.ne.s32.totalorder %s186, %s187
      %p198 = scmp.eq.s32.totalorder %s26, 0
      %p199 = por %p197, %p198
      %p200 = scmp.ne.s32.totalorder %s186, %s187
      %p201 = scmp.eq.s32.totalorder %s27, 1
      %p202 = por %p200, %p201
      %p204 = scmp.ne.s32.totalorder %s187, %s203
      %p205 = scmp.eq.s32.totalorder %s27, 0
      %p206 = por %p204, %p205
      %p207 = scmp.le.s32.totalorder 1, %s21
      %p208 = scmp.lt.s32.totalorder %s21, 3
      %p209 = pnand %p207, %p208
      %p210 = pneg %p209
      // Predicated region
      $region9: #{tpu_custom_call.1} parent=5 // pred_check
        _
      $region10: #{tpu_custom_call.1} parent=5 // pred_check_branch
        %212 = sbr.rel (%p209) target = $region12
      $region11: #{tpu_custom_call.1} parent=5 // pred_region
        %s213 = ssub.s32 %s21, 1
        // Predicated region
        $region13: #{tpu_custom_call.1} parent=11 // pred_check
          %p214 = pneg %p68
        $region14: #{tpu_custom_call.1} parent=11 // pred_check_branch
          %216 = sbr.rel (%p214) target = $region16
        $region15: #{tpu_custom_call.1} parent=11 // pred_region
          _
        $region16: #{tpu_custom_call.1} parent=11 // pred_fallthru
          _
        // Predicated region
        $region17: #{tpu_custom_call.1} parent=11 // pred_check
          %p217 = pneg %p89
        $region18: #{tpu_custom_call.1} parent=11 // pred_check_branch
          %219 = sbr.rel (%p217) target = $region20
        $region19: #{tpu_custom_call.1} parent=11 // pred_region
          _
        $region20: #{tpu_custom_call.1} parent=11 // pred_fallthru
          _
        // Predicated region
        $region21: #{tpu_custom_call.1} parent=11 // pred_check
          %p220 = pneg %p110
        $region22: #{tpu_custom_call.1} parent=11 // pred_check_branch
          %222 = sbr.rel (%p220) target = $region24
        $region23: #{tpu_custom_call.1} parent=11 // pred_region
          %s224 = ssub.s32 2048, 2048
          %225 = vsyncadd [#allocation11], %s224
          %s226 = sshll.u32 [#allocation10], 4
          %s227 = int_to_ptr.vmem [resolvable:$true] %s226
          %232 = dma.hbm_to_vmem [thread:$0]  %s3, 2048, %s227, [#allocation11], 128, 128, 8
        $region24: #{tpu_custom_call.1} parent=11 // pred_fallthru
          _
        // Predicated region
        $region25: #{tpu_custom_call.1} parent=11 // pred_check
          %p233 = pneg %p131
        $region26: #{tpu_custom_call.1} parent=11 // pred_check_branch
          %235 = sbr.rel (%p233) target = $region28
        $region27: #{tpu_custom_call.1} parent=11 // pred_region
          %s237 = ssub.s32 18432, 18432
          %238 = vsyncadd [#allocation11], %s237
          %s239 = sshll.u32 [#allocation12], 4
          %s240 = int_to_ptr.vmem [resolvable:$true] %s239
          %245 = dma.hbm_to_vmem [thread:$0]  %s4, 18432, %s240, [#allocation11], 128, 128, 8
        $region28: #{tpu_custom_call.1} parent=11 // pred_fallthru
          _
        // Predicated region
        $region29: #{tpu_custom_call.1} parent=11 // pred_check
          %p246 = pneg %p152
        $region30: #{tpu_custom_call.1} parent=11 // pred_check_branch
          %248 = sbr.rel (%p246) target = $region32
        $region31: #{tpu_custom_call.1} parent=11 // pred_region
          _
        $region32: #{tpu_custom_call.1} parent=11 // pred_fallthru
          _
        // Predicated region
        $region33: #{tpu_custom_call.1} parent=11 // pred_check
          %p249 = pneg %p173
        $region34: #{tpu_custom_call.1} parent=11 // pred_check_branch
          %251 = sbr.rel (%p249) target = $region36
        $region35: #{tpu_custom_call.1} parent=11 // pred_region
          %s253 = ssub.s32 18432, 18432
          %254 = vsyncadd [#allocation14], %s253
          %s255 = sshll.u32 [#allocation13], 4
          %s256 = int_to_ptr.vmem [resolvable:$true] %s255
          %261 = dma.hbm_to_vmem [thread:$0]  %s6, 18432, %s256, [#allocation14], 128, 128, 8
        $region36: #{tpu_custom_call.1} parent=11 // pred_fallthru
          _
      $region12: #{tpu_custom_call.1} parent=5 // pred_fallthru
        _
      %p262 = scmp.lt.s32.totalorder %s21, 2
      // Predicated region
      $region37: #{tpu_custom_call.1} parent=5 // pred_check
        %p263 = pneg %p262
      $region38: #{tpu_custom_call.1} parent=5 // pred_check_branch
        %265 = sbr.rel (%p263) target = $region40
      $region39: #{tpu_custom_call.1} parent=5 // pred_region
        // Predicated region
        $region41: #{tpu_custom_call.1} parent=39 // pred_check
          %p266 = pneg %p41
        $region42: #{tpu_custom_call.1} parent=39 // pred_check_branch
          %268 = sbr.rel (%p266) target = $region44
        $region43: #{tpu_custom_call.1} parent=39 // pred_region
          %s269 = sand.u32 %s31, 1
          %s270 = scalar_lea.sflag [#allocation8], %s269
          %s271 = sand.u32 %s31, 1
          %s272 = smul.addr %s271, 256
          %s273 = scalar_lea.vmem [#allocation7], %s272
          %s275 = ssub.s32 4096, 4096
          %276 = vsyncadd %s270, %s275
          %s277 = smul.addr %s21, 32
          %s278 = smul.addr %s277, 128
          %s279 = scalar_lea.hbm %s0, %s278
          %s280 = sshll.u32 %s273, 4
          %s281 = int_to_ptr.vmem [resolvable:$true] %s280
          %286 = dma.hbm_to_vmem [thread:$0]  %s279, 4096, %s281, %s270, 128, 128, 8
        $region44: #{tpu_custom_call.1} parent=39 // pred_fallthru
          _
      $region40: #{tpu_custom_call.1} parent=5 // pred_fallthru
        _
      %p287 = scmp.le.s32.totalorder 1, %s21
      %p288 = scmp.lt.s32.totalorder %s21, 3
      %p289 = pnand %p287, %p288
      %p290 = pneg %p289
      // Predicated region
      $region45: #{tpu_custom_call.1} parent=5 // pred_check
        _
      $region46: #{tpu_custom_call.1} parent=5 // pred_check_branch
        %292 = sbr.rel (%p289) target = $region48
      $region47: #{tpu_custom_call.1} parent=5 // pred_region
        %s293 = ssub.s32 %s21, 1
        %s294 = sand.u32 %s34, 1
        %s295 = scalar_lea.sflag [#allocation8], %s294
        %s296 = sand.u32 %s34, 1
        %s297 = smul.addr %s296, 256
        %s298 = scalar_lea.vmem [#allocation7], %s297
        // Predicated region
        $region49: #{tpu_custom_call.1} parent=47 // pred_check
          %p299 = pneg %p47
        $region50: #{tpu_custom_call.1} parent=47 // pred_check_branch
          %301 = sbr.rel (%p299) target = $region52
        $region51: #{tpu_custom_call.1} parent=47 // pred_region
          %302 = dma.done %s295, 4096
        $region52: #{tpu_custom_call.1} parent=47 // pred_fallthru
          _
        // Predicated region
        $region53: #{tpu_custom_call.1} parent=47 // pred_check
          %p303 = pneg %p110
        $region54: #{tpu_custom_call.1} parent=47 // pred_check_branch
          %305 = sbr.rel (%p303) target = $region56
        $region55: #{tpu_custom_call.1} parent=47 // pred_region
          %306 = dma.done [#allocation11], 2048
        $region56: #{tpu_custom_call.1} parent=47 // pred_fallthru
          _
        // Predicated region
        $region57: #{tpu_custom_call.1} parent=47 // pred_check
          %p307 = pneg %p131
        $region58: #{tpu_custom_call.1} parent=47 // pred_check_branch
          %309 = sbr.rel (%p307) target = $region60
        $region59: #{tpu_custom_call.1} parent=47 // pred_region
          %310 = dma.done [#allocation11], 18432
        $region60: #{tpu_custom_call.1} parent=47 // pred_fallthru
          _
        // Predicated region
        $region61: #{tpu_custom_call.1} parent=47 // pred_check
          %p311 = pneg %p173
        $region62: #{tpu_custom_call.1} parent=47 // pred_check_branch
          %313 = sbr.rel (%p311) target = $region64
        $region63: #{tpu_custom_call.1} parent=47 // pred_region
          %314 = dma.done [#allocation14], 18432
        $region64: #{tpu_custom_call.1} parent=47 // pred_fallthru
          _
        %s315 = sand.u32 %s34, 1
        %s316 = scalar_lea.sflag [#allocation8], %s315
        %s317 = sand.u32 %s34, 1
        %s318 = smul.addr %s317, 256
        %s319 = scalar_lea.vmem [#allocation7], %s318
        %p320 = pneg %p47
        %p321 = pneg %p44
        %p322 = pneg %p68
        %p323 = pneg %p65
        %p324 = pneg %p89
        %p325 = pneg %p86
        %p326 = pneg %p110
        %p327 = pneg %p107
        %p328 = pneg %p131
        %p329 = pneg %p128
        %p330 = pneg %p152
        %p331 = pneg %p149
        %p332 = pneg %p173
        %p333 = pneg %p170
        %p334 = pneg %p199
        %p335 = pneg %p196
        %s336 = sand.u32 %s186, 1
        %s337 = scalar_lea.sflag [#allocation9], %s336
        %s338 = sand.u32 %s186, 1
        %s339 = smul.addr %s338, 256
        %s340 = scalar_lea.vmem [#allocation15], %s339
        %v341 = vld [vmem:[%s298] sm:$0xff]
        %v342 = vld [vmem:[%s298 + $0x8] sm:$0xff]
        %v343 = vld [vmem:[%s298 + $0x10] sm:$0xff]
        %v344 = vld [vmem:[%s298 + $0x18] sm:$0xff]
        %v345 = vld [vmem:[%s298 + $0x20] sm:$0xff]
        %v346 = vld [vmem:[%s298 + $0x28] sm:$0xff]
        %v347 = vld [vmem:[%s298 + $0x30] sm:$0xff]
        %v348 = vld [vmem:[%s298 + $0x38] sm:$0xff]
        %v349 = vld [vmem:[%s298 + $0x40] sm:$0xff]
        %v350 = vld [vmem:[%s298 + $0x48] sm:$0xff]
        %v351 = vld [vmem:[%s298 + $0x50] sm:$0xff]
        %v352 = vld [vmem:[%s298 + $0x58] sm:$0xff]
        %v353 = vld [vmem:[%s298 + $0x60] sm:$0xff]
        %v354 = vld [vmem:[%s298 + $0x68] sm:$0xff]
        %v355 = vld [vmem:[%s298 + $0x70] sm:$0xff]
        %v356 = vld [vmem:[%s298 + $0x78] sm:$0xff]
        %v357 = vld [vmem:[%s298 + $0x80] sm:$0xff]
        %v358 = vld [vmem:[%s298 + $0x88] sm:$0xff]
        %v359 = vld [vmem:[%s298 + $0x90] sm:$0xff]
        %v360 = vld [vmem:[%s298 + $0x98] sm:$0xff]
        %v361 = vld [vmem:[%s298 + $0xa0] sm:$0xff]
        %v362 = vld [vmem:[%s298 + $0xa8] sm:$0xff]
        %v363 = vld [vmem:[%s298 + $0xb0] sm:$0xff]
        %v364 = vld [vmem:[%s298 + $0xb8] sm:$0xff]
        %v365 = vld [vmem:[%s298 + $0xc0] sm:$0xff]
        %v366 = vld [vmem:[%s298 + $0xc8] sm:$0xff]
        %v367 = vld [vmem:[%s298 + $0xd0] sm:$0xff]
        %v368 = vld [vmem:[%s298 + $0xd8] sm:$0xff]
        %v369 = vld [vmem:[%s298 + $0xe0] sm:$0xff]
        %v370 = vld [vmem:[%s298 + $0xe8] sm:$0xff]
        %v371 = vld [vmem:[%s298 + $0xf0] sm:$0xff]
        %v372 = vld [vmem:[%s298 + $0xf8] sm:$0xff]
        %v373 = vld [vmem:[%s1] sm:$0x1]
        %v375 = vlaneseq
        %v376 = vshrl.u32 %v375, 7
        %v377 = vsub.s32 0, %v376
        %v378 = vrot.slane %v373, %v377
        %v380 = vmul.f32 %v341, %v378
        %v381 = vmul.f32 %v342, %v378
        %v382 = vmul.f32 %v343, %v378
        %v383 = vmul.f32 %v344, %v378
        %v384 = vmul.f32 %v345, %v378
        %v385 = vmul.f32 %v346, %v378
        %v386 = vmul.f32 %v347, %v378
        %v387 = vmul.f32 %v348, %v378
        %v388 = vmul.f32 %v349, %v378
        %v389 = vmul.f32 %v350, %v378
        %v390 = vmul.f32 %v351, %v378
        %v391 = vmul.f32 %v352, %v378
        %v392 = vmul.f32 %v353, %v378
        %v393 = vmul.f32 %v354, %v378
        %v394 = vmul.f32 %v355, %v378
        %v395 = vmul.f32 %v356, %v378
        %v396 = vmul.f32 %v357, %v378
        %v397 = vmul.f32 %v358, %v378
        %v398 = vmul.f32 %v359, %v378
        %v399 = vmul.f32 %v360, %v378
        %v400 = vmul.f32 %v361, %v378
        %v401 = vmul.f32 %v362, %v378
        %v402 = vmul.f32 %v363, %v378
        %v403 = vmul.f32 %v364, %v378
        %v404 = vmul.f32 %v365, %v378
        %v405 = vmul.f32 %v366, %v378
        %v406 = vmul.f32 %v367, %v378
        %v407 = vmul.f32 %v368, %v378
        %v408 = vmul.f32 %v369, %v378
        %v409 = vmul.f32 %v370, %v378
        %v410 = vmul.f32 %v371, %v378
        %v411 = vmul.f32 %v372, %v378
        %v412 = vld [vmem:[%s2] sm:$0x1]
        %v414 = vlaneseq
        %v415 = vshrl.u32 %v414, 7
        %v416 = vsub.s32 0, %v415
        %v417 = vrot.slane %v412, %v416
        %v419 = vadd.f32 %v380, %v417
        %v420 = vadd.f32 %v381, %v417
        %v421 = vadd.f32 %v382, %v417
        %v422 = vadd.f32 %v383, %v417
        %v423 = vadd.f32 %v384, %v417
        %v424 = vadd.f32 %v385, %v417
        %v425 = vadd.f32 %v386, %v417
        %v426 = vadd.f32 %v387, %v417
        %v427 = vadd.f32 %v388, %v417
        %v428 = vadd.f32 %v389, %v417
        %v429 = vadd.f32 %v390, %v417
        %v430 = vadd.f32 %v391, %v417
        %v431 = vadd.f32 %v392, %v417
        %v432 = vadd.f32 %v393, %v417
        %v433 = vadd.f32 %v394, %v417
        %v434 = vadd.f32 %v395, %v417
        %v435 = vadd.f32 %v396, %v417
        %v436 = vadd.f32 %v397, %v417
        %v437 = vadd.f32 %v398, %v417
        %v438 = vadd.f32 %v399, %v417
        %v439 = vadd.f32 %v400, %v417
        %v440 = vadd.f32 %v401, %v417
        %v441 = vadd.f32 %v402, %v417
        %v442 = vadd.f32 %v403, %v417
        %v443 = vadd.f32 %v404, %v417
        %v444 = vadd.f32 %v405, %v417
        %v445 = vadd.f32 %v406, %v417
        %v446 = vadd.f32 %v407, %v417
        %v447 = vadd.f32 %v408, %v417
        %v448 = vadd.f32 %v409, %v417
        %v449 = vadd.f32 %v410, %v417
        %v450 = vadd.f32 %v411, %v417
        %v451 = vmax.f32 %v419, 0.0
        %v452 = vmax.f32 %v420, 0.0
        %v453 = vmax.f32 %v421, 0.0
        %v454 = vmax.f32 %v422, 0.0
        %v455 = vmax.f32 %v423, 0.0
        %v456 = vmax.f32 %v424, 0.0
        %v457 = vmax.f32 %v425, 0.0
        %v458 = vmax.f32 %v426, 0.0
        %v459 = vmax.f32 %v427, 0.0
        %v460 = vmax.f32 %v428, 0.0
        %v461 = vmax.f32 %v429, 0.0
        %v462 = vmax.f32 %v430, 0.0
        %v463 = vmax.f32 %v431, 0.0
        %v464 = vmax.f32 %v432, 0.0
        %v465 = vmax.f32 %v433, 0.0
        %v466 = vmax.f32 %v434, 0.0
        %v467 = vmax.f32 %v435, 0.0
        %v468 = vmax.f32 %v436, 0.0
        %v469 = vmax.f32 %v437, 0.0
        %v470 = vmax.f32 %v438, 0.0
        %v471 = vmax.f32 %v439, 0.0
        %v472 = vmax.f32 %v440, 0.0
        %v473 = vmax.f32 %v441, 0.0
        %v474 = vmax.f32 %v442, 0.0
        %v475 = vmax.f32 %v443, 0.0
        %v476 = vmax.f32 %v444, 0.0
        %v477 = vmax.f32 %v445, 0.0
        %v478 = vmax.f32 %v446, 0.0
        %v479 = vmax.f32 %v447, 0.0
        %v480 = vmax.f32 %v448, 0.0
        %v481 = vmax.f32 %v449, 0.0
        %v482 = vmax.f32 %v450, 0.0
        %v483 = vld [vmem:[#allocation10] sm:$0xff]
        %v484 = vld [vmem:[#allocation10 + $0x8] sm:$0xff]
        %v485 = vld [vmem:[#allocation10 + $0x10] sm:$0xff]
        %v486 = vld [vmem:[#allocation10 + $0x18] sm:$0xff]
        %v487 = vld [vmem:[#allocation10 + $0x20] sm:$0xff]
        %v488 = vld [vmem:[#allocation10 + $0x28] sm:$0xff]
        %v489 = vld [vmem:[#allocation10 + $0x30] sm:$0xff]
        %v490 = vld [vmem:[#allocation10 + $0x38] sm:$0xff]
        %v491 = vld [vmem:[#allocation10 + $0x40] sm:$0xff]
        %v492 = vld [vmem:[#allocation10 + $0x48] sm:$0xff]
        %v493 = vld [vmem:[#allocation10 + $0x50] sm:$0xff]
        %v494 = vld [vmem:[#allocation10 + $0x58] sm:$0xff]
        %v495 = vld [vmem:[#allocation10 + $0x60] sm:$0xff]
        %v496 = vld [vmem:[#allocation10 + $0x68] sm:$0xff]
        %v497 = vld [vmem:[#allocation10 + $0x70] sm:$0xff]
        %v498 = vld [vmem:[#allocation10 + $0x78] sm:$0xff]
        %499 = vmatprep.subr.mxu0 0.0
        %500 = vmatpush1.msra.mxu0 %v483
        %501 = vmatprep.subr.mxu0 0.0
        %502 = vmatpush1.msra.mxu0 %v484
        %503 = vmatprep.subr.mxu0 0.0
        %504 = vmatpush1.msra.mxu0 %v485
        %505 = vmatprep.subr.mxu0 0.0
        %506 = vmatpush1.msra.mxu0 %v486
        %507 = vmatprep.subr.mxu0 0.0
        %508 = vmatpush1.msra.mxu0 %v487
        %509 = vmatprep.subr.mxu0 0.0
        %510 = vmatpush1.msra.mxu0 %v488
        %511 = vmatprep.subr.mxu0 0.0
        %512 = vmatpush1.msra.mxu0 %v489
        %513 = vmatprep.subr.mxu0 0.0
        %514 = vmatpush1.msra.mxu0 %v490
        %515 = vmatprep.subr.mxu0 0.0
        %516 = vmatpush1.msra.mxu0 %v491
        %517 = vmatprep.subr.mxu0 0.0
        %518 = vmatpush1.msra.mxu0 %v492
        %519 = vmatprep.subr.mxu0 0.0
        %520 = vmatpush1.msra.mxu0 %v493
        %521 = vmatprep.subr.mxu0 0.0
        %522 = vmatpush1.msra.mxu0 %v494
        %523 = vmatprep.subr.mxu0 0.0
        %524 = vmatpush1.msra.mxu0 %v495
        %525 = vmatprep.subr.mxu0 0.0
        %526 = vmatpush1.msra.mxu0 %v496
        %527 = vmatprep.subr.mxu0 0.0
        %528 = vmatpush1.msra.mxu0 %v497
        %529 = vmatprep.subr.mxu0 0.0
        %530 = vmatpush1.msra.mxu0 %v498
        %531 = vmatprep.subr.mxu0 0.0
        %532 = vmatpush1.msra.mxu0 0.0
        %533 = vmatprep.subr.mxu0 0.0
        %534 = vmatpush1.msra.mxu0 0.0
        %535 = vmatprep.subr.mxu0 0.0
        %536 = vmatpush1.msra.mxu0 0.0
        %537 = vmatprep.subr.mxu0 0.0
        %538 = vmatpush1.msra.mxu0 0.0
        %539 = vmatprep.subr.mxu0 0.0
        %540 = vmatpush1.msra.mxu0 0.0
        %541 = vmatprep.subr.mxu0 0.0
        %542 = vmatpush1.msra.mxu0 0.0
        %543 = vmatprep.subr.mxu0 0.0
        %544 = vmatpush1.msra.mxu0 0.0
        %545 = vmatprep.subr.mxu0 0.0
        %546 = vmatpush1.msra.mxu0 0.0
        %547 = vmatprep.subr.mxu0 0.0
        %548 = vmatpush1.msra.mxu0 0.0
        %549 = vmatprep.subr.mxu0 0.0
        %550 = vmatpush1.msra.mxu0 0.0
        %551 = vmatprep.subr.mxu0 0.0
        %552 = vmatpush1.msra.mxu0 0.0
        %553 = vmatprep.subr.mxu0 0.0
        %554 = vmatpush1.msra.mxu0 0.0
        %555 = vmatprep.subr.mxu0 0.0
        %556 = vmatpush1.msra.mxu0 0.0
        %557 = vmatprep.subr.mxu0 0.0
        %558 = vmatpush1.msra.mxu0 0.0
        %559 = vmatprep.subr.mxu0 0.0
        %560 = vmatpush1.msra.mxu0 0.0
        %561 = vmatprep.subr.mxu0 0.0
        %562 = vmatpush1.msra.mxu0 0.0
        %563 = vmatprep.mubr.f32.mxu0 0.0
        %564 = vmatmul.mubr.f32.gmra.mrb[0].mxu0 %v451
        %v565 = vpop.f32.mrb[0].mxu0
        %v566 = vadd.f32 0.0, %v565
        %v567 = vpop.f32.mrb[0].mxu0
        %568 = vmatprep.mubr.f32.mxu0 0.0
        %569 = vmatmul.mubr.f32.gmra.mrb[0].mxu0 %v452
        %v570 = vpop.f32.mrb[0].mxu0
        %v571 = vadd.f32 0.0, %v570
        %v572 = vpop.f32.mrb[0].mxu0
        %573 = vmatprep.mubr.f32.mxu0 0.0
        %574 = vmatmul.mubr.f32.gmra.mrb[0].mxu0 %v453
        %v575 = vpop.f32.mrb[0].mxu0
        %v576 = vadd.f32 0.0, %v575
        %v577 = vpop.f32.mrb[0].mxu0
        %578 = vmatprep.mubr.f32.mxu0 0.0
        %579 = vmatmul.mubr.f32.gmra.mrb[0].mxu0 %v454
        %v580 = vpop.f32.mrb[0].mxu0
        %v581 = vadd.f32 0.0, %v580
        %v582 = vpop.f32.mrb[0].mxu0
        %583 = vmatprep.mubr.f32.mxu0 0.0
        %584 = vmatmul.mubr.f32.gmra.mrb[0].mxu0 %v455
        %v585 = vpop.f32.mrb[0].mxu0
        %v586 = vadd.f32 0.0, %v585
        %v587 = vpop.f32.mrb[0].mxu0
        %588 = vmatprep.mubr.f32.mxu0 0.0
        %589 = vmatmul.mubr.f32.gmra.mrb[0].mxu0 %v456
        %v590 = vpop.f32.mrb[0].mxu0
        %v591 = vadd.f32 0.0, %v590
        %v592 = vpop.f32.mrb[0].mxu0
        %593 = vmatprep.mubr.f32.mxu0 0.0
        %594 = vmatmul.mubr.f32.gmra.mrb[0].mxu0 %v457
        %v595 = vpop.f32.mrb[0].mxu0
        %v596 = vadd.f32 0.0, %v595
        %v597 = vpop.f32.mrb[0].mxu0
        %598 = vmatprep.mubr.f32.mxu0 0.0
        %599 = vmatmul.mubr.f32.gmra.mrb[0].mxu0 %v458
        %v600 = vpop.f32.mrb[0].mxu0
        %v601 = vadd.f32 0.0, %v600
        %v602 = vpop.f32.mrb[0].mxu0
        %603 = vmatprep.mubr.f32.mxu0 0.0
        %604 = vmatmul.mubr.f32.gmra.mrb[0].mxu0 %v459
        %v605 = vpop.f32.mrb[0].mxu0
        %v606 = vadd.f32 0.0, %v605
        %v607 = vpop.f32.mrb[0].mxu0
        %608 = vmatprep.mubr.f32.mxu0 0.0
        %609 = vmatmul.mubr.f32.gmra.mrb[0].mxu0 %v460
        %v610 = vpop.f32.mrb[0].mxu0
        %v611 = vadd.f32 0.0, %v610
        %v612 = vpop.f32.mrb[0].mxu0
        %613 = vmatprep.mubr.f32.mxu0 0.0
        %614 = vmatmul.mubr.f32.gmra.mrb[0].mxu0 %v461
        %v615 = vpop.f32.mrb[0].mxu0
        %v616 = vadd.f32 0.0, %v615
        %v617 = vpop.f32.mrb[0].mxu0
        %618 = vmatprep.mubr.f32.mxu0 0.0
        %619 = vmatmul.mubr.f32.gmra.mrb[0].mxu0 %v462
        %v620 = vpop.f32.mrb[0].mxu0
        %v621 = vadd.f32 0.0, %v620
        %v622 = vpop.f32.mrb[0].mxu0
        %623 = vmatprep.mubr.f32.mxu0 0.0
        %624 = vmatmul.mubr.f32.gmra.mrb[0].mxu0 %v463
        %v625 = vpop.f32.mrb[0].mxu0
        %v626 = vadd.f32 0.0, %v625
        %v627 = vpop.f32.mrb[0].mxu0
        %628 = vmatprep.mubr.f32.mxu0 0.0
        %629 = vmatmul.mubr.f32.gmra.mrb[0].mxu0 %v464
        %v630 = vpop.f32.mrb[0].mxu0
        %v631 = vadd.f32 0.0, %v630
        %v632 = vpop.f32.mrb[0].mxu0
        %633 = vmatprep.mubr.f32.mxu0 0.0
        %634 = vmatmul.mubr.f32.gmra.mrb[0].mxu0 %v465
        %v635 = vpop.f32.mrb[0].mxu0
        %v636 = vadd.f32 0.0, %v635
        %v637 = vpop.f32.mrb[0].mxu0
        %638 = vmatprep.mubr.f32.mxu0 0.0
        %639 = vmatmul.mubr.f32.gmra.mrb[0].mxu0 %v466
        %v640 = vpop.f32.mrb[0].mxu0
        %v641 = vadd.f32 0.0, %v640
        %v642 = vpop.f32.mrb[0].mxu0
        %643 = vmatprep.mubr.f32.mxu0 0.0
        %644 = vmatmul.mubr.f32.gmra.mrb[0].mxu0 %v467
        %v645 = vpop.f32.mrb[0].mxu0
        %v646 = vadd.f32 0.0, %v645
        %v647 = vpop.f32.mrb[0].mxu0
        %648 = vmatprep.mubr.f32.mxu0 0.0
        %649 = vmatmul.mubr.f32.gmra.mrb[0].mxu0 %v468
        %v650 = vpop.f32.mrb[0].mxu0
        %v651 = vadd.f32 0.0, %v650
        %v652 = vpop.f32.mrb[0].mxu0
        %653 = vmatprep.mubr.f32.mxu0 0.0
        %654 = vmatmul.mubr.f32.gmra.mrb[0].mxu0 %v469
        %v655 = vpop.f32.mrb[0].mxu0
        %v656 = vadd.f32 0.0, %v655
        %v657 = vpop.f32.mrb[0].mxu0
        %658 = vmatprep.mubr.f32.mxu0 0.0
        %659 = vmatmul.mubr.f32.gmra.mrb[0].mxu0 %v470
        %v660 = vpop.f32.mrb[0].mxu0
        %v661 = vadd.f32 0.0, %v660
        %v662 = vpop.f32.mrb[0].mxu0
        %663 = vmatprep.mubr.f32.mxu0 0.0
        %664 = vmatmul.mubr.f32.gmra.mrb[0].mxu0 %v471
        %v665 = vpop.f32.mrb[0].mxu0
        %v666 = vadd.f32 0.0, %v665
        %v667 = vpop.f32.mrb[0].mxu0
        %668 = vmatprep.mubr.f32.mxu0 0.0
        %669 = vmatmul.mubr.f32.gmra.mrb[0].mxu0 %v472
        %v670 = vpop.f32.mrb[0].mxu0
        %v671 = vadd.f32 0.0, %v670
        %v672 = vpop.f32.mrb[0].mxu0
        %673 = vmatprep.mubr.f32.mxu0 0.0
        %674 = vmatmul.mubr.f32.gmra.mrb[0].mxu0 %v473
        %v675 = vpop.f32.mrb[0].mxu0
        %v676 = vadd.f32 0.0, %v675
        %v677 = vpop.f32.mrb[0].mxu0
        %678 = vmatprep.mubr.f32.mxu0 0.0
        %679 = vmatmul.mubr.f32.gmra.mrb[0].mxu0 %v474
        %v680 = vpop.f32.mrb[0].mxu0
        %v681 = vadd.f32 0.0, %v680
        %v682 = vpop.f32.mrb[0].mxu0
        %683 = vmatprep.mubr.f32.mxu0 0.0
        %684 = vmatmul.mubr.f32.gmra.mrb[0].mxu0 %v475
        %v685 = vpop.f32.mrb[0].mxu0
        %v686 = vadd.f32 0.0, %v685
        %v687 = vpop.f32.mrb[0].mxu0
        %688 = vmatprep.mubr.f32.mxu0 0.0
        %689 = vmatmul.mubr.f32.gmra.mrb[0].mxu0 %v476
        %v690 = vpop.f32.mrb[0].mxu0
        %v691 = vadd.f32 0.0, %v690
        %v692 = vpop.f32.mrb[0].mxu0
        %693 = vmatprep.mubr.f32.mxu0 0.0
        %694 = vmatmul.mubr.f32.gmra.mrb[0].mxu0 %v477
        %v695 = vpop.f32.mrb[0].mxu0
        %v696 = vadd.f32 0.0, %v695
        %v697 = vpop.f32.mrb[0].mxu0
        %698 = vmatprep.mubr.f32.mxu0 0.0
        %699 = vmatmul.mubr.f32.gmra.mrb[0].mxu0 %v478
        %v700 = vpop.f32.mrb[0].mxu0
        %v701 = vadd.f32 0.0, %v700
        %v702 = vpop.f32.mrb[0].mxu0
        %703 = vmatprep.mubr.f32.mxu0 0.0
        %704 = vmatmul.mubr.f32.gmra.mrb[0].mxu0 %v479
        %v705 = vpop.f32.mrb[0].mxu0
        %v706 = vadd.f32 0.0, %v705
        %v707 = vpop.f32.mrb[0].mxu0
        %708 = vmatprep.mubr.f32.mxu0 0.0
        %709 = vmatmul.mubr.f32.gmra.mrb[0].mxu0 %v480
        %v710 = vpop.f32.mrb[0].mxu0
        %v711 = vadd.f32 0.0, %v710
        %v712 = vpop.f32.mrb[0].mxu0
        %713 = vmatprep.mubr.f32.mxu0 0.0
        %714 = vmatmul.mubr.f32.gmra.mrb[0].mxu0 %v481
        %v715 = vpop.f32.mrb[0].mxu0
        %v716 = vadd.f32 0.0, %v715
        %v717 = vpop.f32.mrb[0].mxu0
        %718 = vmatprep.mubr.f32.mxu0 0.0
        %719 = vmatmul.mubr.f32.gmra.mrb[0].mxu0 %v482
        %v720 = vpop.f32.mrb[0].mxu0
        %v721 = vadd.f32 0.0, %v720
        %v722 = vpop.f32.mrb[0].mxu0
        %723 = vdwg.mxu0
        %724 = vst [vmem:[#allocation6] sm:$0xff] %v566
        %725 = vst [vmem:[#allocation6 + $0x8] sm:$0xff] %v571
        %726 = vst [vmem:[#allocation6 + $0x10] sm:$0xff] %v576
        %727 = vst [vmem:[#allocation6 + $0x18] sm:$0xff] %v581
        %728 = vst [vmem:[#allocation6 + $0x20] sm:$0xff] %v586
        %729 = vst [vmem:[#allocation6 + $0x28] sm:$0xff] %v591
        %730 = vst [vmem:[#allocation6 + $0x30] sm:$0xff] %v596
        %731 = vst [vmem:[#allocation6 + $0x38] sm:$0xff] %v601
        %732 = vst [vmem:[#allocation6 + $0x40] sm:$0xff] %v606
        %733 = vst [vmem:[#allocation6 + $0x48] sm:$0xff] %v611
        %734 = vst [vmem:[#allocation6 + $0x50] sm:$0xff] %v616
        %735 = vst [vmem:[#allocation6 + $0x58] sm:$0xff] %v621
        %736 = vst [vmem:[#allocation6 + $0x60] sm:$0xff] %v626
        %737 = vst [vmem:[#allocation6 + $0x68] sm:$0xff] %v631
        %738 = vst [vmem:[#allocation6 + $0x70] sm:$0xff] %v636
        %739 = vst [vmem:[#allocation6 + $0x78] sm:$0xff] %v641
        %740 = vst [vmem:[#allocation6 + $0x80] sm:$0xff] %v646
        %741 = vst [vmem:[#allocation6 + $0x88] sm:$0xff] %v651
        %742 = vst [vmem:[#allocation6 + $0x90] sm:$0xff] %v656
        %743 = vst [vmem:[#allocation6 + $0x98] sm:$0xff] %v661
        %744 = vst [vmem:[#allocation6 + $0xa0] sm:$0xff] %v666
        %745 = vst [vmem:[#allocation6 + $0xa8] sm:$0xff] %v671
        %746 = vst [vmem:[#allocation6 + $0xb0] sm:$0xff] %v676
        %747 = vst [vmem:[#allocation6 + $0xb8] sm:$0xff] %v681
        %748 = vst [vmem:[#allocation6 + $0xc0] sm:$0xff] %v686
        %749 = vst [vmem:[#allocation6 + $0xc8] sm:$0xff] %v691
        %750 = vst [vmem:[#allocation6 + $0xd0] sm:$0xff] %v696
        %751 = vst [vmem:[#allocation6 + $0xd8] sm:$0xff] %v701
        %752 = vst [vmem:[#allocation6 + $0xe0] sm:$0xff] %v706
        %753 = vst [vmem:[#allocation6 + $0xe8] sm:$0xff] %v711
        %754 = vst [vmem:[#allocation6 + $0xf0] sm:$0xff] %v716
        %755 = vst [vmem:[#allocation6 + $0xf8] sm:$0xff] %v721
        %756 = vst [vmem:[#allocation2] sm:$0xff] 0.0
        %757 = vst [vmem:[#allocation2 + $0x8] sm:$0xff] 0.0
        %758 = vst [vmem:[#allocation2 + $0x10] sm:$0x3] 0.0
        %759 = vst [vmem:[#allocation2 + $0x18] sm:$0xff] 0.0
        %760 = vst [vmem:[#allocation2 + $0x20] sm:$0xff] 0.0
        %761 = vst [vmem:[#allocation2 + $0x28] sm:$0x3] 0.0
        %762 = vst [vmem:[#allocation2 + $0x30] sm:$0xff] 0.0
        %763 = vst [vmem:[#allocation2 + $0x38] sm:$0xff] 0.0
        %764 = vst [vmem:[#allocation2 + $0x40] sm:$0x3] 0.0
        %765 = vst [vmem:[#allocation2 + $0x48] sm:$0xff] 0.0
        %766 = vst [vmem:[#allocation2 + $0x50] sm:$0xff] 0.0
        %767 = vst [vmem:[#allocation2 + $0x58] sm:$0x3] 0.0
        %768 = vst [vmem:[#allocation2 + $0x60] sm:$0xff] 0.0
        %769 = vst [vmem:[#allocation2 + $0x68] sm:$0xff] 0.0
        %770 = vst [vmem:[#allocation2 + $0x70] sm:$0x3] 0.0
        %771 = vst [vmem:[#allocation2 + $0x78] sm:$0xff] 0.0
        %772 = vst [vmem:[#allocation2 + $0x80] sm:$0xff] 0.0
        %773 = vst [vmem:[#allocation2 + $0x88] sm:$0x3] 0.0
        %774 = vst [vmem:[#allocation2 + $0x90] sm:$0xff] 0.0
        %775 = vst [vmem:[#allocation2 + $0x98] sm:$0xff] 0.0
        %776 = vst [vmem:[#allocation2 + $0xa0] sm:$0x3] 0.0
        %777 = vst [vmem:[#allocation2 + $0xa8] sm:$0xff] 0.0
        %778 = vst [vmem:[#allocation2 + $0xb0] sm:$0xff] 0.0
        %779 = vst [vmem:[#allocation2 + $0xb8] sm:$0x3] 0.0
        %780 = vst [vmem:[#allocation2 + $0xc0] sm:$0xff] 0.0
        %781 = vst [vmem:[#allocation2 + $0xc8] sm:$0xff] 0.0
        %782 = vst [vmem:[#allocation2 + $0xd0] sm:$0x3] 0.0
        %783 = vst [vmem:[#allocation2 + $0xd8] sm:$0xff] 0.0
        %784 = vst [vmem:[#allocation2 + $0xe0] sm:$0xff] 0.0
        %785 = vst [vmem:[#allocation2 + $0xe8] sm:$0x3] 0.0
        %786 = vst [vmem:[#allocation2 + $0xf0] sm:$0xff] 0.0
        %787 = vst [vmem:[#allocation2 + $0xf8] sm:$0xff] 0.0
        %788 = vst [vmem:[#allocation2 + $0x100] sm:$0x3] 0.0
        %789 = vst [vmem:[#allocation2 + $0x108] sm:$0xff] 0.0
        %790 = vst [vmem:[#allocation2 + $0x110] sm:$0xff] 0.0
        %791 = vst [vmem:[#allocation2 + $0x118] sm:$0x3] 0.0
        %792 = vst [vmem:[#allocation2 + $0x120] sm:$0xff] 0.0
        %793 = vst [vmem:[#allocation2 + $0x128] sm:$0xff] 0.0
        %794 = vst [vmem:[#allocation2 + $0x130] sm:$0x3] 0.0
        %795 = vst [vmem:[#allocation2 + $0x138] sm:$0xff] 0.0
        %796 = vst [vmem:[#allocation2 + $0x140] sm:$0xff] 0.0
        %797 = vst [vmem:[#allocation2 + $0x148] sm:$0x3] 0.0
        %798 = vst [vmem:[#allocation2 + $0x150] sm:$0xff] 0.0
        %799 = vst [vmem:[#allocation2 + $0x158] sm:$0xff] 0.0
        %800 = vst [vmem:[#allocation2 + $0x160] sm:$0x3] 0.0
        %801 = vst [vmem:[#allocation2 + $0x168] sm:$0xff] 0.0
        %802 = vst [vmem:[#allocation2 + $0x170] sm:$0xff] 0.0
        %803 = vst [vmem:[#allocation2 + $0x178] sm:$0x3] 0.0
        %804 = vst [vmem:[#allocation2 + $0x180] sm:$0xff] 0.0
        %805 = vst [vmem:[#allocation2 + $0x188] sm:$0xff] 0.0
        %806 = vst [vmem:[#allocation2 + $0x190] sm:$0x3] 0.0
        %807 = vst [vmem:[#allocation2 + $0x198] sm:$0xff] 0.0
        %808 = vst [vmem:[#allocation2 + $0x1a0] sm:$0xff] 0.0
        %809 = vst [vmem:[#allocation2 + $0x1a8] sm:$0x3] 0.0
        %s810 = scalar_lea.vmem [#allocation2], 24
        %811 = vst [vmem:[%s810 + $0x1] sm:$0xff] %v451
        %812 = vst [vmem:[%s810 + $0x9] sm:$0xff] %v452
        %813 = vst [vmem:[%s810 + $0x19] sm:$0xff] %v453
        %814 = vst [vmem:[%s810 + $0x21] sm:$0xff] %v454
        %815 = vst [vmem:[%s810 + $0x31] sm:$0xff] %v455
        %816 = vst [vmem:[%s810 + $0x39] sm:$0xff] %v456
        %817 = vst [vmem:[%s810 + $0x49] sm:$0xff] %v457
        %818 = vst [vmem:[%s810 + $0x51] sm:$0xff] %v458
        %819 = vst [vmem:[%s810 + $0x61] sm:$0xff] %v459
        %820 = vst [vmem:[%s810 + $0x69] sm:$0xff] %v460
        %821 = vst [vmem:[%s810 + $0x79] sm:$0xff] %v461
        %822 = vst [vmem:[%s810 + $0x81] sm:$0xff] %v462
        %823 = vst [vmem:[%s810 + $0x91] sm:$0xff] %v463
        %824 = vst [vmem:[%s810 + $0x99] sm:$0xff] %v464
        %825 = vst [vmem:[%s810 + $0xa9] sm:$0xff] %v465
        %826 = vst [vmem:[%s810 + $0xb1] sm:$0xff] %v466
        %827 = vst [vmem:[%s810 + $0xc1] sm:$0xff] %v467
        %828 = vst [vmem:[%s810 + $0xc9] sm:$0xff] %v468
        %829 = vst [vmem:[%s810 + $0xd9] sm:$0xff] %v469
        %830 = vst [vmem:[%s810 + $0xe1] sm:$0xff] %v470
        %831 = vst [vmem:[%s810 + $0xf1] sm:$0xff] %v471
        %832 = vst [vmem:[%s810 + $0xf9] sm:$0xff] %v472
        %833 = vst [vmem:[%s810 + $0x109] sm:$0xff] %v473
        %834 = vst [vmem:[%s810 + $0x111] sm:$0xff] %v474
        %835 = vst [vmem:[%s810 + $0x121] sm:$0xff] %v475
        %836 = vst [vmem:[%s810 + $0x129] sm:$0xff] %v476
        %837 = vst [vmem:[%s810 + $0x139] sm:$0xff] %v477
        %838 = vst [vmem:[%s810 + $0x141] sm:$0xff] %v478
        %839 = vst [vmem:[%s810 + $0x151] sm:$0xff] %v479
        %840 = vst [vmem:[%s810 + $0x159] sm:$0xff] %v480
        %841 = vst [vmem:[%s810 + $0x169] sm:$0xff] %v481
        %842 = vst [vmem:[%s810 + $0x171] sm:$0xff] %v482
        %v843 = vld [vmem:[#allocation2] sm:$0xff]
        %v844 = vld [vmem:[#allocation2 + $0x8] sm:$0xff]
        %v845 = vld [vmem:[#allocation2 + $0x18] sm:$0xff]
        %v846 = vld [vmem:[#allocation2 + $0x20] sm:$0xff]
        %v847 = vld [vmem:[#allocation2 + $0x30] sm:$0xff]
        %v848 = vld [vmem:[#allocation2 + $0x38] sm:$0xff]
        %v849 = vld [vmem:[#allocation2 + $0x48] sm:$0xff]
        %v850 = vld [vmem:[#allocation2 + $0x50] sm:$0xff]
        %v851 = vld [vmem:[#allocation2 + $0x60] sm:$0xff]
        %v852 = vld [vmem:[#allocation2 + $0x68] sm:$0xff]
        %v853 = vld [vmem:[#allocation2 + $0x78] sm:$0xff]
        %v854 = vld [vmem:[#allocation2 + $0x80] sm:$0xff]
        %v855 = vld [vmem:[#allocation2 + $0x90] sm:$0xff]
        %v856 = vld [vmem:[#allocation2 + $0x98] sm:$0xff]
        %v857 = vld [vmem:[#allocation2 + $0xa8] sm:$0xff]
        %v858 = vld [vmem:[#allocation2 + $0xb0] sm:$0xff]
        %v859 = vld [vmem:[#allocation2 + $0xc0] sm:$0xff]
        %v860 = vld [vmem:[#allocation2 + $0xc8] sm:$0xff]
        %v861 = vld [vmem:[#allocation2 + $0xd8] sm:$0xff]
        %v862 = vld [vmem:[#allocation2 + $0xe0] sm:$0xff]
        %v863 = vld [vmem:[#allocation2 + $0xf0] sm:$0xff]
        %v864 = vld [vmem:[#allocation2 + $0xf8] sm:$0xff]
        %v865 = vld [vmem:[#allocation2 + $0x108] sm:$0xff]
        %v866 = vld [vmem:[#allocation2 + $0x110] sm:$0xff]
        %v867 = vld [vmem:[#allocation2 + $0x120] sm:$0xff]
        %v868 = vld [vmem:[#allocation2 + $0x128] sm:$0xff]
        %v869 = vld [vmem:[#allocation2 + $0x138] sm:$0xff]
        %v870 = vld [vmem:[#allocation2 + $0x140] sm:$0xff]
        %v871 = vld [vmem:[#allocation2 + $0x150] sm:$0xff]
        %v872 = vld [vmem:[#allocation2 + $0x158] sm:$0xff]
        %v873 = vld [vmem:[#allocation2 + $0x168] sm:$0xff]
        %v874 = vld [vmem:[#allocation2 + $0x170] sm:$0xff]
        %875 = vst [vmem:[#allocation4] sm:$0xff] %v843
        %876 = vst [vmem:[#allocation4 + $0x48] sm:$0xff] %v844
        %877 = vst [vmem:[#allocation4 + $0x90] sm:$0xff] %v845
        %878 = vst [vmem:[#allocation4 + $0xd8] sm:$0xff] %v846
        %879 = vst [vmem:[#allocation4 + $0x120] sm:$0xff] %v847
        %880 = vst [vmem:[#allocation4 + $0x168] sm:$0xff] %v848
        %881 = vst [vmem:[#allocation4 + $0x1b0] sm:$0xff] %v849
        %882 = vst [vmem:[#allocation4 + $0x1f8] sm:$0xff] %v850
        %883 = vst [vmem:[#allocation4 + $0x240] sm:$0xff] %v851
        %884 = vst [vmem:[#allocation4 + $0x288] sm:$0xff] %v852
        %885 = vst [vmem:[#allocation4 + $0x2d0] sm:$0xff] %v853
        %886 = vst [vmem:[#allocation4 + $0x318] sm:$0xff] %v854
        %887 = vst [vmem:[#allocation4 + $0x360] sm:$0xff] %v855
        %888 = vst [vmem:[#allocation4 + $0x3a8] sm:$0xff] %v856
        %889 = vst [vmem:[#allocation4 + $0x3f0] sm:$0xff] %v857
        %890 = vst [vmem:[#allocation4 + $0x438] sm:$0xff] %v858
        %891 = vst [vmem:[#allocation4 + $0x480] sm:$0xff] %v859
        %892 = vst [vmem:[#allocation4 + $0x4c8] sm:$0xff] %v860
        %893 = vst [vmem:[#allocation4 + $0x510] sm:$0xff] %v861
        %894 = vst [vmem:[#allocation4 + $0x558] sm:$0xff] %v862
        %895 = vst [vmem:[#allocation4 + $0x5a0] sm:$0xff] %v863
        %896 = vst [vmem:[#allocation4 + $0x5e8] sm:$0xff] %v864
        %897 = vst [vmem:[#allocation4 + $0x630] sm:$0xff] %v865
        %898 = vst [vmem:[#allocation4 + $0x678] sm:$0xff] %v866
        %899 = vst [vmem:[#allocation4 + $0x6c0] sm:$0xff] %v867
        %900 = vst [vmem:[#allocation4 + $0x708] sm:$0xff] %v868
        %901 = vst [vmem:[#allocation4 + $0x750] sm:$0xff] %v869
        %902 = vst [vmem:[#allocation4 + $0x798] sm:$0xff] %v870
        %903 = vst [vmem:[#allocation4 + $0x7e0] sm:$0xff] %v871
        %904 = vst [vmem:[#allocation4 + $0x828] sm:$0xff] %v872
        %905 = vst [vmem:[#allocation4 + $0x870] sm:$0xff] %v873
        %906 = vst [vmem:[#allocation4 + $0x8b8] sm:$0xff] %v874
        %v907 = vld [vmem:[#allocation2 + $0x1] sm:$0xff]
        %v908 = vld [vmem:[#allocation2 + $0x9] sm:$0xff]
        %v909 = vld [vmem:[#allocation2 + $0x19] sm:$0xff]
        %v910 = vld [vmem:[#allocation2 + $0x21] sm:$0xff]
        %v911 = vld [vmem:[#allocation2 + $0x31] sm:$0xff]
        %v912 = vld [vmem:[#allocation2 + $0x39] sm:$0xff]
        %v913 = vld [vmem:[#allocation2 + $0x49] sm:$0xff]
        %v914 = vld [vmem:[#allocation2 + $0x51] sm:$0xff]
        %v915 = vld [vmem:[#allocation2 + $0x61] sm:$0xff]
        %v916 = vld [vmem:[#allocation2 + $0x69] sm:$0xff]
        %v917 = vld [vmem:[#allocation2 + $0x79] sm:$0xff]
        %v918 = vld [vmem:[#allocation2 + $0x81] sm:$0xff]
        %v919 = vld [vmem:[#allocation2 + $0x91] sm:$0xff]
        %v920 = vld [vmem:[#allocation2 + $0x99] sm:$0xff]
        %v921 = vld [vmem:[#allocation2 + $0xa9] sm:$0xff]
        %v922 = vld [vmem:[#allocation2 + $0xb1] sm:$0xff]
        %v923 = vld [vmem:[#allocation2 + $0xc1] sm:$0xff]
        %v924 = vld [vmem:[#allocation2 + $0xc9] sm:$0xff]
        %v925 = vld [vmem:[#allocation2 + $0xd9] sm:$0xff]
        %v926 = vld [vmem:[#allocation2 + $0xe1] sm:$0xff]
        %v927 = vld [vmem:[#allocation2 + $0xf1] sm:$0xff]
        %v928 = vld [vmem:[#allocation2 + $0xf9] sm:$0xff]
        %v929 = vld [vmem:[#allocation2 + $0x109] sm:$0xff]
        %v930 = vld [vmem:[#allocation2 + $0x111] sm:$0xff]
        %v931 = vld [vmem:[#allocation2 + $0x121] sm:$0xff]
        %v932 = vld [vmem:[#allocation2 + $0x129] sm:$0xff]
        %v933 = vld [vmem:[#allocation2 + $0x139] sm:$0xff]
        %v934 = vld [vmem:[#allocation2 + $0x141] sm:$0xff]
        %v935 = vld [vmem:[#allocation2 + $0x151] sm:$0xff]
        %v936 = vld [vmem:[#allocation2 + $0x159] sm:$0xff]
        %v937 = vld [vmem:[#allocation2 + $0x169] sm:$0xff]
        %v938 = vld [vmem:[#allocation2 + $0x171] sm:$0xff]
        %939 = vst [vmem:[#allocation4 + $0x8] sm:$0xff] %v907
        %940 = vst [vmem:[#allocation4 + $0x50] sm:$0xff] %v908
        %941 = vst [vmem:[#allocation4 + $0x98] sm:$0xff] %v909
        %942 = vst [vmem:[#allocation4 + $0xe0] sm:$0xff] %v910
        %943 = vst [vmem:[#allocation4 + $0x128] sm:$0xff] %v911
        %944 = vst [vmem:[#allocation4 + $0x170] sm:$0xff] %v912
        %945 = vst [vmem:[#allocation4 + $0x1b8] sm:$0xff] %v913
        %946 = vst [vmem:[#allocation4 + $0x200] sm:$0xff] %v914
        %947 = vst [vmem:[#allocation4 + $0x248] sm:$0xff] %v915
        %948 = vst [vmem:[#allocation4 + $0x290] sm:$0xff] %v916
        %949 = vst [vmem:[#allocation4 + $0x2d8] sm:$0xff] %v917
        %950 = vst [vmem:[#allocation4 + $0x320] sm:$0xff] %v918
        %951 = vst [vmem:[#allocation4 + $0x368] sm:$0xff] %v919
        %952 = vst [vmem:[#allocation4 + $0x3b0] sm:$0xff] %v920
        %953 = vst [vmem:[#allocation4 + $0x3f8] sm:$0xff] %v921
        %954 = vst [vmem:[#allocation4 + $0x440] sm:$0xff] %v922
        %955 = vst [vmem:[#allocation4 + $0x488] sm:$0xff] %v923
        %956 = vst [vmem:[#allocation4 + $0x4d0] sm:$0xff] %v924
        %957 = vst [vmem:[#allocation4 + $0x518] sm:$0xff] %v925
        %958 = vst [vmem:[#allocation4 + $0x560] sm:$0xff] %v926
        %959 = vst [vmem:[#allocation4 + $0x5a8] sm:$0xff] %v927
        %960 = vst [vmem:[#allocation4 + $0x5f0] sm:$0xff] %v928
        %961 = vst [vmem:[#allocation4 + $0x638] sm:$0xff] %v929
        %962 = vst [vmem:[#allocation4 + $0x680] sm:$0xff] %v930
        %963 = vst [vmem:[#allocation4 + $0x6c8] sm:$0xff] %v931
        %964 = vst [vmem:[#allocation4 + $0x710] sm:$0xff] %v932
        %965 = vst [vmem:[#allocation4 + $0x758] sm:$0xff] %v933
        %966 = vst [vmem:[#allocation4 + $0x7a0] sm:$0xff] %v934
        %967 = vst [vmem:[#allocation4 + $0x7e8] sm:$0xff] %v935
        %968 = vst [vmem:[#allocation4 + $0x830] sm:$0xff] %v936
        %969 = vst [vmem:[#allocation4 + $0x878] sm:$0xff] %v937
        %970 = vst [vmem:[#allocation4 + $0x8c0] sm:$0xff] %v938
        %v971 = vld [vmem:[#allocation2 + $0x2] sm:$0xff]
        %v972 = vld [vmem:[#allocation2 + $0xa] sm:$0xff]
        %v973 = vld [vmem:[#allocation2 + $0x1a] sm:$0xff]
        %v974 = vld [vmem:[#allocation2 + $0x22] sm:$0xff]
        %v975 = vld [vmem:[#allocation2 + $0x32] sm:$0xff]
        %v976 = vld [vmem:[#allocation2 + $0x3a] sm:$0xff]
        %v977 = vld [vmem:[#allocation2 + $0x4a] sm:$0xff]
        %v978 = vld [vmem:[#allocation2 + $0x52] sm:$0xff]
        %v979 = vld [vmem:[#allocation2 + $0x62] sm:$0xff]
        %v980 = vld [vmem:[#allocation2 + $0x6a] sm:$0xff]
        %v981 = vld [vmem:[#allocation2 + $0x7a] sm:$0xff]
        %v982 = vld [vmem:[#allocation2 + $0x82] sm:$0xff]
        %v983 = vld [vmem:[#allocation2 + $0x92] sm:$0xff]
        %v984 = vld [vmem:[#allocation2 + $0x9a] sm:$0xff]
        %v985 = vld [vmem:[#allocation2 + $0xaa] sm:$0xff]
        %v986 = vld [vmem:[#allocation2 + $0xb2] sm:$0xff]
        %v987 = vld [vmem:[#allocation2 + $0xc2] sm:$0xff]
        %v988 = vld [vmem:[#allocation2 + $0xca] sm:$0xff]
        %v989 = vld [vmem:[#allocation2 + $0xda] sm:$0xff]
        %v990 = vld [vmem:[#allocation2 + $0xe2] sm:$0xff]
        %v991 = vld [vmem:[#allocation2 + $0xf2] sm:$0xff]
        %v992 = vld [vmem:[#allocation2 + $0xfa] sm:$0xff]
        %v993 = vld [vmem:[#allocation2 + $0x10a] sm:$0xff]
        %v994 = vld [vmem:[#allocation2 + $0x112] sm:$0xff]
        %v995 = vld [vmem:[#allocation2 + $0x122] sm:$0xff]
        %v996 = vld [vmem:[#allocation2 + $0x12a] sm:$0xff]
        %v997 = vld [vmem:[#allocation2 + $0x13a] sm:$0xff]
        %v998 = vld [vmem:[#allocation2 + $0x142] sm:$0xff]
        %v999 = vld [vmem:[#allocation2 + $0x152] sm:$0xff]
        %v1000 = vld [vmem:[#allocation2 + $0x15a] sm:$0xff]
        %v1001 = vld [vmem:[#allocation2 + $0x16a] sm:$0xff]
        %v1002 = vld [vmem:[#allocation2 + $0x172] sm:$0xff]
        %1003 = vst [vmem:[#allocation4 + $0x10] sm:$0xff] %v971
        %1004 = vst [vmem:[#allocation4 + $0x58] sm:$0xff] %v972
        %1005 = vst [vmem:[#allocation4 + $0xa0] sm:$0xff] %v973
        %1006 = vst [vmem:[#allocation4 + $0xe8] sm:$0xff] %v974
        %1007 = vst [vmem:[#allocation4 + $0x130] sm:$0xff] %v975
        %1008 = vst [vmem:[#allocation4 + $0x178] sm:$0xff] %v976
        %1009 = vst [vmem:[#allocation4 + $0x1c0] sm:$0xff] %v977
        %1010 = vst [vmem:[#allocation4 + $0x208] sm:$0xff] %v978
        %1011 = vst [vmem:[#allocation4 + $0x250] sm:$0xff] %v979
        %1012 = vst [vmem:[#allocation4 + $0x298] sm:$0xff] %v980
        %1013 = vst [vmem:[#allocation4 + $0x2e0] sm:$0xff] %v981
        %1014 = vst [vmem:[#allocation4 + $0x328] sm:$0xff] %v982
        %1015 = vst [vmem:[#allocation4 + $0x370] sm:$0xff] %v983
        %1016 = vst [vmem:[#allocation4 + $0x3b8] sm:$0xff] %v984
        %1017 = vst [vmem:[#allocation4 + $0x400] sm:$0xff] %v985
        %1018 = vst [vmem:[#allocation4 + $0x448] sm:$0xff] %v986
        %1019 = vst [vmem:[#allocation4 + $0x490] sm:$0xff] %v987
        %1020 = vst [vmem:[#allocation4 + $0x4d8] sm:$0xff] %v988
        %1021 = vst [vmem:[#allocation4 + $0x520] sm:$0xff] %v989
        %1022 = vst [vmem:[#allocation4 + $0x568] sm:$0xff] %v990
        %1023 = vst [vmem:[#allocation4 + $0x5b0] sm:$0xff] %v991
        %1024 = vst [vmem:[#allocation4 + $0x5f8] sm:$0xff] %v992
        %1025 = vst [vmem:[#allocation4 + $0x640] sm:$0xff] %v993
        %1026 = vst [vmem:[#allocation4 + $0x688] sm:$0xff] %v994
        %1027 = vst [vmem:[#allocation4 + $0x6d0] sm:$0xff] %v995
        %1028 = vst [vmem:[#allocation4 + $0x718] sm:$0xff] %v996
        %1029 = vst [vmem:[#allocation4 + $0x760] sm:$0xff] %v997
        %1030 = vst [vmem:[#allocation4 + $0x7a8] sm:$0xff] %v998
        %1031 = vst [vmem:[#allocation4 + $0x7f0] sm:$0xff] %v999
        %1032 = vst [vmem:[#allocation4 + $0x838] sm:$0xff] %v1000
        %1033 = vst [vmem:[#allocation4 + $0x880] sm:$0xff] %v1001
        %1034 = vst [vmem:[#allocation4 + $0x8c8] sm:$0xff] %v1002
        %v1035 = vld [vmem:[%s810] sm:$0xff]
        %v1036 = vld [vmem:[%s810 + $0x8] sm:$0xff]
        %v1037 = vld [vmem:[%s810 + $0x18] sm:$0xff]
        %v1038 = vld [vmem:[%s810 + $0x20] sm:$0xff]
        %v1039 = vld [vmem:[%s810 + $0x30] sm:$0xff]
        %v1040 = vld [vmem:[%s810 + $0x38] sm:$0xff]
        %v1041 = vld [vmem:[%s810 + $0x48] sm:$0xff]
        %v1042 = vld [vmem:[%s810 + $0x50] sm:$0xff]
        %v1043 = vld [vmem:[%s810 + $0x60] sm:$0xff]
        %v1044 = vld [vmem:[%s810 + $0x68] sm:$0xff]
        %v1045 = vld [vmem:[%s810 + $0x78] sm:$0xff]
        %v1046 = vld [vmem:[%s810 + $0x80] sm:$0xff]
        %v1047 = vld [vmem:[%s810 + $0x90] sm:$0xff]
        %v1048 = vld [vmem:[%s810 + $0x98] sm:$0xff]
        %v1049 = vld [vmem:[%s810 + $0xa8] sm:$0xff]
        %v1050 = vld [vmem:[%s810 + $0xb0] sm:$0xff]
        %v1051 = vld [vmem:[%s810 + $0xc0] sm:$0xff]
        %v1052 = vld [vmem:[%s810 + $0xc8] sm:$0xff]
        %v1053 = vld [vmem:[%s810 + $0xd8] sm:$0xff]
        %v1054 = vld [vmem:[%s810 + $0xe0] sm:$0xff]
        %v1055 = vld [vmem:[%s810 + $0xf0] sm:$0xff]
        %v1056 = vld [vmem:[%s810 + $0xf8] sm:$0xff]
        %v1057 = vld [vmem:[%s810 + $0x108] sm:$0xff]
        %v1058 = vld [vmem:[%s810 + $0x110] sm:$0xff]
        %v1059 = vld [vmem:[%s810 + $0x120] sm:$0xff]
        %v1060 = vld [vmem:[%s810 + $0x128] sm:$0xff]
        %v1061 = vld [vmem:[%s810 + $0x138] sm:$0xff]
        %v1062 = vld [vmem:[%s810 + $0x140] sm:$0xff]
        %v1063 = vld [vmem:[%s810 + $0x150] sm:$0xff]
        %v1064 = vld [vmem:[%s810 + $0x158] sm:$0xff]
        %v1065 = vld [vmem:[%s810 + $0x168] sm:$0xff]
        %v1066 = vld [vmem:[%s810 + $0x170] sm:$0xff]
        %1067 = vst [vmem:[#allocation4 + $0x18] sm:$0xff] %v1035
        %1068 = vst [vmem:[#allocation4 + $0x60] sm:$0xff] %v1036
        %1069 = vst [vmem:[#allocation4 + $0xa8] sm:$0xff] %v1037
        %1070 = vst [vmem:[#allocation4 + $0xf0] sm:$0xff] %v1038
        %1071 = vst [vmem:[#allocation4 + $0x138] sm:$0xff] %v1039
        %1072 = vst [vmem:[#allocation4 + $0x180] sm:$0xff] %v1040
        %1073 = vst [vmem:[#allocation4 + $0x1c8] sm:$0xff] %v1041
        %1074 = vst [vmem:[#allocation4 + $0x210] sm:$0xff] %v1042
        %1075 = vst [vmem:[#allocation4 + $0x258] sm:$0xff] %v1043
        %1076 = vst [vmem:[#allocation4 + $0x2a0] sm:$0xff] %v1044
        %1077 = vst [vmem:[#allocation4 + $0x2e8] sm:$0xff] %v1045
        %1078 = vst [vmem:[#allocation4 + $0x330] sm:$0xff] %v1046
        %1079 = vst [vmem:[#allocation4 + $0x378] sm:$0xff] %v1047
        %1080 = vst [vmem:[#allocation4 + $0x3c0] sm:$0xff] %v1048
        %1081 = vst [vmem:[#allocation4 + $0x408] sm:$0xff] %v1049
        %1082 = vst [vmem:[#allocation4 + $0x450] sm:$0xff] %v1050
        %1083 = vst [vmem:[#allocation4 + $0x498] sm:$0xff] %v1051
        %1084 = vst [vmem:[#allocation4 + $0x4e0] sm:$0xff] %v1052
        %1085 = vst [vmem:[#allocation4 + $0x528] sm:$0xff] %v1053
        %1086 = vst [vmem:[#allocation4 + $0x570] sm:$0xff] %v1054
        %1087 = vst [vmem:[#allocation4 + $0x5b8] sm:$0xff] %v1055
        %1088 = vst [vmem:[#allocation4 + $0x600] sm:$0xff] %v1056
        %1089 = vst [vmem:[#allocation4 + $0x648] sm:$0xff] %v1057
        %1090 = vst [vmem:[#allocation4 + $0x690] sm:$0xff] %v1058
        %1091 = vst [vmem:[#allocation4 + $0x6d8] sm:$0xff] %v1059
        %1092 = vst [vmem:[#allocation4 + $0x720] sm:$0xff] %v1060
        %1093 = vst [vmem:[#allocation4 + $0x768] sm:$0xff] %v1061
        %1094 = vst [vmem:[#allocation4 + $0x7b0] sm:$0xff] %v1062
        %1095 = vst [vmem:[#allocation4 + $0x7f8] sm:$0xff] %v1063
        %1096 = vst [vmem:[#allocation4 + $0x840] sm:$0xff] %v1064
        %1097 = vst [vmem:[#allocation4 + $0x888] sm:$0xff] %v1065
        %1098 = vst [vmem:[#allocation4 + $0x8d0] sm:$0xff] %v1066
        %v1099 = vld [vmem:[%s810 + $0x1] sm:$0xff]
        %v1100 = vld [vmem:[%s810 + $0x9] sm:$0xff]
        %v1101 = vld [vmem:[%s810 + $0x19] sm:$0xff]
        %v1102 = vld [vmem:[%s810 + $0x21] sm:$0xff]
        %v1103 = vld [vmem:[%s810 + $0x31] sm:$0xff]
        %v1104 = vld [vmem:[%s810 + $0x39] sm:$0xff]
        %v1105 = vld [vmem:[%s810 + $0x49] sm:$0xff]
        %v1106 = vld [vmem:[%s810 + $0x51] sm:$0xff]
        %v1107 = vld [vmem:[%s810 + $0x61] sm:$0xff]
        %v1108 = vld [vmem:[%s810 + $0x69] sm:$0xff]
        %v1109 = vld [vmem:[%s810 + $0x79] sm:$0xff]
        %v1110 = vld [vmem:[%s810 + $0x81] sm:$0xff]
        %v1111 = vld [vmem:[%s810 + $0x91] sm:$0xff]
        %v1112 = vld [vmem:[%s810 + $0x99] sm:$0xff]
        %v1113 = vld [vmem:[%s810 + $0xa9] sm:$0xff]
        %v1114 = vld [vmem:[%s810 + $0xb1] sm:$0xff]
        %v1115 = vld [vmem:[%s810 + $0xc1] sm:$0xff]
        %v1116 = vld [vmem:[%s810 + $0xc9] sm:$0xff]
        %v1117 = vld [vmem:[%s810 + $0xd9] sm:$0xff]
        %v1118 = vld [vmem:[%s810 + $0xe1] sm:$0xff]
        %v1119 = vld [vmem:[%s810 + $0xf1] sm:$0xff]
        %v1120 = vld [vmem:[%s810 + $0xf9] sm:$0xff]
        %v1121 = vld [vmem:[%s810 + $0x109] sm:$0xff]
        %v1122 = vld [vmem:[%s810 + $0x111] sm:$0xff]
        %v1123 = vld [vmem:[%s810 + $0x121] sm:$0xff]
        %v1124 = vld [vmem:[%s810 + $0x129] sm:$0xff]
        %v1125 = vld [vmem:[%s810 + $0x139] sm:$0xff]
        %v1126 = vld [vmem:[%s810 + $0x141] sm:$0xff]
        %v1127 = vld [vmem:[%s810 + $0x151] sm:$0xff]
        %v1128 = vld [vmem:[%s810 + $0x159] sm:$0xff]
        %v1129 = vld [vmem:[%s810 + $0x169] sm:$0xff]
        %v1130 = vld [vmem:[%s810 + $0x171] sm:$0xff]
        %1131 = vst [vmem:[#allocation4 + $0x20] sm:$0xff] %v1099
        %1132 = vst [vmem:[#allocation4 + $0x68] sm:$0xff] %v1100
        %1133 = vst [vmem:[#allocation4 + $0xb0] sm:$0xff] %v1101
        %1134 = vst [vmem:[#allocation4 + $0xf8] sm:$0xff] %v1102
        %1135 = vst [vmem:[#allocation4 + $0x140] sm:$0xff] %v1103
        %1136 = vst [vmem:[#allocation4 + $0x188] sm:$0xff] %v1104
        %1137 = vst [vmem:[#allocation4 + $0x1d0] sm:$0xff] %v1105
        %1138 = vst [vmem:[#allocation4 + $0x218] sm:$0xff] %v1106
        %1139 = vst [vmem:[#allocation4 + $0x260] sm:$0xff] %v1107
        %1140 = vst [vmem:[#allocation4 + $0x2a8] sm:$0xff] %v1108
        %1141 = vst [vmem:[#allocation4 + $0x2f0] sm:$0xff] %v1109
        %1142 = vst [vmem:[#allocation4 + $0x338] sm:$0xff] %v1110
        %1143 = vst [vmem:[#allocation4 + $0x380] sm:$0xff] %v1111
        %1144 = vst [vmem:[#allocation4 + $0x3c8] sm:$0xff] %v1112
        %1145 = vst [vmem:[#allocation4 + $0x410] sm:$0xff] %v1113
        %1146 = vst [vmem:[#allocation4 + $0x458] sm:$0xff] %v1114
        %1147 = vst [vmem:[#allocation4 + $0x4a0] sm:$0xff] %v1115
        %1148 = vst [vmem:[#allocation4 + $0x4e8] sm:$0xff] %v1116
        %1149 = vst [vmem:[#allocation4 + $0x530] sm:$0xff] %v1117
        %1150 = vst [vmem:[#allocation4 + $0x578] sm:$0xff] %v1118
        %1151 = vst [vmem:[#allocation4 + $0x5c0] sm:$0xff] %v1119
        %1152 = vst [vmem:[#allocation4 + $0x608] sm:$0xff] %v1120
        %1153 = vst [vmem:[#allocation4 + $0x650] sm:$0xff] %v1121
        %1154 = vst [vmem:[#allocation4 + $0x698] sm:$0xff] %v1122
        %1155 = vst [vmem:[#allocation4 + $0x6e0] sm:$0xff] %v1123
        %1156 = vst [vmem:[#allocation4 + $0x728] sm:$0xff] %v1124
        %1157 = vst [vmem:[#allocation4 + $0x770] sm:$0xff] %v1125
        %1158 = vst [vmem:[#allocation4 + $0x7b8] sm:$0xff] %v1126
        %1159 = vst [vmem:[#allocation4 + $0x800] sm:$0xff] %v1127
        %1160 = vst [vmem:[#allocation4 + $0x848] sm:$0xff] %v1128
        %1161 = vst [vmem:[#allocation4 + $0x890] sm:$0xff] %v1129
        %1162 = vst [vmem:[#allocation4 + $0x8d8] sm:$0xff] %v1130
        %v1163 = vld [vmem:[%s810 + $0x2] sm:$0xff]
        %v1164 = vld [vmem:[%s810 + $0xa] sm:$0xff]
        %v1165 = vld [vmem:[%s810 + $0x1a] sm:$0xff]
        %v1166 = vld [vmem:[%s810 + $0x22] sm:$0xff]
        %v1167 = vld [vmem:[%s810 + $0x32] sm:$0xff]
        %v1168 = vld [vmem:[%s810 + $0x3a] sm:$0xff]
        %v1169 = vld [vmem:[%s810 + $0x4a] sm:$0xff]
        %v1170 = vld [vmem:[%s810 + $0x52] sm:$0xff]
        %v1171 = vld [vmem:[%s810 + $0x62] sm:$0xff]
        %v1172 = vld [vmem:[%s810 + $0x6a] sm:$0xff]
        %v1173 = vld [vmem:[%s810 + $0x7a] sm:$0xff]
        %v1174 = vld [vmem:[%s810 + $0x82] sm:$0xff]
        %v1175 = vld [vmem:[%s810 + $0x92] sm:$0xff]
        %v1176 = vld [vmem:[%s810 + $0x9a] sm:$0xff]
        %v1177 = vld [vmem:[%s810 + $0xaa] sm:$0xff]
        %v1178 = vld [vmem:[%s810 + $0xb2] sm:$0xff]
        %v1179 = vld [vmem:[%s810 + $0xc2] sm:$0xff]
        %v1180 = vld [vmem:[%s810 + $0xca] sm:$0xff]
        %v1181 = vld [vmem:[%s810 + $0xda] sm:$0xff]
        %v1182 = vld [vmem:[%s810 + $0xe2] sm:$0xff]
        %v1183 = vld [vmem:[%s810 + $0xf2] sm:$0xff]
        %v1184 = vld [vmem:[%s810 + $0xfa] sm:$0xff]
        %v1185 = vld [vmem:[%s810 + $0x10a] sm:$0xff]
        %v1186 = vld [vmem:[%s810 + $0x112] sm:$0xff]
        %v1187 = vld [vmem:[%s810 + $0x122] sm:$0xff]
        %v1188 = vld [vmem:[%s810 + $0x12a] sm:$0xff]
        %v1189 = vld [vmem:[%s810 + $0x13a] sm:$0xff]
        %v1190 = vld [vmem:[%s810 + $0x142] sm:$0xff]
        %v1191 = vld [vmem:[%s810 + $0x152] sm:$0xff]
        %v1192 = vld [vmem:[%s810 + $0x15a] sm:$0xff]
        %v1193 = vld [vmem:[%s810 + $0x16a] sm:$0xff]
        %v1194 = vld [vmem:[%s810 + $0x172] sm:$0xff]
        %1195 = vst [vmem:[#allocation4 + $0x28] sm:$0xff] %v1163
        %1196 = vst [vmem:[#allocation4 + $0x70] sm:$0xff] %v1164
        %1197 = vst [vmem:[#allocation4 + $0xb8] sm:$0xff] %v1165
        %1198 = vst [vmem:[#allocation4 + $0x100] sm:$0xff] %v1166
        %1199 = vst [vmem:[#allocation4 + $0x148] sm:$0xff] %v1167
        %1200 = vst [vmem:[#allocation4 + $0x190] sm:$0xff] %v1168
        %1201 = vst [vmem:[#allocation4 + $0x1d8] sm:$0xff] %v1169
        %1202 = vst [vmem:[#allocation4 + $0x220] sm:$0xff] %v1170
        %1203 = vst [vmem:[#allocation4 + $0x268] sm:$0xff] %v1171
        %1204 = vst [vmem:[#allocation4 + $0x2b0] sm:$0xff] %v1172
        %1205 = vst [vmem:[#allocation4 + $0x2f8] sm:$0xff] %v1173
        %1206 = vst [vmem:[#allocation4 + $0x340] sm:$0xff] %v1174
        %1207 = vst [vmem:[#allocation4 + $0x388] sm:$0xff] %v1175
        %1208 = vst [vmem:[#allocation4 + $0x3d0] sm:$0xff] %v1176
        %1209 = vst [vmem:[#allocation4 + $0x418] sm:$0xff] %v1177
        %1210 = vst [vmem:[#allocation4 + $0x460] sm:$0xff] %v1178
        %1211 = vst [vmem:[#allocation4 + $0x4a8] sm:$0xff] %v1179
        %1212 = vst [vmem:[#allocation4 + $0x4f0] sm:$0xff] %v1180
        %1213 = vst [vmem:[#allocation4 + $0x538] sm:$0xff] %v1181
        %1214 = vst [vmem:[#allocation4 + $0x580] sm:$0xff] %v1182
        %1215 = vst [vmem:[#allocation4 + $0x5c8] sm:$0xff] %v1183
        %1216 = vst [vmem:[#allocation4 + $0x610] sm:$0xff] %v1184
        %1217 = vst [vmem:[#allocation4 + $0x658] sm:$0xff] %v1185
        %1218 = vst [vmem:[#allocation4 + $0x6a0] sm:$0xff] %v1186
        %1219 = vst [vmem:[#allocation4 + $0x6e8] sm:$0xff] %v1187
        %1220 = vst [vmem:[#allocation4 + $0x730] sm:$0xff] %v1188
        %1221 = vst [vmem:[#allocation4 + $0x778] sm:$0xff] %v1189
        %1222 = vst [vmem:[#allocation4 + $0x7c0] sm:$0xff] %v1190
        %1223 = vst [vmem:[#allocation4 + $0x808] sm:$0xff] %v1191
        %1224 = vst [vmem:[#allocation4 + $0x850] sm:$0xff] %v1192
        %1225 = vst [vmem:[#allocation4 + $0x898] sm:$0xff] %v1193
        %1226 = vst [vmem:[#allocation4 + $0x8e0] sm:$0xff] %v1194
        %s1227 = scalar_lea.vmem [#allocation2], 48
        %v1228 = vld [vmem:[%s1227] sm:$0xff]
        %v1229 = vld [vmem:[%s1227 + $0x8] sm:$0xff]
        %v1230 = vld [vmem:[%s1227 + $0x18] sm:$0xff]
        %v1231 = vld [vmem:[%s1227 + $0x20] sm:$0xff]
        %v1232 = vld [vmem:[%s1227 + $0x30] sm:$0xff]
        %v1233 = vld [vmem:[%s1227 + $0x38] sm:$0xff]
        %v1234 = vld [vmem:[%s1227 + $0x48] sm:$0xff]
        %v1235 = vld [vmem:[%s1227 + $0x50] sm:$0xff]
        %v1236 = vld [vmem:[%s1227 + $0x60] sm:$0xff]
        %v1237 = vld [vmem:[%s1227 + $0x68] sm:$0xff]
        %v1238 = vld [vmem:[%s1227 + $0x78] sm:$0xff]
        %v1239 = vld [vmem:[%s1227 + $0x80] sm:$0xff]
        %v1240 = vld [vmem:[%s1227 + $0x90] sm:$0xff]
        %v1241 = vld [vmem:[%s1227 + $0x98] sm:$0xff]
        %v1242 = vld [vmem:[%s1227 + $0xa8] sm:$0xff]
        %v1243 = vld [vmem:[%s1227 + $0xb0] sm:$0xff]
        %v1244 = vld [vmem:[%s1227 + $0xc0] sm:$0xff]
        %v1245 = vld [vmem:[%s1227 + $0xc8] sm:$0xff]
        %v1246 = vld [vmem:[%s1227 + $0xd8] sm:$0xff]
        %v1247 = vld [vmem:[%s1227 + $0xe0] sm:$0xff]
        %v1248 = vld [vmem:[%s1227 + $0xf0] sm:$0xff]
        %v1249 = vld [vmem:[%s1227 + $0xf8] sm:$0xff]
        %v1250 = vld [vmem:[%s1227 + $0x108] sm:$0xff]
        %v1251 = vld [vmem:[%s1227 + $0x110] sm:$0xff]
        %v1252 = vld [vmem:[%s1227 + $0x120] sm:$0xff]
        %v1253 = vld [vmem:[%s1227 + $0x128] sm:$0xff]
        %v1254 = vld [vmem:[%s1227 + $0x138] sm:$0xff]
        %v1255 = vld [vmem:[%s1227 + $0x140] sm:$0xff]
        %v1256 = vld [vmem:[%s1227 + $0x150] sm:$0xff]
        %v1257 = vld [vmem:[%s1227 + $0x158] sm:$0xff]
        %v1258 = vld [vmem:[%s1227 + $0x168] sm:$0xff]
        %v1259 = vld [vmem:[%s1227 + $0x170] sm:$0xff]
        %1260 = vst [vmem:[#allocation4 + $0x30] sm:$0xff] %v1228
        %1261 = vst [vmem:[#allocation4 + $0x78] sm:$0xff] %v1229
        %1262 = vst [vmem:[#allocation4 + $0xc0] sm:$0xff] %v1230
        %1263 = vst [vmem:[#allocation4 + $0x108] sm:$0xff] %v1231
        %1264 = vst [vmem:[#allocation4 + $0x150] sm:$0xff] %v1232
        %1265 = vst [vmem:[#allocation4 + $0x198] sm:$0xff] %v1233
        %1266 = vst [vmem:[#allocation4 + $0x1e0] sm:$0xff] %v1234
        %1267 = vst [vmem:[#allocation4 + $0x228] sm:$0xff] %v1235
        %1268 = vst [vmem:[#allocation4 + $0x270] sm:$0xff] %v1236
        %1269 = vst [vmem:[#allocation4 + $0x2b8] sm:$0xff] %v1237
        %1270 = vst [vmem:[#allocation4 + $0x300] sm:$0xff] %v1238
        %1271 = vst [vmem:[#allocation4 + $0x348] sm:$0xff] %v1239
        %1272 = vst [vmem:[#allocation4 + $0x390] sm:$0xff] %v1240
        %1273 = vst [vmem:[#allocation4 + $0x3d8] sm:$0xff] %v1241
        %1274 = vst [vmem:[#allocation4 + $0x420] sm:$0xff] %v1242
        %1275 = vst [vmem:[#allocation4 + $0x468] sm:$0xff] %v1243
        %1276 = vst [vmem:[#allocation4 + $0x4b0] sm:$0xff] %v1244
        %1277 = vst [vmem:[#allocation4 + $0x4f8] sm:$0xff] %v1245
        %1278 = vst [vmem:[#allocation4 + $0x540] sm:$0xff] %v1246
        %1279 = vst [vmem:[#allocation4 + $0x588] sm:$0xff] %v1247
        %1280 = vst [vmem:[#allocation4 + $0x5d0] sm:$0xff] %v1248
        %1281 = vst [vmem:[#allocation4 + $0x618] sm:$0xff] %v1249
        %1282 = vst [vmem:[#allocation4 + $0x660] sm:$0xff] %v1250
        %1283 = vst [vmem:[#allocation4 + $0x6a8] sm:$0xff] %v1251
        %1284 = vst [vmem:[#allocation4 + $0x6f0] sm:$0xff] %v1252
        %1285 = vst [vmem:[#allocation4 + $0x738] sm:$0xff] %v1253
        %1286 = vst [vmem:[#allocation4 + $0x780] sm:$0xff] %v1254
        %1287 = vst [vmem:[#allocation4 + $0x7c8] sm:$0xff] %v1255
        %1288 = vst [vmem:[#allocation4 + $0x810] sm:$0xff] %v1256
        %1289 = vst [vmem:[#allocation4 + $0x858] sm:$0xff] %v1257
        %1290 = vst [vmem:[#allocation4 + $0x8a0] sm:$0xff] %v1258
        %1291 = vst [vmem:[#allocation4 + $0x8e8] sm:$0xff] %v1259
        %v1292 = vld [vmem:[%s1227 + $0x1] sm:$0xff]
        %v1293 = vld [vmem:[%s1227 + $0x9] sm:$0xff]
        %v1294 = vld [vmem:[%s1227 + $0x19] sm:$0xff]
        %v1295 = vld [vmem:[%s1227 + $0x21] sm:$0xff]
        %v1296 = vld [vmem:[%s1227 + $0x31] sm:$0xff]
        %v1297 = vld [vmem:[%s1227 + $0x39] sm:$0xff]
        %v1298 = vld [vmem:[%s1227 + $0x49] sm:$0xff]
        %v1299 = vld [vmem:[%s1227 + $0x51] sm:$0xff]
        %v1300 = vld [vmem:[%s1227 + $0x61] sm:$0xff]
        %v1301 = vld [vmem:[%s1227 + $0x69] sm:$0xff]
        %v1302 = vld [vmem:[%s1227 + $0x79] sm:$0xff]
        %v1303 = vld [vmem:[%s1227 + $0x81] sm:$0xff]
        %v1304 = vld [vmem:[%s1227 + $0x91] sm:$0xff]
        %v1305 = vld [vmem:[%s1227 + $0x99] sm:$0xff]
        %v1306 = vld [vmem:[%s1227 + $0xa9] sm:$0xff]
        %v1307 = vld [vmem:[%s1227 + $0xb1] sm:$0xff]
        %v1308 = vld [vmem:[%s1227 + $0xc1] sm:$0xff]
        %v1309 = vld [vmem:[%s1227 + $0xc9] sm:$0xff]
        %v1310 = vld [vmem:[%s1227 + $0xd9] sm:$0xff]
        %v1311 = vld [vmem:[%s1227 + $0xe1] sm:$0xff]
        %v1312 = vld [vmem:[%s1227 + $0xf1] sm:$0xff]
        %v1313 = vld [vmem:[%s1227 + $0xf9] sm:$0xff]
        %v1314 = vld [vmem:[%s1227 + $0x109] sm:$0xff]
        %v1315 = vld [vmem:[%s1227 + $0x111] sm:$0xff]
        %v1316 = vld [vmem:[%s1227 + $0x121] sm:$0xff]
        %v1317 = vld [vmem:[%s1227 + $0x129] sm:$0xff]
        %v1318 = vld [vmem:[%s1227 + $0x139] sm:$0xff]
        %v1319 = vld [vmem:[%s1227 + $0x141] sm:$0xff]
        %v1320 = vld [vmem:[%s1227 + $0x151] sm:$0xff]
        %v1321 = vld [vmem:[%s1227 + $0x159] sm:$0xff]
        %v1322 = vld [vmem:[%s1227 + $0x169] sm:$0xff]
        %v1323 = vld [vmem:[%s1227 + $0x171] sm:$0xff]
        %1324 = vst [vmem:[#allocation4 + $0x38] sm:$0xff] %v1292
        %1325 = vst [vmem:[#allocation4 + $0x80] sm:$0xff] %v1293
        %1326 = vst [vmem:[#allocation4 + $0xc8] sm:$0xff] %v1294
        %1327 = vst [vmem:[#allocation4 + $0x110] sm:$0xff] %v1295
        %1328 = vst [vmem:[#allocation4 + $0x158] sm:$0xff] %v1296
        %1329 = vst [vmem:[#allocation4 + $0x1a0] sm:$0xff] %v1297
        %1330 = vst [vmem:[#allocation4 + $0x1e8] sm:$0xff] %v1298
        %1331 = vst [vmem:[#allocation4 + $0x230] sm:$0xff] %v1299
        %1332 = vst [vmem:[#allocation4 + $0x278] sm:$0xff] %v1300
        %1333 = vst [vmem:[#allocation4 + $0x2c0] sm:$0xff] %v1301
        %1334 = vst [vmem:[#allocation4 + $0x308] sm:$0xff] %v1302
        %1335 = vst [vmem:[#allocation4 + $0x350] sm:$0xff] %v1303
        %1336 = vst [vmem:[#allocation4 + $0x398] sm:$0xff] %v1304
        %1337 = vst [vmem:[#allocation4 + $0x3e0] sm:$0xff] %v1305
        %1338 = vst [vmem:[#allocation4 + $0x428] sm:$0xff] %v1306
        %1339 = vst [vmem:[#allocation4 + $0x470] sm:$0xff] %v1307
        %1340 = vst [vmem:[#allocation4 + $0x4b8] sm:$0xff] %v1308
        %1341 = vst [vmem:[#allocation4 + $0x500] sm:$0xff] %v1309
        %1342 = vst [vmem:[#allocation4 + $0x548] sm:$0xff] %v1310
        %1343 = vst [vmem:[#allocation4 + $0x590] sm:$0xff] %v1311
        %1344 = vst [vmem:[#allocation4 + $0x5d8] sm:$0xff] %v1312
        %1345 = vst [vmem:[#allocation4 + $0x620] sm:$0xff] %v1313
        %1346 = vst [vmem:[#allocation4 + $0x668] sm:$0xff] %v1314
        %1347 = vst [vmem:[#allocation4 + $0x6b0] sm:$0xff] %v1315
        %1348 = vst [vmem:[#allocation4 + $0x6f8] sm:$0xff] %v1316
        %1349 = vst [vmem:[#allocation4 + $0x740] sm:$0xff] %v1317
        %1350 = vst [vmem:[#allocation4 + $0x788] sm:$0xff] %v1318
        %1351 = vst [vmem:[#allocation4 + $0x7d0] sm:$0xff] %v1319
        %1352 = vst [vmem:[#allocation4 + $0x818] sm:$0xff] %v1320
        %1353 = vst [vmem:[#allocation4 + $0x860] sm:$0xff] %v1321
        %1354 = vst [vmem:[#allocation4 + $0x8a8] sm:$0xff] %v1322
        %1355 = vst [vmem:[#allocation4 + $0x8f0] sm:$0xff] %v1323
        %v1356 = vld [vmem:[%s1227 + $0x2] sm:$0xff]
        %v1357 = vld [vmem:[%s1227 + $0xa] sm:$0xff]
        %v1358 = vld [vmem:[%s1227 + $0x1a] sm:$0xff]
        %v1359 = vld [vmem:[%s1227 + $0x22] sm:$0xff]
        %v1360 = vld [vmem:[%s1227 + $0x32] sm:$0xff]
        %v1361 = vld [vmem:[%s1227 + $0x3a] sm:$0xff]
        %v1362 = vld [vmem:[%s1227 + $0x4a] sm:$0xff]
        %v1363 = vld [vmem:[%s1227 + $0x52] sm:$0xff]
        %v1364 = vld [vmem:[%s1227 + $0x62] sm:$0xff]
        %v1365 = vld [vmem:[%s1227 + $0x6a] sm:$0xff]
        %v1366 = vld [vmem:[%s1227 + $0x7a] sm:$0xff]
        %v1367 = vld [vmem:[%s1227 + $0x82] sm:$0xff]
        %v1368 = vld [vmem:[%s1227 + $0x92] sm:$0xff]
        %v1369 = vld [vmem:[%s1227 + $0x9a] sm:$0xff]
        %v1370 = vld [vmem:[%s1227 + $0xaa] sm:$0xff]
        %v1371 = vld [vmem:[%s1227 + $0xb2] sm:$0xff]
        %v1372 = vld [vmem:[%s1227 + $0xc2] sm:$0xff]
        %v1373 = vld [vmem:[%s1227 + $0xca] sm:$0xff]
        %v1374 = vld [vmem:[%s1227 + $0xda] sm:$0xff]
        %v1375 = vld [vmem:[%s1227 + $0xe2] sm:$0xff]
        %v1376 = vld [vmem:[%s1227 + $0xf2] sm:$0xff]
        %v1377 = vld [vmem:[%s1227 + $0xfa] sm:$0xff]
        %v1378 = vld [vmem:[%s1227 + $0x10a] sm:$0xff]
        %v1379 = vld [vmem:[%s1227 + $0x112] sm:$0xff]
        %v1380 = vld [vmem:[%s1227 + $0x122] sm:$0xff]
        %v1381 = vld [vmem:[%s1227 + $0x12a] sm:$0xff]
        %v1382 = vld [vmem:[%s1227 + $0x13a] sm:$0xff]
        %v1383 = vld [vmem:[%s1227 + $0x142] sm:$0xff]
        %v1384 = vld [vmem:[%s1227 + $0x152] sm:$0xff]
        %v1385 = vld [vmem:[%s1227 + $0x15a] sm:$0xff]
        %v1386 = vld [vmem:[%s1227 + $0x16a] sm:$0xff]
        %v1387 = vld [vmem:[%s1227 + $0x172] sm:$0xff]
        %1388 = vst [vmem:[#allocation4 + $0x40] sm:$0xff] %v1356
        %1389 = vst [vmem:[#allocation4 + $0x88] sm:$0xff] %v1357
        %1390 = vst [vmem:[#allocation4 + $0xd0] sm:$0xff] %v1358
        %1391 = vst [vmem:[#allocation4 + $0x118] sm:$0xff] %v1359
        %1392 = vst [vmem:[#allocation4 + $0x160] sm:$0xff] %v1360
        %1393 = vst [vmem:[#allocation4 + $0x1a8] sm:$0xff] %v1361
        %1394 = vst [vmem:[#allocation4 + $0x1f0] sm:$0xff] %v1362
        %1395 = vst [vmem:[#allocation4 + $0x238] sm:$0xff] %v1363
        %1396 = vst [vmem:[#allocation4 + $0x280] sm:$0xff] %v1364
        %1397 = vst [vmem:[#allocation4 + $0x2c8] sm:$0xff] %v1365
        %1398 = vst [vmem:[#allocation4 + $0x310] sm:$0xff] %v1366
        %1399 = vst [vmem:[#allocation4 + $0x358] sm:$0xff] %v1367
        %1400 = vst [vmem:[#allocation4 + $0x3a0] sm:$0xff] %v1368
        %1401 = vst [vmem:[#allocation4 + $0x3e8] sm:$0xff] %v1369
        %1402 = vst [vmem:[#allocation4 + $0x430] sm:$0xff] %v1370
        %1403 = vst [vmem:[#allocation4 + $0x478] sm:$0xff] %v1371
        %1404 = vst [vmem:[#allocation4 + $0x4c0] sm:$0xff] %v1372
        %1405 = vst [vmem:[#allocation4 + $0x508] sm:$0xff] %v1373
        %1406 = vst [vmem:[#allocation4 + $0x550] sm:$0xff] %v1374
        %1407 = vst [vmem:[#allocation4 + $0x598] sm:$0xff] %v1375
        %1408 = vst [vmem:[#allocation4 + $0x5e0] sm:$0xff] %v1376
        %1409 = vst [vmem:[#allocation4 + $0x628] sm:$0xff] %v1377
        %1410 = vst [vmem:[#allocation4 + $0x670] sm:$0xff] %v1378
        %1411 = vst [vmem:[#allocation4 + $0x6b8] sm:$0xff] %v1379
        %1412 = vst [vmem:[#allocation4 + $0x700] sm:$0xff] %v1380
        %1413 = vst [vmem:[#allocation4 + $0x748] sm:$0xff] %v1381
        %1414 = vst [vmem:[#allocation4 + $0x790] sm:$0xff] %v1382
        %1415 = vst [vmem:[#allocation4 + $0x7d8] sm:$0xff] %v1383
        %1416 = vst [vmem:[#allocation4 + $0x820] sm:$0xff] %v1384
        %1417 = vst [vmem:[#allocation4 + $0x868] sm:$0xff] %v1385
        %1418 = vst [vmem:[#allocation4 + $0x8b0] sm:$0xff] %v1386
        %1419 = vst [vmem:[#allocation4 + $0x8f8] sm:$0xff] %v1387
        %v1420 = vld [vmem:[#allocation4] sm:$0xff]
        %v1421 = vld [vmem:[#allocation4 + $0x8] sm:$0xff]
        %v1422 = vld [vmem:[#allocation4 + $0x10] sm:$0xff]
        %v1423 = vld [vmem:[#allocation4 + $0x18] sm:$0xff]
        %v1424 = vld [vmem:[#allocation4 + $0x20] sm:$0xff]
        %v1425 = vld [vmem:[#allocation4 + $0x28] sm:$0xff]
        %v1426 = vld [vmem:[#allocation4 + $0x30] sm:$0xff]
        %v1427 = vld [vmem:[#allocation4 + $0x38] sm:$0xff]
        %v1428 = vld [vmem:[#allocation4 + $0x40] sm:$0xff]
        %v1429 = vld [vmem:[#allocation4 + $0x48] sm:$0xff]
        %v1430 = vld [vmem:[#allocation4 + $0x50] sm:$0xff]
        %v1431 = vld [vmem:[#allocation4 + $0x58] sm:$0xff]
        %v1432 = vld [vmem:[#allocation4 + $0x60] sm:$0xff]
        %v1433 = vld [vmem:[#allocation4 + $0x68] sm:$0xff]
        %v1434 = vld [vmem:[#allocation4 + $0x70] sm:$0xff]
        %v1435 = vld [vmem:[#allocation4 + $0x78] sm:$0xff]
        %v1436 = vld [vmem:[#allocation4 + $0x80] sm:$0xff]
        %v1437 = vld [vmem:[#allocation4 + $0x88] sm:$0xff]
        %v1438 = vld [vmem:[#allocation4 + $0x90] sm:$0xff]
        %v1439 = vld [vmem:[#allocation4 + $0x98] sm:$0xff]
        %v1440 = vld [vmem:[#allocation4 + $0xa0] sm:$0xff]
        %v1441 = vld [vmem:[#allocation4 + $0xa8] sm:$0xff]
        %v1442 = vld [vmem:[#allocation4 + $0xb0] sm:$0xff]
        %v1443 = vld [vmem:[#allocation4 + $0xb8] sm:$0xff]
        %v1444 = vld [vmem:[#allocation4 + $0xc0] sm:$0xff]
        %v1445 = vld [vmem:[#allocation4 + $0xc8] sm:$0xff]
        %v1446 = vld [vmem:[#allocation4 + $0xd0] sm:$0xff]
        %v1447 = vld [vmem:[#allocation4 + $0xd8] sm:$0xff]
        %v1448 = vld [vmem:[#allocation4 + $0xe0] sm:$0xff]
        %v1449 = vld [vmem:[#allocation4 + $0xe8] sm:$0xff]
        %v1450 = vld [vmem:[#allocation4 + $0xf0] sm:$0xff]
        %v1451 = vld [vmem:[#allocation4 + $0xf8] sm:$0xff]
        %v1452 = vld [vmem:[#allocation4 + $0x100] sm:$0xff]
        %v1453 = vld [vmem:[#allocation4 + $0x108] sm:$0xff]
        %v1454 = vld [vmem:[#allocation4 + $0x110] sm:$0xff]
        %v1455 = vld [vmem:[#allocation4 + $0x118] sm:$0xff]
        %v1456 = vld [vmem:[#allocation4 + $0x120] sm:$0xff]
        %v1457 = vld [vmem:[#allocation4 + $0x128] sm:$0xff]
        %v1458 = vld [vmem:[#allocation4 + $0x130] sm:$0xff]
        %v1459 = vld [vmem:[#allocation4 + $0x138] sm:$0xff]
        %v1460 = vld [vmem:[#allocation4 + $0x140] sm:$0xff]
        %v1461 = vld [vmem:[#allocation4 + $0x148] sm:$0xff]
        %v1462 = vld [vmem:[#allocation4 + $0x150] sm:$0xff]
        %v1463 = vld [vmem:[#allocation4 + $0x158] sm:$0xff]
        %v1464 = vld [vmem:[#allocation4 + $0x160] sm:$0xff]
        %v1465 = vld [vmem:[#allocation4 + $0x168] sm:$0xff]
        %v1466 = vld [vmem:[#allocation4 + $0x170] sm:$0xff]
        %v1467 = vld [vmem:[#allocation4 + $0x178] sm:$0xff]
        %v1468 = vld [vmem:[#allocation4 + $0x180] sm:$0xff]
        %v1469 = vld [vmem:[#allocation4 + $0x188] sm:$0xff]
        %v1470 = vld [vmem:[#allocation4 + $0x190] sm:$0xff]
        %v1471 = vld [vmem:[#allocation4 + $0x198] sm:$0xff]
        %v1472 = vld [vmem:[#allocation4 + $0x1a0] sm:$0xff]
        %v1473 = vld [vmem:[#allocation4 + $0x1a8] sm:$0xff]
        %v1474 = vld [vmem:[#allocation4 + $0x1b0] sm:$0xff]
        %v1475 = vld [vmem:[#allocation4 + $0x1b8] sm:$0xff]
        %v1476 = vld [vmem:[#allocation4 + $0x1c0] sm:$0xff]
        %v1477 = vld [vmem:[#allocation4 + $0x1c8] sm:$0xff]
        %v1478 = vld [vmem:[#allocation4 + $0x1d0] sm:$0xff]
        %v1479 = vld [vmem:[#allocation4 + $0x1d8] sm:$0xff]
        %v1480 = vld [vmem:[#allocation4 + $0x1e0] sm:$0xff]
        %v1481 = vld [vmem:[#allocation4 + $0x1e8] sm:$0xff]
        %v1482 = vld [vmem:[#allocation4 + $0x1f0] sm:$0xff]
        %v1483 = vld [vmem:[#allocation4 + $0x1f8] sm:$0xff]
        %v1484 = vld [vmem:[#allocation4 + $0x200] sm:$0xff]
        %v1485 = vld [vmem:[#allocation4 + $0x208] sm:$0xff]
        %v1486 = vld [vmem:[#allocation4 + $0x210] sm:$0xff]
        %v1487 = vld [vmem:[#allocation4 + $0x218] sm:$0xff]
        %v1488 = vld [vmem:[#allocation4 + $0x220] sm:$0xff]
        %v1489 = vld [vmem:[#allocation4 + $0x228] sm:$0xff]
        %v1490 = vld [vmem:[#allocation4 + $0x230] sm:$0xff]
        %v1491 = vld [vmem:[#allocation4 + $0x238] sm:$0xff]
        %v1492 = vld [vmem:[#allocation4 + $0x240] sm:$0xff]
        %v1493 = vld [vmem:[#allocation4 + $0x248] sm:$0xff]
        %v1494 = vld [vmem:[#allocation4 + $0x250] sm:$0xff]
        %v1495 = vld [vmem:[#allocation4 + $0x258] sm:$0xff]
        %v1496 = vld [vmem:[#allocation4 + $0x260] sm:$0xff]
        %v1497 = vld [vmem:[#allocation4 + $0x268] sm:$0xff]
        %v1498 = vld [vmem:[#allocation4 + $0x270] sm:$0xff]
        %v1499 = vld [vmem:[#allocation4 + $0x278] sm:$0xff]
        %v1500 = vld [vmem:[#allocation4 + $0x280] sm:$0xff]
        %v1501 = vld [vmem:[#allocation4 + $0x288] sm:$0xff]
        %v1502 = vld [vmem:[#allocation4 + $0x290] sm:$0xff]
        %v1503 = vld [vmem:[#allocation4 + $0x298] sm:$0xff]
        %v1504 = vld [vmem:[#allocation4 + $0x2a0] sm:$0xff]
        %v1505 = vld [vmem:[#allocation4 + $0x2a8] sm:$0xff]
        %v1506 = vld [vmem:[#allocation4 + $0x2b0] sm:$0xff]
        %v1507 = vld [vmem:[#allocation4 + $0x2b8] sm:$0xff]
        %v1508 = vld [vmem:[#allocation4 + $0x2c0] sm:$0xff]
        %v1509 = vld [vmem:[#allocation4 + $0x2c8] sm:$0xff]
        %v1510 = vld [vmem:[#allocation4 + $0x2d0] sm:$0xff]
        %v1511 = vld [vmem:[#allocation4 + $0x2d8] sm:$0xff]
        %v1512 = vld [vmem:[#allocation4 + $0x2e0] sm:$0xff]
        %v1513 = vld [vmem:[#allocation4 + $0x2e8] sm:$0xff]
        %v1514 = vld [vmem:[#allocation4 + $0x2f0] sm:$0xff]
        %v1515 = vld [vmem:[#allocation4 + $0x2f8] sm:$0xff]
        %v1516 = vld [vmem:[#allocation4 + $0x300] sm:$0xff]
        %v1517 = vld [vmem:[#allocation4 + $0x308] sm:$0xff]
        %v1518 = vld [vmem:[#allocation4 + $0x310] sm:$0xff]
        %v1519 = vld [vmem:[#allocation4 + $0x318] sm:$0xff]
        %v1520 = vld [vmem:[#allocation4 + $0x320] sm:$0xff]
        %v1521 = vld [vmem:[#allocation4 + $0x328] sm:$0xff]
        %v1522 = vld [vmem:[#allocation4 + $0x330] sm:$0xff]
        %v1523 = vld [vmem:[#allocation4 + $0x338] sm:$0xff]
        %v1524 = vld [vmem:[#allocation4 + $0x340] sm:$0xff]
        %v1525 = vld [vmem:[#allocation4 + $0x348] sm:$0xff]
        %v1526 = vld [vmem:[#allocation4 + $0x350] sm:$0xff]
        %v1527 = vld [vmem:[#allocation4 + $0x358] sm:$0xff]
        %v1528 = vld [vmem:[#allocation4 + $0x360] sm:$0xff]
        %v1529 = vld [vmem:[#allocation4 + $0x368] sm:$0xff]
        %v1530 = vld [vmem:[#allocation4 + $0x370] sm:$0xff]
        %v1531 = vld [vmem:[#allocation4 + $0x378] sm:$0xff]
        %v1532 = vld [vmem:[#allocation4 + $0x380] sm:$0xff]
        %v1533 = vld [vmem:[#allocation4 + $0x388] sm:$0xff]
        %v1534 = vld [vmem:[#allocation4 + $0x390] sm:$0xff]
        %v1535 = vld [vmem:[#allocation4 + $0x398] sm:$0xff]
        %v1536 = vld [vmem:[#allocation4 + $0x3a0] sm:$0xff]
        %v1537 = vld [vmem:[#allocation4 + $0x3a8] sm:$0xff]
        %v1538 = vld [vmem:[#allocation4 + $0x3b0] sm:$0xff]
        %v1539 = vld [vmem:[#allocation4 + $0x3b8] sm:$0xff]
        %v1540 = vld [vmem:[#allocation4 + $0x3c0] sm:$0xff]
        %v1541 = vld [vmem:[#allocation4 + $0x3c8] sm:$0xff]
        %v1542 = vld [vmem:[#allocation4 + $0x3d0] sm:$0xff]
        %v1543 = vld [vmem:[#allocation4 + $0x3d8] sm:$0xff]
        %v1544 = vld [vmem:[#allocation4 + $0x3e0] sm:$0xff]
        %v1545 = vld [vmem:[#allocation4 + $0x3e8] sm:$0xff]
        %v1546 = vld [vmem:[#allocation4 + $0x3f0] sm:$0xff]
        %v1547 = vld [vmem:[#allocation4 + $0x3f8] sm:$0xff]
        %v1548 = vld [vmem:[#allocation4 + $0x400] sm:$0xff]
        %v1549 = vld [vmem:[#allocation4 + $0x408] sm:$0xff]
        %v1550 = vld [vmem:[#allocation4 + $0x410] sm:$0xff]
        %v1551 = vld [vmem:[#allocation4 + $0x418] sm:$0xff]
        %v1552 = vld [vmem:[#allocation4 + $0x420] sm:$0xff]
        %v1553 = vld [vmem:[#allocation4 + $0x428] sm:$0xff]
        %v1554 = vld [vmem:[#allocation4 + $0x430] sm:$0xff]
        %v1555 = vld [vmem:[#allocation4 + $0x438] sm:$0xff]
        %v1556 = vld [vmem:[#allocation4 + $0x440] sm:$0xff]
        %v1557 = vld [vmem:[#allocation4 + $0x448] sm:$0xff]
        %v1558 = vld [vmem:[#allocation4 + $0x450] sm:$0xff]
        %v1559 = vld [vmem:[#allocation4 + $0x458] sm:$0xff]
        %v1560 = vld [vmem:[#allocation4 + $0x460] sm:$0xff]
        %v1561 = vld [vmem:[#allocation4 + $0x468] sm:$0xff]
        %v1562 = vld [vmem:[#allocation4 + $0x470] sm:$0xff]
        %v1563 = vld [vmem:[#allocation4 + $0x478] sm:$0xff]
        %v1564 = vld [vmem:[#allocation4 + $0x480] sm:$0xff]
        %v1565 = vld [vmem:[#allocation4 + $0x488] sm:$0xff]
        %v1566 = vld [vmem:[#allocation4 + $0x490] sm:$0xff]
        %v1567 = vld [vmem:[#allocation4 + $0x498] sm:$0xff]
        %v1568 = vld [vmem:[#allocation4 + $0x4a0] sm:$0xff]
        %v1569 = vld [vmem:[#allocation4 + $0x4a8] sm:$0xff]
        %v1570 = vld [vmem:[#allocation4 + $0x4b0] sm:$0xff]
        %v1571 = vld [vmem:[#allocation4 + $0x4b8] sm:$0xff]
        %v1572 = vld [vmem:[#allocation4 + $0x4c0] sm:$0xff]
        %v1573 = vld [vmem:[#allocation4 + $0x4c8] sm:$0xff]
        %v1574 = vld [vmem:[#allocation4 + $0x4d0] sm:$0xff]
        %v1575 = vld [vmem:[#allocation4 + $0x4d8] sm:$0xff]
        %v1576 = vld [vmem:[#allocation4 + $0x4e0] sm:$0xff]
        %v1577 = vld [vmem:[#allocation4 + $0x4e8] sm:$0xff]
        %v1578 = vld [vmem:[#allocation4 + $0x4f0] sm:$0xff]
        %v1579 = vld [vmem:[#allocation4 + $0x4f8] sm:$0xff]
        %v1580 = vld [vmem:[#allocation4 + $0x500] sm:$0xff]
        %v1581 = vld [vmem:[#allocation4 + $0x508] sm:$0xff]
        %v1582 = vld [vmem:[#allocation4 + $0x510] sm:$0xff]
        %v1583 = vld [vmem:[#allocation4 + $0x518] sm:$0xff]
        %v1584 = vld [vmem:[#allocation4 + $0x520] sm:$0xff]
        %v1585 = vld [vmem:[#allocation4 + $0x528] sm:$0xff]
        %v1586 = vld [vmem:[#allocation4 + $0x530] sm:$0xff]
        %v1587 = vld [vmem:[#allocation4 + $0x538] sm:$0xff]
        %v1588 = vld [vmem:[#allocation4 + $0x540] sm:$0xff]
        %v1589 = vld [vmem:[#allocation4 + $0x548] sm:$0xff]
        %v1590 = vld [vmem:[#allocation4 + $0x550] sm:$0xff]
        %v1591 = vld [vmem:[#allocation4 + $0x558] sm:$0xff]
        %v1592 = vld [vmem:[#allocation4 + $0x560] sm:$0xff]
        %v1593 = vld [vmem:[#allocation4 + $0x568] sm:$0xff]
        %v1594 = vld [vmem:[#allocation4 + $0x570] sm:$0xff]
        %v1595 = vld [vmem:[#allocation4 + $0x578] sm:$0xff]
        %v1596 = vld [vmem:[#allocation4 + $0x580] sm:$0xff]
        %v1597 = vld [vmem:[#allocation4 + $0x588] sm:$0xff]
        %v1598 = vld [vmem:[#allocation4 + $0x590] sm:$0xff]
        %v1599 = vld [vmem:[#allocation4 + $0x598] sm:$0xff]
        %v1600 = vld [vmem:[#allocation4 + $0x5a0] sm:$0xff]
        %v1601 = vld [vmem:[#allocation4 + $0x5a8] sm:$0xff]
        %v1602 = vld [vmem:[#allocation4 + $0x5b0] sm:$0xff]
        %v1603 = vld [vmem:[#allocation4 + $0x5b8] sm:$0xff]
        %v1604 = vld [vmem:[#allocation4 + $0x5c0] sm:$0xff]
        %v1605 = vld [vmem:[#allocation4 + $0x5c8] sm:$0xff]
        %v1606 = vld [vmem:[#allocation4 + $0x5d0] sm:$0xff]
        %v1607 = vld [vmem:[#allocation4 + $0x5d8] sm:$0xff]
        %v1608 = vld [vmem:[#allocation4 + $0x5e0] sm:$0xff]
        %v1609 = vld [vmem:[#allocation4 + $0x5e8] sm:$0xff]
        %v1610 = vld [vmem:[#allocation4 + $0x5f0] sm:$0xff]
        %v1611 = vld [vmem:[#allocation4 + $0x5f8] sm:$0xff]
        %v1612 = vld [vmem:[#allocation4 + $0x600] sm:$0xff]
        %v1613 = vld [vmem:[#allocation4 + $0x608] sm:$0xff]
        %v1614 = vld [vmem:[#allocation4 + $0x610] sm:$0xff]
        %v1615 = vld [vmem:[#allocation4 + $0x618] sm:$0xff]
        %v1616 = vld [vmem:[#allocation4 + $0x620] sm:$0xff]
        %v1617 = vld [vmem:[#allocation4 + $0x628] sm:$0xff]
        %v1618 = vld [vmem:[#allocation4 + $0x630] sm:$0xff]
        %v1619 = vld [vmem:[#allocation4 + $0x638] sm:$0xff]
        %v1620 = vld [vmem:[#allocation4 + $0x640] sm:$0xff]
        %v1621 = vld [vmem:[#allocation4 + $0x648] sm:$0xff]
        %v1622 = vld [vmem:[#allocation4 + $0x650] sm:$0xff]
        %v1623 = vld [vmem:[#allocation4 + $0x658] sm:$0xff]
        %v1624 = vld [vmem:[#allocation4 + $0x660] sm:$0xff]
        %v1625 = vld [vmem:[#allocation4 + $0x668] sm:$0xff]
        %v1626 = vld [vmem:[#allocation4 + $0x670] sm:$0xff]
        %v1627 = vld [vmem:[#allocation4 + $0x678] sm:$0xff]
        %v1628 = vld [vmem:[#allocation4 + $0x680] sm:$0xff]
        %v1629 = vld [vmem:[#allocation4 + $0x688] sm:$0xff]
        %v1630 = vld [vmem:[#allocation4 + $0x690] sm:$0xff]
        %v1631 = vld [vmem:[#allocation4 + $0x698] sm:$0xff]
        %v1632 = vld [vmem:[#allocation4 + $0x6a0] sm:$0xff]
        %v1633 = vld [vmem:[#allocation4 + $0x6a8] sm:$0xff]
        %v1634 = vld [vmem:[#allocation4 + $0x6b0] sm:$0xff]
        %v1635 = vld [vmem:[#allocation4 + $0x6b8] sm:$0xff]
        %v1636 = vld [vmem:[#allocation4 + $0x6c0] sm:$0xff]
        %v1637 = vld [vmem:[#allocation4 + $0x6c8] sm:$0xff]
        %v1638 = vld [vmem:[#allocation4 + $0x6d0] sm:$0xff]
        %v1639 = vld [vmem:[#allocation4 + $0x6d8] sm:$0xff]
        %v1640 = vld [vmem:[#allocation4 + $0x6e0] sm:$0xff]
        %v1641 = vld [vmem:[#allocation4 + $0x6e8] sm:$0xff]
        %v1642 = vld [vmem:[#allocation4 + $0x6f0] sm:$0xff]
        %v1643 = vld [vmem:[#allocation4 + $0x6f8] sm:$0xff]
        %v1644 = vld [vmem:[#allocation4 + $0x700] sm:$0xff]
        %v1645 = vld [vmem:[#allocation4 + $0x708] sm:$0xff]
        %v1646 = vld [vmem:[#allocation4 + $0x710] sm:$0xff]
        %v1647 = vld [vmem:[#allocation4 + $0x718] sm:$0xff]
        %v1648 = vld [vmem:[#allocation4 + $0x720] sm:$0xff]
        %v1649 = vld [vmem:[#allocation4 + $0x728] sm:$0xff]
        %v1650 = vld [vmem:[#allocation4 + $0x730] sm:$0xff]
        %v1651 = vld [vmem:[#allocation4 + $0x738] sm:$0xff]
        %v1652 = vld [vmem:[#allocation4 + $0x740] sm:$0xff]
        %v1653 = vld [vmem:[#allocation4 + $0x748] sm:$0xff]
        %v1654 = vld [vmem:[#allocation4 + $0x750] sm:$0xff]
        %v1655 = vld [vmem:[#allocation4 + $0x758] sm:$0xff]
        %v1656 = vld [vmem:[#allocation4 + $0x760] sm:$0xff]
        %v1657 = vld [vmem:[#allocation4 + $0x768] sm:$0xff]
        %v1658 = vld [vmem:[#allocation4 + $0x770] sm:$0xff]
        %v1659 = vld [vmem:[#allocation4 + $0x778] sm:$0xff]
        %v1660 = vld [vmem:[#allocation4 + $0x780] sm:$0xff]
        %v1661 = vld [vmem:[#allocation4 + $0x788] sm:$0xff]
        %v1662 = vld [vmem:[#allocation4 + $0x790] sm:$0xff]
        %v1663 = vld [vmem:[#allocation4 + $0x798] sm:$0xff]
        %v1664 = vld [vmem:[#allocation4 + $0x7a0] sm:$0xff]
        %v1665 = vld [vmem:[#allocation4 + $0x7a8] sm:$0xff]
        %v1666 = vld [vmem:[#allocation4 + $0x7b0] sm:$0xff]
        %v1667 = vld [vmem:[#allocation4 + $0x7b8] sm:$0xff]
        %v1668 = vld [vmem:[#allocation4 + $0x7c0] sm:$0xff]
        %v1669 = vld [vmem:[#allocation4 + $0x7c8] sm:$0xff]
        %v1670 = vld [vmem:[#allocation4 + $0x7d0] sm:$0xff]
        %v1671 = vld [vmem:[#allocation4 + $0x7d8] sm:$0xff]
        %v1672 = vld [vmem:[#allocation4 + $0x7e0] sm:$0xff]
        %v1673 = vld [vmem:[#allocation4 + $0x7e8] sm:$0xff]
        %v1674 = vld [vmem:[#allocation4 + $0x7f0] sm:$0xff]
        %v1675 = vld [vmem:[#allocation4 + $0x7f8] sm:$0xff]
        %v1676 = vld [vmem:[#allocation4 + $0x800] sm:$0xff]
        %v1677 = vld [vmem:[#allocation4 + $0x808] sm:$0xff]
        %v1678 = vld [vmem:[#allocation4 + $0x810] sm:$0xff]
        %v1679 = vld [vmem:[#allocation4 + $0x818] sm:$0xff]
        %v1680 = vld [vmem:[#allocation4 + $0x820] sm:$0xff]
        %v1681 = vld [vmem:[#allocation4 + $0x828] sm:$0xff]
        %v1682 = vld [vmem:[#allocation4 + $0x830] sm:$0xff]
        %v1683 = vld [vmem:[#allocation4 + $0x838] sm:$0xff]
        %v1684 = vld [vmem:[#allocation4 + $0x840] sm:$0xff]
        %v1685 = vld [vmem:[#allocation4 + $0x848] sm:$0xff]
        %v1686 = vld [vmem:[#allocation4 + $0x850] sm:$0xff]
        %v1687 = vld [vmem:[#allocation4 + $0x858] sm:$0xff]
        %v1688 = vld [vmem:[#allocation4 + $0x860] sm:$0xff]
        %v1689 = vld [vmem:[#allocation4 + $0x868] sm:$0xff]
        %v1690 = vld [vmem:[#allocation4 + $0x870] sm:$0xff]
        %v1691 = vld [vmem:[#allocation4 + $0x878] sm:$0xff]
        %v1692 = vld [vmem:[#allocation4 + $0x880] sm:$0xff]
        %v1693 = vld [vmem:[#allocation4 + $0x888] sm:$0xff]
        %v1694 = vld [vmem:[#allocation4 + $0x890] sm:$0xff]
        %v1695 = vld [vmem:[#allocation4 + $0x898] sm:$0xff]
        %v1696 = vld [vmem:[#allocation4 + $0x8a0] sm:$0xff]
        %v1697 = vld [vmem:[#allocation4 + $0x8a8] sm:$0xff]
        %v1698 = vld [vmem:[#allocation4 + $0x8b0] sm:$0xff]
        %v1699 = vld [vmem:[#allocation4 + $0x8b8] sm:$0xff]
        %v1700 = vld [vmem:[#allocation4 + $0x8c0] sm:$0xff]
        %v1701 = vld [vmem:[#allocation4 + $0x8c8] sm:$0xff]
        %v1702 = vld [vmem:[#allocation4 + $0x8d0] sm:$0xff]
        %v1703 = vld [vmem:[#allocation4 + $0x8d8] sm:$0xff]
        %v1704 = vld [vmem:[#allocation4 + $0x8e0] sm:$0xff]
        %v1705 = vld [vmem:[#allocation4 + $0x8e8] sm:$0xff]
        %v1706 = vld [vmem:[#allocation4 + $0x8f0] sm:$0xff]
        %v1707 = vld [vmem:[#allocation4 + $0x8f8] sm:$0xff]
        %v1708 = vld [vmem:[#allocation12] sm:$0xff]
        %v1709 = vld [vmem:[#allocation12 + $0x8] sm:$0xff]
        %v1710 = vld [vmem:[#allocation12 + $0x10] sm:$0xff]
        %v1711 = vld [vmem:[#allocation12 + $0x18] sm:$0xff]
        %v1712 = vld [vmem:[#allocation12 + $0x20] sm:$0xff]
        %v1713 = vld [vmem:[#allocation12 + $0x28] sm:$0xff]
        %v1714 = vld [vmem:[#allocation12 + $0x30] sm:$0xff]
        %v1715 = vld [vmem:[#allocation12 + $0x38] sm:$0xff]
        %v1716 = vld [vmem:[#allocation12 + $0x40] sm:$0xff]
        %v1717 = vld [vmem:[#allocation12 + $0x48] sm:$0xff]
        %v1718 = vld [vmem:[#allocation12 + $0x50] sm:$0xff]
        %v1719 = vld [vmem:[#allocation12 + $0x58] sm:$0xff]
        %v1720 = vld [vmem:[#allocation12 + $0x60] sm:$0xff]
        %v1721 = vld [vmem:[#allocation12 + $0x68] sm:$0xff]
        %v1722 = vld [vmem:[#allocation12 + $0x70] sm:$0xff]
        %v1723 = vld [vmem:[#allocation12 + $0x78] sm:$0xff]
        %v1724 = vld [vmem:[#allocation12 + $0x80] sm:$0xff]
        %v1725 = vld [vmem:[#allocation12 + $0x88] sm:$0xff]
        %v1726 = vld [vmem:[#allocation12 + $0x90] sm:$0xff]
        %v1727 = vld [vmem:[#allocation12 + $0x98] sm:$0xff]
        %v1728 = vld [vmem:[#allocation12 + $0xa0] sm:$0xff]
        %v1729 = vld [vmem:[#allocation12 + $0xa8] sm:$0xff]
        %v1730 = vld [vmem:[#allocation12 + $0xb0] sm:$0xff]
        %v1731 = vld [vmem:[#allocation12 + $0xb8] sm:$0xff]
        %v1732 = vld [vmem:[#allocation12 + $0xc0] sm:$0xff]
        %v1733 = vld [vmem:[#allocation12 + $0xc8] sm:$0xff]
        %v1734 = vld [vmem:[#allocation12 + $0xd0] sm:$0xff]
        %v1735 = vld [vmem:[#allocation12 + $0xd8] sm:$0xff]
        %v1736 = vld [vmem:[#allocation12 + $0xe0] sm:$0xff]
        %v1737 = vld [vmem:[#allocation12 + $0xe8] sm:$0xff]
        %v1738 = vld [vmem:[#allocation12 + $0xf0] sm:$0xff]
        %v1739 = vld [vmem:[#allocation12 + $0xf8] sm:$0xff]
        %v1740 = vld [vmem:[#allocation12 + $0x100] sm:$0xff]
        %v1741 = vld [vmem:[#allocation12 + $0x108] sm:$0xff]
        %v1742 = vld [vmem:[#allocation12 + $0x110] sm:$0xff]
        %v1743 = vld [vmem:[#allocation12 + $0x118] sm:$0xff]
        %v1744 = vld [vmem:[#allocation12 + $0x120] sm:$0xff]
        %v1745 = vld [vmem:[#allocation12 + $0x128] sm:$0xff]
        %v1746 = vld [vmem:[#allocation12 + $0x130] sm:$0xff]
        %v1747 = vld [vmem:[#allocation12 + $0x138] sm:$0xff]
        %v1748 = vld [vmem:[#allocation12 + $0x140] sm:$0xff]
        %v1749 = vld [vmem:[#allocation12 + $0x148] sm:$0xff]
        %v1750 = vld [vmem:[#allocation12 + $0x150] sm:$0xff]
        %v1751 = vld [vmem:[#allocation12 + $0x158] sm:$0xff]
        %v1752 = vld [vmem:[#allocation12 + $0x160] sm:$0xff]
        %v1753 = vld [vmem:[#allocation12 + $0x168] sm:$0xff]
        %v1754 = vld [vmem:[#allocation12 + $0x170] sm:$0xff]
        %v1755 = vld [vmem:[#allocation12 + $0x178] sm:$0xff]
        %v1756 = vld [vmem:[#allocation12 + $0x180] sm:$0xff]
        %v1757 = vld [vmem:[#allocation12 + $0x188] sm:$0xff]
        %v1758 = vld [vmem:[#allocation12 + $0x190] sm:$0xff]
        %v1759 = vld [vmem:[#allocation12 + $0x198] sm:$0xff]
        %v1760 = vld [vmem:[#allocation12 + $0x1a0] sm:$0xff]
        %v1761 = vld [vmem:[#allocation12 + $0x1a8] sm:$0xff]
        %v1762 = vld [vmem:[#allocation12 + $0x1b0] sm:$0xff]
        %v1763 = vld [vmem:[#allocation12 + $0x1b8] sm:$0xff]
        %v1764 = vld [vmem:[#allocation12 + $0x1c0] sm:$0xff]
        %v1765 = vld [vmem:[#allocation12 + $0x1c8] sm:$0xff]
        %v1766 = vld [vmem:[#allocation12 + $0x1d0] sm:$0xff]
        %v1767 = vld [vmem:[#allocation12 + $0x1d8] sm:$0xff]
        %v1768 = vld [vmem:[#allocation12 + $0x1e0] sm:$0xff]
        %v1769 = vld [vmem:[#allocation12 + $0x1e8] sm:$0xff]
        %v1770 = vld [vmem:[#allocation12 + $0x1f0] sm:$0xff]
        %v1771 = vld [vmem:[#allocation12 + $0x1f8] sm:$0xff]
        %v1772 = vld [vmem:[#allocation12 + $0x200] sm:$0xff]
        %v1773 = vld [vmem:[#allocation12 + $0x208] sm:$0xff]
        %v1774 = vld [vmem:[#allocation12 + $0x210] sm:$0xff]
        %v1775 = vld [vmem:[#allocation12 + $0x218] sm:$0xff]
        %v1776 = vld [vmem:[#allocation12 + $0x220] sm:$0xff]
        %v1777 = vld [vmem:[#allocation12 + $0x228] sm:$0xff]
        %v1778 = vld [vmem:[#allocation12 + $0x230] sm:$0xff]
        %v1779 = vld [vmem:[#allocation12 + $0x238] sm:$0xff]
        %v1780 = vld [vmem:[#allocation12 + $0x240] sm:$0xff]
        %v1781 = vld [vmem:[#allocation12 + $0x248] sm:$0xff]
        %v1782 = vld [vmem:[#allocation12 + $0x250] sm:$0xff]
        %v1783 = vld [vmem:[#allocation12 + $0x258] sm:$0xff]
        %v1784 = vld [vmem:[#allocation12 + $0x260] sm:$0xff]
        %v1785 = vld [vmem:[#allocation12 + $0x268] sm:$0xff]
        %v1786 = vld [vmem:[#allocation12 + $0x270] sm:$0xff]
        %v1787 = vld [vmem:[#allocation12 + $0x278] sm:$0xff]
        %v1788 = vld [vmem:[#allocation12 + $0x280] sm:$0xff]
        %v1789 = vld [vmem:[#allocation12 + $0x288] sm:$0xff]
        %v1790 = vld [vmem:[#allocation12 + $0x290] sm:$0xff]
        %v1791 = vld [vmem:[#allocation12 + $0x298] sm:$0xff]
        %v1792 = vld [vmem:[#allocation12 + $0x2a0] sm:$0xff]
        %v1793 = vld [vmem:[#allocation12 + $0x2a8] sm:$0xff]
        %v1794 = vld [vmem:[#allocation12 + $0x2b0] sm:$0xff]
        %v1795 = vld [vmem:[#allocation12 + $0x2b8] sm:$0xff]
        %v1796 = vld [vmem:[#allocation12 + $0x2c0] sm:$0xff]
        %v1797 = vld [vmem:[#allocation12 + $0x2c8] sm:$0xff]
        %v1798 = vld [vmem:[#allocation12 + $0x2d0] sm:$0xff]
        %v1799 = vld [vmem:[#allocation12 + $0x2d8] sm:$0xff]
        %v1800 = vld [vmem:[#allocation12 + $0x2e0] sm:$0xff]
        %v1801 = vld [vmem:[#allocation12 + $0x2e8] sm:$0xff]
        %v1802 = vld [vmem:[#allocation12 + $0x2f0] sm:$0xff]
        %v1803 = vld [vmem:[#allocation12 + $0x2f8] sm:$0xff]
        %v1804 = vld [vmem:[#allocation12 + $0x300] sm:$0xff]
        %v1805 = vld [vmem:[#allocation12 + $0x308] sm:$0xff]
        %v1806 = vld [vmem:[#allocation12 + $0x310] sm:$0xff]
        %v1807 = vld [vmem:[#allocation12 + $0x318] sm:$0xff]
        %v1808 = vld [vmem:[#allocation12 + $0x320] sm:$0xff]
        %v1809 = vld [vmem:[#allocation12 + $0x328] sm:$0xff]
        %v1810 = vld [vmem:[#allocation12 + $0x330] sm:$0xff]
        %v1811 = vld [vmem:[#allocation12 + $0x338] sm:$0xff]
        %v1812 = vld [vmem:[#allocation12 + $0x340] sm:$0xff]
        %v1813 = vld [vmem:[#allocation12 + $0x348] sm:$0xff]
        %v1814 = vld [vmem:[#allocation12 + $0x350] sm:$0xff]
        %v1815 = vld [vmem:[#allocation12 + $0x358] sm:$0xff]
        %v1816 = vld [vmem:[#allocation12 + $0x360] sm:$0xff]
        %v1817 = vld [vmem:[#allocation12 + $0x368] sm:$0xff]
        %v1818 = vld [vmem:[#allocation12 + $0x370] sm:$0xff]
        %v1819 = vld [vmem:[#allocation12 + $0x378] sm:$0xff]
        %v1820 = vld [vmem:[#allocation12 + $0x380] sm:$0xff]
        %v1821 = vld [vmem:[#allocation12 + $0x388] sm:$0xff]
        %v1822 = vld [vmem:[#allocation12 + $0x390] sm:$0xff]
        %v1823 = vld [vmem:[#allocation12 + $0x398] sm:$0xff]
        %v1824 = vld [vmem:[#allocation12 + $0x3a0] sm:$0xff]
        %v1825 = vld [vmem:[#allocation12 + $0x3a8] sm:$0xff]
        %v1826 = vld [vmem:[#allocation12 + $0x3b0] sm:$0xff]
        %v1827 = vld [vmem:[#allocation12 + $0x3b8] sm:$0xff]
        %v1828 = vld [vmem:[#allocation12 + $0x3c0] sm:$0xff]
        %v1829 = vld [vmem:[#allocation12 + $0x3c8] sm:$0xff]
        %v1830 = vld [vmem:[#allocation12 + $0x3d0] sm:$0xff]
        %v1831 = vld [vmem:[#allocation12 + $0x3d8] sm:$0xff]
        %v1832 = vld [vmem:[#allocation12 + $0x3e0] sm:$0xff]
        %v1833 = vld [vmem:[#allocation12 + $0x3e8] sm:$0xff]
        %v1834 = vld [vmem:[#allocation12 + $0x3f0] sm:$0xff]
        %v1835 = vld [vmem:[#allocation12 + $0x3f8] sm:$0xff]
        %v1836 = vld [vmem:[#allocation12 + $0x400] sm:$0xff]
        %v1837 = vld [vmem:[#allocation12 + $0x408] sm:$0xff]
        %v1838 = vld [vmem:[#allocation12 + $0x410] sm:$0xff]
        %v1839 = vld [vmem:[#allocation12 + $0x418] sm:$0xff]
        %v1840 = vld [vmem:[#allocation12 + $0x420] sm:$0xff]
        %v1841 = vld [vmem:[#allocation12 + $0x428] sm:$0xff]
        %v1842 = vld [vmem:[#allocation12 + $0x430] sm:$0xff]
        %v1843 = vld [vmem:[#allocation12 + $0x438] sm:$0xff]
        %v1844 = vld [vmem:[#allocation12 + $0x440] sm:$0xff]
        %v1845 = vld [vmem:[#allocation12 + $0x448] sm:$0xff]
        %v1846 = vld [vmem:[#allocation12 + $0x450] sm:$0xff]
        %v1847 = vld [vmem:[#allocation12 + $0x458] sm:$0xff]
        %v1848 = vld [vmem:[#allocation12 + $0x460] sm:$0xff]
        %v1849 = vld [vmem:[#allocation12 + $0x468] sm:$0xff]
        %v1850 = vld [vmem:[#allocation12 + $0x470] sm:$0xff]
        %v1851 = vld [vmem:[#allocation12 + $0x478] sm:$0xff]
        %v1852 = vld [vmem:[%s5] sm:$0x1]
        %v1854 = vlaneseq
        %v1855 = vshrl.u32 %v1854, 7
        %v1856 = vsub.s32 0, %v1855
        %v1857 = vrot.slane %v1852, %v1856
        %1859 = vmatprep.subr.mxu0 0.0
        %1860 = vmatpush1.msra.mxu0 %v1708
        %1861 = vmatprep.subr.mxu0 0.0
        %1862 = vmatpush1.msra.mxu0 %v1709
        %1863 = vmatprep.subr.mxu0 0.0
        %1864 = vmatpush1.msra.mxu0 %v1710
        %1865 = vmatprep.subr.mxu0 0.0
        %1866 = vmatpush1.msra.mxu0 %v1711
        %1867 = vmatprep.subr.mxu0 0.0
        %1868 = vmatpush1.msra.mxu0 %v1712
        %1869 = vmatprep.subr.mxu0 0.0
        %1870 = vmatpush1.msra.mxu0 %v1713
        %1871 = vmatprep.subr.mxu0 0.0
        %1872 = vmatpush1.msra.mxu0 %v1714
        %1873 = vmatprep.subr.mxu0 0.0
        %1874 = vmatpush1.msra.mxu0 %v1715
        %1875 = vmatprep.subr.mxu0 0.0
        %1876 = vmatpush1.msra.mxu0 %v1716
        %1877 = vmatprep.subr.mxu0 0.0
        %1878 = vmatpush1.msra.mxu0 %v1717
        %1879 = vmatprep.subr.mxu0 0.0
        %1880 = vmatpush1.msra.mxu0 %v1718
        %1881 = vmatprep.subr.mxu0 0.0
        %1882 = vmatpush1.msra.mxu0 %v1719
        %1883 = vmatprep.subr.mxu0 0.0
        %1884 = vmatpush1.msra.mxu0 %v1720
        %1885 = vmatprep.subr.mxu0 0.0
        %1886 = vmatpush1.msra.mxu0 %v1721
        %1887 = vmatprep.subr.mxu0 0.0
        %1888 = vmatpush1.msra.mxu0 %v1722
        %1889 = vmatprep.subr.mxu0 0.0
        %1890 = vmatpush1.msra.mxu0 %v1723
        %1891 = vmatprep.subr.mxu0 0.0
        %1892 = vmatpush1.msra.mxu0 %v1724
        %1893 = vmatprep.subr.mxu0 0.0
        %1894 = vmatpush1.msra.mxu0 %v1725
        %1895 = vmatprep.subr.mxu0 0.0
        %1896 = vmatpush1.msra.mxu0 %v1726
        %1897 = vmatprep.subr.mxu0 0.0
        %1898 = vmatpush1.msra.mxu0 %v1727
        %1899 = vmatprep.subr.mxu0 0.0
        %1900 = vmatpush1.msra.mxu0 %v1728
        %1901 = vmatprep.subr.mxu0 0.0
        %1902 = vmatpush1.msra.mxu0 %v1729
        %1903 = vmatprep.subr.mxu0 0.0
        %1904 = vmatpush1.msra.mxu0 %v1730
        %1905 = vmatprep.subr.mxu0 0.0
        %1906 = vmatpush1.msra.mxu0 %v1731
        %1907 = vmatprep.subr.mxu0 0.0
        %1908 = vmatpush1.msra.mxu0 %v1732
        %1909 = vmatprep.subr.mxu0 0.0
        %1910 = vmatpush1.msra.mxu0 %v1733
        %1911 = vmatprep.subr.mxu0 0.0
        %1912 = vmatpush1.msra.mxu0 %v1734
        %1913 = vmatprep.subr.mxu0 0.0
        %1914 = vmatpush1.msra.mxu0 %v1735
        %1915 = vmatprep.subr.mxu0 0.0
        %1916 = vmatpush1.msra.mxu0 %v1736
        %1917 = vmatprep.subr.mxu0 0.0
        %1918 = vmatpush1.msra.mxu0 %v1737
        %1919 = vmatprep.subr.mxu0 0.0
        %1920 = vmatpush1.msra.mxu0 %v1738
        %1921 = vmatprep.subr.mxu0 0.0
        %1922 = vmatpush1.msra.mxu0 %v1739
        %1923 = vmatprep.mubr.f32.mxu0 %v1421
        %1924 = vmatmul.mubr.f32.gmra.mrb[0].mxu0 %v1420
        %v1925 = vpop.f32.mrb[0].mxu0
        %v1926 = vadd.f32 %v1857, %v1925
        %v1927 = vpop.f32.mrb[0].mxu0
        %1928 = vmatprep.mubr.f32.mxu0 %v1430
        %1929 = vmatmul.mubr.f32.gmra.mrb[0].mxu0 %v1429
        %v1930 = vpop.f32.mrb[0].mxu0
        %v1931 = vadd.f32 %v1857, %v1930
        %v1932 = vpop.f32.mrb[0].mxu0
        %1933 = vmatprep.mubr.f32.mxu0 %v1439
        %1934 = vmatmul.mubr.f32.gmra.mrb[0].mxu0 %v1438
        %v1935 = vpop.f32.mrb[0].mxu0
        %v1936 = vadd.f32 %v1857, %v1935
        %v1937 = vpop.f32.mrb[0].mxu0
        %1938 = vmatprep.mubr.f32.mxu0 %v1448
        %1939 = vmatmul.mubr.f32.gmra.mrb[0].mxu0 %v1447
        %v1940 = vpop.f32.mrb[0].mxu0
        %v1941 = vadd.f32 %v1857, %v1940
        %v1942 = vpop.f32.mrb[0].mxu0
        %1943 = vmatprep.mubr.f32.mxu0 %v1457
        %1944 = vmatmul.mubr.f32.gmra.mrb[0].mxu0 %v1456
        %v1945 = vpop.f32.mrb[0].mxu0
        %v1946 = vadd.f32 %v1857, %v1945
        %v1947 = vpop.f32.mrb[0].mxu0
        %1948 = vmatprep.mubr.f32.mxu0 %v1466
        %1949 = vmatmul.mubr.f32.gmra.mrb[0].mxu0 %v1465
        %v1950 = vpop.f32.mrb[0].mxu0
        %v1951 = vadd.f32 %v1857, %v1950
        %v1952 = vpop.f32.mrb[0].mxu0
        %1953 = vmatprep.mubr.f32.mxu0 %v1475
        %1954 = vmatmul.mubr.f32.gmra.mrb[0].mxu0 %v1474
        %v1955 = vpop.f32.mrb[0].mxu0
        %v1956 = vadd.f32 %v1857, %v1955
        %v1957 = vpop.f32.mrb[0].mxu0
        %1958 = vmatprep.mubr.f32.mxu0 %v1484
        %1959 = vmatmul.mubr.f32.gmra.mrb[0].mxu0 %v1483
        %v1960 = vpop.f32.mrb[0].mxu0
        %v1961 = vadd.f32 %v1857, %v1960
        %v1962 = vpop.f32.mrb[0].mxu0
        %1963 = vmatprep.mubr.f32.mxu0 %v1493
        %1964 = vmatmul.mubr.f32.gmra.mrb[0].mxu0 %v1492
        %v1965 = vpop.f32.mrb[0].mxu0
        %v1966 = vadd.f32 %v1857, %v1965
        %v1967 = vpop.f32.mrb[0].mxu0
        %1968 = vmatprep.mubr.f32.mxu0 %v1502
        %1969 = vmatmul.mubr.f32.gmra.mrb[0].mxu0 %v1501
        %v1970 = vpop.f32.mrb[0].mxu0
        %v1971 = vadd.f32 %v1857, %v1970
        %v1972 = vpop.f32.mrb[0].mxu0
        %1973 = vmatprep.mubr.f32.mxu0 %v1511
        %1974 = vmatmul.mubr.f32.gmra.mrb[0].mxu0 %v1510
        %v1975 = vpop.f32.mrb[0].mxu0
        %v1976 = vadd.f32 %v1857, %v1975
        %v1977 = vpop.f32.mrb[0].mxu0
        %1978 = vmatprep.mubr.f32.mxu0 %v1520
        %1979 = vmatmul.mubr.f32.gmra.mrb[0].mxu0 %v1519
        %v1980 = vpop.f32.mrb[0].mxu0
        %v1981 = vadd.f32 %v1857, %v1980
        %v1982 = vpop.f32.mrb[0].mxu0
        %1983 = vmatprep.mubr.f32.mxu0 %v1529
        %1984 = vmatmul.mubr.f32.gmra.mrb[0].mxu0 %v1528
        %v1985 = vpop.f32.mrb[0].mxu0
        %v1986 = vadd.f32 %v1857, %v1985
        %v1987 = vpop.f32.mrb[0].mxu0
        %1988 = vmatprep.mubr.f32.mxu0 %v1538
        %1989 = vmatmul.mubr.f32.gmra.mrb[0].mxu0 %v1537
        %v1990 = vpop.f32.mrb[0].mxu0
        %v1991 = vadd.f32 %v1857, %v1990
        %v1992 = vpop.f32.mrb[0].mxu0
        %1993 = vmatprep.mubr.f32.mxu0 %v1547
        %1994 = vmatmul.mubr.f32.gmra.mrb[0].mxu0 %v1546
        %v1995 = vpop.f32.mrb[0].mxu0
        %v1996 = vadd.f32 %v1857, %v1995
        %v1997 = vpop.f32.mrb[0].mxu0
        %1998 = vmatprep.mubr.f32.mxu0 %v1556
        %1999 = vmatmul.mubr.f32.gmra.mrb[0].mxu0 %v1555
        %v2000 = vpop.f32.mrb[0].mxu0
        %v2001 = vadd.f32 %v1857, %v2000
        %v2002 = vpop.f32.mrb[0].mxu0
        %2003 = vmatprep.mubr.f32.mxu0 %v1565
        %2004 = vmatmul.mubr.f32.gmra.mrb[0].mxu0 %v1564
        %v2005 = vpop.f32.mrb[0].mxu0
        %v2006 = vadd.f32 %v1857, %v2005
        %v2007 = vpop.f32.mrb[0].mxu0
        %2008 = vmatprep.mubr.f32.mxu0 %v1574
        %2009 = vmatmul.mubr.f32.gmra.mrb[0].mxu0 %v1573
        %v2010 = vpop.f32.mrb[0].mxu0
        %v2011 = vadd.f32 %v1857, %v2010
        %v2012 = vpop.f32.mrb[0].mxu0
        %2013 = vmatprep.mubr.f32.mxu0 %v1583
        %2014 = vmatmul.mubr.f32.gmra.mrb[0].mxu0 %v1582
        %v2015 = vpop.f32.mrb[0].mxu0
        %v2016 = vadd.f32 %v1857, %v2015
        %v2017 = vpop.f32.mrb[0].mxu0
        %2018 = vmatprep.mubr.f32.mxu0 %v1592
        %2019 = vmatmul.mubr.f32.gmra.mrb[0].mxu0 %v1591
        %v2020 = vpop.f32.mrb[0].mxu0
        %v2021 = vadd.f32 %v1857, %v2020
        %v2022 = vpop.f32.mrb[0].mxu0
        %2023 = vmatprep.mubr.f32.mxu0 %v1601
        %2024 = vmatmul.mubr.f32.gmra.mrb[0].mxu0 %v1600
        %v2025 = vpop.f32.mrb[0].mxu0
        %v2026 = vadd.f32 %v1857, %v2025
        %v2027 = vpop.f32.mrb[0].mxu0
        %2028 = vmatprep.mubr.f32.mxu0 %v1610
        %2029 = vmatmul.mubr.f32.gmra.mrb[0].mxu0 %v1609
        %v2030 = vpop.f32.mrb[0].mxu0
        %v2031 = vadd.f32 %v1857, %v2030
        %v2032 = vpop.f32.mrb[0].mxu0
        %2033 = vmatprep.mubr.f32.mxu0 %v1619
        %2034 = vmatmul.mubr.f32.gmra.mrb[0].mxu0 %v1618
        %v2035 = vpop.f32.mrb[0].mxu0
        %v2036 = vadd.f32 %v1857, %v2035
        %v2037 = vpop.f32.mrb[0].mxu0
        %2038 = vmatprep.mubr.f32.mxu0 %v1628
        %2039 = vmatmul.mubr.f32.gmra.mrb[0].mxu0 %v1627
        %v2040 = vpop.f32.mrb[0].mxu0
        %v2041 = vadd.f32 %v1857, %v2040
        %v2042 = vpop.f32.mrb[0].mxu0
        %2043 = vmatprep.mubr.f32.mxu0 %v1637
        %2044 = vmatmul.mubr.f32.gmra.mrb[0].mxu0 %v1636
        %v2045 = vpop.f32.mrb[0].mxu0
        %v2046 = vadd.f32 %v1857, %v2045
        %v2047 = vpop.f32.mrb[0].mxu0
        %2048 = vmatprep.mubr.f32.mxu0 %v1646
        %2049 = vmatmul.mubr.f32.gmra.mrb[0].mxu0 %v1645
        %v2050 = vpop.f32.mrb[0].mxu0
        %v2051 = vadd.f32 %v1857, %v2050
        %v2052 = vpop.f32.mrb[0].mxu0
        %2053 = vmatprep.mubr.f32.mxu0 %v1655
        %2054 = vmatmul.mubr.f32.gmra.mrb[0].mxu0 %v1654
        %v2055 = vpop.f32.mrb[0].mxu0
        %v2056 = vadd.f32 %v1857, %v2055
        %v2057 = vpop.f32.mrb[0].mxu0
        %2058 = vmatprep.mubr.f32.mxu0 %v1664
        %2059 = vmatmul.mubr.f32.gmra.mrb[0].mxu0 %v1663
        %v2060 = vpop.f32.mrb[0].mxu0
        %v2061 = vadd.f32 %v1857, %v2060
        %v2062 = vpop.f32.mrb[0].mxu0
        %2063 = vmatprep.mubr.f32.mxu0 %v1673
        %2064 = vmatmul.mubr.f32.gmra.mrb[0].mxu0 %v1672
        %v2065 = vpop.f32.mrb[0].mxu0
        %v2066 = vadd.f32 %v1857, %v2065
        %v2067 = vpop.f32.mrb[0].mxu0
        %2068 = vmatprep.mubr.f32.mxu0 %v1682
        %2069 = vmatmul.mubr.f32.gmra.mrb[0].mxu0 %v1681
        %v2070 = vpop.f32.mrb[0].mxu0
        %v2071 = vadd.f32 %v1857, %v2070
        %v2072 = vpop.f32.mrb[0].mxu0
        %2073 = vmatprep.mubr.f32.mxu0 %v1691
        %2074 = vmatmul.mubr.f32.gmra.mrb[0].mxu0 %v1690
        %v2075 = vpop.f32.mrb[0].mxu0
        %v2076 = vadd.f32 %v1857, %v2075
        %v2077 = vpop.f32.mrb[0].mxu0
        %2078 = vmatprep.mubr.f32.mxu0 %v1700
        %2079 = vmatmul.mubr.f32.gmra.mrb[0].mxu0 %v1699
        %v2080 = vpop.f32.mrb[0].mxu0
        %v2081 = vadd.f32 %v1857, %v2080
        %v2082 = vpop.f32.mrb[0].mxu0
        %2083 = vdwg.mxu0
        %2084 = vmatprep.subr.mxu0 0.0
        %2085 = vmatpush1.msra.mxu0 %v1740
        %2086 = vmatprep.subr.mxu0 0.0
        %2087 = vmatpush1.msra.mxu0 %v1741
        %2088 = vmatprep.subr.mxu0 0.0
        %2089 = vmatpush1.msra.mxu0 %v1742
        %2090 = vmatprep.subr.mxu0 0.0
        %2091 = vmatpush1.msra.mxu0 %v1743
        %2092 = vmatprep.subr.mxu0 0.0
        %2093 = vmatpush1.msra.mxu0 %v1744
        %2094 = vmatprep.subr.mxu0 0.0
        %2095 = vmatpush1.msra.mxu0 %v1745
        %2096 = vmatprep.subr.mxu0 0.0
        %2097 = vmatpush1.msra.mxu0 %v1746
        %2098 = vmatprep.subr.mxu0 0.0
        %2099 = vmatpush1.msra.mxu0 %v1747
        %2100 = vmatprep.subr.mxu0 0.0
        %2101 = vmatpush1.msra.mxu0 %v1748
        %2102 = vmatprep.subr.mxu0 0.0
        %2103 = vmatpush1.msra.mxu0 %v1749
        %2104 = vmatprep.subr.mxu0 0.0
        %2105 = vmatpush1.msra.mxu0 %v1750
        %2106 = vmatprep.subr.mxu0 0.0
        %2107 = vmatpush1.msra.mxu0 %v1751
        %2108 = vmatprep.subr.mxu0 0.0
        %2109 = vmatpush1.msra.mxu0 %v1752
        %2110 = vmatprep.subr.mxu0 0.0
        %2111 = vmatpush1.msra.mxu0 %v1753
        %2112 = vmatprep.subr.mxu0 0.0
        %2113 = vmatpush1.msra.mxu0 %v1754
        %2114 = vmatprep.subr.mxu0 0.0
        %2115 = vmatpush1.msra.mxu0 %v1755
        %2116 = vmatprep.subr.mxu0 0.0
        %2117 = vmatpush1.msra.mxu0 %v1756
        %2118 = vmatprep.subr.mxu0 0.0
        %2119 = vmatpush1.msra.mxu0 %v1757
        %2120 = vmatprep.subr.mxu0 0.0
        %2121 = vmatpush1.msra.mxu0 %v1758
        %2122 = vmatprep.subr.mxu0 0.0
        %2123 = vmatpush1.msra.mxu0 %v1759
        %2124 = vmatprep.subr.mxu0 0.0
        %2125 = vmatpush1.msra.mxu0 %v1760
        %2126 = vmatprep.subr.mxu0 0.0
        %2127 = vmatpush1.msra.mxu0 %v1761
        %2128 = vmatprep.subr.mxu0 0.0
        %2129 = vmatpush1.msra.mxu0 %v1762
        %2130 = vmatprep.subr.mxu0 0.0
        %2131 = vmatpush1.msra.mxu0 %v1763
        %2132 = vmatprep.subr.mxu0 0.0
        %2133 = vmatpush1.msra.mxu0 %v1764
        %2134 = vmatprep.subr.mxu0 0.0
        %2135 = vmatpush1.msra.mxu0 %v1765
        %2136 = vmatprep.subr.mxu0 0.0
        %2137 = vmatpush1.msra.mxu0 %v1766
        %2138 = vmatprep.subr.mxu0 0.0
        %2139 = vmatpush1.msra.mxu0 %v1767
        %2140 = vmatprep.subr.mxu0 0.0
        %2141 = vmatpush1.msra.mxu0 %v1768
        %2142 = vmatprep.subr.mxu0 0.0
        %2143 = vmatpush1.msra.mxu0 %v1769
        %2144 = vmatprep.subr.mxu0 0.0
        %2145 = vmatpush1.msra.mxu0 %v1770
        %2146 = vmatprep.subr.mxu0 0.0
        %2147 = vmatpush1.msra.mxu0 %v1771
        %2148 = vmatprep.mubr.f32.mxu0 %v1423
        %2149 = vmatmul.mubr.f32.gmra.mrb[0].mxu0 %v1422
        %v2150 = vpop.f32.mrb[0].mxu0
        %v2151 = vadd.f32 %v1926, %v2150
        %v2152 = vpop.f32.mrb[0].mxu0
        %2153 = vmatprep.mubr.f32.mxu0 %v1432
        %2154 = vmatmul.mubr.f32.gmra.mrb[0].mxu0 %v1431
        %v2155 = vpop.f32.mrb[0].mxu0
        %v2156 = vadd.f32 %v1931, %v2155
        %v2157 = vpop.f32.mrb[0].mxu0
        %2158 = vmatprep.mubr.f32.mxu0 %v1441
        %2159 = vmatmul.mubr.f32.gmra.mrb[0].mxu0 %v1440
        %v2160 = vpop.f32.mrb[0].mxu0
        %v2161 = vadd.f32 %v1936, %v2160
        %v2162 = vpop.f32.mrb[0].mxu0
        %2163 = vmatprep.mubr.f32.mxu0 %v1450
        %2164 = vmatmul.mubr.f32.gmra.mrb[0].mxu0 %v1449
        %v2165 = vpop.f32.mrb[0].mxu0
        %v2166 = vadd.f32 %v1941, %v2165
        %v2167 = vpop.f32.mrb[0].mxu0
        %2168 = vmatprep.mubr.f32.mxu0 %v1459
        %2169 = vmatmul.mubr.f32.gmra.mrb[0].mxu0 %v1458
        %v2170 = vpop.f32.mrb[0].mxu0
        %v2171 = vadd.f32 %v1946, %v2170
        %v2172 = vpop.f32.mrb[0].mxu0
        %2173 = vmatprep.mubr.f32.mxu0 %v1468
        %2174 = vmatmul.mubr.f32.gmra.mrb[0].mxu0 %v1467
        %v2175 = vpop.f32.mrb[0].mxu0
        %v2176 = vadd.f32 %v1951, %v2175
        %v2177 = vpop.f32.mrb[0].mxu0
        %2178 = vmatprep.mubr.f32.mxu0 %v1477
        %2179 = vmatmul.mubr.f32.gmra.mrb[0].mxu0 %v1476
        %v2180 = vpop.f32.mrb[0].mxu0
        %v2181 = vadd.f32 %v1956, %v2180
        %v2182 = vpop.f32.mrb[0].mxu0
        %2183 = vmatprep.mubr.f32.mxu0 %v1486
        %2184 = vmatmul.mubr.f32.gmra.mrb[0].mxu0 %v1485
        %v2185 = vpop.f32.mrb[0].mxu0
        %v2186 = vadd.f32 %v1961, %v2185
        %v2187 = vpop.f32.mrb[0].mxu0
        %2188 = vmatprep.mubr.f32.mxu0 %v1495
        %2189 = vmatmul.mubr.f32.gmra.mrb[0].mxu0 %v1494
        %v2190 = vpop.f32.mrb[0].mxu0
        %v2191 = vadd.f32 %v1966, %v2190
        %v2192 = vpop.f32.mrb[0].mxu0
        %2193 = vmatprep.mubr.f32.mxu0 %v1504
        %2194 = vmatmul.mubr.f32.gmra.mrb[0].mxu0 %v1503
        %v2195 = vpop.f32.mrb[0].mxu0
        %v2196 = vadd.f32 %v1971, %v2195
        %v2197 = vpop.f32.mrb[0].mxu0
        %2198 = vmatprep.mubr.f32.mxu0 %v1513
        %2199 = vmatmul.mubr.f32.gmra.mrb[0].mxu0 %v1512
        %v2200 = vpop.f32.mrb[0].mxu0
        %v2201 = vadd.f32 %v1976, %v2200
        %v2202 = vpop.f32.mrb[0].mxu0
        %2203 = vmatprep.mubr.f32.mxu0 %v1522
        %2204 = vmatmul.mubr.f32.gmra.mrb[0].mxu0 %v1521
        %v2205 = vpop.f32.mrb[0].mxu0
        %v2206 = vadd.f32 %v1981, %v2205
        %v2207 = vpop.f32.mrb[0].mxu0
        %2208 = vmatprep.mubr.f32.mxu0 %v1531
        %2209 = vmatmul.mubr.f32.gmra.mrb[0].mxu0 %v1530
        %v2210 = vpop.f32.mrb[0].mxu0
        %v2211 = vadd.f32 %v1986, %v2210
        %v2212 = vpop.f32.mrb[0].mxu0
        %2213 = vmatprep.mubr.f32.mxu0 %v1540
        %2214 = vmatmul.mubr.f32.gmra.mrb[0].mxu0 %v1539
        %v2215 = vpop.f32.mrb[0].mxu0
        %v2216 = vadd.f32 %v1991, %v2215
        %v2217 = vpop.f32.mrb[0].mxu0
        %2218 = vmatprep.mubr.f32.mxu0 %v1549
        %2219 = vmatmul.mubr.f32.gmra.mrb[0].mxu0 %v1548
        %v2220 = vpop.f32.mrb[0].mxu0
        %v2221 = vadd.f32 %v1996, %v2220
        %v2222 = vpop.f32.mrb[0].mxu0
        %2223 = vmatprep.mubr.f32.mxu0 %v1558
        %2224 = vmatmul.mubr.f32.gmra.mrb[0].mxu0 %v1557
        %v2225 = vpop.f32.mrb[0].mxu0
        %v2226 = vadd.f32 %v2001, %v2225
        %v2227 = vpop.f32.mrb[0].mxu0
        %2228 = vmatprep.mubr.f32.mxu0 %v1567
        %2229 = vmatmul.mubr.f32.gmra.mrb[0].mxu0 %v1566
        %v2230 = vpop.f32.mrb[0].mxu0
        %v2231 = vadd.f32 %v2006, %v2230
        %v2232 = vpop.f32.mrb[0].mxu0
        %2233 = vmatprep.mubr.f32.mxu0 %v1576
        %2234 = vmatmul.mubr.f32.gmra.mrb[0].mxu0 %v1575
        %v2235 = vpop.f32.mrb[0].mxu0
        %v2236 = vadd.f32 %v2011, %v2235
        %v2237 = vpop.f32.mrb[0].mxu0
        %2238 = vmatprep.mubr.f32.mxu0 %v1585
        %2239 = vmatmul.mubr.f32.gmra.mrb[0].mxu0 %v1584
        %v2240 = vpop.f32.mrb[0].mxu0
        %v2241 = vadd.f32 %v2016, %v2240
        %v2242 = vpop.f32.mrb[0].mxu0
        %2243 = vmatprep.mubr.f32.mxu0 %v1594
        %2244 = vmatmul.mubr.f32.gmra.mrb[0].mxu0 %v1593
        %v2245 = vpop.f32.mrb[0].mxu0
        %v2246 = vadd.f32 %v2021, %v2245
        %v2247 = vpop.f32.mrb[0].mxu0
        %2248 = vmatprep.mubr.f32.mxu0 %v1603
        %2249 = vmatmul.mubr.f32.gmra.mrb[0].mxu0 %v1602
        %v2250 = vpop.f32.mrb[0].mxu0
        %v2251 = vadd.f32 %v2026, %v2250
        %v2252 = vpop.f32.mrb[0].mxu0
        %2253 = vmatprep.mubr.f32.mxu0 %v1612
        %2254 = vmatmul.mubr.f32.gmra.mrb[0].mxu0 %v1611
        %v2255 = vpop.f32.mrb[0].mxu0
        %v2256 = vadd.f32 %v2031, %v2255
        %v2257 = vpop.f32.mrb[0].mxu0
        %2258 = vmatprep.mubr.f32.mxu0 %v1621
        %2259 = vmatmul.mubr.f32.gmra.mrb[0].mxu0 %v1620
        %v2260 = vpop.f32.mrb[0].mxu0
        %v2261 = vadd.f32 %v2036, %v2260
        %v2262 = vpop.f32.mrb[0].mxu0
        %2263 = vmatprep.mubr.f32.mxu0 %v1630
        %2264 = vmatmul.mubr.f32.gmra.mrb[0].mxu0 %v1629
        %v2265 = vpop.f32.mrb[0].mxu0
        %v2266 = vadd.f32 %v2041, %v2265
        %v2267 = vpop.f32.mrb[0].mxu0
        %2268 = vmatprep.mubr.f32.mxu0 %v1639
        %2269 = vmatmul.mubr.f32.gmra.mrb[0].mxu0 %v1638
        %v2270 = vpop.f32.mrb[0].mxu0
        %v2271 = vadd.f32 %v2046, %v2270
        %v2272 = vpop.f32.mrb[0].mxu0
        %2273 = vmatprep.mubr.f32.mxu0 %v1648
        %2274 = vmatmul.mubr.f32.gmra.mrb[0].mxu0 %v1647
        %v2275 = vpop.f32.mrb[0].mxu0
        %v2276 = vadd.f32 %v2051, %v2275
        %v2277 = vpop.f32.mrb[0].mxu0
        %2278 = vmatprep.mubr.f32.mxu0 %v1657
        %2279 = vmatmul.mubr.f32.gmra.mrb[0].mxu0 %v1656
        %v2280 = vpop.f32.mrb[0].mxu0
        %v2281 = vadd.f32 %v2056, %v2280
        %v2282 = vpop.f32.mrb[0].mxu0
        %2283 = vmatprep.mubr.f32.mxu0 %v1666
        %2284 = vmatmul.mubr.f32.gmra.mrb[0].mxu0 %v1665
        %v2285 = vpop.f32.mrb[0].mxu0
        %v2286 = vadd.f32 %v2061, %v2285
        %v2287 = vpop.f32.mrb[0].mxu0
        %2288 = vmatprep.mubr.f32.mxu0 %v1675
        %2289 = vmatmul.mubr.f32.gmra.mrb[0].mxu0 %v1674
        %v2290 = vpop.f32.mrb[0].mxu0
        %v2291 = vadd.f32 %v2066, %v2290
        %v2292 = vpop.f32.mrb[0].mxu0
        %2293 = vmatprep.mubr.f32.mxu0 %v1684
        %2294 = vmatmul.mubr.f32.gmra.mrb[0].mxu0 %v1683
        %v2295 = vpop.f32.mrb[0].mxu0
        %v2296 = vadd.f32 %v2071, %v2295
        %v2297 = vpop.f32.mrb[0].mxu0
        %2298 = vmatprep.mubr.f32.mxu0 %v1693
        %2299 = vmatmul.mubr.f32.gmra.mrb[0].mxu0 %v1692
        %v2300 = vpop.f32.mrb[0].mxu0
        %v2301 = vadd.f32 %v2076, %v2300
        %v2302 = vpop.f32.mrb[0].mxu0
        %2303 = vmatprep.mubr.f32.mxu0 %v1702
        %2304 = vmatmul.mubr.f32.gmra.mrb[0].mxu0 %v1701
        %v2305 = vpop.f32.mrb[0].mxu0
        %v2306 = vadd.f32 %v2081, %v2305
        %v2307 = vpop.f32.mrb[0].mxu0
        %2308 = vdwg.mxu0
        %2309 = vmatprep.subr.mxu0 0.0
        %2310 = vmatpush1.msra.mxu0 %v1772
        %2311 = vmatprep.subr.mxu0 0.0
        %2312 = vmatpush1.msra.mxu0 %v1773
        %2313 = vmatprep.subr.mxu0 0.0
        %2314 = vmatpush1.msra.mxu0 %v1774
        %2315 = vmatprep.subr.mxu0 0.0
        %2316 = vmatpush1.msra.mxu0 %v1775
        %2317 = vmatprep.subr.mxu0 0.0
        %2318 = vmatpush1.msra.mxu0 %v1776
        %2319 = vmatprep.subr.mxu0 0.0
        %2320 = vmatpush1.msra.mxu0 %v1777
        %2321 = vmatprep.subr.mxu0 0.0
        %2322 = vmatpush1.msra.mxu0 %v1778
        %2323 = vmatprep.subr.mxu0 0.0
        %2324 = vmatpush1.msra.mxu0 %v1779
        %2325 = vmatprep.subr.mxu0 0.0
        %2326 = vmatpush1.msra.mxu0 %v1780
        %2327 = vmatprep.subr.mxu0 0.0
        %2328 = vmatpush1.msra.mxu0 %v1781
        %2329 = vmatprep.subr.mxu0 0.0
        %2330 = vmatpush1.msra.mxu0 %v1782
        %2331 = vmatprep.subr.mxu0 0.0
        %2332 = vmatpush1.msra.mxu0 %v1783
        %2333 = vmatprep.subr.mxu0 0.0
        %2334 = vmatpush1.msra.mxu0 %v1784
        %2335 = vmatprep.subr.mxu0 0.0
        %2336 = vmatpush1.msra.mxu0 %v1785
        %2337 = vmatprep.subr.mxu0 0.0
        %2338 = vmatpush1.msra.mxu0 %v1786
        %2339 = vmatprep.subr.mxu0 0.0
        %2340 = vmatpush1.msra.mxu0 %v1787
        %2341 = vmatprep.subr.mxu0 0.0
        %2342 = vmatpush1.msra.mxu0 %v1788
        %2343 = vmatprep.subr.mxu0 0.0
        %2344 = vmatpush1.msra.mxu0 %v1789
        %2345 = vmatprep.subr.mxu0 0.0
        %2346 = vmatpush1.msra.mxu0 %v1790
        %2347 = vmatprep.subr.mxu0 0.0
        %2348 = vmatpush1.msra.mxu0 %v1791
        %2349 = vmatprep.subr.mxu0 0.0
        %2350 = vmatpush1.msra.mxu0 %v1792
        %2351 = vmatprep.subr.mxu0 0.0
        %2352 = vmatpush1.msra.mxu0 %v1793
        %2353 = vmatprep.subr.mxu0 0.0
        %2354 = vmatpush1.msra.mxu0 %v1794
        %2355 = vmatprep.subr.mxu0 0.0
        %2356 = vmatpush1.msra.mxu0 %v1795
        %2357 = vmatprep.subr.mxu0 0.0
        %2358 = vmatpush1.msra.mxu0 %v1796
        %2359 = vmatprep.subr.mxu0 0.0
        %2360 = vmatpush1.msra.mxu0 %v1797
        %2361 = vmatprep.subr.mxu0 0.0
        %2362 = vmatpush1.msra.mxu0 %v1798
        %2363 = vmatprep.subr.mxu0 0.0
        %2364 = vmatpush1.msra.mxu0 %v1799
        %2365 = vmatprep.subr.mxu0 0.0
        %2366 = vmatpush1.msra.mxu0 %v1800
        %2367 = vmatprep.subr.mxu0 0.0
        %2368 = vmatpush1.msra.mxu0 %v1801
        %2369 = vmatprep.subr.mxu0 0.0
        %2370 = vmatpush1.msra.mxu0 %v1802
        %2371 = vmatprep.subr.mxu0 0.0
        %2372 = vmatpush1.msra.mxu0 %v1803
        %2373 = vmatprep.mubr.f32.mxu0 %v1425
        %2374 = vmatmul.mubr.f32.gmra.mrb[0].mxu0 %v1424
        %v2375 = vpop.f32.mrb[0].mxu0
        %v2376 = vadd.f32 %v2151, %v2375
        %v2377 = vpop.f32.mrb[0].mxu0
        %2378 = vmatprep.mubr.f32.mxu0 %v1434
        %2379 = vmatmul.mubr.f32.gmra.mrb[0].mxu0 %v1433
        %v2380 = vpop.f32.mrb[0].mxu0
        %v2381 = vadd.f32 %v2156, %v2380
        %v2382 = vpop.f32.mrb[0].mxu0
        %2383 = vmatprep.mubr.f32.mxu0 %v1443
        %2384 = vmatmul.mubr.f32.gmra.mrb[0].mxu0 %v1442
        %v2385 = vpop.f32.mrb[0].mxu0
        %v2386 = vadd.f32 %v2161, %v2385
        %v2387 = vpop.f32.mrb[0].mxu0
        %2388 = vmatprep.mubr.f32.mxu0 %v1452
        %2389 = vmatmul.mubr.f32.gmra.mrb[0].mxu0 %v1451
        %v2390 = vpop.f32.mrb[0].mxu0
        %v2391 = vadd.f32 %v2166, %v2390
        %v2392 = vpop.f32.mrb[0].mxu0
        %2393 = vmatprep.mubr.f32.mxu0 %v1461
        %2394 = vmatmul.mubr.f32.gmra.mrb[0].mxu0 %v1460
        %v2395 = vpop.f32.mrb[0].mxu0
        %v2396 = vadd.f32 %v2171, %v2395
        %v2397 = vpop.f32.mrb[0].mxu0
        %2398 = vmatprep.mubr.f32.mxu0 %v1470
        %2399 = vmatmul.mubr.f32.gmra.mrb[0].mxu0 %v1469
        %v2400 = vpop.f32.mrb[0].mxu0
        %v2401 = vadd.f32 %v2176, %v2400
        %v2402 = vpop.f32.mrb[0].mxu0
        %2403 = vmatprep.mubr.f32.mxu0 %v1479
        %2404 = vmatmul.mubr.f32.gmra.mrb[0].mxu0 %v1478
        %v2405 = vpop.f32.mrb[0].mxu0
        %v2406 = vadd.f32 %v2181, %v2405
        %v2407 = vpop.f32.mrb[0].mxu0
        %2408 = vmatprep.mubr.f32.mxu0 %v1488
        %2409 = vmatmul.mubr.f32.gmra.mrb[0].mxu0 %v1487
        %v2410 = vpop.f32.mrb[0].mxu0
        %v2411 = vadd.f32 %v2186, %v2410
        %v2412 = vpop.f32.mrb[0].mxu0
        %2413 = vmatprep.mubr.f32.mxu0 %v1497
        %2414 = vmatmul.mubr.f32.gmra.mrb[0].mxu0 %v1496
        %v2415 = vpop.f32.mrb[0].mxu0
        %v2416 = vadd.f32 %v2191, %v2415
        %v2417 = vpop.f32.mrb[0].mxu0
        %2418 = vmatprep.mubr.f32.mxu0 %v1506
        %2419 = vmatmul.mubr.f32.gmra.mrb[0].mxu0 %v1505
        %v2420 = vpop.f32.mrb[0].mxu0
        %v2421 = vadd.f32 %v2196, %v2420
        %v2422 = vpop.f32.mrb[0].mxu0
        %2423 = vmatprep.mubr.f32.mxu0 %v1515
        %2424 = vmatmul.mubr.f32.gmra.mrb[0].mxu0 %v1514
        %v2425 = vpop.f32.mrb[0].mxu0
        %v2426 = vadd.f32 %v2201, %v2425
        %v2427 = vpop.f32.mrb[0].mxu0
        %2428 = vmatprep.mubr.f32.mxu0 %v1524
        %2429 = vmatmul.mubr.f32.gmra.mrb[0].mxu0 %v1523
        %v2430 = vpop.f32.mrb[0].mxu0
        %v2431 = vadd.f32 %v2206, %v2430
        %v2432 = vpop.f32.mrb[0].mxu0
        %2433 = vmatprep.mubr.f32.mxu0 %v1533
        %2434 = vmatmul.mubr.f32.gmra.mrb[0].mxu0 %v1532
        %v2435 = vpop.f32.mrb[0].mxu0
        %v2436 = vadd.f32 %v2211, %v2435
        %v2437 = vpop.f32.mrb[0].mxu0
        %2438 = vmatprep.mubr.f32.mxu0 %v1542
        %2439 = vmatmul.mubr.f32.gmra.mrb[0].mxu0 %v1541
        %v2440 = vpop.f32.mrb[0].mxu0
        %v2441 = vadd.f32 %v2216, %v2440
        %v2442 = vpop.f32.mrb[0].mxu0
        %2443 = vmatprep.mubr.f32.mxu0 %v1551
        %2444 = vmatmul.mubr.f32.gmra.mrb[0].mxu0 %v1550
        %v2445 = vpop.f32.mrb[0].mxu0
        %v2446 = vadd.f32 %v2221, %v2445
        %v2447 = vpop.f32.mrb[0].mxu0
        %2448 = vmatprep.mubr.f32.mxu0 %v1560
        %2449 = vmatmul.mubr.f32.gmra.mrb[0].mxu0 %v1559
        %v2450 = vpop.f32.mrb[0].mxu0
        %v2451 = vadd.f32 %v2226, %v2450
        %v2452 = vpop.f32.mrb[0].mxu0
        %2453 = vmatprep.mubr.f32.mxu0 %v1569
        %2454 = vmatmul.mubr.f32.gmra.mrb[0].mxu0 %v1568
        %v2455 = vpop.f32.mrb[0].mxu0
        %v2456 = vadd.f32 %v2231, %v2455
        %v2457 = vpop.f32.mrb[0].mxu0
        %2458 = vmatprep.mubr.f32.mxu0 %v1578
        %2459 = vmatmul.mubr.f32.gmra.mrb[0].mxu0 %v1577
        %v2460 = vpop.f32.mrb[0].mxu0
        %v2461 = vadd.f32 %v2236, %v2460
        %v2462 = vpop.f32.mrb[0].mxu0
        %2463 = vmatprep.mubr.f32.mxu0 %v1587
        %2464 = vmatmul.mubr.f32.gmra.mrb[0].mxu0 %v1586
        %v2465 = vpop.f32.mrb[0].mxu0
        %v2466 = vadd.f32 %v2241, %v2465
        %v2467 = vpop.f32.mrb[0].mxu0
        %2468 = vmatprep.mubr.f32.mxu0 %v1596
        %2469 = vmatmul.mubr.f32.gmra.mrb[0].mxu0 %v1595
        %v2470 = vpop.f32.mrb[0].mxu0
        %v2471 = vadd.f32 %v2246, %v2470
        %v2472 = vpop.f32.mrb[0].mxu0
        %2473 = vmatprep.mubr.f32.mxu0 %v1605
        %2474 = vmatmul.mubr.f32.gmra.mrb[0].mxu0 %v1604
        %v2475 = vpop.f32.mrb[0].mxu0
        %v2476 = vadd.f32 %v2251, %v2475
        %v2477 = vpop.f32.mrb[0].mxu0
        %2478 = vmatprep.mubr.f32.mxu0 %v1614
        %2479 = vmatmul.mubr.f32.gmra.mrb[0].mxu0 %v1613
        %v2480 = vpop.f32.mrb[0].mxu0
        %v2481 = vadd.f32 %v2256, %v2480
        %v2482 = vpop.f32.mrb[0].mxu0
        %2483 = vmatprep.mubr.f32.mxu0 %v1623
        %2484 = vmatmul.mubr.f32.gmra.mrb[0].mxu0 %v1622
        %v2485 = vpop.f32.mrb[0].mxu0
        %v2486 = vadd.f32 %v2261, %v2485
        %v2487 = vpop.f32.mrb[0].mxu0
        %2488 = vmatprep.mubr.f32.mxu0 %v1632
        %2489 = vmatmul.mubr.f32.gmra.mrb[0].mxu0 %v1631
        %v2490 = vpop.f32.mrb[0].mxu0
        %v2491 = vadd.f32 %v2266, %v2490
        %v2492 = vpop.f32.mrb[0].mxu0
        %2493 = vmatprep.mubr.f32.mxu0 %v1641
        %2494 = vmatmul.mubr.f32.gmra.mrb[0].mxu0 %v1640
        %v2495 = vpop.f32.mrb[0].mxu0
        %v2496 = vadd.f32 %v2271, %v2495
        %v2497 = vpop.f32.mrb[0].mxu0
        %2498 = vmatprep.mubr.f32.mxu0 %v1650
        %2499 = vmatmul.mubr.f32.gmra.mrb[0].mxu0 %v1649
        %v2500 = vpop.f32.mrb[0].mxu0
        %v2501 = vadd.f32 %v2276, %v2500
        %v2502 = vpop.f32.mrb[0].mxu0
        %2503 = vmatprep.mubr.f32.mxu0 %v1659
        %2504 = vmatmul.mubr.f32.gmra.mrb[0].mxu0 %v1658
        %v2505 = vpop.f32.mrb[0].mxu0
        %v2506 = vadd.f32 %v2281, %v2505
        %v2507 = vpop.f32.mrb[0].mxu0
        %2508 = vmatprep.mubr.f32.mxu0 %v1668
        %2509 = vmatmul.mubr.f32.gmra.mrb[0].mxu0 %v1667
        %v2510 = vpop.f32.mrb[0].mxu0
        %v2511 = vadd.f32 %v2286, %v2510
        %v2512 = vpop.f32.mrb[0].mxu0
        %2513 = vmatprep.mubr.f32.mxu0 %v1677
        %2514 = vmatmul.mubr.f32.gmra.mrb[0].mxu0 %v1676
        %v2515 = vpop.f32.mrb[0].mxu0
        %v2516 = vadd.f32 %v2291, %v2515
        %v2517 = vpop.f32.mrb[0].mxu0
        %2518 = vmatprep.mubr.f32.mxu0 %v1686
        %2519 = vmatmul.mubr.f32.gmra.mrb[0].mxu0 %v1685
        %v2520 = vpop.f32.mrb[0].mxu0
        %v2521 = vadd.f32 %v2296, %v2520
        %v2522 = vpop.f32.mrb[0].mxu0
        %2523 = vmatprep.mubr.f32.mxu0 %v1695
        %2524 = vmatmul.mubr.f32.gmra.mrb[0].mxu0 %v1694
        %v2525 = vpop.f32.mrb[0].mxu0
        %v2526 = vadd.f32 %v2301, %v2525
        %v2527 = vpop.f32.mrb[0].mxu0
        %2528 = vmatprep.mubr.f32.mxu0 %v1704
        %2529 = vmatmul.mubr.f32.gmra.mrb[0].mxu0 %v1703
        %v2530 = vpop.f32.mrb[0].mxu0
        %v2531 = vadd.f32 %v2306, %v2530
        %v2532 = vpop.f32.mrb[0].mxu0
        %2533 = vdwg.mxu0
        %2534 = vmatprep.subr.mxu0 0.0
        %2535 = vmatpush1.msra.mxu0 %v1804
        %2536 = vmatprep.subr.mxu0 0.0
        %2537 = vmatpush1.msra.mxu0 %v1805
        %2538 = vmatprep.subr.mxu0 0.0
        %2539 = vmatpush1.msra.mxu0 %v1806
        %2540 = vmatprep.subr.mxu0 0.0
        %2541 = vmatpush1.msra.mxu0 %v1807
        %2542 = vmatprep.subr.mxu0 0.0
        %2543 = vmatpush1.msra.mxu0 %v1808
        %2544 = vmatprep.subr.mxu0 0.0
        %2545 = vmatpush1.msra.mxu0 %v1809
        %2546 = vmatprep.subr.mxu0 0.0
        %2547 = vmatpush1.msra.mxu0 %v1810
        %2548 = vmatprep.subr.mxu0 0.0
        %2549 = vmatpush1.msra.mxu0 %v1811
        %2550 = vmatprep.subr.mxu0 0.0
        %2551 = vmatpush1.msra.mxu0 %v1812
        %2552 = vmatprep.subr.mxu0 0.0
        %2553 = vmatpush1.msra.mxu0 %v1813
        %2554 = vmatprep.subr.mxu0 0.0
        %2555 = vmatpush1.msra.mxu0 %v1814
        %2556 = vmatprep.subr.mxu0 0.0
        %2557 = vmatpush1.msra.mxu0 %v1815
        %2558 = vmatprep.subr.mxu0 0.0
        %2559 = vmatpush1.msra.mxu0 %v1816
        %2560 = vmatprep.subr.mxu0 0.0
        %2561 = vmatpush1.msra.mxu0 %v1817
        %2562 = vmatprep.subr.mxu0 0.0
        %2563 = vmatpush1.msra.mxu0 %v1818
        %2564 = vmatprep.subr.mxu0 0.0
        %2565 = vmatpush1.msra.mxu0 %v1819
        %2566 = vmatprep.subr.mxu0 0.0
        %2567 = vmatpush1.msra.mxu0 %v1820
        %2568 = vmatprep.subr.mxu0 0.0
        %2569 = vmatpush1.msra.mxu0 %v1821
        %2570 = vmatprep.subr.mxu0 0.0
        %2571 = vmatpush1.msra.mxu0 %v1822
        %2572 = vmatprep.subr.mxu0 0.0
        %2573 = vmatpush1.msra.mxu0 %v1823
        %2574 = vmatprep.subr.mxu0 0.0
        %2575 = vmatpush1.msra.mxu0 %v1824
        %2576 = vmatprep.subr.mxu0 0.0
        %2577 = vmatpush1.msra.mxu0 %v1825
        %2578 = vmatprep.subr.mxu0 0.0
        %2579 = vmatpush1.msra.mxu0 %v1826
        %2580 = vmatprep.subr.mxu0 0.0
        %2581 = vmatpush1.msra.mxu0 %v1827
        %2582 = vmatprep.subr.mxu0 0.0
        %2583 = vmatpush1.msra.mxu0 %v1828
        %2584 = vmatprep.subr.mxu0 0.0
        %2585 = vmatpush1.msra.mxu0 %v1829
        %2586 = vmatprep.subr.mxu0 0.0
        %2587 = vmatpush1.msra.mxu0 %v1830
        %2588 = vmatprep.subr.mxu0 0.0
        %2589 = vmatpush1.msra.mxu0 %v1831
        %2590 = vmatprep.subr.mxu0 0.0
        %2591 = vmatpush1.msra.mxu0 %v1832
        %2592 = vmatprep.subr.mxu0 0.0
        %2593 = vmatpush1.msra.mxu0 %v1833
        %2594 = vmatprep.subr.mxu0 0.0
        %2595 = vmatpush1.msra.mxu0 %v1834
        %2596 = vmatprep.subr.mxu0 0.0
        %2597 = vmatpush1.msra.mxu0 %v1835
        %2598 = vmatprep.mubr.f32.mxu0 %v1427
        %2599 = vmatmul.mubr.f32.gmra.mrb[0].mxu0 %v1426
        %v2600 = vpop.f32.mrb[0].mxu0
        %v2601 = vadd.f32 %v2376, %v2600
        %v2602 = vpop.f32.mrb[0].mxu0
        %2603 = vmatprep.mubr.f32.mxu0 %v1436
        %2604 = vmatmul.mubr.f32.gmra.mrb[0].mxu0 %v1435
        %v2605 = vpop.f32.mrb[0].mxu0
        %v2606 = vadd.f32 %v2381, %v2605
        %v2607 = vpop.f32.mrb[0].mxu0
        %2608 = vmatprep.mubr.f32.mxu0 %v1445
        %2609 = vmatmul.mubr.f32.gmra.mrb[0].mxu0 %v1444
        %v2610 = vpop.f32.mrb[0].mxu0
        %v2611 = vadd.f32 %v2386, %v2610
        %v2612 = vpop.f32.mrb[0].mxu0
        %2613 = vmatprep.mubr.f32.mxu0 %v1454
        %2614 = vmatmul.mubr.f32.gmra.mrb[0].mxu0 %v1453
        %v2615 = vpop.f32.mrb[0].mxu0
        %v2616 = vadd.f32 %v2391, %v2615
        %v2617 = vpop.f32.mrb[0].mxu0
        %2618 = vmatprep.mubr.f32.mxu0 %v1463
        %2619 = vmatmul.mubr.f32.gmra.mrb[0].mxu0 %v1462
        %v2620 = vpop.f32.mrb[0].mxu0
        %v2621 = vadd.f32 %v2396, %v2620
        %v2622 = vpop.f32.mrb[0].mxu0
        %2623 = vmatprep.mubr.f32.mxu0 %v1472
        %2624 = vmatmul.mubr.f32.gmra.mrb[0].mxu0 %v1471
        %v2625 = vpop.f32.mrb[0].mxu0
        %v2626 = vadd.f32 %v2401, %v2625
        %v2627 = vpop.f32.mrb[0].mxu0
        %2628 = vmatprep.mubr.f32.mxu0 %v1481
        %2629 = vmatmul.mubr.f32.gmra.mrb[0].mxu0 %v1480
        %v2630 = vpop.f32.mrb[0].mxu0
        %v2631 = vadd.f32 %v2406, %v2630
        %v2632 = vpop.f32.mrb[0].mxu0
        %2633 = vmatprep.mubr.f32.mxu0 %v1490
        %2634 = vmatmul.mubr.f32.gmra.mrb[0].mxu0 %v1489
        %v2635 = vpop.f32.mrb[0].mxu0
        %v2636 = vadd.f32 %v2411, %v2635
        %v2637 = vpop.f32.mrb[0].mxu0
        %2638 = vmatprep.mubr.f32.mxu0 %v1499
        %2639 = vmatmul.mubr.f32.gmra.mrb[0].mxu0 %v1498
        %v2640 = vpop.f32.mrb[0].mxu0
        %v2641 = vadd.f32 %v2416, %v2640
        %v2642 = vpop.f32.mrb[0].mxu0
        %2643 = vmatprep.mubr.f32.mxu0 %v1508
        %2644 = vmatmul.mubr.f32.gmra.mrb[0].mxu0 %v1507
        %v2645 = vpop.f32.mrb[0].mxu0
        %v2646 = vadd.f32 %v2421, %v2645
        %v2647 = vpop.f32.mrb[0].mxu0
        %2648 = vmatprep.mubr.f32.mxu0 %v1517
        %2649 = vmatmul.mubr.f32.gmra.mrb[0].mxu0 %v1516
        %v2650 = vpop.f32.mrb[0].mxu0
        %v2651 = vadd.f32 %v2426, %v2650
        %v2652 = vpop.f32.mrb[0].mxu0
        %2653 = vmatprep.mubr.f32.mxu0 %v1526
        %2654 = vmatmul.mubr.f32.gmra.mrb[0].mxu0 %v1525
        %v2655 = vpop.f32.mrb[0].mxu0
        %v2656 = vadd.f32 %v2431, %v2655
        %v2657 = vpop.f32.mrb[0].mxu0
        %2658 = vmatprep.mubr.f32.mxu0 %v1535
        %2659 = vmatmul.mubr.f32.gmra.mrb[0].mxu0 %v1534
        %v2660 = vpop.f32.mrb[0].mxu0
        %v2661 = vadd.f32 %v2436, %v2660
        %v2662 = vpop.f32.mrb[0].mxu0
        %2663 = vmatprep.mubr.f32.mxu0 %v1544
        %2664 = vmatmul.mubr.f32.gmra.mrb[0].mxu0 %v1543
        %v2665 = vpop.f32.mrb[0].mxu0
        %v2666 = vadd.f32 %v2441, %v2665
        %v2667 = vpop.f32.mrb[0].mxu0
        %2668 = vmatprep.mubr.f32.mxu0 %v1553
        %2669 = vmatmul.mubr.f32.gmra.mrb[0].mxu0 %v1552
        %v2670 = vpop.f32.mrb[0].mxu0
        %v2671 = vadd.f32 %v2446, %v2670
        %v2672 = vpop.f32.mrb[0].mxu0
        %2673 = vmatprep.mubr.f32.mxu0 %v1562
        %2674 = vmatmul.mubr.f32.gmra.mrb[0].mxu0 %v1561
        %v2675 = vpop.f32.mrb[0].mxu0
        %v2676 = vadd.f32 %v2451, %v2675
        %v2677 = vpop.f32.mrb[0].mxu0
        %2678 = vmatprep.mubr.f32.mxu0 %v1571
        %2679 = vmatmul.mubr.f32.gmra.mrb[0].mxu0 %v1570
        %v2680 = vpop.f32.mrb[0].mxu0
        %v2681 = vadd.f32 %v2456, %v2680
        %v2682 = vpop.f32.mrb[0].mxu0
        %2683 = vmatprep.mubr.f32.mxu0 %v1580
        %2684 = vmatmul.mubr.f32.gmra.mrb[0].mxu0 %v1579
        %v2685 = vpop.f32.mrb[0].mxu0
        %v2686 = vadd.f32 %v2461, %v2685
        %v2687 = vpop.f32.mrb[0].mxu0
        %2688 = vmatprep.mubr.f32.mxu0 %v1589
        %2689 = vmatmul.mubr.f32.gmra.mrb[0].mxu0 %v1588
        %v2690 = vpop.f32.mrb[0].mxu0
        %v2691 = vadd.f32 %v2466, %v2690
        %v2692 = vpop.f32.mrb[0].mxu0
        %2693 = vmatprep.mubr.f32.mxu0 %v1598
        %2694 = vmatmul.mubr.f32.gmra.mrb[0].mxu0 %v1597
        %v2695 = vpop.f32.mrb[0].mxu0
        %v2696 = vadd.f32 %v2471, %v2695
        %v2697 = vpop.f32.mrb[0].mxu0
        %2698 = vmatprep.mubr.f32.mxu0 %v1607
        %2699 = vmatmul.mubr.f32.gmra.mrb[0].mxu0 %v1606
        %v2700 = vpop.f32.mrb[0].mxu0
        %v2701 = vadd.f32 %v2476, %v2700
        %v2702 = vpop.f32.mrb[0].mxu0
        %2703 = vmatprep.mubr.f32.mxu0 %v1616
        %2704 = vmatmul.mubr.f32.gmra.mrb[0].mxu0 %v1615
        %v2705 = vpop.f32.mrb[0].mxu0
        %v2706 = vadd.f32 %v2481, %v2705
        %v2707 = vpop.f32.mrb[0].mxu0
        %2708 = vmatprep.mubr.f32.mxu0 %v1625
        %2709 = vmatmul.mubr.f32.gmra.mrb[0].mxu0 %v1624
        %v2710 = vpop.f32.mrb[0].mxu0
        %v2711 = vadd.f32 %v2486, %v2710
        %v2712 = vpop.f32.mrb[0].mxu0
        %2713 = vmatprep.mubr.f32.mxu0 %v1634
        %2714 = vmatmul.mubr.f32.gmra.mrb[0].mxu0 %v1633
        %v2715 = vpop.f32.mrb[0].mxu0
        %v2716 = vadd.f32 %v2491, %v2715
        %v2717 = vpop.f32.mrb[0].mxu0
        %2718 = vmatprep.mubr.f32.mxu0 %v1643
        %2719 = vmatmul.mubr.f32.gmra.mrb[0].mxu0 %v1642
        %v2720 = vpop.f32.mrb[0].mxu0
        %v2721 = vadd.f32 %v2496, %v2720
        %v2722 = vpop.f32.mrb[0].mxu0
        %2723 = vmatprep.mubr.f32.mxu0 %v1652
        %2724 = vmatmul.mubr.f32.gmra.mrb[0].mxu0 %v1651
        %v2725 = vpop.f32.mrb[0].mxu0
        %v2726 = vadd.f32 %v2501, %v2725
        %v2727 = vpop.f32.mrb[0].mxu0
        %2728 = vmatprep.mubr.f32.mxu0 %v1661
        %2729 = vmatmul.mubr.f32.gmra.mrb[0].mxu0 %v1660
        %v2730 = vpop.f32.mrb[0].mxu0
        %v2731 = vadd.f32 %v2506, %v2730
        %v2732 = vpop.f32.mrb[0].mxu0
        %2733 = vmatprep.mubr.f32.mxu0 %v1670
        %2734 = vmatmul.mubr.f32.gmra.mrb[0].mxu0 %v1669
        %v2735 = vpop.f32.mrb[0].mxu0
        %v2736 = vadd.f32 %v2511, %v2735
        %v2737 = vpop.f32.mrb[0].mxu0
        %2738 = vmatprep.mubr.f32.mxu0 %v1679
        %2739 = vmatmul.mubr.f32.gmra.mrb[0].mxu0 %v1678
        %v2740 = vpop.f32.mrb[0].mxu0
        %v2741 = vadd.f32 %v2516, %v2740
        %v2742 = vpop.f32.mrb[0].mxu0
        %2743 = vmatprep.mubr.f32.mxu0 %v1688
        %2744 = vmatmul.mubr.f32.gmra.mrb[0].mxu0 %v1687
        %v2745 = vpop.f32.mrb[0].mxu0
        %v2746 = vadd.f32 %v2521, %v2745
        %v2747 = vpop.f32.mrb[0].mxu0
        %2748 = vmatprep.mubr.f32.mxu0 %v1697
        %2749 = vmatmul.mubr.f32.gmra.mrb[0].mxu0 %v1696
        %v2750 = vpop.f32.mrb[0].mxu0
        %v2751 = vadd.f32 %v2526, %v2750
        %v2752 = vpop.f32.mrb[0].mxu0
        %2753 = vmatprep.mubr.f32.mxu0 %v1706
        %2754 = vmatmul.mubr.f32.gmra.mrb[0].mxu0 %v1705
        %v2755 = vpop.f32.mrb[0].mxu0
        %v2756 = vadd.f32 %v2531, %v2755
        %v2757 = vpop.f32.mrb[0].mxu0
        %2758 = vdwg.mxu0
        %2759 = vmatprep.subr.mxu0 0.0
        %2760 = vmatpush1.msra.mxu0 %v1836
        %2761 = vmatprep.subr.mxu0 0.0
        %2762 = vmatpush1.msra.mxu0 %v1837
        %2763 = vmatprep.subr.mxu0 0.0
        %2764 = vmatpush1.msra.mxu0 %v1838
        %2765 = vmatprep.subr.mxu0 0.0
        %2766 = vmatpush1.msra.mxu0 %v1839
        %2767 = vmatprep.subr.mxu0 0.0
        %2768 = vmatpush1.msra.mxu0 %v1840
        %2769 = vmatprep.subr.mxu0 0.0
        %2770 = vmatpush1.msra.mxu0 %v1841
        %2771 = vmatprep.subr.mxu0 0.0
        %2772 = vmatpush1.msra.mxu0 %v1842
        %2773 = vmatprep.subr.mxu0 0.0
        %2774 = vmatpush1.msra.mxu0 %v1843
        %2775 = vmatprep.subr.mxu0 0.0
        %2776 = vmatpush1.msra.mxu0 %v1844
        %2777 = vmatprep.subr.mxu0 0.0
        %2778 = vmatpush1.msra.mxu0 %v1845
        %2779 = vmatprep.subr.mxu0 0.0
        %2780 = vmatpush1.msra.mxu0 %v1846
        %2781 = vmatprep.subr.mxu0 0.0
        %2782 = vmatpush1.msra.mxu0 %v1847
        %2783 = vmatprep.subr.mxu0 0.0
        %2784 = vmatpush1.msra.mxu0 %v1848
        %2785 = vmatprep.subr.mxu0 0.0
        %2786 = vmatpush1.msra.mxu0 %v1849
        %2787 = vmatprep.subr.mxu0 0.0
        %2788 = vmatpush1.msra.mxu0 %v1850
        %2789 = vmatprep.subr.mxu0 0.0
        %2790 = vmatpush1.msra.mxu0 %v1851
        %2791 = vmatprep.subr.mxu0 0.0
        %2792 = vmatpush1.msra.mxu0 0.0
        %2793 = vmatprep.subr.mxu0 0.0
        %2794 = vmatpush1.msra.mxu0 0.0
        %2795 = vmatprep.subr.mxu0 0.0
        %2796 = vmatpush1.msra.mxu0 0.0
        %2797 = vmatprep.subr.mxu0 0.0
        %2798 = vmatpush1.msra.mxu0 0.0
        %2799 = vmatprep.subr.mxu0 0.0
        %2800 = vmatpush1.msra.mxu0 0.0
        %2801 = vmatprep.subr.mxu0 0.0
        %2802 = vmatpush1.msra.mxu0 0.0
        %2803 = vmatprep.subr.mxu0 0.0
        %2804 = vmatpush1.msra.mxu0 0.0
        %2805 = vmatprep.subr.mxu0 0.0
        %2806 = vmatpush1.msra.mxu0 0.0
        %2807 = vmatprep.subr.mxu0 0.0
        %2808 = vmatpush1.msra.mxu0 0.0
        %2809 = vmatprep.subr.mxu0 0.0
        %2810 = vmatpush1.msra.mxu0 0.0
        %2811 = vmatprep.subr.mxu0 0.0
        %2812 = vmatpush1.msra.mxu0 0.0
        %2813 = vmatprep.subr.mxu0 0.0
        %2814 = vmatpush1.msra.mxu0 0.0
        %2815 = vmatprep.subr.mxu0 0.0
        %2816 = vmatpush1.msra.mxu0 0.0
        %2817 = vmatprep.subr.mxu0 0.0
        %2818 = vmatpush1.msra.mxu0 0.0
        %2819 = vmatprep.subr.mxu0 0.0
        %2820 = vmatpush1.msra.mxu0 0.0
        %2821 = vmatprep.subr.mxu0 0.0
        %2822 = vmatpush1.msra.mxu0 0.0
        %2823 = vmatprep.mubr.f32.mxu0 0.0
        %2824 = vmatmul.mubr.f32.gmra.mrb[0].mxu0 %v1428
        %v2825 = vpop.f32.mrb[0].mxu0
        %v2826 = vadd.f32 %v2601, %v2825
        %v2827 = vpop.f32.mrb[0].mxu0
        %2828 = vmatprep.mubr.f32.mxu0 0.0
        %2829 = vmatmul.mubr.f32.gmra.mrb[0].mxu0 %v1437
        %v2830 = vpop.f32.mrb[0].mxu0
        %v2831 = vadd.f32 %v2606, %v2830
        %v2832 = vpop.f32.mrb[0].mxu0
        %2833 = vmatprep.mubr.f32.mxu0 0.0
        %2834 = vmatmul.mubr.f32.gmra.mrb[0].mxu0 %v1446
        %v2835 = vpop.f32.mrb[0].mxu0
        %v2836 = vadd.f32 %v2611, %v2835
        %v2837 = vpop.f32.mrb[0].mxu0
        %2838 = vmatprep.mubr.f32.mxu0 0.0
        %2839 = vmatmul.mubr.f32.gmra.mrb[0].mxu0 %v1455
        %v2840 = vpop.f32.mrb[0].mxu0
        %v2841 = vadd.f32 %v2616, %v2840
        %v2842 = vpop.f32.mrb[0].mxu0
        %2843 = vmatprep.mubr.f32.mxu0 0.0
        %2844 = vmatmul.mubr.f32.gmra.mrb[0].mxu0 %v1464
        %v2845 = vpop.f32.mrb[0].mxu0
        %v2846 = vadd.f32 %v2621, %v2845
        %v2847 = vpop.f32.mrb[0].mxu0
        %2848 = vmatprep.mubr.f32.mxu0 0.0
        %2849 = vmatmul.mubr.f32.gmra.mrb[0].mxu0 %v1473
        %v2850 = vpop.f32.mrb[0].mxu0
        %v2851 = vadd.f32 %v2626, %v2850
        %v2852 = vpop.f32.mrb[0].mxu0
        %2853 = vmatprep.mubr.f32.mxu0 0.0
        %2854 = vmatmul.mubr.f32.gmra.mrb[0].mxu0 %v1482
        %v2855 = vpop.f32.mrb[0].mxu0
        %v2856 = vadd.f32 %v2631, %v2855
        %v2857 = vpop.f32.mrb[0].mxu0
        %2858 = vmatprep.mubr.f32.mxu0 0.0
        %2859 = vmatmul.mubr.f32.gmra.mrb[0].mxu0 %v1491
        %v2860 = vpop.f32.mrb[0].mxu0
        %v2861 = vadd.f32 %v2636, %v2860
        %v2862 = vpop.f32.mrb[0].mxu0
        %2863 = vmatprep.mubr.f32.mxu0 0.0
        %2864 = vmatmul.mubr.f32.gmra.mrb[0].mxu0 %v1500
        %v2865 = vpop.f32.mrb[0].mxu0
        %v2866 = vadd.f32 %v2641, %v2865
        %v2867 = vpop.f32.mrb[0].mxu0
        %2868 = vmatprep.mubr.f32.mxu0 0.0
        %2869 = vmatmul.mubr.f32.gmra.mrb[0].mxu0 %v1509
        %v2870 = vpop.f32.mrb[0].mxu0
        %v2871 = vadd.f32 %v2646, %v2870
        %v2872 = vpop.f32.mrb[0].mxu0
        %2873 = vmatprep.mubr.f32.mxu0 0.0
        %2874 = vmatmul.mubr.f32.gmra.mrb[0].mxu0 %v1518
        %v2875 = vpop.f32.mrb[0].mxu0
        %v2876 = vadd.f32 %v2651, %v2875
        %v2877 = vpop.f32.mrb[0].mxu0
        %2878 = vmatprep.mubr.f32.mxu0 0.0
        %2879 = vmatmul.mubr.f32.gmra.mrb[0].mxu0 %v1527
        %v2880 = vpop.f32.mrb[0].mxu0
        %v2881 = vadd.f32 %v2656, %v2880
        %v2882 = vpop.f32.mrb[0].mxu0
        %2883 = vmatprep.mubr.f32.mxu0 0.0
        %2884 = vmatmul.mubr.f32.gmra.mrb[0].mxu0 %v1536
        %v2885 = vpop.f32.mrb[0].mxu0
        %v2886 = vadd.f32 %v2661, %v2885
        %v2887 = vpop.f32.mrb[0].mxu0
        %2888 = vmatprep.mubr.f32.mxu0 0.0
        %2889 = vmatmul.mubr.f32.gmra.mrb[0].mxu0 %v1545
        %v2890 = vpop.f32.mrb[0].mxu0
        %v2891 = vadd.f32 %v2666, %v2890
        %v2892 = vpop.f32.mrb[0].mxu0
        %2893 = vmatprep.mubr.f32.mxu0 0.0
        %2894 = vmatmul.mubr.f32.gmra.mrb[0].mxu0 %v1554
        %v2895 = vpop.f32.mrb[0].mxu0
        %v2896 = vadd.f32 %v2671, %v2895
        %v2897 = vpop.f32.mrb[0].mxu0
        %2898 = vmatprep.mubr.f32.mxu0 0.0
        %2899 = vmatmul.mubr.f32.gmra.mrb[0].mxu0 %v1563
        %v2900 = vpop.f32.mrb[0].mxu0
        %v2901 = vadd.f32 %v2676, %v2900
        %v2902 = vpop.f32.mrb[0].mxu0
        %2903 = vmatprep.mubr.f32.mxu0 0.0
        %2904 = vmatmul.mubr.f32.gmra.mrb[0].mxu0 %v1572
        %v2905 = vpop.f32.mrb[0].mxu0
        %v2906 = vadd.f32 %v2681, %v2905
        %v2907 = vpop.f32.mrb[0].mxu0
        %2908 = vmatprep.mubr.f32.mxu0 0.0
        %2909 = vmatmul.mubr.f32.gmra.mrb[0].mxu0 %v1581
        %v2910 = vpop.f32.mrb[0].mxu0
        %v2911 = vadd.f32 %v2686, %v2910
        %v2912 = vpop.f32.mrb[0].mxu0
        %2913 = vmatprep.mubr.f32.mxu0 0.0
        %2914 = vmatmul.mubr.f32.gmra.mrb[0].mxu0 %v1590
        %v2915 = vpop.f32.mrb[0].mxu0
        %v2916 = vadd.f32 %v2691, %v2915
        %v2917 = vpop.f32.mrb[0].mxu0
        %2918 = vmatprep.mubr.f32.mxu0 0.0
        %2919 = vmatmul.mubr.f32.gmra.mrb[0].mxu0 %v1599
        %v2920 = vpop.f32.mrb[0].mxu0
        %v2921 = vadd.f32 %v2696, %v2920
        %v2922 = vpop.f32.mrb[0].mxu0
        %2923 = vmatprep.mubr.f32.mxu0 0.0
        %2924 = vmatmul.mubr.f32.gmra.mrb[0].mxu0 %v1608
        %v2925 = vpop.f32.mrb[0].mxu0
        %v2926 = vadd.f32 %v2701, %v2925
        %v2927 = vpop.f32.mrb[0].mxu0
        %2928 = vmatprep.mubr.f32.mxu0 0.0
        %2929 = vmatmul.mubr.f32.gmra.mrb[0].mxu0 %v1617
        %v2930 = vpop.f32.mrb[0].mxu0
        %v2931 = vadd.f32 %v2706, %v2930
        %v2932 = vpop.f32.mrb[0].mxu0
        %2933 = vmatprep.mubr.f32.mxu0 0.0
        %2934 = vmatmul.mubr.f32.gmra.mrb[0].mxu0 %v1626
        %v2935 = vpop.f32.mrb[0].mxu0
        %v2936 = vadd.f32 %v2711, %v2935
        %v2937 = vpop.f32.mrb[0].mxu0
        %2938 = vmatprep.mubr.f32.mxu0 0.0
        %2939 = vmatmul.mubr.f32.gmra.mrb[0].mxu0 %v1635
        %v2940 = vpop.f32.mrb[0].mxu0
        %v2941 = vadd.f32 %v2716, %v2940
        %v2942 = vpop.f32.mrb[0].mxu0
        %2943 = vmatprep.mubr.f32.mxu0 0.0
        %2944 = vmatmul.mubr.f32.gmra.mrb[0].mxu0 %v1644
        %v2945 = vpop.f32.mrb[0].mxu0
        %v2946 = vadd.f32 %v2721, %v2945
        %v2947 = vpop.f32.mrb[0].mxu0
        %2948 = vmatprep.mubr.f32.mxu0 0.0
        %2949 = vmatmul.mubr.f32.gmra.mrb[0].mxu0 %v1653
        %v2950 = vpop.f32.mrb[0].mxu0
        %v2951 = vadd.f32 %v2726, %v2950
        %v2952 = vpop.f32.mrb[0].mxu0
        %2953 = vmatprep.mubr.f32.mxu0 0.0
        %2954 = vmatmul.mubr.f32.gmra.mrb[0].mxu0 %v1662
        %v2955 = vpop.f32.mrb[0].mxu0
        %v2956 = vadd.f32 %v2731, %v2955
        %v2957 = vpop.f32.mrb[0].mxu0
        %2958 = vmatprep.mubr.f32.mxu0 0.0
        %2959 = vmatmul.mubr.f32.gmra.mrb[0].mxu0 %v1671
        %v2960 = vpop.f32.mrb[0].mxu0
        %v2961 = vadd.f32 %v2736, %v2960
        %v2962 = vpop.f32.mrb[0].mxu0
        %2963 = vmatprep.mubr.f32.mxu0 0.0
        %2964 = vmatmul.mubr.f32.gmra.mrb[0].mxu0 %v1680
        %v2965 = vpop.f32.mrb[0].mxu0
        %v2966 = vadd.f32 %v2741, %v2965
        %v2967 = vpop.f32.mrb[0].mxu0
        %2968 = vmatprep.mubr.f32.mxu0 0.0
        %2969 = vmatmul.mubr.f32.gmra.mrb[0].mxu0 %v1689
        %v2970 = vpop.f32.mrb[0].mxu0
        %v2971 = vadd.f32 %v2746, %v2970
        %v2972 = vpop.f32.mrb[0].mxu0
        %2973 = vmatprep.mubr.f32.mxu0 0.0
        %2974 = vmatmul.mubr.f32.gmra.mrb[0].mxu0 %v1698
        %v2975 = vpop.f32.mrb[0].mxu0
        %v2976 = vadd.f32 %v2751, %v2975
        %v2977 = vpop.f32.mrb[0].mxu0
        %2978 = vmatprep.mubr.f32.mxu0 0.0
        %2979 = vmatmul.mubr.f32.gmra.mrb[0].mxu0 %v1707
        %v2980 = vpop.f32.mrb[0].mxu0
        %v2981 = vadd.f32 %v2756, %v2980
        %v2982 = vpop.f32.mrb[0].mxu0
        %2983 = vdwg.mxu0
        %v2984 = vmax.f32 %v2826, 0.0
        %v2985 = vmax.f32 %v2831, 0.0
        %v2986 = vmax.f32 %v2836, 0.0
        %v2987 = vmax.f32 %v2841, 0.0
        %v2988 = vmax.f32 %v2846, 0.0
        %v2989 = vmax.f32 %v2851, 0.0
        %v2990 = vmax.f32 %v2856, 0.0
        %v2991 = vmax.f32 %v2861, 0.0
        %v2992 = vmax.f32 %v2866, 0.0
        %v2993 = vmax.f32 %v2871, 0.0
        %v2994 = vmax.f32 %v2876, 0.0
        %v2995 = vmax.f32 %v2881, 0.0
        %v2996 = vmax.f32 %v2886, 0.0
        %v2997 = vmax.f32 %v2891, 0.0
        %v2998 = vmax.f32 %v2896, 0.0
        %v2999 = vmax.f32 %v2901, 0.0
        %v3000 = vmax.f32 %v2906, 0.0
        %v3001 = vmax.f32 %v2911, 0.0
        %v3002 = vmax.f32 %v2916, 0.0
        %v3003 = vmax.f32 %v2921, 0.0
        %v3004 = vmax.f32 %v2926, 0.0
        %v3005 = vmax.f32 %v2931, 0.0
        %v3006 = vmax.f32 %v2936, 0.0
        %v3007 = vmax.f32 %v2941, 0.0
        %v3008 = vmax.f32 %v2946, 0.0
        %v3009 = vmax.f32 %v2951, 0.0
        %v3010 = vmax.f32 %v2956, 0.0
        %v3011 = vmax.f32 %v2961, 0.0
        %v3012 = vmax.f32 %v2966, 0.0
        %v3013 = vmax.f32 %v2971, 0.0
        %v3014 = vmax.f32 %v2976, 0.0
        %v3015 = vmax.f32 %v2981, 0.0
        %3016 = vst [vmem:[#allocation3] sm:$0xff] 0.0
        %3017 = vst [vmem:[#allocation3 + $0x8] sm:$0xff] 0.0
        %3018 = vst [vmem:[#allocation3 + $0x10] sm:$0x3] 0.0
        %3019 = vst [vmem:[#allocation3 + $0x18] sm:$0xff] 0.0
        %3020 = vst [vmem:[#allocation3 + $0x20] sm:$0xff] 0.0
        %3021 = vst [vmem:[#allocation3 + $0x28] sm:$0x3] 0.0
        %3022 = vst [vmem:[#allocation3 + $0x30] sm:$0xff] 0.0
        %3023 = vst [vmem:[#allocation3 + $0x38] sm:$0xff] 0.0
        %3024 = vst [vmem:[#allocation3 + $0x40] sm:$0x3] 0.0
        %3025 = vst [vmem:[#allocation3 + $0x48] sm:$0xff] 0.0
        %3026 = vst [vmem:[#allocation3 + $0x50] sm:$0xff] 0.0
        %3027 = vst [vmem:[#allocation3 + $0x58] sm:$0x3] 0.0
        %3028 = vst [vmem:[#allocation3 + $0x60] sm:$0xff] 0.0
        %3029 = vst [vmem:[#allocation3 + $0x68] sm:$0xff] 0.0
        %3030 = vst [vmem:[#allocation3 + $0x70] sm:$0x3] 0.0
        %3031 = vst [vmem:[#allocation3 + $0x78] sm:$0xff] 0.0
        %3032 = vst [vmem:[#allocation3 + $0x80] sm:$0xff] 0.0
        %3033 = vst [vmem:[#allocation3 + $0x88] sm:$0x3] 0.0
        %3034 = vst [vmem:[#allocation3 + $0x90] sm:$0xff] 0.0
        %3035 = vst [vmem:[#allocation3 + $0x98] sm:$0xff] 0.0
        %3036 = vst [vmem:[#allocation3 + $0xa0] sm:$0x3] 0.0
        %3037 = vst [vmem:[#allocation3 + $0xa8] sm:$0xff] 0.0
        %3038 = vst [vmem:[#allocation3 + $0xb0] sm:$0xff] 0.0
        %3039 = vst [vmem:[#allocation3 + $0xb8] sm:$0x3] 0.0
        %3040 = vst [vmem:[#allocation3 + $0xc0] sm:$0xff] 0.0
        %3041 = vst [vmem:[#allocation3 + $0xc8] sm:$0xff] 0.0
        %3042 = vst [vmem:[#allocation3 + $0xd0] sm:$0x3] 0.0
        %3043 = vst [vmem:[#allocation3 + $0xd8] sm:$0xff] 0.0
        %3044 = vst [vmem:[#allocation3 + $0xe0] sm:$0xff] 0.0
        %3045 = vst [vmem:[#allocation3 + $0xe8] sm:$0x3] 0.0
        %3046 = vst [vmem:[#allocation3 + $0xf0] sm:$0xff] 0.0
        %3047 = vst [vmem:[#allocation3 + $0xf8] sm:$0xff] 0.0
        %3048 = vst [vmem:[#allocation3 + $0x100] sm:$0x3] 0.0
        %3049 = vst [vmem:[#allocation3 + $0x108] sm:$0xff] 0.0
        %3050 = vst [vmem:[#allocation3 + $0x110] sm:$0xff] 0.0
        %3051 = vst [vmem:[#allocation3 + $0x118] sm:$0x3] 0.0
        %3052 = vst [vmem:[#allocation3 + $0x120] sm:$0xff] 0.0
        %3053 = vst [vmem:[#allocation3 + $0x128] sm:$0xff] 0.0
        %3054 = vst [vmem:[#allocation3 + $0x130] sm:$0x3] 0.0
        %3055 = vst [vmem:[#allocation3 + $0x138] sm:$0xff] 0.0
        %3056 = vst [vmem:[#allocation3 + $0x140] sm:$0xff] 0.0
        %3057 = vst [vmem:[#allocation3 + $0x148] sm:$0x3] 0.0
        %3058 = vst [vmem:[#allocation3 + $0x150] sm:$0xff] 0.0
        %3059 = vst [vmem:[#allocation3 + $0x158] sm:$0xff] 0.0
        %3060 = vst [vmem:[#allocation3 + $0x160] sm:$0x3] 0.0
        %3061 = vst [vmem:[#allocation3 + $0x168] sm:$0xff] 0.0
        %3062 = vst [vmem:[#allocation3 + $0x170] sm:$0xff] 0.0
        %3063 = vst [vmem:[#allocation3 + $0x178] sm:$0x3] 0.0
        %3064 = vst [vmem:[#allocation3 + $0x180] sm:$0xff] 0.0
        %3065 = vst [vmem:[#allocation3 + $0x188] sm:$0xff] 0.0
        %3066 = vst [vmem:[#allocation3 + $0x190] sm:$0x3] 0.0
        %3067 = vst [vmem:[#allocation3 + $0x198] sm:$0xff] 0.0
        %3068 = vst [vmem:[#allocation3 + $0x1a0] sm:$0xff] 0.0
        %3069 = vst [vmem:[#allocation3 + $0x1a8] sm:$0x3] 0.0
        %s3070 = scalar_lea.vmem [#allocation3], 24
        %3071 = vst [vmem:[%s3070 + $0x1] sm:$0xff] %v2984
        %3072 = vst [vmem:[%s3070 + $0x9] sm:$0xff] %v2985
        %3073 = vst [vmem:[%s3070 + $0x19] sm:$0xff] %v2986
        %3074 = vst [vmem:[%s3070 + $0x21] sm:$0xff] %v2987
        %3075 = vst [vmem:[%s3070 + $0x31] sm:$0xff] %v2988
        %3076 = vst [vmem:[%s3070 + $0x39] sm:$0xff] %v2989
        %3077 = vst [vmem:[%s3070 + $0x49] sm:$0xff] %v2990
        %3078 = vst [vmem:[%s3070 + $0x51] sm:$0xff] %v2991
        %3079 = vst [vmem:[%s3070 + $0x61] sm:$0xff] %v2992
        %3080 = vst [vmem:[%s3070 + $0x69] sm:$0xff] %v2993
        %3081 = vst [vmem:[%s3070 + $0x79] sm:$0xff] %v2994
        %3082 = vst [vmem:[%s3070 + $0x81] sm:$0xff] %v2995
        %3083 = vst [vmem:[%s3070 + $0x91] sm:$0xff] %v2996
        %3084 = vst [vmem:[%s3070 + $0x99] sm:$0xff] %v2997
        %3085 = vst [vmem:[%s3070 + $0xa9] sm:$0xff] %v2998
        %3086 = vst [vmem:[%s3070 + $0xb1] sm:$0xff] %v2999
        %3087 = vst [vmem:[%s3070 + $0xc1] sm:$0xff] %v3000
        %3088 = vst [vmem:[%s3070 + $0xc9] sm:$0xff] %v3001
        %3089 = vst [vmem:[%s3070 + $0xd9] sm:$0xff] %v3002
        %3090 = vst [vmem:[%s3070 + $0xe1] sm:$0xff] %v3003
        %3091 = vst [vmem:[%s3070 + $0xf1] sm:$0xff] %v3004
        %3092 = vst [vmem:[%s3070 + $0xf9] sm:$0xff] %v3005
        %3093 = vst [vmem:[%s3070 + $0x109] sm:$0xff] %v3006
        %3094 = vst [vmem:[%s3070 + $0x111] sm:$0xff] %v3007
        %3095 = vst [vmem:[%s3070 + $0x121] sm:$0xff] %v3008
        %3096 = vst [vmem:[%s3070 + $0x129] sm:$0xff] %v3009
        %3097 = vst [vmem:[%s3070 + $0x139] sm:$0xff] %v3010
        %3098 = vst [vmem:[%s3070 + $0x141] sm:$0xff] %v3011
        %3099 = vst [vmem:[%s3070 + $0x151] sm:$0xff] %v3012
        %3100 = vst [vmem:[%s3070 + $0x159] sm:$0xff] %v3013
        %3101 = vst [vmem:[%s3070 + $0x169] sm:$0xff] %v3014
        %3102 = vst [vmem:[%s3070 + $0x171] sm:$0xff] %v3015
        %v3103 = vld [vmem:[#allocation3] sm:$0xff]
        %v3104 = vld [vmem:[#allocation3 + $0x8] sm:$0xff]
        %v3105 = vld [vmem:[#allocation3 + $0x18] sm:$0xff]
        %v3106 = vld [vmem:[#allocation3 + $0x20] sm:$0xff]
        %v3107 = vld [vmem:[#allocation3 + $0x30] sm:$0xff]
        %v3108 = vld [vmem:[#allocation3 + $0x38] sm:$0xff]
        %v3109 = vld [vmem:[#allocation3 + $0x48] sm:$0xff]
        %v3110 = vld [vmem:[#allocation3 + $0x50] sm:$0xff]
        %v3111 = vld [vmem:[#allocation3 + $0x60] sm:$0xff]
        %v3112 = vld [vmem:[#allocation3 + $0x68] sm:$0xff]
        %v3113 = vld [vmem:[#allocation3 + $0x78] sm:$0xff]
        %v3114 = vld [vmem:[#allocation3 + $0x80] sm:$0xff]
        %v3115 = vld [vmem:[#allocation3 + $0x90] sm:$0xff]
        %v3116 = vld [vmem:[#allocation3 + $0x98] sm:$0xff]
        %v3117 = vld [vmem:[#allocation3 + $0xa8] sm:$0xff]
        %v3118 = vld [vmem:[#allocation3 + $0xb0] sm:$0xff]
        %v3119 = vld [vmem:[#allocation3 + $0xc0] sm:$0xff]
        %v3120 = vld [vmem:[#allocation3 + $0xc8] sm:$0xff]
        %v3121 = vld [vmem:[#allocation3 + $0xd8] sm:$0xff]
        %v3122 = vld [vmem:[#allocation3 + $0xe0] sm:$0xff]
        %v3123 = vld [vmem:[#allocation3 + $0xf0] sm:$0xff]
        %v3124 = vld [vmem:[#allocation3 + $0xf8] sm:$0xff]
        %v3125 = vld [vmem:[#allocation3 + $0x108] sm:$0xff]
        %v3126 = vld [vmem:[#allocation3 + $0x110] sm:$0xff]
        %v3127 = vld [vmem:[#allocation3 + $0x120] sm:$0xff]
        %v3128 = vld [vmem:[#allocation3 + $0x128] sm:$0xff]
        %v3129 = vld [vmem:[#allocation3 + $0x138] sm:$0xff]
        %v3130 = vld [vmem:[#allocation3 + $0x140] sm:$0xff]
        %v3131 = vld [vmem:[#allocation3 + $0x150] sm:$0xff]
        %v3132 = vld [vmem:[#allocation3 + $0x158] sm:$0xff]
        %v3133 = vld [vmem:[#allocation3 + $0x168] sm:$0xff]
        %v3134 = vld [vmem:[#allocation3 + $0x170] sm:$0xff]
        %3135 = vst [vmem:[#allocation5] sm:$0xff] %v3103
        %3136 = vst [vmem:[#allocation5 + $0x48] sm:$0xff] %v3104
        %3137 = vst [vmem:[#allocation5 + $0x90] sm:$0xff] %v3105
        %3138 = vst [vmem:[#allocation5 + $0xd8] sm:$0xff] %v3106
        %3139 = vst [vmem:[#allocation5 + $0x120] sm:$0xff] %v3107
        %3140 = vst [vmem:[#allocation5 + $0x168] sm:$0xff] %v3108
        %3141 = vst [vmem:[#allocation5 + $0x1b0] sm:$0xff] %v3109
        %3142 = vst [vmem:[#allocation5 + $0x1f8] sm:$0xff] %v3110
        %3143 = vst [vmem:[#allocation5 + $0x240] sm:$0xff] %v3111
        %3144 = vst [vmem:[#allocation5 + $0x288] sm:$0xff] %v3112
        %3145 = vst [vmem:[#allocation5 + $0x2d0] sm:$0xff] %v3113
        %3146 = vst [vmem:[#allocation5 + $0x318] sm:$0xff] %v3114
        %3147 = vst [vmem:[#allocation5 + $0x360] sm:$0xff] %v3115
        %3148 = vst [vmem:[#allocation5 + $0x3a8] sm:$0xff] %v3116
        %3149 = vst [vmem:[#allocation5 + $0x3f0] sm:$0xff] %v3117
        %3150 = vst [vmem:[#allocation5 + $0x438] sm:$0xff] %v3118
        %3151 = vst [vmem:[#allocation5 + $0x480] sm:$0xff] %v3119
        %3152 = vst [vmem:[#allocation5 + $0x4c8] sm:$0xff] %v3120
        %3153 = vst [vmem:[#allocation5 + $0x510] sm:$0xff] %v3121
        %3154 = vst [vmem:[#allocation5 + $0x558] sm:$0xff] %v3122
        %3155 = vst [vmem:[#allocation5 + $0x5a0] sm:$0xff] %v3123
        %3156 = vst [vmem:[#allocation5 + $0x5e8] sm:$0xff] %v3124
        %3157 = vst [vmem:[#allocation5 + $0x630] sm:$0xff] %v3125
        %3158 = vst [vmem:[#allocation5 + $0x678] sm:$0xff] %v3126
        %3159 = vst [vmem:[#allocation5 + $0x6c0] sm:$0xff] %v3127
        %3160 = vst [vmem:[#allocation5 + $0x708] sm:$0xff] %v3128
        %3161 = vst [vmem:[#allocation5 + $0x750] sm:$0xff] %v3129
        %3162 = vst [vmem:[#allocation5 + $0x798] sm:$0xff] %v3130
        %3163 = vst [vmem:[#allocation5 + $0x7e0] sm:$0xff] %v3131
        %3164 = vst [vmem:[#allocation5 + $0x828] sm:$0xff] %v3132
        %3165 = vst [vmem:[#allocation5 + $0x870] sm:$0xff] %v3133
        %3166 = vst [vmem:[#allocation5 + $0x8b8] sm:$0xff] %v3134
        %v3167 = vld [vmem:[#allocation3 + $0x1] sm:$0xff]
        %v3168 = vld [vmem:[#allocation3 + $0x9] sm:$0xff]
        %v3169 = vld [vmem:[#allocation3 + $0x19] sm:$0xff]
        %v3170 = vld [vmem:[#allocation3 + $0x21] sm:$0xff]
        %v3171 = vld [vmem:[#allocation3 + $0x31] sm:$0xff]
        %v3172 = vld [vmem:[#allocation3 + $0x39] sm:$0xff]
        %v3173 = vld [vmem:[#allocation3 + $0x49] sm:$0xff]
        %v3174 = vld [vmem:[#allocation3 + $0x51] sm:$0xff]
        %v3175 = vld [vmem:[#allocation3 + $0x61] sm:$0xff]
        %v3176 = vld [vmem:[#allocation3 + $0x69] sm:$0xff]
        %v3177 = vld [vmem:[#allocation3 + $0x79] sm:$0xff]
        %v3178 = vld [vmem:[#allocation3 + $0x81] sm:$0xff]
        %v3179 = vld [vmem:[#allocation3 + $0x91] sm:$0xff]
        %v3180 = vld [vmem:[#allocation3 + $0x99] sm:$0xff]
        %v3181 = vld [vmem:[#allocation3 + $0xa9] sm:$0xff]
        %v3182 = vld [vmem:[#allocation3 + $0xb1] sm:$0xff]
        %v3183 = vld [vmem:[#allocation3 + $0xc1] sm:$0xff]
        %v3184 = vld [vmem:[#allocation3 + $0xc9] sm:$0xff]
        %v3185 = vld [vmem:[#allocation3 + $0xd9] sm:$0xff]
        %v3186 = vld [vmem:[#allocation3 + $0xe1] sm:$0xff]
        %v3187 = vld [vmem:[#allocation3 + $0xf1] sm:$0xff]
        %v3188 = vld [vmem:[#allocation3 + $0xf9] sm:$0xff]
        %v3189 = vld [vmem:[#allocation3 + $0x109] sm:$0xff]
        %v3190 = vld [vmem:[#allocation3 + $0x111] sm:$0xff]
        %v3191 = vld [vmem:[#allocation3 + $0x121] sm:$0xff]
        %v3192 = vld [vmem:[#allocation3 + $0x129] sm:$0xff]
        %v3193 = vld [vmem:[#allocation3 + $0x139] sm:$0xff]
        %v3194 = vld [vmem:[#allocation3 + $0x141] sm:$0xff]
        %v3195 = vld [vmem:[#allocation3 + $0x151] sm:$0xff]
        %v3196 = vld [vmem:[#allocation3 + $0x159] sm:$0xff]
        %v3197 = vld [vmem:[#allocation3 + $0x169] sm:$0xff]
        %v3198 = vld [vmem:[#allocation3 + $0x171] sm:$0xff]
        %3199 = vst [vmem:[#allocation5 + $0x8] sm:$0xff] %v3167
        %3200 = vst [vmem:[#allocation5 + $0x50] sm:$0xff] %v3168
        %3201 = vst [vmem:[#allocation5 + $0x98] sm:$0xff] %v3169
        %3202 = vst [vmem:[#allocation5 + $0xe0] sm:$0xff] %v3170
        %3203 = vst [vmem:[#allocation5 + $0x128] sm:$0xff] %v3171
        %3204 = vst [vmem:[#allocation5 + $0x170] sm:$0xff] %v3172
        %3205 = vst [vmem:[#allocation5 + $0x1b8] sm:$0xff] %v3173
        %3206 = vst [vmem:[#allocation5 + $0x200] sm:$0xff] %v3174
        %3207 = vst [vmem:[#allocation5 + $0x248] sm:$0xff] %v3175
        %3208 = vst [vmem:[#allocation5 + $0x290] sm:$0xff] %v3176
        %3209 = vst [vmem:[#allocation5 + $0x2d8] sm:$0xff] %v3177
        %3210 = vst [vmem:[#allocation5 + $0x320] sm:$0xff] %v3178
        %3211 = vst [vmem:[#allocation5 + $0x368] sm:$0xff] %v3179
        %3212 = vst [vmem:[#allocation5 + $0x3b0] sm:$0xff] %v3180
        %3213 = vst [vmem:[#allocation5 + $0x3f8] sm:$0xff] %v3181
        %3214 = vst [vmem:[#allocation5 + $0x440] sm:$0xff] %v3182
        %3215 = vst [vmem:[#allocation5 + $0x488] sm:$0xff] %v3183
        %3216 = vst [vmem:[#allocation5 + $0x4d0] sm:$0xff] %v3184
        %3217 = vst [vmem:[#allocation5 + $0x518] sm:$0xff] %v3185
        %3218 = vst [vmem:[#allocation5 + $0x560] sm:$0xff] %v3186
        %3219 = vst [vmem:[#allocation5 + $0x5a8] sm:$0xff] %v3187
        %3220 = vst [vmem:[#allocation5 + $0x5f0] sm:$0xff] %v3188
        %3221 = vst [vmem:[#allocation5 + $0x638] sm:$0xff] %v3189
        %3222 = vst [vmem:[#allocation5 + $0x680] sm:$0xff] %v3190
        %3223 = vst [vmem:[#allocation5 + $0x6c8] sm:$0xff] %v3191
        %3224 = vst [vmem:[#allocation5 + $0x710] sm:$0xff] %v3192
        %3225 = vst [vmem:[#allocation5 + $0x758] sm:$0xff] %v3193
        %3226 = vst [vmem:[#allocation5 + $0x7a0] sm:$0xff] %v3194
        %3227 = vst [vmem:[#allocation5 + $0x7e8] sm:$0xff] %v3195
        %3228 = vst [vmem:[#allocation5 + $0x830] sm:$0xff] %v3196
        %3229 = vst [vmem:[#allocation5 + $0x878] sm:$0xff] %v3197
        %3230 = vst [vmem:[#allocation5 + $0x8c0] sm:$0xff] %v3198
        %v3231 = vld [vmem:[#allocation3 + $0x2] sm:$0xff]
        %v3232 = vld [vmem:[#allocation3 + $0xa] sm:$0xff]
        %v3233 = vld [vmem:[#allocation3 + $0x1a] sm:$0xff]
        %v3234 = vld [vmem:[#allocation3 + $0x22] sm:$0xff]
        %v3235 = vld [vmem:[#allocation3 + $0x32] sm:$0xff]
        %v3236 = vld [vmem:[#allocation3 + $0x3a] sm:$0xff]
        %v3237 = vld [vmem:[#allocation3 + $0x4a] sm:$0xff]
        %v3238 = vld [vmem:[#allocation3 + $0x52] sm:$0xff]
        %v3239 = vld [vmem:[#allocation3 + $0x62] sm:$0xff]
        %v3240 = vld [vmem:[#allocation3 + $0x6a] sm:$0xff]
        %v3241 = vld [vmem:[#allocation3 + $0x7a] sm:$0xff]
        %v3242 = vld [vmem:[#allocation3 + $0x82] sm:$0xff]
        %v3243 = vld [vmem:[#allocation3 + $0x92] sm:$0xff]
        %v3244 = vld [vmem:[#allocation3 + $0x9a] sm:$0xff]
        %v3245 = vld [vmem:[#allocation3 + $0xaa] sm:$0xff]
        %v3246 = vld [vmem:[#allocation3 + $0xb2] sm:$0xff]
        %v3247 = vld [vmem:[#allocation3 + $0xc2] sm:$0xff]
        %v3248 = vld [vmem:[#allocation3 + $0xca] sm:$0xff]
        %v3249 = vld [vmem:[#allocation3 + $0xda] sm:$0xff]
        %v3250 = vld [vmem:[#allocation3 + $0xe2] sm:$0xff]
        %v3251 = vld [vmem:[#allocation3 + $0xf2] sm:$0xff]
        %v3252 = vld [vmem:[#allocation3 + $0xfa] sm:$0xff]
        %v3253 = vld [vmem:[#allocation3 + $0x10a] sm:$0xff]
        %v3254 = vld [vmem:[#allocation3 + $0x112] sm:$0xff]
        %v3255 = vld [vmem:[#allocation3 + $0x122] sm:$0xff]
        %v3256 = vld [vmem:[#allocation3 + $0x12a] sm:$0xff]
        %v3257 = vld [vmem:[#allocation3 + $0x13a] sm:$0xff]
        %v3258 = vld [vmem:[#allocation3 + $0x142] sm:$0xff]
        %v3259 = vld [vmem:[#allocation3 + $0x152] sm:$0xff]
        %v3260 = vld [vmem:[#allocation3 + $0x15a] sm:$0xff]
        %v3261 = vld [vmem:[#allocation3 + $0x16a] sm:$0xff]
        %v3262 = vld [vmem:[#allocation3 + $0x172] sm:$0xff]
        %3263 = vst [vmem:[#allocation5 + $0x10] sm:$0xff] %v3231
        %3264 = vst [vmem:[#allocation5 + $0x58] sm:$0xff] %v3232
        %3265 = vst [vmem:[#allocation5 + $0xa0] sm:$0xff] %v3233
        %3266 = vst [vmem:[#allocation5 + $0xe8] sm:$0xff] %v3234
        %3267 = vst [vmem:[#allocation5 + $0x130] sm:$0xff] %v3235
        %3268 = vst [vmem:[#allocation5 + $0x178] sm:$0xff] %v3236
        %3269 = vst [vmem:[#allocation5 + $0x1c0] sm:$0xff] %v3237
        %3270 = vst [vmem:[#allocation5 + $0x208] sm:$0xff] %v3238
        %3271 = vst [vmem:[#allocation5 + $0x250] sm:$0xff] %v3239
        %3272 = vst [vmem:[#allocation5 + $0x298] sm:$0xff] %v3240
        %3273 = vst [vmem:[#allocation5 + $0x2e0] sm:$0xff] %v3241
        %3274 = vst [vmem:[#allocation5 + $0x328] sm:$0xff] %v3242
        %3275 = vst [vmem:[#allocation5 + $0x370] sm:$0xff] %v3243
        %3276 = vst [vmem:[#allocation5 + $0x3b8] sm:$0xff] %v3244
        %3277 = vst [vmem:[#allocation5 + $0x400] sm:$0xff] %v3245
        %3278 = vst [vmem:[#allocation5 + $0x448] sm:$0xff] %v3246
        %3279 = vst [vmem:[#allocation5 + $0x490] sm:$0xff] %v3247
        %3280 = vst [vmem:[#allocation5 + $0x4d8] sm:$0xff] %v3248
        %3281 = vst [vmem:[#allocation5 + $0x520] sm:$0xff] %v3249
        %3282 = vst [vmem:[#allocation5 + $0x568] sm:$0xff] %v3250
        %3283 = vst [vmem:[#allocation5 + $0x5b0] sm:$0xff] %v3251
        %3284 = vst [vmem:[#allocation5 + $0x5f8] sm:$0xff] %v3252
        %3285 = vst [vmem:[#allocation5 + $0x640] sm:$0xff] %v3253
        %3286 = vst [vmem:[#allocation5 + $0x688] sm:$0xff] %v3254
        %3287 = vst [vmem:[#allocation5 + $0x6d0] sm:$0xff] %v3255
        %3288 = vst [vmem:[#allocation5 + $0x718] sm:$0xff] %v3256
        %3289 = vst [vmem:[#allocation5 + $0x760] sm:$0xff] %v3257
        %3290 = vst [vmem:[#allocation5 + $0x7a8] sm:$0xff] %v3258
        %3291 = vst [vmem:[#allocation5 + $0x7f0] sm:$0xff] %v3259
        %3292 = vst [vmem:[#allocation5 + $0x838] sm:$0xff] %v3260
        %3293 = vst [vmem:[#allocation5 + $0x880] sm:$0xff] %v3261
        %3294 = vst [vmem:[#allocation5 + $0x8c8] sm:$0xff] %v3262
        %v3295 = vld [vmem:[%s3070] sm:$0xff]
        %v3296 = vld [vmem:[%s3070 + $0x8] sm:$0xff]
        %v3297 = vld [vmem:[%s3070 + $0x18] sm:$0xff]
        %v3298 = vld [vmem:[%s3070 + $0x20] sm:$0xff]
        %v3299 = vld [vmem:[%s3070 + $0x30] sm:$0xff]
        %v3300 = vld [vmem:[%s3070 + $0x38] sm:$0xff]
        %v3301 = vld [vmem:[%s3070 + $0x48] sm:$0xff]
        %v3302 = vld [vmem:[%s3070 + $0x50] sm:$0xff]
        %v3303 = vld [vmem:[%s3070 + $0x60] sm:$0xff]
        %v3304 = vld [vmem:[%s3070 + $0x68] sm:$0xff]
        %v3305 = vld [vmem:[%s3070 + $0x78] sm:$0xff]
        %v3306 = vld [vmem:[%s3070 + $0x80] sm:$0xff]
        %v3307 = vld [vmem:[%s3070 + $0x90] sm:$0xff]
        %v3308 = vld [vmem:[%s3070 + $0x98] sm:$0xff]
        %v3309 = vld [vmem:[%s3070 + $0xa8] sm:$0xff]
        %v3310 = vld [vmem:[%s3070 + $0xb0] sm:$0xff]
        %v3311 = vld [vmem:[%s3070 + $0xc0] sm:$0xff]
        %v3312 = vld [vmem:[%s3070 + $0xc8] sm:$0xff]
        %v3313 = vld [vmem:[%s3070 + $0xd8] sm:$0xff]
        %v3314 = vld [vmem:[%s3070 + $0xe0] sm:$0xff]
        %v3315 = vld [vmem:[%s3070 + $0xf0] sm:$0xff]
        %v3316 = vld [vmem:[%s3070 + $0xf8] sm:$0xff]
        %v3317 = vld [vmem:[%s3070 + $0x108] sm:$0xff]
        %v3318 = vld [vmem:[%s3070 + $0x110] sm:$0xff]
        %v3319 = vld [vmem:[%s3070 + $0x120] sm:$0xff]
        %v3320 = vld [vmem:[%s3070 + $0x128] sm:$0xff]
        %v3321 = vld [vmem:[%s3070 + $0x138] sm:$0xff]
        %v3322 = vld [vmem:[%s3070 + $0x140] sm:$0xff]
        %v3323 = vld [vmem:[%s3070 + $0x150] sm:$0xff]
        %v3324 = vld [vmem:[%s3070 + $0x158] sm:$0xff]
        %v3325 = vld [vmem:[%s3070 + $0x168] sm:$0xff]
        %v3326 = vld [vmem:[%s3070 + $0x170] sm:$0xff]
        %3327 = vst [vmem:[#allocation5 + $0x18] sm:$0xff] %v3295
        %3328 = vst [vmem:[#allocation5 + $0x60] sm:$0xff] %v3296
        %3329 = vst [vmem:[#allocation5 + $0xa8] sm:$0xff] %v3297
        %3330 = vst [vmem:[#allocation5 + $0xf0] sm:$0xff] %v3298
        %3331 = vst [vmem:[#allocation5 + $0x138] sm:$0xff] %v3299
        %3332 = vst [vmem:[#allocation5 + $0x180] sm:$0xff] %v3300
        %3333 = vst [vmem:[#allocation5 + $0x1c8] sm:$0xff] %v3301
        %3334 = vst [vmem:[#allocation5 + $0x210] sm:$0xff] %v3302
        %3335 = vst [vmem:[#allocation5 + $0x258] sm:$0xff] %v3303
        %3336 = vst [vmem:[#allocation5 + $0x2a0] sm:$0xff] %v3304
        %3337 = vst [vmem:[#allocation5 + $0x2e8] sm:$0xff] %v3305
        %3338 = vst [vmem:[#allocation5 + $0x330] sm:$0xff] %v3306
        %3339 = vst [vmem:[#allocation5 + $0x378] sm:$0xff] %v3307
        %3340 = vst [vmem:[#allocation5 + $0x3c0] sm:$0xff] %v3308
        %3341 = vst [vmem:[#allocation5 + $0x408] sm:$0xff] %v3309
        %3342 = vst [vmem:[#allocation5 + $0x450] sm:$0xff] %v3310
        %3343 = vst [vmem:[#allocation5 + $0x498] sm:$0xff] %v3311
        %3344 = vst [vmem:[#allocation5 + $0x4e0] sm:$0xff] %v3312
        %3345 = vst [vmem:[#allocation5 + $0x528] sm:$0xff] %v3313
        %3346 = vst [vmem:[#allocation5 + $0x570] sm:$0xff] %v3314
        %3347 = vst [vmem:[#allocation5 + $0x5b8] sm:$0xff] %v3315
        %3348 = vst [vmem:[#allocation5 + $0x600] sm:$0xff] %v3316
        %3349 = vst [vmem:[#allocation5 + $0x648] sm:$0xff] %v3317
        %3350 = vst [vmem:[#allocation5 + $0x690] sm:$0xff] %v3318
        %3351 = vst [vmem:[#allocation5 + $0x6d8] sm:$0xff] %v3319
        %3352 = vst [vmem:[#allocation5 + $0x720] sm:$0xff] %v3320
        %3353 = vst [vmem:[#allocation5 + $0x768] sm:$0xff] %v3321
        %3354 = vst [vmem:[#allocation5 + $0x7b0] sm:$0xff] %v3322
        %3355 = vst [vmem:[#allocation5 + $0x7f8] sm:$0xff] %v3323
        %3356 = vst [vmem:[#allocation5 + $0x840] sm:$0xff] %v3324
        %3357 = vst [vmem:[#allocation5 + $0x888] sm:$0xff] %v3325
        %3358 = vst [vmem:[#allocation5 + $0x8d0] sm:$0xff] %v3326
        %v3359 = vld [vmem:[%s3070 + $0x1] sm:$0xff]
        %v3360 = vld [vmem:[%s3070 + $0x9] sm:$0xff]
        %v3361 = vld [vmem:[%s3070 + $0x19] sm:$0xff]
        %v3362 = vld [vmem:[%s3070 + $0x21] sm:$0xff]
        %v3363 = vld [vmem:[%s3070 + $0x31] sm:$0xff]
        %v3364 = vld [vmem:[%s3070 + $0x39] sm:$0xff]
        %v3365 = vld [vmem:[%s3070 + $0x49] sm:$0xff]
        %v3366 = vld [vmem:[%s3070 + $0x51] sm:$0xff]
        %v3367 = vld [vmem:[%s3070 + $0x61] sm:$0xff]
        %v3368 = vld [vmem:[%s3070 + $0x69] sm:$0xff]
        %v3369 = vld [vmem:[%s3070 + $0x79] sm:$0xff]
        %v3370 = vld [vmem:[%s3070 + $0x81] sm:$0xff]
        %v3371 = vld [vmem:[%s3070 + $0x91] sm:$0xff]
        %v3372 = vld [vmem:[%s3070 + $0x99] sm:$0xff]
        %v3373 = vld [vmem:[%s3070 + $0xa9] sm:$0xff]
        %v3374 = vld [vmem:[%s3070 + $0xb1] sm:$0xff]
        %v3375 = vld [vmem:[%s3070 + $0xc1] sm:$0xff]
        %v3376 = vld [vmem:[%s3070 + $0xc9] sm:$0xff]
        %v3377 = vld [vmem:[%s3070 + $0xd9] sm:$0xff]
        %v3378 = vld [vmem:[%s3070 + $0xe1] sm:$0xff]
        %v3379 = vld [vmem:[%s3070 + $0xf1] sm:$0xff]
        %v3380 = vld [vmem:[%s3070 + $0xf9] sm:$0xff]
        %v3381 = vld [vmem:[%s3070 + $0x109] sm:$0xff]
        %v3382 = vld [vmem:[%s3070 + $0x111] sm:$0xff]
        %v3383 = vld [vmem:[%s3070 + $0x121] sm:$0xff]
        %v3384 = vld [vmem:[%s3070 + $0x129] sm:$0xff]
        %v3385 = vld [vmem:[%s3070 + $0x139] sm:$0xff]
        %v3386 = vld [vmem:[%s3070 + $0x141] sm:$0xff]
        %v3387 = vld [vmem:[%s3070 + $0x151] sm:$0xff]
        %v3388 = vld [vmem:[%s3070 + $0x159] sm:$0xff]
        %v3389 = vld [vmem:[%s3070 + $0x169] sm:$0xff]
        %v3390 = vld [vmem:[%s3070 + $0x171] sm:$0xff]
        %3391 = vst [vmem:[#allocation5 + $0x20] sm:$0xff] %v3359
        %3392 = vst [vmem:[#allocation5 + $0x68] sm:$0xff] %v3360
        %3393 = vst [vmem:[#allocation5 + $0xb0] sm:$0xff] %v3361
        %3394 = vst [vmem:[#allocation5 + $0xf8] sm:$0xff] %v3362
        %3395 = vst [vmem:[#allocation5 + $0x140] sm:$0xff] %v3363
        %3396 = vst [vmem:[#allocation5 + $0x188] sm:$0xff] %v3364
        %3397 = vst [vmem:[#allocation5 + $0x1d0] sm:$0xff] %v3365
        %3398 = vst [vmem:[#allocation5 + $0x218] sm:$0xff] %v3366
        %3399 = vst [vmem:[#allocation5 + $0x260] sm:$0xff] %v3367
        %3400 = vst [vmem:[#allocation5 + $0x2a8] sm:$0xff] %v3368
        %3401 = vst [vmem:[#allocation5 + $0x2f0] sm:$0xff] %v3369
        %3402 = vst [vmem:[#allocation5 + $0x338] sm:$0xff] %v3370
        %3403 = vst [vmem:[#allocation5 + $0x380] sm:$0xff] %v3371
        %3404 = vst [vmem:[#allocation5 + $0x3c8] sm:$0xff] %v3372
        %3405 = vst [vmem:[#allocation5 + $0x410] sm:$0xff] %v3373
        %3406 = vst [vmem:[#allocation5 + $0x458] sm:$0xff] %v3374
        %3407 = vst [vmem:[#allocation5 + $0x4a0] sm:$0xff] %v3375
        %3408 = vst [vmem:[#allocation5 + $0x4e8] sm:$0xff] %v3376
        %3409 = vst [vmem:[#allocation5 + $0x530] sm:$0xff] %v3377
        %3410 = vst [vmem:[#allocation5 + $0x578] sm:$0xff] %v3378
        %3411 = vst [vmem:[#allocation5 + $0x5c0] sm:$0xff] %v3379
        %3412 = vst [vmem:[#allocation5 + $0x608] sm:$0xff] %v3380
        %3413 = vst [vmem:[#allocation5 + $0x650] sm:$0xff] %v3381
        %3414 = vst [vmem:[#allocation5 + $0x698] sm:$0xff] %v3382
        %3415 = vst [vmem:[#allocation5 + $0x6e0] sm:$0xff] %v3383
        %3416 = vst [vmem:[#allocation5 + $0x728] sm:$0xff] %v3384
        %3417 = vst [vmem:[#allocation5 + $0x770] sm:$0xff] %v3385
        %3418 = vst [vmem:[#allocation5 + $0x7b8] sm:$0xff] %v3386
        %3419 = vst [vmem:[#allocation5 + $0x800] sm:$0xff] %v3387
        %3420 = vst [vmem:[#allocation5 + $0x848] sm:$0xff] %v3388
        %3421 = vst [vmem:[#allocation5 + $0x890] sm:$0xff] %v3389
        %3422 = vst [vmem:[#allocation5 + $0x8d8] sm:$0xff] %v3390
        %v3423 = vld [vmem:[%s3070 + $0x2] sm:$0xff]
        %v3424 = vld [vmem:[%s3070 + $0xa] sm:$0xff]
        %v3425 = vld [vmem:[%s3070 + $0x1a] sm:$0xff]
        %v3426 = vld [vmem:[%s3070 + $0x22] sm:$0xff]
        %v3427 = vld [vmem:[%s3070 + $0x32] sm:$0xff]
        %v3428 = vld [vmem:[%s3070 + $0x3a] sm:$0xff]
        %v3429 = vld [vmem:[%s3070 + $0x4a] sm:$0xff]
        %v3430 = vld [vmem:[%s3070 + $0x52] sm:$0xff]
        %v3431 = vld [vmem:[%s3070 + $0x62] sm:$0xff]
        %v3432 = vld [vmem:[%s3070 + $0x6a] sm:$0xff]
        %v3433 = vld [vmem:[%s3070 + $0x7a] sm:$0xff]
        %v3434 = vld [vmem:[%s3070 + $0x82] sm:$0xff]
        %v3435 = vld [vmem:[%s3070 + $0x92] sm:$0xff]
        %v3436 = vld [vmem:[%s3070 + $0x9a] sm:$0xff]
        %v3437 = vld [vmem:[%s3070 + $0xaa] sm:$0xff]
        %v3438 = vld [vmem:[%s3070 + $0xb2] sm:$0xff]
        %v3439 = vld [vmem:[%s3070 + $0xc2] sm:$0xff]
        %v3440 = vld [vmem:[%s3070 + $0xca] sm:$0xff]
        %v3441 = vld [vmem:[%s3070 + $0xda] sm:$0xff]
        %v3442 = vld [vmem:[%s3070 + $0xe2] sm:$0xff]
        %v3443 = vld [vmem:[%s3070 + $0xf2] sm:$0xff]
        %v3444 = vld [vmem:[%s3070 + $0xfa] sm:$0xff]
        %v3445 = vld [vmem:[%s3070 + $0x10a] sm:$0xff]
        %v3446 = vld [vmem:[%s3070 + $0x112] sm:$0xff]
        %v3447 = vld [vmem:[%s3070 + $0x122] sm:$0xff]
        %v3448 = vld [vmem:[%s3070 + $0x12a] sm:$0xff]
        %v3449 = vld [vmem:[%s3070 + $0x13a] sm:$0xff]
        %v3450 = vld [vmem:[%s3070 + $0x142] sm:$0xff]
        %v3451 = vld [vmem:[%s3070 + $0x152] sm:$0xff]
        %v3452 = vld [vmem:[%s3070 + $0x15a] sm:$0xff]
        %v3453 = vld [vmem:[%s3070 + $0x16a] sm:$0xff]
        %v3454 = vld [vmem:[%s3070 + $0x172] sm:$0xff]
        %3455 = vst [vmem:[#allocation5 + $0x28] sm:$0xff] %v3423
        %3456 = vst [vmem:[#allocation5 + $0x70] sm:$0xff] %v3424
        %3457 = vst [vmem:[#allocation5 + $0xb8] sm:$0xff] %v3425
        %3458 = vst [vmem:[#allocation5 + $0x100] sm:$0xff] %v3426
        %3459 = vst [vmem:[#allocation5 + $0x148] sm:$0xff] %v3427
        %3460 = vst [vmem:[#allocation5 + $0x190] sm:$0xff] %v3428
        %3461 = vst [vmem:[#allocation5 + $0x1d8] sm:$0xff] %v3429
        %3462 = vst [vmem:[#allocation5 + $0x220] sm:$0xff] %v3430
        %3463 = vst [vmem:[#allocation5 + $0x268] sm:$0xff] %v3431
        %3464 = vst [vmem:[#allocation5 + $0x2b0] sm:$0xff] %v3432
        %3465 = vst [vmem:[#allocation5 + $0x2f8] sm:$0xff] %v3433
        %3466 = vst [vmem:[#allocation5 + $0x340] sm:$0xff] %v3434
        %3467 = vst [vmem:[#allocation5 + $0x388] sm:$0xff] %v3435
        %3468 = vst [vmem:[#allocation5 + $0x3d0] sm:$0xff] %v3436
        %3469 = vst [vmem:[#allocation5 + $0x418] sm:$0xff] %v3437
        %3470 = vst [vmem:[#allocation5 + $0x460] sm:$0xff] %v3438
        %3471 = vst [vmem:[#allocation5 + $0x4a8] sm:$0xff] %v3439
        %3472 = vst [vmem:[#allocation5 + $0x4f0] sm:$0xff] %v3440
        %3473 = vst [vmem:[#allocation5 + $0x538] sm:$0xff] %v3441
        %3474 = vst [vmem:[#allocation5 + $0x580] sm:$0xff] %v3442
        %3475 = vst [vmem:[#allocation5 + $0x5c8] sm:$0xff] %v3443
        %3476 = vst [vmem:[#allocation5 + $0x610] sm:$0xff] %v3444
        %3477 = vst [vmem:[#allocation5 + $0x658] sm:$0xff] %v3445
        %3478 = vst [vmem:[#allocation5 + $0x6a0] sm:$0xff] %v3446
        %3479 = vst [vmem:[#allocation5 + $0x6e8] sm:$0xff] %v3447
        %3480 = vst [vmem:[#allocation5 + $0x730] sm:$0xff] %v3448
        %3481 = vst [vmem:[#allocation5 + $0x778] sm:$0xff] %v3449
        %3482 = vst [vmem:[#allocation5 + $0x7c0] sm:$0xff] %v3450
        %3483 = vst [vmem:[#allocation5 + $0x808] sm:$0xff] %v3451
        %3484 = vst [vmem:[#allocation5 + $0x850] sm:$0xff] %v3452
        %3485 = vst [vmem:[#allocation5 + $0x898] sm:$0xff] %v3453
        %3486 = vst [vmem:[#allocation5 + $0x8e0] sm:$0xff] %v3454
        %s3487 = scalar_lea.vmem [#allocation3], 48
        %v3488 = vld [vmem:[%s3487] sm:$0xff]
        %v3489 = vld [vmem:[%s3487 + $0x8] sm:$0xff]
        %v3490 = vld [vmem:[%s3487 + $0x18] sm:$0xff]
        %v3491 = vld [vmem:[%s3487 + $0x20] sm:$0xff]
        %v3492 = vld [vmem:[%s3487 + $0x30] sm:$0xff]
        %v3493 = vld [vmem:[%s3487 + $0x38] sm:$0xff]
        %v3494 = vld [vmem:[%s3487 + $0x48] sm:$0xff]
        %v3495 = vld [vmem:[%s3487 + $0x50] sm:$0xff]
        %v3496 = vld [vmem:[%s3487 + $0x60] sm:$0xff]
        %v3497 = vld [vmem:[%s3487 + $0x68] sm:$0xff]
        %v3498 = vld [vmem:[%s3487 + $0x78] sm:$0xff]
        %v3499 = vld [vmem:[%s3487 + $0x80] sm:$0xff]
        %v3500 = vld [vmem:[%s3487 + $0x90] sm:$0xff]
        %v3501 = vld [vmem:[%s3487 + $0x98] sm:$0xff]
        %v3502 = vld [vmem:[%s3487 + $0xa8] sm:$0xff]
        %v3503 = vld [vmem:[%s3487 + $0xb0] sm:$0xff]
        %v3504 = vld [vmem:[%s3487 + $0xc0] sm:$0xff]
        %v3505 = vld [vmem:[%s3487 + $0xc8] sm:$0xff]
        %v3506 = vld [vmem:[%s3487 + $0xd8] sm:$0xff]
        %v3507 = vld [vmem:[%s3487 + $0xe0] sm:$0xff]
        %v3508 = vld [vmem:[%s3487 + $0xf0] sm:$0xff]
        %v3509 = vld [vmem:[%s3487 + $0xf8] sm:$0xff]
        %v3510 = vld [vmem:[%s3487 + $0x108] sm:$0xff]
        %v3511 = vld [vmem:[%s3487 + $0x110] sm:$0xff]
        %v3512 = vld [vmem:[%s3487 + $0x120] sm:$0xff]
        %v3513 = vld [vmem:[%s3487 + $0x128] sm:$0xff]
        %v3514 = vld [vmem:[%s3487 + $0x138] sm:$0xff]
        %v3515 = vld [vmem:[%s3487 + $0x140] sm:$0xff]
        %v3516 = vld [vmem:[%s3487 + $0x150] sm:$0xff]
        %v3517 = vld [vmem:[%s3487 + $0x158] sm:$0xff]
        %v3518 = vld [vmem:[%s3487 + $0x168] sm:$0xff]
        %v3519 = vld [vmem:[%s3487 + $0x170] sm:$0xff]
        %3520 = vst [vmem:[#allocation5 + $0x30] sm:$0xff] %v3488
        %3521 = vst [vmem:[#allocation5 + $0x78] sm:$0xff] %v3489
        %3522 = vst [vmem:[#allocation5 + $0xc0] sm:$0xff] %v3490
        %3523 = vst [vmem:[#allocation5 + $0x108] sm:$0xff] %v3491
        %3524 = vst [vmem:[#allocation5 + $0x150] sm:$0xff] %v3492
        %3525 = vst [vmem:[#allocation5 + $0x198] sm:$0xff] %v3493
        %3526 = vst [vmem:[#allocation5 + $0x1e0] sm:$0xff] %v3494
        %3527 = vst [vmem:[#allocation5 + $0x228] sm:$0xff] %v3495
        %3528 = vst [vmem:[#allocation5 + $0x270] sm:$0xff] %v3496
        %3529 = vst [vmem:[#allocation5 + $0x2b8] sm:$0xff] %v3497
        %3530 = vst [vmem:[#allocation5 + $0x300] sm:$0xff] %v3498
        %3531 = vst [vmem:[#allocation5 + $0x348] sm:$0xff] %v3499
        %3532 = vst [vmem:[#allocation5 + $0x390] sm:$0xff] %v3500
        %3533 = vst [vmem:[#allocation5 + $0x3d8] sm:$0xff] %v3501
        %3534 = vst [vmem:[#allocation5 + $0x420] sm:$0xff] %v3502
        %3535 = vst [vmem:[#allocation5 + $0x468] sm:$0xff] %v3503
        %3536 = vst [vmem:[#allocation5 + $0x4b0] sm:$0xff] %v3504
        %3537 = vst [vmem:[#allocation5 + $0x4f8] sm:$0xff] %v3505
        %3538 = vst [vmem:[#allocation5 + $0x540] sm:$0xff] %v3506
        %3539 = vst [vmem:[#allocation5 + $0x588] sm:$0xff] %v3507
        %3540 = vst [vmem:[#allocation5 + $0x5d0] sm:$0xff] %v3508
        %3541 = vst [vmem:[#allocation5 + $0x618] sm:$0xff] %v3509
        %3542 = vst [vmem:[#allocation5 + $0x660] sm:$0xff] %v3510
        %3543 = vst [vmem:[#allocation5 + $0x6a8] sm:$0xff] %v3511
        %3544 = vst [vmem:[#allocation5 + $0x6f0] sm:$0xff] %v3512
        %3545 = vst [vmem:[#allocation5 + $0x738] sm:$0xff] %v3513
        %3546 = vst [vmem:[#allocation5 + $0x780] sm:$0xff] %v3514
        %3547 = vst [vmem:[#allocation5 + $0x7c8] sm:$0xff] %v3515
        %3548 = vst [vmem:[#allocation5 + $0x810] sm:$0xff] %v3516
        %3549 = vst [vmem:[#allocation5 + $0x858] sm:$0xff] %v3517
        %3550 = vst [vmem:[#allocation5 + $0x8a0] sm:$0xff] %v3518
        %3551 = vst [vmem:[#allocation5 + $0x8e8] sm:$0xff] %v3519
        %v3552 = vld [vmem:[%s3487 + $0x1] sm:$0xff]
        %v3553 = vld [vmem:[%s3487 + $0x9] sm:$0xff]
        %v3554 = vld [vmem:[%s3487 + $0x19] sm:$0xff]
        %v3555 = vld [vmem:[%s3487 + $0x21] sm:$0xff]
        %v3556 = vld [vmem:[%s3487 + $0x31] sm:$0xff]
        %v3557 = vld [vmem:[%s3487 + $0x39] sm:$0xff]
        %v3558 = vld [vmem:[%s3487 + $0x49] sm:$0xff]
        %v3559 = vld [vmem:[%s3487 + $0x51] sm:$0xff]
        %v3560 = vld [vmem:[%s3487 + $0x61] sm:$0xff]
        %v3561 = vld [vmem:[%s3487 + $0x69] sm:$0xff]
        %v3562 = vld [vmem:[%s3487 + $0x79] sm:$0xff]
        %v3563 = vld [vmem:[%s3487 + $0x81] sm:$0xff]
        %v3564 = vld [vmem:[%s3487 + $0x91] sm:$0xff]
        %v3565 = vld [vmem:[%s3487 + $0x99] sm:$0xff]
        %v3566 = vld [vmem:[%s3487 + $0xa9] sm:$0xff]
        %v3567 = vld [vmem:[%s3487 + $0xb1] sm:$0xff]
        %v3568 = vld [vmem:[%s3487 + $0xc1] sm:$0xff]
        %v3569 = vld [vmem:[%s3487 + $0xc9] sm:$0xff]
        %v3570 = vld [vmem:[%s3487 + $0xd9] sm:$0xff]
        %v3571 = vld [vmem:[%s3487 + $0xe1] sm:$0xff]
        %v3572 = vld [vmem:[%s3487 + $0xf1] sm:$0xff]
        %v3573 = vld [vmem:[%s3487 + $0xf9] sm:$0xff]
        %v3574 = vld [vmem:[%s3487 + $0x109] sm:$0xff]
        %v3575 = vld [vmem:[%s3487 + $0x111] sm:$0xff]
        %v3576 = vld [vmem:[%s3487 + $0x121] sm:$0xff]
        %v3577 = vld [vmem:[%s3487 + $0x129] sm:$0xff]
        %v3578 = vld [vmem:[%s3487 + $0x139] sm:$0xff]
        %v3579 = vld [vmem:[%s3487 + $0x141] sm:$0xff]
        %v3580 = vld [vmem:[%s3487 + $0x151] sm:$0xff]
        %v3581 = vld [vmem:[%s3487 + $0x159] sm:$0xff]
        %v3582 = vld [vmem:[%s3487 + $0x169] sm:$0xff]
        %v3583 = vld [vmem:[%s3487 + $0x171] sm:$0xff]
        %3584 = vst [vmem:[#allocation5 + $0x38] sm:$0xff] %v3552
        %3585 = vst [vmem:[#allocation5 + $0x80] sm:$0xff] %v3553
        %3586 = vst [vmem:[#allocation5 + $0xc8] sm:$0xff] %v3554
        %3587 = vst [vmem:[#allocation5 + $0x110] sm:$0xff] %v3555
        %3588 = vst [vmem:[#allocation5 + $0x158] sm:$0xff] %v3556
        %3589 = vst [vmem:[#allocation5 + $0x1a0] sm:$0xff] %v3557
        %3590 = vst [vmem:[#allocation5 + $0x1e8] sm:$0xff] %v3558
        %3591 = vst [vmem:[#allocation5 + $0x230] sm:$0xff] %v3559
        %3592 = vst [vmem:[#allocation5 + $0x278] sm:$0xff] %v3560
        %3593 = vst [vmem:[#allocation5 + $0x2c0] sm:$0xff] %v3561
        %3594 = vst [vmem:[#allocation5 + $0x308] sm:$0xff] %v3562
        %3595 = vst [vmem:[#allocation5 + $0x350] sm:$0xff] %v3563
        %3596 = vst [vmem:[#allocation5 + $0x398] sm:$0xff] %v3564
        %3597 = vst [vmem:[#allocation5 + $0x3e0] sm:$0xff] %v3565
        %3598 = vst [vmem:[#allocation5 + $0x428] sm:$0xff] %v3566
        %3599 = vst [vmem:[#allocation5 + $0x470] sm:$0xff] %v3567
        %3600 = vst [vmem:[#allocation5 + $0x4b8] sm:$0xff] %v3568
        %3601 = vst [vmem:[#allocation5 + $0x500] sm:$0xff] %v3569
        %3602 = vst [vmem:[#allocation5 + $0x548] sm:$0xff] %v3570
        %3603 = vst [vmem:[#allocation5 + $0x590] sm:$0xff] %v3571
        %3604 = vst [vmem:[#allocation5 + $0x5d8] sm:$0xff] %v3572
        %3605 = vst [vmem:[#allocation5 + $0x620] sm:$0xff] %v3573
        %3606 = vst [vmem:[#allocation5 + $0x668] sm:$0xff] %v3574
        %3607 = vst [vmem:[#allocation5 + $0x6b0] sm:$0xff] %v3575
        %3608 = vst [vmem:[#allocation5 + $0x6f8] sm:$0xff] %v3576
        %3609 = vst [vmem:[#allocation5 + $0x740] sm:$0xff] %v3577
        %3610 = vst [vmem:[#allocation5 + $0x788] sm:$0xff] %v3578
        %3611 = vst [vmem:[#allocation5 + $0x7d0] sm:$0xff] %v3579
        %3612 = vst [vmem:[#allocation5 + $0x818] sm:$0xff] %v3580
        %3613 = vst [vmem:[#allocation5 + $0x860] sm:$0xff] %v3581
        %3614 = vst [vmem:[#allocation5 + $0x8a8] sm:$0xff] %v3582
        %3615 = vst [vmem:[#allocation5 + $0x8f0] sm:$0xff] %v3583
        %v3616 = vld [vmem:[%s3487 + $0x2] sm:$0xff]
        %v3617 = vld [vmem:[%s3487 + $0xa] sm:$0xff]
        %v3618 = vld [vmem:[%s3487 + $0x1a] sm:$0xff]
        %v3619 = vld [vmem:[%s3487 + $0x22] sm:$0xff]
        %v3620 = vld [vmem:[%s3487 + $0x32] sm:$0xff]
        %v3621 = vld [vmem:[%s3487 + $0x3a] sm:$0xff]
        %v3622 = vld [vmem:[%s3487 + $0x4a] sm:$0xff]
        %v3623 = vld [vmem:[%s3487 + $0x52] sm:$0xff]
        %v3624 = vld [vmem:[%s3487 + $0x62] sm:$0xff]
        %v3625 = vld [vmem:[%s3487 + $0x6a] sm:$0xff]
        %v3626 = vld [vmem:[%s3487 + $0x7a] sm:$0xff]
        %v3627 = vld [vmem:[%s3487 + $0x82] sm:$0xff]
        %v3628 = vld [vmem:[%s3487 + $0x92] sm:$0xff]
        %v3629 = vld [vmem:[%s3487 + $0x9a] sm:$0xff]
        %v3630 = vld [vmem:[%s3487 + $0xaa] sm:$0xff]
        %v3631 = vld [vmem:[%s3487 + $0xb2] sm:$0xff]
        %v3632 = vld [vmem:[%s3487 + $0xc2] sm:$0xff]
        %v3633 = vld [vmem:[%s3487 + $0xca] sm:$0xff]
        %v3634 = vld [vmem:[%s3487 + $0xda] sm:$0xff]
        %v3635 = vld [vmem:[%s3487 + $0xe2] sm:$0xff]
        %v3636 = vld [vmem:[%s3487 + $0xf2] sm:$0xff]
        %v3637 = vld [vmem:[%s3487 + $0xfa] sm:$0xff]
        %v3638 = vld [vmem:[%s3487 + $0x10a] sm:$0xff]
        %v3639 = vld [vmem:[%s3487 + $0x112] sm:$0xff]
        %v3640 = vld [vmem:[%s3487 + $0x122] sm:$0xff]
        %v3641 = vld [vmem:[%s3487 + $0x12a] sm:$0xff]
        %v3642 = vld [vmem:[%s3487 + $0x13a] sm:$0xff]
        %v3643 = vld [vmem:[%s3487 + $0x142] sm:$0xff]
        %v3644 = vld [vmem:[%s3487 + $0x152] sm:$0xff]
        %v3645 = vld [vmem:[%s3487 + $0x15a] sm:$0xff]
        %v3646 = vld [vmem:[%s3487 + $0x16a] sm:$0xff]
        %v3647 = vld [vmem:[%s3487 + $0x172] sm:$0xff]
        %3648 = vst [vmem:[#allocation5 + $0x40] sm:$0xff] %v3616
        %3649 = vst [vmem:[#allocation5 + $0x88] sm:$0xff] %v3617
        %3650 = vst [vmem:[#allocation5 + $0xd0] sm:$0xff] %v3618
        %3651 = vst [vmem:[#allocation5 + $0x118] sm:$0xff] %v3619
        %3652 = vst [vmem:[#allocation5 + $0x160] sm:$0xff] %v3620
        %3653 = vst [vmem:[#allocation5 + $0x1a8] sm:$0xff] %v3621
        %3654 = vst [vmem:[#allocation5 + $0x1f0] sm:$0xff] %v3622
        %3655 = vst [vmem:[#allocation5 + $0x238] sm:$0xff] %v3623
        %3656 = vst [vmem:[#allocation5 + $0x280] sm:$0xff] %v3624
        %3657 = vst [vmem:[#allocation5 + $0x2c8] sm:$0xff] %v3625
        %3658 = vst [vmem:[#allocation5 + $0x310] sm:$0xff] %v3626
        %3659 = vst [vmem:[#allocation5 + $0x358] sm:$0xff] %v3627
        %3660 = vst [vmem:[#allocation5 + $0x3a0] sm:$0xff] %v3628
        %3661 = vst [vmem:[#allocation5 + $0x3e8] sm:$0xff] %v3629
        %3662 = vst [vmem:[#allocation5 + $0x430] sm:$0xff] %v3630
        %3663 = vst [vmem:[#allocation5 + $0x478] sm:$0xff] %v3631
        %3664 = vst [vmem:[#allocation5 + $0x4c0] sm:$0xff] %v3632
        %3665 = vst [vmem:[#allocation5 + $0x508] sm:$0xff] %v3633
        %3666 = vst [vmem:[#allocation5 + $0x550] sm:$0xff] %v3634
        %3667 = vst [vmem:[#allocation5 + $0x598] sm:$0xff] %v3635
        %3668 = vst [vmem:[#allocation5 + $0x5e0] sm:$0xff] %v3636
        %3669 = vst [vmem:[#allocation5 + $0x628] sm:$0xff] %v3637
        %3670 = vst [vmem:[#allocation5 + $0x670] sm:$0xff] %v3638
        %3671 = vst [vmem:[#allocation5 + $0x6b8] sm:$0xff] %v3639
        %3672 = vst [vmem:[#allocation5 + $0x700] sm:$0xff] %v3640
        %3673 = vst [vmem:[#allocation5 + $0x748] sm:$0xff] %v3641
        %3674 = vst [vmem:[#allocation5 + $0x790] sm:$0xff] %v3642
        %3675 = vst [vmem:[#allocation5 + $0x7d8] sm:$0xff] %v3643
        %3676 = vst [vmem:[#allocation5 + $0x820] sm:$0xff] %v3644
        %3677 = vst [vmem:[#allocation5 + $0x868] sm:$0xff] %v3645
        %3678 = vst [vmem:[#allocation5 + $0x8b0] sm:$0xff] %v3646
        %3679 = vst [vmem:[#allocation5 + $0x8f8] sm:$0xff] %v3647
        %v3680 = vld [vmem:[#allocation5] sm:$0xff]
        %v3681 = vld [vmem:[#allocation5 + $0x8] sm:$0xff]
        %v3682 = vld [vmem:[#allocation5 + $0x10] sm:$0xff]
        %v3683 = vld [vmem:[#allocation5 + $0x18] sm:$0xff]
        %v3684 = vld [vmem:[#allocation5 + $0x20] sm:$0xff]
        %v3685 = vld [vmem:[#allocation5 + $0x28] sm:$0xff]
        %v3686 = vld [vmem:[#allocation5 + $0x30] sm:$0xff]
        %v3687 = vld [vmem:[#allocation5 + $0x38] sm:$0xff]
        %v3688 = vld [vmem:[#allocation5 + $0x40] sm:$0xff]
        %v3689 = vld [vmem:[#allocation5 + $0x48] sm:$0xff]
        %v3690 = vld [vmem:[#allocation5 + $0x50] sm:$0xff]
        %v3691 = vld [vmem:[#allocation5 + $0x58] sm:$0xff]
        %v3692 = vld [vmem:[#allocation5 + $0x60] sm:$0xff]
        %v3693 = vld [vmem:[#allocation5 + $0x68] sm:$0xff]
        %v3694 = vld [vmem:[#allocation5 + $0x70] sm:$0xff]
        %v3695 = vld [vmem:[#allocation5 + $0x78] sm:$0xff]
        %v3696 = vld [vmem:[#allocation5 + $0x80] sm:$0xff]
        %v3697 = vld [vmem:[#allocation5 + $0x88] sm:$0xff]
        %v3698 = vld [vmem:[#allocation5 + $0x90] sm:$0xff]
        %v3699 = vld [vmem:[#allocation5 + $0x98] sm:$0xff]
        %v3700 = vld [vmem:[#allocation5 + $0xa0] sm:$0xff]
        %v3701 = vld [vmem:[#allocation5 + $0xa8] sm:$0xff]
        %v3702 = vld [vmem:[#allocation5 + $0xb0] sm:$0xff]
        %v3703 = vld [vmem:[#allocation5 + $0xb8] sm:$0xff]
        %v3704 = vld [vmem:[#allocation5 + $0xc0] sm:$0xff]
        %v3705 = vld [vmem:[#allocation5 + $0xc8] sm:$0xff]
        %v3706 = vld [vmem:[#allocation5 + $0xd0] sm:$0xff]
        %v3707 = vld [vmem:[#allocation5 + $0xd8] sm:$0xff]
        %v3708 = vld [vmem:[#allocation5 + $0xe0] sm:$0xff]
        %v3709 = vld [vmem:[#allocation5 + $0xe8] sm:$0xff]
        %v3710 = vld [vmem:[#allocation5 + $0xf0] sm:$0xff]
        %v3711 = vld [vmem:[#allocation5 + $0xf8] sm:$0xff]
        %v3712 = vld [vmem:[#allocation5 + $0x100] sm:$0xff]
        %v3713 = vld [vmem:[#allocation5 + $0x108] sm:$0xff]
        %v3714 = vld [vmem:[#allocation5 + $0x110] sm:$0xff]
        %v3715 = vld [vmem:[#allocation5 + $0x118] sm:$0xff]
        %v3716 = vld [vmem:[#allocation5 + $0x120] sm:$0xff]
        %v3717 = vld [vmem:[#allocation5 + $0x128] sm:$0xff]
        %v3718 = vld [vmem:[#allocation5 + $0x130] sm:$0xff]
        %v3719 = vld [vmem:[#allocation5 + $0x138] sm:$0xff]
        %v3720 = vld [vmem:[#allocation5 + $0x140] sm:$0xff]
        %v3721 = vld [vmem:[#allocation5 + $0x148] sm:$0xff]
        %v3722 = vld [vmem:[#allocation5 + $0x150] sm:$0xff]
        %v3723 = vld [vmem:[#allocation5 + $0x158] sm:$0xff]
        %v3724 = vld [vmem:[#allocation5 + $0x160] sm:$0xff]
        %v3725 = vld [vmem:[#allocation5 + $0x168] sm:$0xff]
        %v3726 = vld [vmem:[#allocation5 + $0x170] sm:$0xff]
        %v3727 = vld [vmem:[#allocation5 + $0x178] sm:$0xff]
        %v3728 = vld [vmem:[#allocation5 + $0x180] sm:$0xff]
        %v3729 = vld [vmem:[#allocation5 + $0x188] sm:$0xff]
        %v3730 = vld [vmem:[#allocation5 + $0x190] sm:$0xff]
        %v3731 = vld [vmem:[#allocation5 + $0x198] sm:$0xff]
        %v3732 = vld [vmem:[#allocation5 + $0x1a0] sm:$0xff]
        %v3733 = vld [vmem:[#allocation5 + $0x1a8] sm:$0xff]
        %v3734 = vld [vmem:[#allocation5 + $0x1b0] sm:$0xff]
        %v3735 = vld [vmem:[#allocation5 + $0x1b8] sm:$0xff]
        %v3736 = vld [vmem:[#allocation5 + $0x1c0] sm:$0xff]
        %v3737 = vld [vmem:[#allocation5 + $0x1c8] sm:$0xff]
        %v3738 = vld [vmem:[#allocation5 + $0x1d0] sm:$0xff]
        %v3739 = vld [vmem:[#allocation5 + $0x1d8] sm:$0xff]
        %v3740 = vld [vmem:[#allocation5 + $0x1e0] sm:$0xff]
        %v3741 = vld [vmem:[#allocation5 + $0x1e8] sm:$0xff]
        %v3742 = vld [vmem:[#allocation5 + $0x1f0] sm:$0xff]
        %v3743 = vld [vmem:[#allocation5 + $0x1f8] sm:$0xff]
        %v3744 = vld [vmem:[#allocation5 + $0x200] sm:$0xff]
        %v3745 = vld [vmem:[#allocation5 + $0x208] sm:$0xff]
        %v3746 = vld [vmem:[#allocation5 + $0x210] sm:$0xff]
        %v3747 = vld [vmem:[#allocation5 + $0x218] sm:$0xff]
        %v3748 = vld [vmem:[#allocation5 + $0x220] sm:$0xff]
        %v3749 = vld [vmem:[#allocation5 + $0x228] sm:$0xff]
        %v3750 = vld [vmem:[#allocation5 + $0x230] sm:$0xff]
        %v3751 = vld [vmem:[#allocation5 + $0x238] sm:$0xff]
        %v3752 = vld [vmem:[#allocation5 + $0x240] sm:$0xff]
        %v3753 = vld [vmem:[#allocation5 + $0x248] sm:$0xff]
        %v3754 = vld [vmem:[#allocation5 + $0x250] sm:$0xff]
        %v3755 = vld [vmem:[#allocation5 + $0x258] sm:$0xff]
        %v3756 = vld [vmem:[#allocation5 + $0x260] sm:$0xff]
        %v3757 = vld [vmem:[#allocation5 + $0x268] sm:$0xff]
        %v3758 = vld [vmem:[#allocation5 + $0x270] sm:$0xff]
        %v3759 = vld [vmem:[#allocation5 + $0x278] sm:$0xff]
        %v3760 = vld [vmem:[#allocation5 + $0x280] sm:$0xff]
        %v3761 = vld [vmem:[#allocation5 + $0x288] sm:$0xff]
        %v3762 = vld [vmem:[#allocation5 + $0x290] sm:$0xff]
        %v3763 = vld [vmem:[#allocation5 + $0x298] sm:$0xff]
        %v3764 = vld [vmem:[#allocation5 + $0x2a0] sm:$0xff]
        %v3765 = vld [vmem:[#allocation5 + $0x2a8] sm:$0xff]
        %v3766 = vld [vmem:[#allocation5 + $0x2b0] sm:$0xff]
        %v3767 = vld [vmem:[#allocation5 + $0x2b8] sm:$0xff]
        %v3768 = vld [vmem:[#allocation5 + $0x2c0] sm:$0xff]
        %v3769 = vld [vmem:[#allocation5 + $0x2c8] sm:$0xff]
        %v3770 = vld [vmem:[#allocation5 + $0x2d0] sm:$0xff]
        %v3771 = vld [vmem:[#allocation5 + $0x2d8] sm:$0xff]
        %v3772 = vld [vmem:[#allocation5 + $0x2e0] sm:$0xff]
        %v3773 = vld [vmem:[#allocation5 + $0x2e8] sm:$0xff]
        %v3774 = vld [vmem:[#allocation5 + $0x2f0] sm:$0xff]
        %v3775 = vld [vmem:[#allocation5 + $0x2f8] sm:$0xff]
        %v3776 = vld [vmem:[#allocation5 + $0x300] sm:$0xff]
        %v3777 = vld [vmem:[#allocation5 + $0x308] sm:$0xff]
        %v3778 = vld [vmem:[#allocation5 + $0x310] sm:$0xff]
        %v3779 = vld [vmem:[#allocation5 + $0x318] sm:$0xff]
        %v3780 = vld [vmem:[#allocation5 + $0x320] sm:$0xff]
        %v3781 = vld [vmem:[#allocation5 + $0x328] sm:$0xff]
        %v3782 = vld [vmem:[#allocation5 + $0x330] sm:$0xff]
        %v3783 = vld [vmem:[#allocation5 + $0x338] sm:$0xff]
        %v3784 = vld [vmem:[#allocation5 + $0x340] sm:$0xff]
        %v3785 = vld [vmem:[#allocation5 + $0x348] sm:$0xff]
        %v3786 = vld [vmem:[#allocation5 + $0x350] sm:$0xff]
        %v3787 = vld [vmem:[#allocation5 + $0x358] sm:$0xff]
        %v3788 = vld [vmem:[#allocation5 + $0x360] sm:$0xff]
        %v3789 = vld [vmem:[#allocation5 + $0x368] sm:$0xff]
        %v3790 = vld [vmem:[#allocation5 + $0x370] sm:$0xff]
        %v3791 = vld [vmem:[#allocation5 + $0x378] sm:$0xff]
        %v3792 = vld [vmem:[#allocation5 + $0x380] sm:$0xff]
        %v3793 = vld [vmem:[#allocation5 + $0x388] sm:$0xff]
        %v3794 = vld [vmem:[#allocation5 + $0x390] sm:$0xff]
        %v3795 = vld [vmem:[#allocation5 + $0x398] sm:$0xff]
        %v3796 = vld [vmem:[#allocation5 + $0x3a0] sm:$0xff]
        %v3797 = vld [vmem:[#allocation5 + $0x3a8] sm:$0xff]
        %v3798 = vld [vmem:[#allocation5 + $0x3b0] sm:$0xff]
        %v3799 = vld [vmem:[#allocation5 + $0x3b8] sm:$0xff]
        %v3800 = vld [vmem:[#allocation5 + $0x3c0] sm:$0xff]
        %v3801 = vld [vmem:[#allocation5 + $0x3c8] sm:$0xff]
        %v3802 = vld [vmem:[#allocation5 + $0x3d0] sm:$0xff]
        %v3803 = vld [vmem:[#allocation5 + $0x3d8] sm:$0xff]
        %v3804 = vld [vmem:[#allocation5 + $0x3e0] sm:$0xff]
        %v3805 = vld [vmem:[#allocation5 + $0x3e8] sm:$0xff]
        %v3806 = vld [vmem:[#allocation5 + $0x3f0] sm:$0xff]
        %v3807 = vld [vmem:[#allocation5 + $0x3f8] sm:$0xff]
        %v3808 = vld [vmem:[#allocation5 + $0x400] sm:$0xff]
        %v3809 = vld [vmem:[#allocation5 + $0x408] sm:$0xff]
        %v3810 = vld [vmem:[#allocation5 + $0x410] sm:$0xff]
        %v3811 = vld [vmem:[#allocation5 + $0x418] sm:$0xff]
        %v3812 = vld [vmem:[#allocation5 + $0x420] sm:$0xff]
        %v3813 = vld [vmem:[#allocation5 + $0x428] sm:$0xff]
        %v3814 = vld [vmem:[#allocation5 + $0x430] sm:$0xff]
        %v3815 = vld [vmem:[#allocation5 + $0x438] sm:$0xff]
        %v3816 = vld [vmem:[#allocation5 + $0x440] sm:$0xff]
        %v3817 = vld [vmem:[#allocation5 + $0x448] sm:$0xff]
        %v3818 = vld [vmem:[#allocation5 + $0x450] sm:$0xff]
        %v3819 = vld [vmem:[#allocation5 + $0x458] sm:$0xff]
        %v3820 = vld [vmem:[#allocation5 + $0x460] sm:$0xff]
        %v3821 = vld [vmem:[#allocation5 + $0x468] sm:$0xff]
        %v3822 = vld [vmem:[#allocation5 + $0x470] sm:$0xff]
        %v3823 = vld [vmem:[#allocation5 + $0x478] sm:$0xff]
        %v3824 = vld [vmem:[#allocation5 + $0x480] sm:$0xff]
        %v3825 = vld [vmem:[#allocation5 + $0x488] sm:$0xff]
        %v3826 = vld [vmem:[#allocation5 + $0x490] sm:$0xff]
        %v3827 = vld [vmem:[#allocation5 + $0x498] sm:$0xff]
        %v3828 = vld [vmem:[#allocation5 + $0x4a0] sm:$0xff]
        %v3829 = vld [vmem:[#allocation5 + $0x4a8] sm:$0xff]
        %v3830 = vld [vmem:[#allocation5 + $0x4b0] sm:$0xff]
        %v3831 = vld [vmem:[#allocation5 + $0x4b8] sm:$0xff]
        %v3832 = vld [vmem:[#allocation5 + $0x4c0] sm:$0xff]
        %v3833 = vld [vmem:[#allocation5 + $0x4c8] sm:$0xff]
        %v3834 = vld [vmem:[#allocation5 + $0x4d0] sm:$0xff]
        %v3835 = vld [vmem:[#allocation5 + $0x4d8] sm:$0xff]
        %v3836 = vld [vmem:[#allocation5 + $0x4e0] sm:$0xff]
        %v3837 = vld [vmem:[#allocation5 + $0x4e8] sm:$0xff]
        %v3838 = vld [vmem:[#allocation5 + $0x4f0] sm:$0xff]
        %v3839 = vld [vmem:[#allocation5 + $0x4f8] sm:$0xff]
        %v3840 = vld [vmem:[#allocation5 + $0x500] sm:$0xff]
        %v3841 = vld [vmem:[#allocation5 + $0x508] sm:$0xff]
        %v3842 = vld [vmem:[#allocation5 + $0x510] sm:$0xff]
        %v3843 = vld [vmem:[#allocation5 + $0x518] sm:$0xff]
        %v3844 = vld [vmem:[#allocation5 + $0x520] sm:$0xff]
        %v3845 = vld [vmem:[#allocation5 + $0x528] sm:$0xff]
        %v3846 = vld [vmem:[#allocation5 + $0x530] sm:$0xff]
        %v3847 = vld [vmem:[#allocation5 + $0x538] sm:$0xff]
        %v3848 = vld [vmem:[#allocation5 + $0x540] sm:$0xff]
        %v3849 = vld [vmem:[#allocation5 + $0x548] sm:$0xff]
        %v3850 = vld [vmem:[#allocation5 + $0x550] sm:$0xff]
        %v3851 = vld [vmem:[#allocation5 + $0x558] sm:$0xff]
        %v3852 = vld [vmem:[#allocation5 + $0x560] sm:$0xff]
        %v3853 = vld [vmem:[#allocation5 + $0x568] sm:$0xff]
        %v3854 = vld [vmem:[#allocation5 + $0x570] sm:$0xff]
        %v3855 = vld [vmem:[#allocation5 + $0x578] sm:$0xff]
        %v3856 = vld [vmem:[#allocation5 + $0x580] sm:$0xff]
        %v3857 = vld [vmem:[#allocation5 + $0x588] sm:$0xff]
        %v3858 = vld [vmem:[#allocation5 + $0x590] sm:$0xff]
        %v3859 = vld [vmem:[#allocation5 + $0x598] sm:$0xff]
        %v3860 = vld [vmem:[#allocation5 + $0x5a0] sm:$0xff]
        %v3861 = vld [vmem:[#allocation5 + $0x5a8] sm:$0xff]
        %v3862 = vld [vmem:[#allocation5 + $0x5b0] sm:$0xff]
        %v3863 = vld [vmem:[#allocation5 + $0x5b8] sm:$0xff]
        %v3864 = vld [vmem:[#allocation5 + $0x5c0] sm:$0xff]
        %v3865 = vld [vmem:[#allocation5 + $0x5c8] sm:$0xff]
        %v3866 = vld [vmem:[#allocation5 + $0x5d0] sm:$0xff]
        %v3867 = vld [vmem:[#allocation5 + $0x5d8] sm:$0xff]
        %v3868 = vld [vmem:[#allocation5 + $0x5e0] sm:$0xff]
        %v3869 = vld [vmem:[#allocation5 + $0x5e8] sm:$0xff]
        %v3870 = vld [vmem:[#allocation5 + $0x5f0] sm:$0xff]
        %v3871 = vld [vmem:[#allocation5 + $0x5f8] sm:$0xff]
        %v3872 = vld [vmem:[#allocation5 + $0x600] sm:$0xff]
        %v3873 = vld [vmem:[#allocation5 + $0x608] sm:$0xff]
        %v3874 = vld [vmem:[#allocation5 + $0x610] sm:$0xff]
        %v3875 = vld [vmem:[#allocation5 + $0x618] sm:$0xff]
        %v3876 = vld [vmem:[#allocation5 + $0x620] sm:$0xff]
        %v3877 = vld [vmem:[#allocation5 + $0x628] sm:$0xff]
        %v3878 = vld [vmem:[#allocation5 + $0x630] sm:$0xff]
        %v3879 = vld [vmem:[#allocation5 + $0x638] sm:$0xff]
        %v3880 = vld [vmem:[#allocation5 + $0x640] sm:$0xff]
        %v3881 = vld [vmem:[#allocation5 + $0x648] sm:$0xff]
        %v3882 = vld [vmem:[#allocation5 + $0x650] sm:$0xff]
        %v3883 = vld [vmem:[#allocation5 + $0x658] sm:$0xff]
        %v3884 = vld [vmem:[#allocation5 + $0x660] sm:$0xff]
        %v3885 = vld [vmem:[#allocation5 + $0x668] sm:$0xff]
        %v3886 = vld [vmem:[#allocation5 + $0x670] sm:$0xff]
        %v3887 = vld [vmem:[#allocation5 + $0x678] sm:$0xff]
        %v3888 = vld [vmem:[#allocation5 + $0x680] sm:$0xff]
        %v3889 = vld [vmem:[#allocation5 + $0x688] sm:$0xff]
        %v3890 = vld [vmem:[#allocation5 + $0x690] sm:$0xff]
        %v3891 = vld [vmem:[#allocation5 + $0x698] sm:$0xff]
        %v3892 = vld [vmem:[#allocation5 + $0x6a0] sm:$0xff]
        %v3893 = vld [vmem:[#allocation5 + $0x6a8] sm:$0xff]
        %v3894 = vld [vmem:[#allocation5 + $0x6b0] sm:$0xff]
        %v3895 = vld [vmem:[#allocation5 + $0x6b8] sm:$0xff]
        %v3896 = vld [vmem:[#allocation5 + $0x6c0] sm:$0xff]
        %v3897 = vld [vmem:[#allocation5 + $0x6c8] sm:$0xff]
        %v3898 = vld [vmem:[#allocation5 + $0x6d0] sm:$0xff]
        %v3899 = vld [vmem:[#allocation5 + $0x6d8] sm:$0xff]
        %v3900 = vld [vmem:[#allocation5 + $0x6e0] sm:$0xff]
        %v3901 = vld [vmem:[#allocation5 + $0x6e8] sm:$0xff]
        %v3902 = vld [vmem:[#allocation5 + $0x6f0] sm:$0xff]
        %v3903 = vld [vmem:[#allocation5 + $0x6f8] sm:$0xff]
        %v3904 = vld [vmem:[#allocation5 + $0x700] sm:$0xff]
        %v3905 = vld [vmem:[#allocation5 + $0x708] sm:$0xff]
        %v3906 = vld [vmem:[#allocation5 + $0x710] sm:$0xff]
        %v3907 = vld [vmem:[#allocation5 + $0x718] sm:$0xff]
        %v3908 = vld [vmem:[#allocation5 + $0x720] sm:$0xff]
        %v3909 = vld [vmem:[#allocation5 + $0x728] sm:$0xff]
        %v3910 = vld [vmem:[#allocation5 + $0x730] sm:$0xff]
        %v3911 = vld [vmem:[#allocation5 + $0x738] sm:$0xff]
        %v3912 = vld [vmem:[#allocation5 + $0x740] sm:$0xff]
        %v3913 = vld [vmem:[#allocation5 + $0x748] sm:$0xff]
        %v3914 = vld [vmem:[#allocation5 + $0x750] sm:$0xff]
        %v3915 = vld [vmem:[#allocation5 + $0x758] sm:$0xff]
        %v3916 = vld [vmem:[#allocation5 + $0x760] sm:$0xff]
        %v3917 = vld [vmem:[#allocation5 + $0x768] sm:$0xff]
        %v3918 = vld [vmem:[#allocation5 + $0x770] sm:$0xff]
        %v3919 = vld [vmem:[#allocation5 + $0x778] sm:$0xff]
        %v3920 = vld [vmem:[#allocation5 + $0x780] sm:$0xff]
        %v3921 = vld [vmem:[#allocation5 + $0x788] sm:$0xff]
        %v3922 = vld [vmem:[#allocation5 + $0x790] sm:$0xff]
        %v3923 = vld [vmem:[#allocation5 + $0x798] sm:$0xff]
        %v3924 = vld [vmem:[#allocation5 + $0x7a0] sm:$0xff]
        %v3925 = vld [vmem:[#allocation5 + $0x7a8] sm:$0xff]
        %v3926 = vld [vmem:[#allocation5 + $0x7b0] sm:$0xff]
        %v3927 = vld [vmem:[#allocation5 + $0x7b8] sm:$0xff]
        %v3928 = vld [vmem:[#allocation5 + $0x7c0] sm:$0xff]
        %v3929 = vld [vmem:[#allocation5 + $0x7c8] sm:$0xff]
        %v3930 = vld [vmem:[#allocation5 + $0x7d0] sm:$0xff]
        %v3931 = vld [vmem:[#allocation5 + $0x7d8] sm:$0xff]
        %v3932 = vld [vmem:[#allocation5 + $0x7e0] sm:$0xff]
        %v3933 = vld [vmem:[#allocation5 + $0x7e8] sm:$0xff]
        %v3934 = vld [vmem:[#allocation5 + $0x7f0] sm:$0xff]
        %v3935 = vld [vmem:[#allocation5 + $0x7f8] sm:$0xff]
        %v3936 = vld [vmem:[#allocation5 + $0x800] sm:$0xff]
        %v3937 = vld [vmem:[#allocation5 + $0x808] sm:$0xff]
        %v3938 = vld [vmem:[#allocation5 + $0x810] sm:$0xff]
        %v3939 = vld [vmem:[#allocation5 + $0x818] sm:$0xff]
        %v3940 = vld [vmem:[#allocation5 + $0x820] sm:$0xff]
        %v3941 = vld [vmem:[#allocation5 + $0x828] sm:$0xff]
        %v3942 = vld [vmem:[#allocation5 + $0x830] sm:$0xff]
        %v3943 = vld [vmem:[#allocation5 + $0x838] sm:$0xff]
        %v3944 = vld [vmem:[#allocation5 + $0x840] sm:$0xff]
        %v3945 = vld [vmem:[#allocation5 + $0x848] sm:$0xff]
        %v3946 = vld [vmem:[#allocation5 + $0x850] sm:$0xff]
        %v3947 = vld [vmem:[#allocation5 + $0x858] sm:$0xff]
        %v3948 = vld [vmem:[#allocation5 + $0x860] sm:$0xff]
        %v3949 = vld [vmem:[#allocation5 + $0x868] sm:$0xff]
        %v3950 = vld [vmem:[#allocation5 + $0x870] sm:$0xff]
        %v3951 = vld [vmem:[#allocation5 + $0x878] sm:$0xff]
        %v3952 = vld [vmem:[#allocation5 + $0x880] sm:$0xff]
        %v3953 = vld [vmem:[#allocation5 + $0x888] sm:$0xff]
        %v3954 = vld [vmem:[#allocation5 + $0x890] sm:$0xff]
        %v3955 = vld [vmem:[#allocation5 + $0x898] sm:$0xff]
        %v3956 = vld [vmem:[#allocation5 + $0x8a0] sm:$0xff]
        %v3957 = vld [vmem:[#allocation5 + $0x8a8] sm:$0xff]
        %v3958 = vld [vmem:[#allocation5 + $0x8b0] sm:$0xff]
        %v3959 = vld [vmem:[#allocation5 + $0x8b8] sm:$0xff]
        %v3960 = vld [vmem:[#allocation5 + $0x8c0] sm:$0xff]
        %v3961 = vld [vmem:[#allocation5 + $0x8c8] sm:$0xff]
        %v3962 = vld [vmem:[#allocation5 + $0x8d0] sm:$0xff]
        %v3963 = vld [vmem:[#allocation5 + $0x8d8] sm:$0xff]
        %v3964 = vld [vmem:[#allocation5 + $0x8e0] sm:$0xff]
        %v3965 = vld [vmem:[#allocation5 + $0x8e8] sm:$0xff]
        %v3966 = vld [vmem:[#allocation5 + $0x8f0] sm:$0xff]
        %v3967 = vld [vmem:[#allocation5 + $0x8f8] sm:$0xff]
        %v3968 = vld [vmem:[#allocation13] sm:$0xff]
        %v3969 = vld [vmem:[#allocation13 + $0x8] sm:$0xff]
        %v3970 = vld [vmem:[#allocation13 + $0x10] sm:$0xff]
        %v3971 = vld [vmem:[#allocation13 + $0x18] sm:$0xff]
        %v3972 = vld [vmem:[#allocation13 + $0x20] sm:$0xff]
        %v3973 = vld [vmem:[#allocation13 + $0x28] sm:$0xff]
        %v3974 = vld [vmem:[#allocation13 + $0x30] sm:$0xff]
        %v3975 = vld [vmem:[#allocation13 + $0x38] sm:$0xff]
        %v3976 = vld [vmem:[#allocation13 + $0x40] sm:$0xff]
        %v3977 = vld [vmem:[#allocation13 + $0x48] sm:$0xff]
        %v3978 = vld [vmem:[#allocation13 + $0x50] sm:$0xff]
        %v3979 = vld [vmem:[#allocation13 + $0x58] sm:$0xff]
        %v3980 = vld [vmem:[#allocation13 + $0x60] sm:$0xff]
        %v3981 = vld [vmem:[#allocation13 + $0x68] sm:$0xff]
        %v3982 = vld [vmem:[#allocation13 + $0x70] sm:$0xff]
        %v3983 = vld [vmem:[#allocation13 + $0x78] sm:$0xff]
        %v3984 = vld [vmem:[#allocation13 + $0x80] sm:$0xff]
        %v3985 = vld [vmem:[#allocation13 + $0x88] sm:$0xff]
        %v3986 = vld [vmem:[#allocation13 + $0x90] sm:$0xff]
        %v3987 = vld [vmem:[#allocation13 + $0x98] sm:$0xff]
        %v3988 = vld [vmem:[#allocation13 + $0xa0] sm:$0xff]
        %v3989 = vld [vmem:[#allocation13 + $0xa8] sm:$0xff]
        %v3990 = vld [vmem:[#allocation13 + $0xb0] sm:$0xff]
        %v3991 = vld [vmem:[#allocation13 + $0xb8] sm:$0xff]
        %v3992 = vld [vmem:[#allocation13 + $0xc0] sm:$0xff]
        %v3993 = vld [vmem:[#allocation13 + $0xc8] sm:$0xff]
        %v3994 = vld [vmem:[#allocation13 + $0xd0] sm:$0xff]
        %v3995 = vld [vmem:[#allocation13 + $0xd8] sm:$0xff]
        %v3996 = vld [vmem:[#allocation13 + $0xe0] sm:$0xff]
        %v3997 = vld [vmem:[#allocation13 + $0xe8] sm:$0xff]
        %v3998 = vld [vmem:[#allocation13 + $0xf0] sm:$0xff]
        %v3999 = vld [vmem:[#allocation13 + $0xf8] sm:$0xff]
        %v4000 = vld [vmem:[#allocation13 + $0x100] sm:$0xff]
        %v4001 = vld [vmem:[#allocation13 + $0x108] sm:$0xff]
        %v4002 = vld [vmem:[#allocation13 + $0x110] sm:$0xff]
        %v4003 = vld [vmem:[#allocation13 + $0x118] sm:$0xff]
        %v4004 = vld [vmem:[#allocation13 + $0x120] sm:$0xff]
        %v4005 = vld [vmem:[#allocation13 + $0x128] sm:$0xff]
        %v4006 = vld [vmem:[#allocation13 + $0x130] sm:$0xff]
        %v4007 = vld [vmem:[#allocation13 + $0x138] sm:$0xff]
        %v4008 = vld [vmem:[#allocation13 + $0x140] sm:$0xff]
        %v4009 = vld [vmem:[#allocation13 + $0x148] sm:$0xff]
        %v4010 = vld [vmem:[#allocation13 + $0x150] sm:$0xff]
        %v4011 = vld [vmem:[#allocation13 + $0x158] sm:$0xff]
        %v4012 = vld [vmem:[#allocation13 + $0x160] sm:$0xff]
        %v4013 = vld [vmem:[#allocation13 + $0x168] sm:$0xff]
        %v4014 = vld [vmem:[#allocation13 + $0x170] sm:$0xff]
        %v4015 = vld [vmem:[#allocation13 + $0x178] sm:$0xff]
        %v4016 = vld [vmem:[#allocation13 + $0x180] sm:$0xff]
        %v4017 = vld [vmem:[#allocation13 + $0x188] sm:$0xff]
        %v4018 = vld [vmem:[#allocation13 + $0x190] sm:$0xff]
        %v4019 = vld [vmem:[#allocation13 + $0x198] sm:$0xff]
        %v4020 = vld [vmem:[#allocation13 + $0x1a0] sm:$0xff]
        %v4021 = vld [vmem:[#allocation13 + $0x1a8] sm:$0xff]
        %v4022 = vld [vmem:[#allocation13 + $0x1b0] sm:$0xff]
        %v4023 = vld [vmem:[#allocation13 + $0x1b8] sm:$0xff]
        %v4024 = vld [vmem:[#allocation13 + $0x1c0] sm:$0xff]
        %v4025 = vld [vmem:[#allocation13 + $0x1c8] sm:$0xff]
        %v4026 = vld [vmem:[#allocation13 + $0x1d0] sm:$0xff]
        %v4027 = vld [vmem:[#allocation13 + $0x1d8] sm:$0xff]
        %v4028 = vld [vmem:[#allocation13 + $0x1e0] sm:$0xff]
        %v4029 = vld [vmem:[#allocation13 + $0x1e8] sm:$0xff]
        %v4030 = vld [vmem:[#allocation13 + $0x1f0] sm:$0xff]
        %v4031 = vld [vmem:[#allocation13 + $0x1f8] sm:$0xff]
        %v4032 = vld [vmem:[#allocation13 + $0x200] sm:$0xff]
        %v4033 = vld [vmem:[#allocation13 + $0x208] sm:$0xff]
        %v4034 = vld [vmem:[#allocation13 + $0x210] sm:$0xff]
        %v4035 = vld [vmem:[#allocation13 + $0x218] sm:$0xff]
        %v4036 = vld [vmem:[#allocation13 + $0x220] sm:$0xff]
        %v4037 = vld [vmem:[#allocation13 + $0x228] sm:$0xff]
        %v4038 = vld [vmem:[#allocation13 + $0x230] sm:$0xff]
        %v4039 = vld [vmem:[#allocation13 + $0x238] sm:$0xff]
        %v4040 = vld [vmem:[#allocation13 + $0x240] sm:$0xff]
        %v4041 = vld [vmem:[#allocation13 + $0x248] sm:$0xff]
        %v4042 = vld [vmem:[#allocation13 + $0x250] sm:$0xff]
        %v4043 = vld [vmem:[#allocation13 + $0x258] sm:$0xff]
        %v4044 = vld [vmem:[#allocation13 + $0x260] sm:$0xff]
        %v4045 = vld [vmem:[#allocation13 + $0x268] sm:$0xff]
        %v4046 = vld [vmem:[#allocation13 + $0x270] sm:$0xff]
        %v4047 = vld [vmem:[#allocation13 + $0x278] sm:$0xff]
        %v4048 = vld [vmem:[#allocation13 + $0x280] sm:$0xff]
        %v4049 = vld [vmem:[#allocation13 + $0x288] sm:$0xff]
        %v4050 = vld [vmem:[#allocation13 + $0x290] sm:$0xff]
        %v4051 = vld [vmem:[#allocation13 + $0x298] sm:$0xff]
        %v4052 = vld [vmem:[#allocation13 + $0x2a0] sm:$0xff]
        %v4053 = vld [vmem:[#allocation13 + $0x2a8] sm:$0xff]
        %v4054 = vld [vmem:[#allocation13 + $0x2b0] sm:$0xff]
        %v4055 = vld [vmem:[#allocation13 + $0x2b8] sm:$0xff]
        %v4056 = vld [vmem:[#allocation13 + $0x2c0] sm:$0xff]
        %v4057 = vld [vmem:[#allocation13 + $0x2c8] sm:$0xff]
        %v4058 = vld [vmem:[#allocation13 + $0x2d0] sm:$0xff]
        %v4059 = vld [vmem:[#allocation13 + $0x2d8] sm:$0xff]
        %v4060 = vld [vmem:[#allocation13 + $0x2e0] sm:$0xff]
        %v4061 = vld [vmem:[#allocation13 + $0x2e8] sm:$0xff]
        %v4062 = vld [vmem:[#allocation13 + $0x2f0] sm:$0xff]
        %v4063 = vld [vmem:[#allocation13 + $0x2f8] sm:$0xff]
        %v4064 = vld [vmem:[#allocation13 + $0x300] sm:$0xff]
        %v4065 = vld [vmem:[#allocation13 + $0x308] sm:$0xff]
        %v4066 = vld [vmem:[#allocation13 + $0x310] sm:$0xff]
        %v4067 = vld [vmem:[#allocation13 + $0x318] sm:$0xff]
        %v4068 = vld [vmem:[#allocation13 + $0x320] sm:$0xff]
        %v4069 = vld [vmem:[#allocation13 + $0x328] sm:$0xff]
        %v4070 = vld [vmem:[#allocation13 + $0x330] sm:$0xff]
        %v4071 = vld [vmem:[#allocation13 + $0x338] sm:$0xff]
        %v4072 = vld [vmem:[#allocation13 + $0x340] sm:$0xff]
        %v4073 = vld [vmem:[#allocation13 + $0x348] sm:$0xff]
        %v4074 = vld [vmem:[#allocation13 + $0x350] sm:$0xff]
        %v4075 = vld [vmem:[#allocation13 + $0x358] sm:$0xff]
        %v4076 = vld [vmem:[#allocation13 + $0x360] sm:$0xff]
        %v4077 = vld [vmem:[#allocation13 + $0x368] sm:$0xff]
        %v4078 = vld [vmem:[#allocation13 + $0x370] sm:$0xff]
        %v4079 = vld [vmem:[#allocation13 + $0x378] sm:$0xff]
        %v4080 = vld [vmem:[#allocation13 + $0x380] sm:$0xff]
        %v4081 = vld [vmem:[#allocation13 + $0x388] sm:$0xff]
        %v4082 = vld [vmem:[#allocation13 + $0x390] sm:$0xff]
        %v4083 = vld [vmem:[#allocation13 + $0x398] sm:$0xff]
        %v4084 = vld [vmem:[#allocation13 + $0x3a0] sm:$0xff]
        %v4085 = vld [vmem:[#allocation13 + $0x3a8] sm:$0xff]
        %v4086 = vld [vmem:[#allocation13 + $0x3b0] sm:$0xff]
        %v4087 = vld [vmem:[#allocation13 + $0x3b8] sm:$0xff]
        %v4088 = vld [vmem:[#allocation13 + $0x3c0] sm:$0xff]
        %v4089 = vld [vmem:[#allocation13 + $0x3c8] sm:$0xff]
        %v4090 = vld [vmem:[#allocation13 + $0x3d0] sm:$0xff]
        %v4091 = vld [vmem:[#allocation13 + $0x3d8] sm:$0xff]
        %v4092 = vld [vmem:[#allocation13 + $0x3e0] sm:$0xff]
        %v4093 = vld [vmem:[#allocation13 + $0x3e8] sm:$0xff]
        %v4094 = vld [vmem:[#allocation13 + $0x3f0] sm:$0xff]
        %v4095 = vld [vmem:[#allocation13 + $0x3f8] sm:$0xff]
        %v4096 = vld [vmem:[#allocation13 + $0x400] sm:$0xff]
        %v4097 = vld [vmem:[#allocation13 + $0x408] sm:$0xff]
        %v4098 = vld [vmem:[#allocation13 + $0x410] sm:$0xff]
        %v4099 = vld [vmem:[#allocation13 + $0x418] sm:$0xff]
        %v4100 = vld [vmem:[#allocation13 + $0x420] sm:$0xff]
        %v4101 = vld [vmem:[#allocation13 + $0x428] sm:$0xff]
        %v4102 = vld [vmem:[#allocation13 + $0x430] sm:$0xff]
        %v4103 = vld [vmem:[#allocation13 + $0x438] sm:$0xff]
        %v4104 = vld [vmem:[#allocation13 + $0x440] sm:$0xff]
        %v4105 = vld [vmem:[#allocation13 + $0x448] sm:$0xff]
        %v4106 = vld [vmem:[#allocation13 + $0x450] sm:$0xff]
        %v4107 = vld [vmem:[#allocation13 + $0x458] sm:$0xff]
        %v4108 = vld [vmem:[#allocation13 + $0x460] sm:$0xff]
        %v4109 = vld [vmem:[#allocation13 + $0x468] sm:$0xff]
        %v4110 = vld [vmem:[#allocation13 + $0x470] sm:$0xff]
        %v4111 = vld [vmem:[#allocation13 + $0x478] sm:$0xff]
        %v4112 = vld [vmem:[#allocation6] sm:$0xff]
        %v4113 = vld [vmem:[#allocation6 + $0x8] sm:$0xff]
        %v4114 = vld [vmem:[#allocation6 + $0x10] sm:$0xff]
        %v4115 = vld [vmem:[#allocation6 + $0x18] sm:$0xff]
        %v4116 = vld [vmem:[#allocation6 + $0x20] sm:$0xff]
        %v4117 = vld [vmem:[#allocation6 + $0x28] sm:$0xff]
        %v4118 = vld [vmem:[#allocation6 + $0x30] sm:$0xff]
        %v4119 = vld [vmem:[#allocation6 + $0x38] sm:$0xff]
        %v4120 = vld [vmem:[#allocation6 + $0x40] sm:$0xff]
        %v4121 = vld [vmem:[#allocation6 + $0x48] sm:$0xff]
        %v4122 = vld [vmem:[#allocation6 + $0x50] sm:$0xff]
        %v4123 = vld [vmem:[#allocation6 + $0x58] sm:$0xff]
        %v4124 = vld [vmem:[#allocation6 + $0x60] sm:$0xff]
        %v4125 = vld [vmem:[#allocation6 + $0x68] sm:$0xff]
        %v4126 = vld [vmem:[#allocation6 + $0x70] sm:$0xff]
        %v4127 = vld [vmem:[#allocation6 + $0x78] sm:$0xff]
        %v4128 = vld [vmem:[#allocation6 + $0x80] sm:$0xff]
        %v4129 = vld [vmem:[#allocation6 + $0x88] sm:$0xff]
        %v4130 = vld [vmem:[#allocation6 + $0x90] sm:$0xff]
        %v4131 = vld [vmem:[#allocation6 + $0x98] sm:$0xff]
        %v4132 = vld [vmem:[#allocation6 + $0xa0] sm:$0xff]
        %v4133 = vld [vmem:[#allocation6 + $0xa8] sm:$0xff]
        %v4134 = vld [vmem:[#allocation6 + $0xb0] sm:$0xff]
        %v4135 = vld [vmem:[#allocation6 + $0xb8] sm:$0xff]
        %v4136 = vld [vmem:[#allocation6 + $0xc0] sm:$0xff]
        %v4137 = vld [vmem:[#allocation6 + $0xc8] sm:$0xff]
        %v4138 = vld [vmem:[#allocation6 + $0xd0] sm:$0xff]
        %v4139 = vld [vmem:[#allocation6 + $0xd8] sm:$0xff]
        %v4140 = vld [vmem:[#allocation6 + $0xe0] sm:$0xff]
        %v4141 = vld [vmem:[#allocation6 + $0xe8] sm:$0xff]
        %v4142 = vld [vmem:[#allocation6 + $0xf0] sm:$0xff]
        %v4143 = vld [vmem:[#allocation6 + $0xf8] sm:$0xff]
        %4144 = vmatprep.subr.mxu0 0.0
        %4145 = vmatpush1.msra.mxu0 %v3968
        %4146 = vmatprep.subr.mxu0 0.0
        %4147 = vmatpush1.msra.mxu0 %v3969
        %4148 = vmatprep.subr.mxu0 0.0
        %4149 = vmatpush1.msra.mxu0 %v3970
        %4150 = vmatprep.subr.mxu0 0.0
        %4151 = vmatpush1.msra.mxu0 %v3971
        %4152 = vmatprep.subr.mxu0 0.0
        %4153 = vmatpush1.msra.mxu0 %v3972
        %4154 = vmatprep.subr.mxu0 0.0
        %4155 = vmatpush1.msra.mxu0 %v3973
        %4156 = vmatprep.subr.mxu0 0.0
        %4157 = vmatpush1.msra.mxu0 %v3974
        %4158 = vmatprep.subr.mxu0 0.0
        %4159 = vmatpush1.msra.mxu0 %v3975
        %4160 = vmatprep.subr.mxu0 0.0
        %4161 = vmatpush1.msra.mxu0 %v3976
        %4162 = vmatprep.subr.mxu0 0.0
        %4163 = vmatpush1.msra.mxu0 %v3977
        %4164 = vmatprep.subr.mxu0 0.0
        %4165 = vmatpush1.msra.mxu0 %v3978
        %4166 = vmatprep.subr.mxu0 0.0
        %4167 = vmatpush1.msra.mxu0 %v3979
        %4168 = vmatprep.subr.mxu0 0.0
        %4169 = vmatpush1.msra.mxu0 %v3980
        %4170 = vmatprep.subr.mxu0 0.0
        %4171 = vmatpush1.msra.mxu0 %v3981
        %4172 = vmatprep.subr.mxu0 0.0
        %4173 = vmatpush1.msra.mxu0 %v3982
        %4174 = vmatprep.subr.mxu0 0.0
        %4175 = vmatpush1.msra.mxu0 %v3983
        %4176 = vmatprep.subr.mxu0 0.0
        %4177 = vmatpush1.msra.mxu0 %v3984
        %4178 = vmatprep.subr.mxu0 0.0
        %4179 = vmatpush1.msra.mxu0 %v3985
        %4180 = vmatprep.subr.mxu0 0.0
        %4181 = vmatpush1.msra.mxu0 %v3986
        %4182 = vmatprep.subr.mxu0 0.0
        %4183 = vmatpush1.msra.mxu0 %v3987
        %4184 = vmatprep.subr.mxu0 0.0
        %4185 = vmatpush1.msra.mxu0 %v3988
        %4186 = vmatprep.subr.mxu0 0.0
        %4187 = vmatpush1.msra.mxu0 %v3989
        %4188 = vmatprep.subr.mxu0 0.0
        %4189 = vmatpush1.msra.mxu0 %v3990
        %4190 = vmatprep.subr.mxu0 0.0
        %4191 = vmatpush1.msra.mxu0 %v3991
        %4192 = vmatprep.subr.mxu0 0.0
        %4193 = vmatpush1.msra.mxu0 %v3992
        %4194 = vmatprep.subr.mxu0 0.0
        %4195 = vmatpush1.msra.mxu0 %v3993
        %4196 = vmatprep.subr.mxu0 0.0
        %4197 = vmatpush1.msra.mxu0 %v3994
        %4198 = vmatprep.subr.mxu0 0.0
        %4199 = vmatpush1.msra.mxu0 %v3995
        %4200 = vmatprep.subr.mxu0 0.0
        %4201 = vmatpush1.msra.mxu0 %v3996
        %4202 = vmatprep.subr.mxu0 0.0
        %4203 = vmatpush1.msra.mxu0 %v3997
        %4204 = vmatprep.subr.mxu0 0.0
        %4205 = vmatpush1.msra.mxu0 %v3998
        %4206 = vmatprep.subr.mxu0 0.0
        %4207 = vmatpush1.msra.mxu0 %v3999
        %4208 = vmatprep.mubr.f32.mxu0 %v3681
        %4209 = vmatmul.mubr.f32.gmra.mrb[0].mxu0 %v3680
        %v4210 = vpop.f32.mrb[0].mxu0
        %v4211 = vadd.f32 %v4112, %v4210
        %v4212 = vpop.f32.mrb[0].mxu0
        %4213 = vmatprep.mubr.f32.mxu0 %v3690
        %4214 = vmatmul.mubr.f32.gmra.mrb[0].mxu0 %v3689
        %v4215 = vpop.f32.mrb[0].mxu0
        %v4216 = vadd.f32 %v4113, %v4215
        %v4217 = vpop.f32.mrb[0].mxu0
        %4218 = vmatprep.mubr.f32.mxu0 %v3699
        %4219 = vmatmul.mubr.f32.gmra.mrb[0].mxu0 %v3698
        %v4220 = vpop.f32.mrb[0].mxu0
        %v4221 = vadd.f32 %v4114, %v4220
        %v4222 = vpop.f32.mrb[0].mxu0
        %4223 = vmatprep.mubr.f32.mxu0 %v3708
        %4224 = vmatmul.mubr.f32.gmra.mrb[0].mxu0 %v3707
        %v4225 = vpop.f32.mrb[0].mxu0
        %v4226 = vadd.f32 %v4115, %v4225
        %v4227 = vpop.f32.mrb[0].mxu0
        %4228 = vmatprep.mubr.f32.mxu0 %v3717
        %4229 = vmatmul.mubr.f32.gmra.mrb[0].mxu0 %v3716
        %v4230 = vpop.f32.mrb[0].mxu0
        %v4231 = vadd.f32 %v4116, %v4230
        %v4232 = vpop.f32.mrb[0].mxu0
        %4233 = vmatprep.mubr.f32.mxu0 %v3726
        %4234 = vmatmul.mubr.f32.gmra.mrb[0].mxu0 %v3725
        %v4235 = vpop.f32.mrb[0].mxu0
        %v4236 = vadd.f32 %v4117, %v4235
        %v4237 = vpop.f32.mrb[0].mxu0
        %4238 = vmatprep.mubr.f32.mxu0 %v3735
        %4239 = vmatmul.mubr.f32.gmra.mrb[0].mxu0 %v3734
        %v4240 = vpop.f32.mrb[0].mxu0
        %v4241 = vadd.f32 %v4118, %v4240
        %v4242 = vpop.f32.mrb[0].mxu0
        %4243 = vmatprep.mubr.f32.mxu0 %v3744
        %4244 = vmatmul.mubr.f32.gmra.mrb[0].mxu0 %v3743
        %v4245 = vpop.f32.mrb[0].mxu0
        %v4246 = vadd.f32 %v4119, %v4245
        %v4247 = vpop.f32.mrb[0].mxu0
        %4248 = vmatprep.mubr.f32.mxu0 %v3753
        %4249 = vmatmul.mubr.f32.gmra.mrb[0].mxu0 %v3752
        %v4250 = vpop.f32.mrb[0].mxu0
        %v4251 = vadd.f32 %v4120, %v4250
        %v4252 = vpop.f32.mrb[0].mxu0
        %4253 = vmatprep.mubr.f32.mxu0 %v3762
        %4254 = vmatmul.mubr.f32.gmra.mrb[0].mxu0 %v3761
        %v4255 = vpop.f32.mrb[0].mxu0
        %v4256 = vadd.f32 %v4121, %v4255
        %v4257 = vpop.f32.mrb[0].mxu0
        %4258 = vmatprep.mubr.f32.mxu0 %v3771
        %4259 = vmatmul.mubr.f32.gmra.mrb[0].mxu0 %v3770
        %v4260 = vpop.f32.mrb[0].mxu0
        %v4261 = vadd.f32 %v4122, %v4260
        %v4262 = vpop.f32.mrb[0].mxu0
        %4263 = vmatprep.mubr.f32.mxu0 %v3780
        %4264 = vmatmul.mubr.f32.gmra.mrb[0].mxu0 %v3779
        %v4265 = vpop.f32.mrb[0].mxu0
        %v4266 = vadd.f32 %v4123, %v4265
        %v4267 = vpop.f32.mrb[0].mxu0
        %4268 = vmatprep.mubr.f32.mxu0 %v3789
        %4269 = vmatmul.mubr.f32.gmra.mrb[0].mxu0 %v3788
        %v4270 = vpop.f32.mrb[0].mxu0
        %v4271 = vadd.f32 %v4124, %v4270
        %v4272 = vpop.f32.mrb[0].mxu0
        %4273 = vmatprep.mubr.f32.mxu0 %v3798
        %4274 = vmatmul.mubr.f32.gmra.mrb[0].mxu0 %v3797
        %v4275 = vpop.f32.mrb[0].mxu0
        %v4276 = vadd.f32 %v4125, %v4275
        %v4277 = vpop.f32.mrb[0].mxu0
        %4278 = vmatprep.mubr.f32.mxu0 %v3807
        %4279 = vmatmul.mubr.f32.gmra.mrb[0].mxu0 %v3806
        %v4280 = vpop.f32.mrb[0].mxu0
        %v4281 = vadd.f32 %v4126, %v4280
        %v4282 = vpop.f32.mrb[0].mxu0
        %4283 = vmatprep.mubr.f32.mxu0 %v3816
        %4284 = vmatmul.mubr.f32.gmra.mrb[0].mxu0 %v3815
        %v4285 = vpop.f32.mrb[0].mxu0
        %v4286 = vadd.f32 %v4127, %v4285
        %v4287 = vpop.f32.mrb[0].mxu0
        %4288 = vmatprep.mubr.f32.mxu0 %v3825
        %4289 = vmatmul.mubr.f32.gmra.mrb[0].mxu0 %v3824
        %v4290 = vpop.f32.mrb[0].mxu0
        %v4291 = vadd.f32 %v4128, %v4290
        %v4292 = vpop.f32.mrb[0].mxu0
        %4293 = vmatprep.mubr.f32.mxu0 %v3834
        %4294 = vmatmul.mubr.f32.gmra.mrb[0].mxu0 %v3833
        %v4295 = vpop.f32.mrb[0].mxu0
        %v4296 = vadd.f32 %v4129, %v4295
        %v4297 = vpop.f32.mrb[0].mxu0
        %4298 = vmatprep.mubr.f32.mxu0 %v3843
        %4299 = vmatmul.mubr.f32.gmra.mrb[0].mxu0 %v3842
        %v4300 = vpop.f32.mrb[0].mxu0
        %v4301 = vadd.f32 %v4130, %v4300
        %v4302 = vpop.f32.mrb[0].mxu0
        %4303 = vmatprep.mubr.f32.mxu0 %v3852
        %4304 = vmatmul.mubr.f32.gmra.mrb[0].mxu0 %v3851
        %v4305 = vpop.f32.mrb[0].mxu0
        %v4306 = vadd.f32 %v4131, %v4305
        %v4307 = vpop.f32.mrb[0].mxu0
        %4308 = vmatprep.mubr.f32.mxu0 %v3861
        %4309 = vmatmul.mubr.f32.gmra.mrb[0].mxu0 %v3860
        %v4310 = vpop.f32.mrb[0].mxu0
        %v4311 = vadd.f32 %v4132, %v4310
        %v4312 = vpop.f32.mrb[0].mxu0
        %4313 = vmatprep.mubr.f32.mxu0 %v3870
        %4314 = vmatmul.mubr.f32.gmra.mrb[0].mxu0 %v3869
        %v4315 = vpop.f32.mrb[0].mxu0
        %v4316 = vadd.f32 %v4133, %v4315
        %v4317 = vpop.f32.mrb[0].mxu0
        %4318 = vmatprep.mubr.f32.mxu0 %v3879
        %4319 = vmatmul.mubr.f32.gmra.mrb[0].mxu0 %v3878
        %v4320 = vpop.f32.mrb[0].mxu0
        %v4321 = vadd.f32 %v4134, %v4320
        %v4322 = vpop.f32.mrb[0].mxu0
        %4323 = vmatprep.mubr.f32.mxu0 %v3888
        %4324 = vmatmul.mubr.f32.gmra.mrb[0].mxu0 %v3887
        %v4325 = vpop.f32.mrb[0].mxu0
        %v4326 = vadd.f32 %v4135, %v4325
        %v4327 = vpop.f32.mrb[0].mxu0
        %4328 = vmatprep.mubr.f32.mxu0 %v3897
        %4329 = vmatmul.mubr.f32.gmra.mrb[0].mxu0 %v3896
        %v4330 = vpop.f32.mrb[0].mxu0
        %v4331 = vadd.f32 %v4136, %v4330
        %v4332 = vpop.f32.mrb[0].mxu0
        %4333 = vmatprep.mubr.f32.mxu0 %v3906
        %4334 = vmatmul.mubr.f32.gmra.mrb[0].mxu0 %v3905
        %v4335 = vpop.f32.mrb[0].mxu0
        %v4336 = vadd.f32 %v4137, %v4335
        %v4337 = vpop.f32.mrb[0].mxu0
        %4338 = vmatprep.mubr.f32.mxu0 %v3915
        %4339 = vmatmul.mubr.f32.gmra.mrb[0].mxu0 %v3914
        %v4340 = vpop.f32.mrb[0].mxu0
        %v4341 = vadd.f32 %v4138, %v4340
        %v4342 = vpop.f32.mrb[0].mxu0
        %4343 = vmatprep.mubr.f32.mxu0 %v3924
        %4344 = vmatmul.mubr.f32.gmra.mrb[0].mxu0 %v3923
        %v4345 = vpop.f32.mrb[0].mxu0
        %v4346 = vadd.f32 %v4139, %v4345
        %v4347 = vpop.f32.mrb[0].mxu0
        %4348 = vmatprep.mubr.f32.mxu0 %v3933
        %4349 = vmatmul.mubr.f32.gmra.mrb[0].mxu0 %v3932
        %v4350 = vpop.f32.mrb[0].mxu0
        %v4351 = vadd.f32 %v4140, %v4350
        %v4352 = vpop.f32.mrb[0].mxu0
        %4353 = vmatprep.mubr.f32.mxu0 %v3942
        %4354 = vmatmul.mubr.f32.gmra.mrb[0].mxu0 %v3941
        %v4355 = vpop.f32.mrb[0].mxu0
        %v4356 = vadd.f32 %v4141, %v4355
        %v4357 = vpop.f32.mrb[0].mxu0
        %4358 = vmatprep.mubr.f32.mxu0 %v3951
        %4359 = vmatmul.mubr.f32.gmra.mrb[0].mxu0 %v3950
        %v4360 = vpop.f32.mrb[0].mxu0
        %v4361 = vadd.f32 %v4142, %v4360
        %v4362 = vpop.f32.mrb[0].mxu0
        %4363 = vmatprep.mubr.f32.mxu0 %v3960
        %4364 = vmatmul.mubr.f32.gmra.mrb[0].mxu0 %v3959
        %v4365 = vpop.f32.mrb[0].mxu0
        %v4366 = vadd.f32 %v4143, %v4365
        %v4367 = vpop.f32.mrb[0].mxu0
        %4368 = vdwg.mxu0
        %4369 = vmatprep.subr.mxu0 0.0
        %4370 = vmatpush1.msra.mxu0 %v4000
        %4371 = vmatprep.subr.mxu0 0.0
        %4372 = vmatpush1.msra.mxu0 %v4001
        %4373 = vmatprep.subr.mxu0 0.0
        %4374 = vmatpush1.msra.mxu0 %v4002
        %4375 = vmatprep.subr.mxu0 0.0
        %4376 = vmatpush1.msra.mxu0 %v4003
        %4377 = vmatprep.subr.mxu0 0.0
        %4378 = vmatpush1.msra.mxu0 %v4004
        %4379 = vmatprep.subr.mxu0 0.0
        %4380 = vmatpush1.msra.mxu0 %v4005
        %4381 = vmatprep.subr.mxu0 0.0
        %4382 = vmatpush1.msra.mxu0 %v4006
        %4383 = vmatprep.subr.mxu0 0.0
        %4384 = vmatpush1.msra.mxu0 %v4007
        %4385 = vmatprep.subr.mxu0 0.0
        %4386 = vmatpush1.msra.mxu0 %v4008
        %4387 = vmatprep.subr.mxu0 0.0
        %4388 = vmatpush1.msra.mxu0 %v4009
        %4389 = vmatprep.subr.mxu0 0.0
        %4390 = vmatpush1.msra.mxu0 %v4010
        %4391 = vmatprep.subr.mxu0 0.0
        %4392 = vmatpush1.msra.mxu0 %v4011
        %4393 = vmatprep.subr.mxu0 0.0
        %4394 = vmatpush1.msra.mxu0 %v4012
        %4395 = vmatprep.subr.mxu0 0.0
        %4396 = vmatpush1.msra.mxu0 %v4013
        %4397 = vmatprep.subr.mxu0 0.0
        %4398 = vmatpush1.msra.mxu0 %v4014
        %4399 = vmatprep.subr.mxu0 0.0
        %4400 = vmatpush1.msra.mxu0 %v4015
        %4401 = vmatprep.subr.mxu0 0.0
        %4402 = vmatpush1.msra.mxu0 %v4016
        %4403 = vmatprep.subr.mxu0 0.0
        %4404 = vmatpush1.msra.mxu0 %v4017
        %4405 = vmatprep.subr.mxu0 0.0
        %4406 = vmatpush1.msra.mxu0 %v4018
        %4407 = vmatprep.subr.mxu0 0.0
        %4408 = vmatpush1.msra.mxu0 %v4019
        %4409 = vmatprep.subr.mxu0 0.0
        %4410 = vmatpush1.msra.mxu0 %v4020
        %4411 = vmatprep.subr.mxu0 0.0
        %4412 = vmatpush1.msra.mxu0 %v4021
        %4413 = vmatprep.subr.mxu0 0.0
        %4414 = vmatpush1.msra.mxu0 %v4022
        %4415 = vmatprep.subr.mxu0 0.0
        %4416 = vmatpush1.msra.mxu0 %v4023
        %4417 = vmatprep.subr.mxu0 0.0
        %4418 = vmatpush1.msra.mxu0 %v4024
        %4419 = vmatprep.subr.mxu0 0.0
        %4420 = vmatpush1.msra.mxu0 %v4025
        %4421 = vmatprep.subr.mxu0 0.0
        %4422 = vmatpush1.msra.mxu0 %v4026
        %4423 = vmatprep.subr.mxu0 0.0
        %4424 = vmatpush1.msra.mxu0 %v4027
        %4425 = vmatprep.subr.mxu0 0.0
        %4426 = vmatpush1.msra.mxu0 %v4028
        %4427 = vmatprep.subr.mxu0 0.0
        %4428 = vmatpush1.msra.mxu0 %v4029
        %4429 = vmatprep.subr.mxu0 0.0
        %4430 = vmatpush1.msra.mxu0 %v4030
        %4431 = vmatprep.subr.mxu0 0.0
        %4432 = vmatpush1.msra.mxu0 %v4031
        %4433 = vmatprep.mubr.f32.mxu0 %v3683
        %4434 = vmatmul.mubr.f32.gmra.mrb[0].mxu0 %v3682
        %v4435 = vpop.f32.mrb[0].mxu0
        %v4436 = vadd.f32 %v4211, %v4435
        %v4437 = vpop.f32.mrb[0].mxu0
        %4438 = vmatprep.mubr.f32.mxu0 %v3692
        %4439 = vmatmul.mubr.f32.gmra.mrb[0].mxu0 %v3691
        %v4440 = vpop.f32.mrb[0].mxu0
        %v4441 = vadd.f32 %v4216, %v4440
        %v4442 = vpop.f32.mrb[0].mxu0
        %4443 = vmatprep.mubr.f32.mxu0 %v3701
        %4444 = vmatmul.mubr.f32.gmra.mrb[0].mxu0 %v3700
        %v4445 = vpop.f32.mrb[0].mxu0
        %v4446 = vadd.f32 %v4221, %v4445
        %v4447 = vpop.f32.mrb[0].mxu0
        %4448 = vmatprep.mubr.f32.mxu0 %v3710
        %4449 = vmatmul.mubr.f32.gmra.mrb[0].mxu0 %v3709
        %v4450 = vpop.f32.mrb[0].mxu0
        %v4451 = vadd.f32 %v4226, %v4450
        %v4452 = vpop.f32.mrb[0].mxu0
        %4453 = vmatprep.mubr.f32.mxu0 %v3719
        %4454 = vmatmul.mubr.f32.gmra.mrb[0].mxu0 %v3718
        %v4455 = vpop.f32.mrb[0].mxu0
        %v4456 = vadd.f32 %v4231, %v4455
        %v4457 = vpop.f32.mrb[0].mxu0
        %4458 = vmatprep.mubr.f32.mxu0 %v3728
        %4459 = vmatmul.mubr.f32.gmra.mrb[0].mxu0 %v3727
        %v4460 = vpop.f32.mrb[0].mxu0
        %v4461 = vadd.f32 %v4236, %v4460
        %v4462 = vpop.f32.mrb[0].mxu0
        %4463 = vmatprep.mubr.f32.mxu0 %v3737
        %4464 = vmatmul.mubr.f32.gmra.mrb[0].mxu0 %v3736
        %v4465 = vpop.f32.mrb[0].mxu0
        %v4466 = vadd.f32 %v4241, %v4465
        %v4467 = vpop.f32.mrb[0].mxu0
        %4468 = vmatprep.mubr.f32.mxu0 %v3746
        %4469 = vmatmul.mubr.f32.gmra.mrb[0].mxu0 %v3745
        %v4470 = vpop.f32.mrb[0].mxu0
        %v4471 = vadd.f32 %v4246, %v4470
        %v4472 = vpop.f32.mrb[0].mxu0
        %4473 = vmatprep.mubr.f32.mxu0 %v3755
        %4474 = vmatmul.mubr.f32.gmra.mrb[0].mxu0 %v3754
        %v4475 = vpop.f32.mrb[0].mxu0
        %v4476 = vadd.f32 %v4251, %v4475
        %v4477 = vpop.f32.mrb[0].mxu0
        %4478 = vmatprep.mubr.f32.mxu0 %v3764
        %4479 = vmatmul.mubr.f32.gmra.mrb[0].mxu0 %v3763
        %v4480 = vpop.f32.mrb[0].mxu0
        %v4481 = vadd.f32 %v4256, %v4480
        %v4482 = vpop.f32.mrb[0].mxu0
        %4483 = vmatprep.mubr.f32.mxu0 %v3773
        %4484 = vmatmul.mubr.f32.gmra.mrb[0].mxu0 %v3772
        %v4485 = vpop.f32.mrb[0].mxu0
        %v4486 = vadd.f32 %v4261, %v4485
        %v4487 = vpop.f32.mrb[0].mxu0
        %4488 = vmatprep.mubr.f32.mxu0 %v3782
        %4489 = vmatmul.mubr.f32.gmra.mrb[0].mxu0 %v3781
        %v4490 = vpop.f32.mrb[0].mxu0
        %v4491 = vadd.f32 %v4266, %v4490
        %v4492 = vpop.f32.mrb[0].mxu0
        %4493 = vmatprep.mubr.f32.mxu0 %v3791
        %4494 = vmatmul.mubr.f32.gmra.mrb[0].mxu0 %v3790
        %v4495 = vpop.f32.mrb[0].mxu0
        %v4496 = vadd.f32 %v4271, %v4495
        %v4497 = vpop.f32.mrb[0].mxu0
        %4498 = vmatprep.mubr.f32.mxu0 %v3800
        %4499 = vmatmul.mubr.f32.gmra.mrb[0].mxu0 %v3799
        %v4500 = vpop.f32.mrb[0].mxu0
        %v4501 = vadd.f32 %v4276, %v4500
        %v4502 = vpop.f32.mrb[0].mxu0
        %4503 = vmatprep.mubr.f32.mxu0 %v3809
        %4504 = vmatmul.mubr.f32.gmra.mrb[0].mxu0 %v3808
        %v4505 = vpop.f32.mrb[0].mxu0
        %v4506 = vadd.f32 %v4281, %v4505
        %v4507 = vpop.f32.mrb[0].mxu0
        %4508 = vmatprep.mubr.f32.mxu0 %v3818
        %4509 = vmatmul.mubr.f32.gmra.mrb[0].mxu0 %v3817
        %v4510 = vpop.f32.mrb[0].mxu0
        %v4511 = vadd.f32 %v4286, %v4510
        %v4512 = vpop.f32.mrb[0].mxu0
        %4513 = vmatprep.mubr.f32.mxu0 %v3827
        %4514 = vmatmul.mubr.f32.gmra.mrb[0].mxu0 %v3826
        %v4515 = vpop.f32.mrb[0].mxu0
        %v4516 = vadd.f32 %v4291, %v4515
        %v4517 = vpop.f32.mrb[0].mxu0
        %4518 = vmatprep.mubr.f32.mxu0 %v3836
        %4519 = vmatmul.mubr.f32.gmra.mrb[0].mxu0 %v3835
        %v4520 = vpop.f32.mrb[0].mxu0
        %v4521 = vadd.f32 %v4296, %v4520
        %v4522 = vpop.f32.mrb[0].mxu0
        %4523 = vmatprep.mubr.f32.mxu0 %v3845
        %4524 = vmatmul.mubr.f32.gmra.mrb[0].mxu0 %v3844
        %v4525 = vpop.f32.mrb[0].mxu0
        %v4526 = vadd.f32 %v4301, %v4525
        %v4527 = vpop.f32.mrb[0].mxu0
        %4528 = vmatprep.mubr.f32.mxu0 %v3854
        %4529 = vmatmul.mubr.f32.gmra.mrb[0].mxu0 %v3853
        %v4530 = vpop.f32.mrb[0].mxu0
        %v4531 = vadd.f32 %v4306, %v4530
        %v4532 = vpop.f32.mrb[0].mxu0
        %4533 = vmatprep.mubr.f32.mxu0 %v3863
        %4534 = vmatmul.mubr.f32.gmra.mrb[0].mxu0 %v3862
        %v4535 = vpop.f32.mrb[0].mxu0
        %v4536 = vadd.f32 %v4311, %v4535
        %v4537 = vpop.f32.mrb[0].mxu0
        %4538 = vmatprep.mubr.f32.mxu0 %v3872
        %4539 = vmatmul.mubr.f32.gmra.mrb[0].mxu0 %v3871
        %v4540 = vpop.f32.mrb[0].mxu0
        %v4541 = vadd.f32 %v4316, %v4540
        %v4542 = vpop.f32.mrb[0].mxu0
        %4543 = vmatprep.mubr.f32.mxu0 %v3881
        %4544 = vmatmul.mubr.f32.gmra.mrb[0].mxu0 %v3880
        %v4545 = vpop.f32.mrb[0].mxu0
        %v4546 = vadd.f32 %v4321, %v4545
        %v4547 = vpop.f32.mrb[0].mxu0
        %4548 = vmatprep.mubr.f32.mxu0 %v3890
        %4549 = vmatmul.mubr.f32.gmra.mrb[0].mxu0 %v3889
        %v4550 = vpop.f32.mrb[0].mxu0
        %v4551 = vadd.f32 %v4326, %v4550
        %v4552 = vpop.f32.mrb[0].mxu0
        %4553 = vmatprep.mubr.f32.mxu0 %v3899
        %4554 = vmatmul.mubr.f32.gmra.mrb[0].mxu0 %v3898
        %v4555 = vpop.f32.mrb[0].mxu0
        %v4556 = vadd.f32 %v4331, %v4555
        %v4557 = vpop.f32.mrb[0].mxu0
        %4558 = vmatprep.mubr.f32.mxu0 %v3908
        %4559 = vmatmul.mubr.f32.gmra.mrb[0].mxu0 %v3907
        %v4560 = vpop.f32.mrb[0].mxu0
        %v4561 = vadd.f32 %v4336, %v4560
        %v4562 = vpop.f32.mrb[0].mxu0
        %4563 = vmatprep.mubr.f32.mxu0 %v3917
        %4564 = vmatmul.mubr.f32.gmra.mrb[0].mxu0 %v3916
        %v4565 = vpop.f32.mrb[0].mxu0
        %v4566 = vadd.f32 %v4341, %v4565
        %v4567 = vpop.f32.mrb[0].mxu0
        %4568 = vmatprep.mubr.f32.mxu0 %v3926
        %4569 = vmatmul.mubr.f32.gmra.mrb[0].mxu0 %v3925
        %v4570 = vpop.f32.mrb[0].mxu0
        %v4571 = vadd.f32 %v4346, %v4570
        %v4572 = vpop.f32.mrb[0].mxu0
        %4573 = vmatprep.mubr.f32.mxu0 %v3935
        %4574 = vmatmul.mubr.f32.gmra.mrb[0].mxu0 %v3934
        %v4575 = vpop.f32.mrb[0].mxu0
        %v4576 = vadd.f32 %v4351, %v4575
        %v4577 = vpop.f32.mrb[0].mxu0
        %4578 = vmatprep.mubr.f32.mxu0 %v3944
        %4579 = vmatmul.mubr.f32.gmra.mrb[0].mxu0 %v3943
        %v4580 = vpop.f32.mrb[0].mxu0
        %v4581 = vadd.f32 %v4356, %v4580
        %v4582 = vpop.f32.mrb[0].mxu0
        %4583 = vmatprep.mubr.f32.mxu0 %v3953
        %4584 = vmatmul.mubr.f32.gmra.mrb[0].mxu0 %v3952
        %v4585 = vpop.f32.mrb[0].mxu0
        %v4586 = vadd.f32 %v4361, %v4585
        %v4587 = vpop.f32.mrb[0].mxu0
        %4588 = vmatprep.mubr.f32.mxu0 %v3962
        %4589 = vmatmul.mubr.f32.gmra.mrb[0].mxu0 %v3961
        %v4590 = vpop.f32.mrb[0].mxu0
        %v4591 = vadd.f32 %v4366, %v4590
        %v4592 = vpop.f32.mrb[0].mxu0
        %4593 = vdwg.mxu0
        %4594 = vmatprep.subr.mxu0 0.0
        %4595 = vmatpush1.msra.mxu0 %v4032
        %4596 = vmatprep.subr.mxu0 0.0
        %4597 = vmatpush1.msra.mxu0 %v4033
        %4598 = vmatprep.subr.mxu0 0.0
        %4599 = vmatpush1.msra.mxu0 %v4034
        %4600 = vmatprep.subr.mxu0 0.0
        %4601 = vmatpush1.msra.mxu0 %v4035
        %4602 = vmatprep.subr.mxu0 0.0
        %4603 = vmatpush1.msra.mxu0 %v4036
        %4604 = vmatprep.subr.mxu0 0.0
        %4605 = vmatpush1.msra.mxu0 %v4037
        %4606 = vmatprep.subr.mxu0 0.0
        %4607 = vmatpush1.msra.mxu0 %v4038
        %4608 = vmatprep.subr.mxu0 0.0
        %4609 = vmatpush1.msra.mxu0 %v4039
        %4610 = vmatprep.subr.mxu0 0.0
        %4611 = vmatpush1.msra.mxu0 %v4040
        %4612 = vmatprep.subr.mxu0 0.0
        %4613 = vmatpush1.msra.mxu0 %v4041
        %4614 = vmatprep.subr.mxu0 0.0
        %4615 = vmatpush1.msra.mxu0 %v4042
        %4616 = vmatprep.subr.mxu0 0.0
        %4617 = vmatpush1.msra.mxu0 %v4043
        %4618 = vmatprep.subr.mxu0 0.0
        %4619 = vmatpush1.msra.mxu0 %v4044
        %4620 = vmatprep.subr.mxu0 0.0
        %4621 = vmatpush1.msra.mxu0 %v4045
        %4622 = vmatprep.subr.mxu0 0.0
        %4623 = vmatpush1.msra.mxu0 %v4046
        %4624 = vmatprep.subr.mxu0 0.0
        %4625 = vmatpush1.msra.mxu0 %v4047
        %4626 = vmatprep.subr.mxu0 0.0
        %4627 = vmatpush1.msra.mxu0 %v4048
        %4628 = vmatprep.subr.mxu0 0.0
        %4629 = vmatpush1.msra.mxu0 %v4049
        %4630 = vmatprep.subr.mxu0 0.0
        %4631 = vmatpush1.msra.mxu0 %v4050
        %4632 = vmatprep.subr.mxu0 0.0
        %4633 = vmatpush1.msra.mxu0 %v4051
        %4634 = vmatprep.subr.mxu0 0.0
        %4635 = vmatpush1.msra.mxu0 %v4052
        %4636 = vmatprep.subr.mxu0 0.0
        %4637 = vmatpush1.msra.mxu0 %v4053
        %4638 = vmatprep.subr.mxu0 0.0
        %4639 = vmatpush1.msra.mxu0 %v4054
        %4640 = vmatprep.subr.mxu0 0.0
        %4641 = vmatpush1.msra.mxu0 %v4055
        %4642 = vmatprep.subr.mxu0 0.0
        %4643 = vmatpush1.msra.mxu0 %v4056
        %4644 = vmatprep.subr.mxu0 0.0
        %4645 = vmatpush1.msra.mxu0 %v4057
        %4646 = vmatprep.subr.mxu0 0.0
        %4647 = vmatpush1.msra.mxu0 %v4058
        %4648 = vmatprep.subr.mxu0 0.0
        %4649 = vmatpush1.msra.mxu0 %v4059
        %4650 = vmatprep.subr.mxu0 0.0
        %4651 = vmatpush1.msra.mxu0 %v4060
        %4652 = vmatprep.subr.mxu0 0.0
        %4653 = vmatpush1.msra.mxu0 %v4061
        %4654 = vmatprep.subr.mxu0 0.0
        %4655 = vmatpush1.msra.mxu0 %v4062
        %4656 = vmatprep.subr.mxu0 0.0
        %4657 = vmatpush1.msra.mxu0 %v4063
        %4658 = vmatprep.mubr.f32.mxu0 %v3685
        %4659 = vmatmul.mubr.f32.gmra.mrb[0].mxu0 %v3684
        %v4660 = vpop.f32.mrb[0].mxu0
        %v4661 = vadd.f32 %v4436, %v4660
        %v4662 = vpop.f32.mrb[0].mxu0
        %4663 = vmatprep.mubr.f32.mxu0 %v3694
        %4664 = vmatmul.mubr.f32.gmra.mrb[0].mxu0 %v3693
        %v4665 = vpop.f32.mrb[0].mxu0
        %v4666 = vadd.f32 %v4441, %v4665
        %v4667 = vpop.f32.mrb[0].mxu0
        %4668 = vmatprep.mubr.f32.mxu0 %v3703
        %4669 = vmatmul.mubr.f32.gmra.mrb[0].mxu0 %v3702
        %v4670 = vpop.f32.mrb[0].mxu0
        %v4671 = vadd.f32 %v4446, %v4670
        %v4672 = vpop.f32.mrb[0].mxu0
        %4673 = vmatprep.mubr.f32.mxu0 %v3712
        %4674 = vmatmul.mubr.f32.gmra.mrb[0].mxu0 %v3711
        %v4675 = vpop.f32.mrb[0].mxu0
        %v4676 = vadd.f32 %v4451, %v4675
        %v4677 = vpop.f32.mrb[0].mxu0
        %4678 = vmatprep.mubr.f32.mxu0 %v3721
        %4679 = vmatmul.mubr.f32.gmra.mrb[0].mxu0 %v3720
        %v4680 = vpop.f32.mrb[0].mxu0
        %v4681 = vadd.f32 %v4456, %v4680
        %v4682 = vpop.f32.mrb[0].mxu0
        %4683 = vmatprep.mubr.f32.mxu0 %v3730
        %4684 = vmatmul.mubr.f32.gmra.mrb[0].mxu0 %v3729
        %v4685 = vpop.f32.mrb[0].mxu0
        %v4686 = vadd.f32 %v4461, %v4685
        %v4687 = vpop.f32.mrb[0].mxu0
        %4688 = vmatprep.mubr.f32.mxu0 %v3739
        %4689 = vmatmul.mubr.f32.gmra.mrb[0].mxu0 %v3738
        %v4690 = vpop.f32.mrb[0].mxu0
        %v4691 = vadd.f32 %v4466, %v4690
        %v4692 = vpop.f32.mrb[0].mxu0
        %4693 = vmatprep.mubr.f32.mxu0 %v3748
        %4694 = vmatmul.mubr.f32.gmra.mrb[0].mxu0 %v3747
        %v4695 = vpop.f32.mrb[0].mxu0
        %v4696 = vadd.f32 %v4471, %v4695
        %v4697 = vpop.f32.mrb[0].mxu0
        %4698 = vmatprep.mubr.f32.mxu0 %v3757
        %4699 = vmatmul.mubr.f32.gmra.mrb[0].mxu0 %v3756
        %v4700 = vpop.f32.mrb[0].mxu0
        %v4701 = vadd.f32 %v4476, %v4700
        %v4702 = vpop.f32.mrb[0].mxu0
        %4703 = vmatprep.mubr.f32.mxu0 %v3766
        %4704 = vmatmul.mubr.f32.gmra.mrb[0].mxu0 %v3765
        %v4705 = vpop.f32.mrb[0].mxu0
        %v4706 = vadd.f32 %v4481, %v4705
        %v4707 = vpop.f32.mrb[0].mxu0
        %4708 = vmatprep.mubr.f32.mxu0 %v3775
        %4709 = vmatmul.mubr.f32.gmra.mrb[0].mxu0 %v3774
        %v4710 = vpop.f32.mrb[0].mxu0
        %v4711 = vadd.f32 %v4486, %v4710
        %v4712 = vpop.f32.mrb[0].mxu0
        %4713 = vmatprep.mubr.f32.mxu0 %v3784
        %4714 = vmatmul.mubr.f32.gmra.mrb[0].mxu0 %v3783
        %v4715 = vpop.f32.mrb[0].mxu0
        %v4716 = vadd.f32 %v4491, %v4715
        %v4717 = vpop.f32.mrb[0].mxu0
        %4718 = vmatprep.mubr.f32.mxu0 %v3793
        %4719 = vmatmul.mubr.f32.gmra.mrb[0].mxu0 %v3792
        %v4720 = vpop.f32.mrb[0].mxu0
        %v4721 = vadd.f32 %v4496, %v4720
        %v4722 = vpop.f32.mrb[0].mxu0
        %4723 = vmatprep.mubr.f32.mxu0 %v3802
        %4724 = vmatmul.mubr.f32.gmra.mrb[0].mxu0 %v3801
        %v4725 = vpop.f32.mrb[0].mxu0
        %v4726 = vadd.f32 %v4501, %v4725
        %v4727 = vpop.f32.mrb[0].mxu0
        %4728 = vmatprep.mubr.f32.mxu0 %v3811
        %4729 = vmatmul.mubr.f32.gmra.mrb[0].mxu0 %v3810
        %v4730 = vpop.f32.mrb[0].mxu0
        %v4731 = vadd.f32 %v4506, %v4730
        %v4732 = vpop.f32.mrb[0].mxu0
        %4733 = vmatprep.mubr.f32.mxu0 %v3820
        %4734 = vmatmul.mubr.f32.gmra.mrb[0].mxu0 %v3819
        %v4735 = vpop.f32.mrb[0].mxu0
        %v4736 = vadd.f32 %v4511, %v4735
        %v4737 = vpop.f32.mrb[0].mxu0
        %4738 = vmatprep.mubr.f32.mxu0 %v3829
        %4739 = vmatmul.mubr.f32.gmra.mrb[0].mxu0 %v3828
        %v4740 = vpop.f32.mrb[0].mxu0
        %v4741 = vadd.f32 %v4516, %v4740
        %v4742 = vpop.f32.mrb[0].mxu0
        %4743 = vmatprep.mubr.f32.mxu0 %v3838
        %4744 = vmatmul.mubr.f32.gmra.mrb[0].mxu0 %v3837
        %v4745 = vpop.f32.mrb[0].mxu0
        %v4746 = vadd.f32 %v4521, %v4745
        %v4747 = vpop.f32.mrb[0].mxu0
        %4748 = vmatprep.mubr.f32.mxu0 %v3847
        %4749 = vmatmul.mubr.f32.gmra.mrb[0].mxu0 %v3846
        %v4750 = vpop.f32.mrb[0].mxu0
        %v4751 = vadd.f32 %v4526, %v4750
        %v4752 = vpop.f32.mrb[0].mxu0
        %4753 = vmatprep.mubr.f32.mxu0 %v3856
        %4754 = vmatmul.mubr.f32.gmra.mrb[0].mxu0 %v3855
        %v4755 = vpop.f32.mrb[0].mxu0
        %v4756 = vadd.f32 %v4531, %v4755
        %v4757 = vpop.f32.mrb[0].mxu0
        %4758 = vmatprep.mubr.f32.mxu0 %v3865
        %4759 = vmatmul.mubr.f32.gmra.mrb[0].mxu0 %v3864
        %v4760 = vpop.f32.mrb[0].mxu0
        %v4761 = vadd.f32 %v4536, %v4760
        %v4762 = vpop.f32.mrb[0].mxu0
        %4763 = vmatprep.mubr.f32.mxu0 %v3874
        %4764 = vmatmul.mubr.f32.gmra.mrb[0].mxu0 %v3873
        %v4765 = vpop.f32.mrb[0].mxu0
        %v4766 = vadd.f32 %v4541, %v4765
        %v4767 = vpop.f32.mrb[0].mxu0
        %4768 = vmatprep.mubr.f32.mxu0 %v3883
        %4769 = vmatmul.mubr.f32.gmra.mrb[0].mxu0 %v3882
        %v4770 = vpop.f32.mrb[0].mxu0
        %v4771 = vadd.f32 %v4546, %v4770
        %v4772 = vpop.f32.mrb[0].mxu0
        %4773 = vmatprep.mubr.f32.mxu0 %v3892
        %4774 = vmatmul.mubr.f32.gmra.mrb[0].mxu0 %v3891
        %v4775 = vpop.f32.mrb[0].mxu0
        %v4776 = vadd.f32 %v4551, %v4775
        %v4777 = vpop.f32.mrb[0].mxu0
        %4778 = vmatprep.mubr.f32.mxu0 %v3901
        %4779 = vmatmul.mubr.f32.gmra.mrb[0].mxu0 %v3900
        %v4780 = vpop.f32.mrb[0].mxu0
        %v4781 = vadd.f32 %v4556, %v4780
        %v4782 = vpop.f32.mrb[0].mxu0
        %4783 = vmatprep.mubr.f32.mxu0 %v3910
        %4784 = vmatmul.mubr.f32.gmra.mrb[0].mxu0 %v3909
        %v4785 = vpop.f32.mrb[0].mxu0
        %v4786 = vadd.f32 %v4561, %v4785
        %v4787 = vpop.f32.mrb[0].mxu0
        %4788 = vmatprep.mubr.f32.mxu0 %v3919
        %4789 = vmatmul.mubr.f32.gmra.mrb[0].mxu0 %v3918
        %v4790 = vpop.f32.mrb[0].mxu0
        %v4791 = vadd.f32 %v4566, %v4790
        %v4792 = vpop.f32.mrb[0].mxu0
        %4793 = vmatprep.mubr.f32.mxu0 %v3928
        %4794 = vmatmul.mubr.f32.gmra.mrb[0].mxu0 %v3927
        %v4795 = vpop.f32.mrb[0].mxu0
        %v4796 = vadd.f32 %v4571, %v4795
        %v4797 = vpop.f32.mrb[0].mxu0
        %4798 = vmatprep.mubr.f32.mxu0 %v3937
        %4799 = vmatmul.mubr.f32.gmra.mrb[0].mxu0 %v3936
        %v4800 = vpop.f32.mrb[0].mxu0
        %v4801 = vadd.f32 %v4576, %v4800
        %v4802 = vpop.f32.mrb[0].mxu0
        %4803 = vmatprep.mubr.f32.mxu0 %v3946
        %4804 = vmatmul.mubr.f32.gmra.mrb[0].mxu0 %v3945
        %v4805 = vpop.f32.mrb[0].mxu0
        %v4806 = vadd.f32 %v4581, %v4805
        %v4807 = vpop.f32.mrb[0].mxu0
        %4808 = vmatprep.mubr.f32.mxu0 %v3955
        %4809 = vmatmul.mubr.f32.gmra.mrb[0].mxu0 %v3954
        %v4810 = vpop.f32.mrb[0].mxu0
        %v4811 = vadd.f32 %v4586, %v4810
        %v4812 = vpop.f32.mrb[0].mxu0
        %4813 = vmatprep.mubr.f32.mxu0 %v3964
        %4814 = vmatmul.mubr.f32.gmra.mrb[0].mxu0 %v3963
        %v4815 = vpop.f32.mrb[0].mxu0
        %v4816 = vadd.f32 %v4591, %v4815
        %v4817 = vpop.f32.mrb[0].mxu0
        %4818 = vdwg.mxu0
        %4819 = vmatprep.subr.mxu0 0.0
        %4820 = vmatpush1.msra.mxu0 %v4064
        %4821 = vmatprep.subr.mxu0 0.0
        %4822 = vmatpush1.msra.mxu0 %v4065
        %4823 = vmatprep.subr.mxu0 0.0
        %4824 = vmatpush1.msra.mxu0 %v4066
        %4825 = vmatprep.subr.mxu0 0.0
        %4826 = vmatpush1.msra.mxu0 %v4067
        %4827 = vmatprep.subr.mxu0 0.0
        %4828 = vmatpush1.msra.mxu0 %v4068
        %4829 = vmatprep.subr.mxu0 0.0
        %4830 = vmatpush1.msra.mxu0 %v4069
        %4831 = vmatprep.subr.mxu0 0.0
        %4832 = vmatpush1.msra.mxu0 %v4070
        %4833 = vmatprep.subr.mxu0 0.0
        %4834 = vmatpush1.msra.mxu0 %v4071
        %4835 = vmatprep.subr.mxu0 0.0
        %4836 = vmatpush1.msra.mxu0 %v4072
        %4837 = vmatprep.subr.mxu0 0.0
        %4838 = vmatpush1.msra.mxu0 %v4073
        %4839 = vmatprep.subr.mxu0 0.0
        %4840 = vmatpush1.msra.mxu0 %v4074
        %4841 = vmatprep.subr.mxu0 0.0
        %4842 = vmatpush1.msra.mxu0 %v4075
        %4843 = vmatprep.subr.mxu0 0.0
        %4844 = vmatpush1.msra.mxu0 %v4076
        %4845 = vmatprep.subr.mxu0 0.0
        %4846 = vmatpush1.msra.mxu0 %v4077
        %4847 = vmatprep.subr.mxu0 0.0
        %4848 = vmatpush1.msra.mxu0 %v4078
        %4849 = vmatprep.subr.mxu0 0.0
        %4850 = vmatpush1.msra.mxu0 %v4079
        %4851 = vmatprep.subr.mxu0 0.0
        %4852 = vmatpush1.msra.mxu0 %v4080
        %4853 = vmatprep.subr.mxu0 0.0
        %4854 = vmatpush1.msra.mxu0 %v4081
        %4855 = vmatprep.subr.mxu0 0.0
        %4856 = vmatpush1.msra.mxu0 %v4082
        %4857 = vmatprep.subr.mxu0 0.0
        %4858 = vmatpush1.msra.mxu0 %v4083
        %4859 = vmatprep.subr.mxu0 0.0
        %4860 = vmatpush1.msra.mxu0 %v4084
        %4861 = vmatprep.subr.mxu0 0.0
        %4862 = vmatpush1.msra.mxu0 %v4085
        %4863 = vmatprep.subr.mxu0 0.0
        %4864 = vmatpush1.msra.mxu0 %v4086
        %4865 = vmatprep.subr.mxu0 0.0
        %4866 = vmatpush1.msra.mxu0 %v4087
        %4867 = vmatprep.subr.mxu0 0.0
        %4868 = vmatpush1.msra.mxu0 %v4088
        %4869 = vmatprep.subr.mxu0 0.0
        %4870 = vmatpush1.msra.mxu0 %v4089
        %4871 = vmatprep.subr.mxu0 0.0
        %4872 = vmatpush1.msra.mxu0 %v4090
        %4873 = vmatprep.subr.mxu0 0.0
        %4874 = vmatpush1.msra.mxu0 %v4091
        %4875 = vmatprep.subr.mxu0 0.0
        %4876 = vmatpush1.msra.mxu0 %v4092
        %4877 = vmatprep.subr.mxu0 0.0
        %4878 = vmatpush1.msra.mxu0 %v4093
        %4879 = vmatprep.subr.mxu0 0.0
        %4880 = vmatpush1.msra.mxu0 %v4094
        %4881 = vmatprep.subr.mxu0 0.0
        %4882 = vmatpush1.msra.mxu0 %v4095
        %4883 = vmatprep.mubr.f32.mxu0 %v3687
        %4884 = vmatmul.mubr.f32.gmra.mrb[0].mxu0 %v3686
        %v4885 = vpop.f32.mrb[0].mxu0
        %v4886 = vadd.f32 %v4661, %v4885
        %v4887 = vpop.f32.mrb[0].mxu0
        %4888 = vmatprep.mubr.f32.mxu0 %v3696
        %4889 = vmatmul.mubr.f32.gmra.mrb[0].mxu0 %v3695
        %v4890 = vpop.f32.mrb[0].mxu0
        %v4891 = vadd.f32 %v4666, %v4890
        %v4892 = vpop.f32.mrb[0].mxu0
        %4893 = vmatprep.mubr.f32.mxu0 %v3705
        %4894 = vmatmul.mubr.f32.gmra.mrb[0].mxu0 %v3704
        %v4895 = vpop.f32.mrb[0].mxu0
        %v4896 = vadd.f32 %v4671, %v4895
        %v4897 = vpop.f32.mrb[0].mxu0
        %4898 = vmatprep.mubr.f32.mxu0 %v3714
        %4899 = vmatmul.mubr.f32.gmra.mrb[0].mxu0 %v3713
        %v4900 = vpop.f32.mrb[0].mxu0
        %v4901 = vadd.f32 %v4676, %v4900
        %v4902 = vpop.f32.mrb[0].mxu0
        %4903 = vmatprep.mubr.f32.mxu0 %v3723
        %4904 = vmatmul.mubr.f32.gmra.mrb[0].mxu0 %v3722
        %v4905 = vpop.f32.mrb[0].mxu0
        %v4906 = vadd.f32 %v4681, %v4905
        %v4907 = vpop.f32.mrb[0].mxu0
        %4908 = vmatprep.mubr.f32.mxu0 %v3732
        %4909 = vmatmul.mubr.f32.gmra.mrb[0].mxu0 %v3731
        %v4910 = vpop.f32.mrb[0].mxu0
        %v4911 = vadd.f32 %v4686, %v4910
        %v4912 = vpop.f32.mrb[0].mxu0
        %4913 = vmatprep.mubr.f32.mxu0 %v3741
        %4914 = vmatmul.mubr.f32.gmra.mrb[0].mxu0 %v3740
        %v4915 = vpop.f32.mrb[0].mxu0
        %v4916 = vadd.f32 %v4691, %v4915
        %v4917 = vpop.f32.mrb[0].mxu0
        %4918 = vmatprep.mubr.f32.mxu0 %v3750
        %4919 = vmatmul.mubr.f32.gmra.mrb[0].mxu0 %v3749
        %v4920 = vpop.f32.mrb[0].mxu0
        %v4921 = vadd.f32 %v4696, %v4920
        %v4922 = vpop.f32.mrb[0].mxu0
        %4923 = vmatprep.mubr.f32.mxu0 %v3759
        %4924 = vmatmul.mubr.f32.gmra.mrb[0].mxu0 %v3758
        %v4925 = vpop.f32.mrb[0].mxu0
        %v4926 = vadd.f32 %v4701, %v4925
        %v4927 = vpop.f32.mrb[0].mxu0
        %4928 = vmatprep.mubr.f32.mxu0 %v3768
        %4929 = vmatmul.mubr.f32.gmra.mrb[0].mxu0 %v3767
        %v4930 = vpop.f32.mrb[0].mxu0
        %v4931 = vadd.f32 %v4706, %v4930
        %v4932 = vpop.f32.mrb[0].mxu0
        %4933 = vmatprep.mubr.f32.mxu0 %v3777
        %4934 = vmatmul.mubr.f32.gmra.mrb[0].mxu0 %v3776
        %v4935 = vpop.f32.mrb[0].mxu0
        %v4936 = vadd.f32 %v4711, %v4935
        %v4937 = vpop.f32.mrb[0].mxu0
        %4938 = vmatprep.mubr.f32.mxu0 %v3786
        %4939 = vmatmul.mubr.f32.gmra.mrb[0].mxu0 %v3785
        %v4940 = vpop.f32.mrb[0].mxu0
        %v4941 = vadd.f32 %v4716, %v4940
        %v4942 = vpop.f32.mrb[0].mxu0
        %4943 = vmatprep.mubr.f32.mxu0 %v3795
        %4944 = vmatmul.mubr.f32.gmra.mrb[0].mxu0 %v3794
        %v4945 = vpop.f32.mrb[0].mxu0
        %v4946 = vadd.f32 %v4721, %v4945
        %v4947 = vpop.f32.mrb[0].mxu0
        %4948 = vmatprep.mubr.f32.mxu0 %v3804
        %4949 = vmatmul.mubr.f32.gmra.mrb[0].mxu0 %v3803
        %v4950 = vpop.f32.mrb[0].mxu0
        %v4951 = vadd.f32 %v4726, %v4950
        %v4952 = vpop.f32.mrb[0].mxu0
        %4953 = vmatprep.mubr.f32.mxu0 %v3813
        %4954 = vmatmul.mubr.f32.gmra.mrb[0].mxu0 %v3812
        %v4955 = vpop.f32.mrb[0].mxu0
        %v4956 = vadd.f32 %v4731, %v4955
        %v4957 = vpop.f32.mrb[0].mxu0
        %4958 = vmatprep.mubr.f32.mxu0 %v3822
        %4959 = vmatmul.mubr.f32.gmra.mrb[0].mxu0 %v3821
        %v4960 = vpop.f32.mrb[0].mxu0
        %v4961 = vadd.f32 %v4736, %v4960
        %v4962 = vpop.f32.mrb[0].mxu0
        %4963 = vmatprep.mubr.f32.mxu0 %v3831
        %4964 = vmatmul.mubr.f32.gmra.mrb[0].mxu0 %v3830
        %v4965 = vpop.f32.mrb[0].mxu0
        %v4966 = vadd.f32 %v4741, %v4965
        %v4967 = vpop.f32.mrb[0].mxu0
        %4968 = vmatprep.mubr.f32.mxu0 %v3840
        %4969 = vmatmul.mubr.f32.gmra.mrb[0].mxu0 %v3839
        %v4970 = vpop.f32.mrb[0].mxu0
        %v4971 = vadd.f32 %v4746, %v4970
        %v4972 = vpop.f32.mrb[0].mxu0
        %4973 = vmatprep.mubr.f32.mxu0 %v3849
        %4974 = vmatmul.mubr.f32.gmra.mrb[0].mxu0 %v3848
        %v4975 = vpop.f32.mrb[0].mxu0
        %v4976 = vadd.f32 %v4751, %v4975
        %v4977 = vpop.f32.mrb[0].mxu0
        %4978 = vmatprep.mubr.f32.mxu0 %v3858
        %4979 = vmatmul.mubr.f32.gmra.mrb[0].mxu0 %v3857
        %v4980 = vpop.f32.mrb[0].mxu0
        %v4981 = vadd.f32 %v4756, %v4980
        %v4982 = vpop.f32.mrb[0].mxu0
        %4983 = vmatprep.mubr.f32.mxu0 %v3867
        %4984 = vmatmul.mubr.f32.gmra.mrb[0].mxu0 %v3866
        %v4985 = vpop.f32.mrb[0].mxu0
        %v4986 = vadd.f32 %v4761, %v4985
        %v4987 = vpop.f32.mrb[0].mxu0
        %4988 = vmatprep.mubr.f32.mxu0 %v3876
        %4989 = vmatmul.mubr.f32.gmra.mrb[0].mxu0 %v3875
        %v4990 = vpop.f32.mrb[0].mxu0
        %v4991 = vadd.f32 %v4766, %v4990
        %v4992 = vpop.f32.mrb[0].mxu0
        %4993 = vmatprep.mubr.f32.mxu0 %v3885
        %4994 = vmatmul.mubr.f32.gmra.mrb[0].mxu0 %v3884
        %v4995 = vpop.f32.mrb[0].mxu0
        %v4996 = vadd.f32 %v4771, %v4995
        %v4997 = vpop.f32.mrb[0].mxu0
        %4998 = vmatprep.mubr.f32.mxu0 %v3894
        %4999 = vmatmul.mubr.f32.gmra.mrb[0].mxu0 %v3893
        %v5000 = vpop.f32.mrb[0].mxu0
        %v5001 = vadd.f32 %v4776, %v5000
        %v5002 = vpop.f32.mrb[0].mxu0
        %5003 = vmatprep.mubr.f32.mxu0 %v3903
        %5004 = vmatmul.mubr.f32.gmra.mrb[0].mxu0 %v3902
        %v5005 = vpop.f32.mrb[0].mxu0
        %v5006 = vadd.f32 %v4781, %v5005
        %v5007 = vpop.f32.mrb[0].mxu0
        %5008 = vmatprep.mubr.f32.mxu0 %v3912
        %5009 = vmatmul.mubr.f32.gmra.mrb[0].mxu0 %v3911
        %v5010 = vpop.f32.mrb[0].mxu0
        %v5011 = vadd.f32 %v4786, %v5010
        %v5012 = vpop.f32.mrb[0].mxu0
        %5013 = vmatprep.mubr.f32.mxu0 %v3921
        %5014 = vmatmul.mubr.f32.gmra.mrb[0].mxu0 %v3920
        %v5015 = vpop.f32.mrb[0].mxu0
        %v5016 = vadd.f32 %v4791, %v5015
        %v5017 = vpop.f32.mrb[0].mxu0
        %5018 = vmatprep.mubr.f32.mxu0 %v3930
        %5019 = vmatmul.mubr.f32.gmra.mrb[0].mxu0 %v3929
        %v5020 = vpop.f32.mrb[0].mxu0
        %v5021 = vadd.f32 %v4796, %v5020
        %v5022 = vpop.f32.mrb[0].mxu0
        %5023 = vmatprep.mubr.f32.mxu0 %v3939
        %5024 = vmatmul.mubr.f32.gmra.mrb[0].mxu0 %v3938
        %v5025 = vpop.f32.mrb[0].mxu0
        %v5026 = vadd.f32 %v4801, %v5025
        %v5027 = vpop.f32.mrb[0].mxu0
        %5028 = vmatprep.mubr.f32.mxu0 %v3948
        %5029 = vmatmul.mubr.f32.gmra.mrb[0].mxu0 %v3947
        %v5030 = vpop.f32.mrb[0].mxu0
        %v5031 = vadd.f32 %v4806, %v5030
        %v5032 = vpop.f32.mrb[0].mxu0
        %5033 = vmatprep.mubr.f32.mxu0 %v3957
        %5034 = vmatmul.mubr.f32.gmra.mrb[0].mxu0 %v3956
        %v5035 = vpop.f32.mrb[0].mxu0
        %v5036 = vadd.f32 %v4811, %v5035
        %v5037 = vpop.f32.mrb[0].mxu0
        %5038 = vmatprep.mubr.f32.mxu0 %v3966
        %5039 = vmatmul.mubr.f32.gmra.mrb[0].mxu0 %v3965
        %v5040 = vpop.f32.mrb[0].mxu0
        %v5041 = vadd.f32 %v4816, %v5040
        %v5042 = vpop.f32.mrb[0].mxu0
        %5043 = vdwg.mxu0
        %5044 = vmatprep.subr.mxu0 0.0
        %5045 = vmatpush1.msra.mxu0 %v4096
        %5046 = vmatprep.subr.mxu0 0.0
        %5047 = vmatpush1.msra.mxu0 %v4097
        %5048 = vmatprep.subr.mxu0 0.0
        %5049 = vmatpush1.msra.mxu0 %v4098
        %5050 = vmatprep.subr.mxu0 0.0
        %5051 = vmatpush1.msra.mxu0 %v4099
        %5052 = vmatprep.subr.mxu0 0.0
        %5053 = vmatpush1.msra.mxu0 %v4100
        %5054 = vmatprep.subr.mxu0 0.0
        %5055 = vmatpush1.msra.mxu0 %v4101
        %5056 = vmatprep.subr.mxu0 0.0
        %5057 = vmatpush1.msra.mxu0 %v4102
        %5058 = vmatprep.subr.mxu0 0.0
        %5059 = vmatpush1.msra.mxu0 %v4103
        %5060 = vmatprep.subr.mxu0 0.0
        %5061 = vmatpush1.msra.mxu0 %v4104
        %5062 = vmatprep.subr.mxu0 0.0
        %5063 = vmatpush1.msra.mxu0 %v4105
        %5064 = vmatprep.subr.mxu0 0.0
        %5065 = vmatpush1.msra.mxu0 %v4106
        %5066 = vmatprep.subr.mxu0 0.0
        %5067 = vmatpush1.msra.mxu0 %v4107
        %5068 = vmatprep.subr.mxu0 0.0
        %5069 = vmatpush1.msra.mxu0 %v4108
        %5070 = vmatprep.subr.mxu0 0.0
        %5071 = vmatpush1.msra.mxu0 %v4109
        %5072 = vmatprep.subr.mxu0 0.0
        %5073 = vmatpush1.msra.mxu0 %v4110
        %5074 = vmatprep.subr.mxu0 0.0
        %5075 = vmatpush1.msra.mxu0 %v4111
        %5076 = vmatprep.subr.mxu0 0.0
        %5077 = vmatpush1.msra.mxu0 0.0
        %5078 = vmatprep.subr.mxu0 0.0
        %5079 = vmatpush1.msra.mxu0 0.0
        %5080 = vmatprep.subr.mxu0 0.0
        %5081 = vmatpush1.msra.mxu0 0.0
        %5082 = vmatprep.subr.mxu0 0.0
        %5083 = vmatpush1.msra.mxu0 0.0
        %5084 = vmatprep.subr.mxu0 0.0
        %5085 = vmatpush1.msra.mxu0 0.0
        %5086 = vmatprep.subr.mxu0 0.0
        %5087 = vmatpush1.msra.mxu0 0.0
        %5088 = vmatprep.subr.mxu0 0.0
        %5089 = vmatpush1.msra.mxu0 0.0
        %5090 = vmatprep.subr.mxu0 0.0
        %5091 = vmatpush1.msra.mxu0 0.0
        %5092 = vmatprep.subr.mxu0 0.0
        %5093 = vmatpush1.msra.mxu0 0.0
        %5094 = vmatprep.subr.mxu0 0.0
        %5095 = vmatpush1.msra.mxu0 0.0
        %5096 = vmatprep.subr.mxu0 0.0
        %5097 = vmatpush1.msra.mxu0 0.0
        %5098 = vmatprep.subr.mxu0 0.0
        %5099 = vmatpush1.msra.mxu0 0.0
        %5100 = vmatprep.subr.mxu0 0.0
        %5101 = vmatpush1.msra.mxu0 0.0
        %5102 = vmatprep.subr.mxu0 0.0
        %5103 = vmatpush1.msra.mxu0 0.0
        %5104 = vmatprep.subr.mxu0 0.0
        %5105 = vmatpush1.msra.mxu0 0.0
        %5106 = vmatprep.subr.mxu0 0.0
        %5107 = vmatpush1.msra.mxu0 0.0
        %5108 = vmatprep.mubr.f32.mxu0 0.0
        %5109 = vmatmul.mubr.f32.gmra.mrb[0].mxu0 %v3688
        %v5110 = vpop.f32.mrb[0].mxu0
        %v5111 = vadd.f32 %v4886, %v5110
        %v5112 = vpop.f32.mrb[0].mxu0
        %5113 = vmatprep.mubr.f32.mxu0 0.0
        %5114 = vmatmul.mubr.f32.gmra.mrb[0].mxu0 %v3697
        %v5115 = vpop.f32.mrb[0].mxu0
        %v5116 = vadd.f32 %v4891, %v5115
        %v5117 = vpop.f32.mrb[0].mxu0
        %5118 = vmatprep.mubr.f32.mxu0 0.0
        %5119 = vmatmul.mubr.f32.gmra.mrb[0].mxu0 %v3706
        %v5120 = vpop.f32.mrb[0].mxu0
        %v5121 = vadd.f32 %v4896, %v5120
        %v5122 = vpop.f32.mrb[0].mxu0
        %5123 = vmatprep.mubr.f32.mxu0 0.0
        %5124 = vmatmul.mubr.f32.gmra.mrb[0].mxu0 %v3715
        %v5125 = vpop.f32.mrb[0].mxu0
        %v5126 = vadd.f32 %v4901, %v5125
        %v5127 = vpop.f32.mrb[0].mxu0
        %5128 = vmatprep.mubr.f32.mxu0 0.0
        %5129 = vmatmul.mubr.f32.gmra.mrb[0].mxu0 %v3724
        %v5130 = vpop.f32.mrb[0].mxu0
        %v5131 = vadd.f32 %v4906, %v5130
        %v5132 = vpop.f32.mrb[0].mxu0
        %5133 = vmatprep.mubr.f32.mxu0 0.0
        %5134 = vmatmul.mubr.f32.gmra.mrb[0].mxu0 %v3733
        %v5135 = vpop.f32.mrb[0].mxu0
        %v5136 = vadd.f32 %v4911, %v5135
        %v5137 = vpop.f32.mrb[0].mxu0
        %5138 = vmatprep.mubr.f32.mxu0 0.0
        %5139 = vmatmul.mubr.f32.gmra.mrb[0].mxu0 %v3742
        %v5140 = vpop.f32.mrb[0].mxu0
        %v5141 = vadd.f32 %v4916, %v5140
        %v5142 = vpop.f32.mrb[0].mxu0
        %5143 = vmatprep.mubr.f32.mxu0 0.0
        %5144 = vmatmul.mubr.f32.gmra.mrb[0].mxu0 %v3751
        %v5145 = vpop.f32.mrb[0].mxu0
        %v5146 = vadd.f32 %v4921, %v5145
        %v5147 = vpop.f32.mrb[0].mxu0
        %5148 = vmatprep.mubr.f32.mxu0 0.0
        %5149 = vmatmul.mubr.f32.gmra.mrb[0].mxu0 %v3760
        %v5150 = vpop.f32.mrb[0].mxu0
        %v5151 = vadd.f32 %v4926, %v5150
        %v5152 = vpop.f32.mrb[0].mxu0
        %5153 = vmatprep.mubr.f32.mxu0 0.0
        %5154 = vmatmul.mubr.f32.gmra.mrb[0].mxu0 %v3769
        %v5155 = vpop.f32.mrb[0].mxu0
        %v5156 = vadd.f32 %v4931, %v5155
        %v5157 = vpop.f32.mrb[0].mxu0
        %5158 = vmatprep.mubr.f32.mxu0 0.0
        %5159 = vmatmul.mubr.f32.gmra.mrb[0].mxu0 %v3778
        %v5160 = vpop.f32.mrb[0].mxu0
        %v5161 = vadd.f32 %v4936, %v5160
        %v5162 = vpop.f32.mrb[0].mxu0
        %5163 = vmatprep.mubr.f32.mxu0 0.0
        %5164 = vmatmul.mubr.f32.gmra.mrb[0].mxu0 %v3787
        %v5165 = vpop.f32.mrb[0].mxu0
        %v5166 = vadd.f32 %v4941, %v5165
        %v5167 = vpop.f32.mrb[0].mxu0
        %5168 = vmatprep.mubr.f32.mxu0 0.0
        %5169 = vmatmul.mubr.f32.gmra.mrb[0].mxu0 %v3796
        %v5170 = vpop.f32.mrb[0].mxu0
        %v5171 = vadd.f32 %v4946, %v5170
        %v5172 = vpop.f32.mrb[0].mxu0
        %5173 = vmatprep.mubr.f32.mxu0 0.0
        %5174 = vmatmul.mubr.f32.gmra.mrb[0].mxu0 %v3805
        %v5175 = vpop.f32.mrb[0].mxu0
        %v5176 = vadd.f32 %v4951, %v5175
        %v5177 = vpop.f32.mrb[0].mxu0
        %5178 = vmatprep.mubr.f32.mxu0 0.0
        %5179 = vmatmul.mubr.f32.gmra.mrb[0].mxu0 %v3814
        %v5180 = vpop.f32.mrb[0].mxu0
        %v5181 = vadd.f32 %v4956, %v5180
        %v5182 = vpop.f32.mrb[0].mxu0
        %5183 = vmatprep.mubr.f32.mxu0 0.0
        %5184 = vmatmul.mubr.f32.gmra.mrb[0].mxu0 %v3823
        %v5185 = vpop.f32.mrb[0].mxu0
        %v5186 = vadd.f32 %v4961, %v5185
        %v5187 = vpop.f32.mrb[0].mxu0
        %5188 = vmatprep.mubr.f32.mxu0 0.0
        %5189 = vmatmul.mubr.f32.gmra.mrb[0].mxu0 %v3832
        %v5190 = vpop.f32.mrb[0].mxu0
        %v5191 = vadd.f32 %v4966, %v5190
        %v5192 = vpop.f32.mrb[0].mxu0
        %5193 = vmatprep.mubr.f32.mxu0 0.0
        %5194 = vmatmul.mubr.f32.gmra.mrb[0].mxu0 %v3841
        %v5195 = vpop.f32.mrb[0].mxu0
        %v5196 = vadd.f32 %v4971, %v5195
        %v5197 = vpop.f32.mrb[0].mxu0
        %5198 = vmatprep.mubr.f32.mxu0 0.0
        %5199 = vmatmul.mubr.f32.gmra.mrb[0].mxu0 %v3850
        %v5200 = vpop.f32.mrb[0].mxu0
        %v5201 = vadd.f32 %v4976, %v5200
        %v5202 = vpop.f32.mrb[0].mxu0
        %5203 = vmatprep.mubr.f32.mxu0 0.0
        %5204 = vmatmul.mubr.f32.gmra.mrb[0].mxu0 %v3859
        %v5205 = vpop.f32.mrb[0].mxu0
        %v5206 = vadd.f32 %v4981, %v5205
        %v5207 = vpop.f32.mrb[0].mxu0
        %5208 = vmatprep.mubr.f32.mxu0 0.0
        %5209 = vmatmul.mubr.f32.gmra.mrb[0].mxu0 %v3868
        %v5210 = vpop.f32.mrb[0].mxu0
        %v5211 = vadd.f32 %v4986, %v5210
        %v5212 = vpop.f32.mrb[0].mxu0
        %5213 = vmatprep.mubr.f32.mxu0 0.0
        %5214 = vmatmul.mubr.f32.gmra.mrb[0].mxu0 %v3877
        %v5215 = vpop.f32.mrb[0].mxu0
        %v5216 = vadd.f32 %v4991, %v5215
        %v5217 = vpop.f32.mrb[0].mxu0
        %5218 = vmatprep.mubr.f32.mxu0 0.0
        %5219 = vmatmul.mubr.f32.gmra.mrb[0].mxu0 %v3886
        %v5220 = vpop.f32.mrb[0].mxu0
        %v5221 = vadd.f32 %v4996, %v5220
        %v5222 = vpop.f32.mrb[0].mxu0
        %5223 = vmatprep.mubr.f32.mxu0 0.0
        %5224 = vmatmul.mubr.f32.gmra.mrb[0].mxu0 %v3895
        %v5225 = vpop.f32.mrb[0].mxu0
        %v5226 = vadd.f32 %v5001, %v5225
        %v5227 = vpop.f32.mrb[0].mxu0
        %5228 = vmatprep.mubr.f32.mxu0 0.0
        %5229 = vmatmul.mubr.f32.gmra.mrb[0].mxu0 %v3904
        %v5230 = vpop.f32.mrb[0].mxu0
        %v5231 = vadd.f32 %v5006, %v5230
        %v5232 = vpop.f32.mrb[0].mxu0
        %5233 = vmatprep.mubr.f32.mxu0 0.0
        %5234 = vmatmul.mubr.f32.gmra.mrb[0].mxu0 %v3913
        %v5235 = vpop.f32.mrb[0].mxu0
        %v5236 = vadd.f32 %v5011, %v5235
        %v5237 = vpop.f32.mrb[0].mxu0
        %5238 = vmatprep.mubr.f32.mxu0 0.0
        %5239 = vmatmul.mubr.f32.gmra.mrb[0].mxu0 %v3922
        %v5240 = vpop.f32.mrb[0].mxu0
        %v5241 = vadd.f32 %v5016, %v5240
        %v5242 = vpop.f32.mrb[0].mxu0
        %5243 = vmatprep.mubr.f32.mxu0 0.0
        %5244 = vmatmul.mubr.f32.gmra.mrb[0].mxu0 %v3931
        %v5245 = vpop.f32.mrb[0].mxu0
        %v5246 = vadd.f32 %v5021, %v5245
        %v5247 = vpop.f32.mrb[0].mxu0
        %5248 = vmatprep.mubr.f32.mxu0 0.0
        %5249 = vmatmul.mubr.f32.gmra.mrb[0].mxu0 %v3940
        %v5250 = vpop.f32.mrb[0].mxu0
        %v5251 = vadd.f32 %v5026, %v5250
        %v5252 = vpop.f32.mrb[0].mxu0
        %5253 = vmatprep.mubr.f32.mxu0 0.0
        %5254 = vmatmul.mubr.f32.gmra.mrb[0].mxu0 %v3949
        %v5255 = vpop.f32.mrb[0].mxu0
        %v5256 = vadd.f32 %v5031, %v5255
        %v5257 = vpop.f32.mrb[0].mxu0
        %5258 = vmatprep.mubr.f32.mxu0 0.0
        %5259 = vmatmul.mubr.f32.gmra.mrb[0].mxu0 %v3958
        %v5260 = vpop.f32.mrb[0].mxu0
        %v5261 = vadd.f32 %v5036, %v5260
        %v5262 = vpop.f32.mrb[0].mxu0
        %5263 = vmatprep.mubr.f32.mxu0 0.0
        %5264 = vmatmul.mubr.f32.gmra.mrb[0].mxu0 %v3967
        %v5265 = vpop.f32.mrb[0].mxu0
        %v5266 = vadd.f32 %v5041, %v5265
        %v5267 = vpop.f32.mrb[0].mxu0
        %5268 = vdwg.mxu0
        %5269 = vst [vmem:[%s340] sm:$0xff] %v5111
        %5270 = vst [vmem:[%s340 + $0x8] sm:$0xff] %v5116
        %5271 = vst [vmem:[%s340 + $0x10] sm:$0xff] %v5121
        %5272 = vst [vmem:[%s340 + $0x18] sm:$0xff] %v5126
        %5273 = vst [vmem:[%s340 + $0x20] sm:$0xff] %v5131
        %5274 = vst [vmem:[%s340 + $0x28] sm:$0xff] %v5136
        %5275 = vst [vmem:[%s340 + $0x30] sm:$0xff] %v5141
        %5276 = vst [vmem:[%s340 + $0x38] sm:$0xff] %v5146
        %5277 = vst [vmem:[%s340 + $0x40] sm:$0xff] %v5151
        %5278 = vst [vmem:[%s340 + $0x48] sm:$0xff] %v5156
        %5279 = vst [vmem:[%s340 + $0x50] sm:$0xff] %v5161
        %5280 = vst [vmem:[%s340 + $0x58] sm:$0xff] %v5166
        %5281 = vst [vmem:[%s340 + $0x60] sm:$0xff] %v5171
        %5282 = vst [vmem:[%s340 + $0x68] sm:$0xff] %v5176
        %5283 = vst [vmem:[%s340 + $0x70] sm:$0xff] %v5181
        %5284 = vst [vmem:[%s340 + $0x78] sm:$0xff] %v5186
        %5285 = vst [vmem:[%s340 + $0x80] sm:$0xff] %v5191
        %5286 = vst [vmem:[%s340 + $0x88] sm:$0xff] %v5196
        %5287 = vst [vmem:[%s340 + $0x90] sm:$0xff] %v5201
        %5288 = vst [vmem:[%s340 + $0x98] sm:$0xff] %v5206
        %5289 = vst [vmem:[%s340 + $0xa0] sm:$0xff] %v5211
        %5290 = vst [vmem:[%s340 + $0xa8] sm:$0xff] %v5216
        %5291 = vst [vmem:[%s340 + $0xb0] sm:$0xff] %v5221
        %5292 = vst [vmem:[%s340 + $0xb8] sm:$0xff] %v5226
        %5293 = vst [vmem:[%s340 + $0xc0] sm:$0xff] %v5231
        %5294 = vst [vmem:[%s340 + $0xc8] sm:$0xff] %v5236
        %5295 = vst [vmem:[%s340 + $0xd0] sm:$0xff] %v5241
        %5296 = vst [vmem:[%s340 + $0xd8] sm:$0xff] %v5246
        %5297 = vst [vmem:[%s340 + $0xe0] sm:$0xff] %v5251
        %5298 = vst [vmem:[%s340 + $0xe8] sm:$0xff] %v5256
        %5299 = vst [vmem:[%s340 + $0xf0] sm:$0xff] %v5261
        %5300 = vst [vmem:[%s340 + $0xf8] sm:$0xff] %v5266
        %s5301 = sand.u32 %s186, 1
        %s5302 = scalar_lea.sflag [#allocation9], %s5301
        %s5303 = sand.u32 %s186, 1
        %s5304 = smul.addr %s5303, 256
        %s5305 = scalar_lea.vmem [#allocation15], %s5304
        // Predicated region
        $region65: #{tpu_custom_call.1} parent=47 // pred_check
          %p5306 = pneg %p196
        $region66: #{tpu_custom_call.1} parent=47 // pred_check_branch
          %5308 = sbr.rel (%p5306) target = $region68
        $region67: #{tpu_custom_call.1} parent=47 // pred_region
          %s5310 = ssub.s32 4096, 4096
          %5311 = vsyncadd %s5302, %s5310
          %s5312 = smul.addr %s26, 32
          %s5313 = smul.addr %s5312, 128
          %s5314 = scalar_lea.hbm %s7, %s5313
          %s5315 = sshll.u32 %s5305, 4
          %s5316 = int_to_ptr.vmem [resolvable:$true] %s5315
          %5321 = dma.vmem_to_hbm [thread:$0]  %s5316, 4096, %s5314, %s5302, 128, 128, 8
        $region68: #{tpu_custom_call.1} parent=47 // pred_fallthru
          _
      $region48: #{tpu_custom_call.1} parent=5 // pred_fallthru
        _
      %p5322 = scmp.le.s32.totalorder 2, %s21
      // Predicated region
      $region69: #{tpu_custom_call.1} parent=5 // pred_check
        %p5323 = pneg %p5322
      $region70: #{tpu_custom_call.1} parent=5 // pred_check_branch
        %5325 = sbr.rel (%p5323) target = $region72
      $region71: #{tpu_custom_call.1} parent=5 // pred_region
        %s5326 = ssub.s32 %s21, 2
        // Predicated region
        $region73: #{tpu_custom_call.1} parent=71 // pred_check
          %p5327 = pneg %p202
        $region74: #{tpu_custom_call.1} parent=71 // pred_check_branch
          %5329 = sbr.rel (%p5327) target = $region76
        $region75: #{tpu_custom_call.1} parent=71 // pred_region
          %s5330 = sand.u32 %s187, 1
          %s5331 = scalar_lea.sflag [#allocation9], %s5330
          %s5332 = sand.u32 %s187, 1
          %s5333 = smul.addr %s5332, 256
          %s5334 = scalar_lea.vmem [#allocation15], %s5333
          %5335 = dma.done %s5331, 4096
        $region76: #{tpu_custom_call.1} parent=71 // pred_fallthru
          _
      $region72: #{tpu_custom_call.1} parent=5 // pred_fallthru
        _
    $region6: #{tpu_custom_call.1} parent=1 // loop_footer
      %s25 = sadd.s32 1, %s21
    $region7: #{tpu_custom_call.1} parent=1 // loop_footer_branch
      %20 = sbr.rel target = $region3
    $region8: #{tpu_custom_call.1} parent=1 // loop_exit
      _
    %5336 = vsyncpa [#allocation8], 1
    %s5337 = scalar_lea.sflag [#allocation8], 1
    %5338 = vsyncpa %s5337, 1
    %5339 = vsyncpa [#allocation11], 1
    %5340 = vsyncpa [#allocation14], 1
    %5341 = vsyncpa [#allocation9], 1
    %s5342 = scalar_lea.sflag [#allocation9], 1
    %5343 = vsyncpa %s5342, 1

</llo_original>
